<compile_context>
chip_gen: v7x
topology: tpu7x:2x2x1
jax: 0.10.0
libtpu: 0.0.40
codegen_flags: <defaults>
</compile_context>

<pallas_src>
import functools
import math

import jax
import jax.numpy as jnp
import numpy as np
from jax import lax
from jax.experimental import pallas as pl
from jax.experimental.pallas import tpu as pltpu


# ---------------------------------------------------------------------------
# In-kernel math helpers
# ---------------------------------------------------------------------------
def _gelu_tanh(x):
    # tanh-approximate GELU: the transcendental runs on the EUP slot instead of
    # a VALU erf polynomial over the full (M, I) FFN activation.
    c = 0.7978845608028654  # sqrt(2/pi)
    return 0.5 * x * (1.0 + jnp.tanh(c * (x + 0.044715 * (x * x * x))))


def _layer_norm(x, w, b, eps=1e-12):
    u = jnp.mean(x, axis=-1, keepdims=True)
    s = jnp.mean((x - u) ** 2, axis=-1, keepdims=True)
    xn = (x - u) * lax.rsqrt(s + eps)          # rsqrt -> EUP slot
    return w * xn + b


# ---------------------------------------------------------------------------
# Fused ImageEncoder stack kernel: grid = (batch_tiles, n_layers)
# ---------------------------------------------------------------------------
def encoder_stack_kernel(
    x_ref,                                              # (Bt, S, H)
    wq_ref, bq_ref, wk_ref, bk_ref, wv_ref, bv_ref,     # attention (W bf16, b f32)
    ln1_w_ref, ln1_b_ref,                               # norm_img
    w1_ref, b1_ref,                                     # FCN fc     (H -> I)
    w2_ref, b2_ref,                                     # AddNorm fc (I -> H)
    ln2_w_ref, ln2_b_ref,                               # AddNorm ln
    out_ref,                                            # (Bt, S, H)
    act_ref,                                            # VMEM scratch (M, H) f32
    *, n_heads: int,
):
    Bt, S, H = x_ref.shape
    M = Bt * S
    hd = H // n_heads
    scale = 1.0 / math.sqrt(hd)
    layer = pl.program_id(1)

    # Layer 0 of each batch tile: load the residual stream into VMEM scratch.
    @pl.when(layer == 0)
    def _():
        act_ref[...] = x_ref[...].astype(jnp.float32).reshape(M, H)

    x = act_ref[...]                                    # (M, H) f32 residual stream
    xb = x.astype(jnp.bfloat16)                         # bf16 operands for the MXU

    # --- multi-head self attention (no output projection, as in the module) ---
    q = jnp.dot(xb, wq_ref[0], preferred_element_type=jnp.float32) + bq_ref[0]
    k = jnp.dot(xb, wk_ref[0], preferred_element_type=jnp.float32) + bk_ref[0]
    v = jnp.dot(xb, wv_ref[0], preferred_element_type=jnp.float32) + bv_ref[0]

    def to_heads(t):
        # (M, H) -> (n_heads*Bt, S, hd): static lane slices stacked along a NEW
        # leading batch axis (leading-dim concat is cheap), so the attention
        # matmuls below are ONE batched dot over G = n_heads*Bt rather than a
        # per-head Python loop of tiny dots.
        t3 = t.reshape(Bt, S, H)                        # leading split: free
        return jnp.concatenate(
            [t3[:, :, h * hd:(h + 1) * hd] for h in range(n_heads)], axis=0
        ).astype(jnp.bfloat16)

    qh = to_heads(q)                                    # (G, S, hd)
    kh = to_heads(k)
    vh = to_heads(v)

    scores = jnp.einsum("gqd,gkd->gqk", qh, kh,
                        preferred_element_type=jnp.float32) * scale      # (G,S,S)
    m = jnp.max(scores, axis=-1, keepdims=True)
    p = jnp.exp(scores - m)
    denom = jnp.sum(p, axis=-1, keepdims=True)
    probs = p * pl.reciprocal(denom, approx=True)       # EUP reciprocal
    # dropout(p=0.01) is identity at inference.
    ctx = jnp.einsum("gqk,gkd->gqd", probs.astype(jnp.bfloat16), vh,
                     preferred_element_type=jnp.float32)                 # (G,S,hd)

    # Merge heads back to (M, H): leading-dim slices + a single lane concat.
    att = jnp.concatenate(
        [ctx[h * Bt:(h + 1) * Bt] for h in range(n_heads)], axis=-1
    ).reshape(M, H)

    # --- norm_img: LayerNorm(att + x) ---
    att_out = _layer_norm(att + x, ln1_w_ref[0], ln1_b_ref[0])

    # --- FCN: gelu(att_out @ W1 + b1) ---
    h1 = jnp.dot(att_out.astype(jnp.bfloat16), w1_ref[0],
                 preferred_element_type=jnp.float32) + b1_ref[0]
    h1 = _gelu_tanh(h1)

    # --- AddNorm: LayerNorm(h1 @ W2 + b2 + att_out) ---
    y = jnp.dot(h1.astype(jnp.bfloat16), w2_ref[0],
                preferred_element_type=jnp.float32) + b2_ref[0]
    out = _layer_norm(y + att_out, ln2_w_ref[0], ln2_b_ref[0])

    # Carry the residual stream in f32 VMEM (never round-trips HBM between layers).
    act_ref[...] = out

    @pl.when(layer == pl.num_programs(1) - 1)
    def _():
        out_ref[...] = out.reshape(Bt, S, H).astype(out_ref.dtype)


# ---------------------------------------------------------------------------
# Wrapper: grid / BlockSpecs / VMEM budgeting
# ---------------------------------------------------------------------------
def _choose_batch_tile(B, S, target_rows=512):
    """Largest divisor Bt of B with Bt*S <= target_rows, keeping a >= 2 step
    batch grid whenever B >= 2 (so both v7x TensorCores get work)."""
    best = 1
    for bt in range(1, B + 1):
        if B % bt:
            continue
        if bt * S > target_rows:
            continue
        if B // bt >= 2 or B == 1:
            best = bt
    return best


def _vmem_limit_bytes(Bt, S, H, I, n_heads, in_bytes, out_bytes):
    """Footprint-derived VMEM limit, clamped to 80% of the generation's
    physical VMEM (~51 MiB on v7x, ~102 MiB on v5e/v6e)."""
    f32, bf16 = 4, 2
    M = Bt * S
    G = Bt * n_heads
    weights = (3 * H * H + 2 * H * I) * bf16 * 2        # layer weights, double-buffered
    vectors = (8 * H + I) * f32 * 2                     # biases + LN params
    io = (M * H) * (in_bytes + out_bytes) * 2           # x + out blocks, double-buffered
    resident = M * H * f32                              # carried activation scratch
    inter = (M * (8 * H + 2 * I)) * f32 \
        + (M * H) * 3 * bf16 \
        + (G * S * S) * (2 * f32 + bf16)                # scores / probs intermediates
    est = int((weights + vectors + io + resident + inter) * 1.3) + (4 << 20)
    try:
        cap = pltpu.get_tpu_info().vmem_capacity_bytes  # hardware-capability probe
    except Exception:
        cap = 64 << 20                                  # conservative: v7x per-TC VMEM
    return max(32 << 20, min(est, int(cap * 0.8)))


def stack_layer_params(layer_params):
    """Stack per-layer dicts into arrays with a leading layer axis."""
    return {k: jnp.stack([p[k] for p in layer_params], axis=0)
            for k in layer_params[0]}


def image_encoder(x, layer_params, *, n_heads, batch_tile=None, target_rows=512):
    """ImageEncoder forward: the whole layer stack fused into one pallas_call.

    x: (B, S, H).  layer_params: list of per-layer parameter dicts.
    """
    B, S, H = x.shape
    stacked = stack_layer_params(layer_params)
    L = stacked["wq"].shape[0]
    I = stacked["w1"].shape[-1]
    assert H % n_heads == 0
    Bt = batch_tile if batch_tile is not None else _choose_batch_tile(B, S, target_rows)
    assert B % Bt == 0

    grid = (B // Bt, L)                                 # layer axis innermost

    def wspec(shape):
        # One layer's block per grid step; index_map depends only on the layer
        # axis, so the pipeline prefetches the NEXT layer's weights while the
        # current layer computes.
        return pl.BlockSpec((1,) + shape[1:],
                            lambda b, l, _n=len(shape): (l,) + (0,) * (_n - 1))

    in_specs = [
        pl.BlockSpec((Bt, S, H), lambda b, l: (b, 0, 0)),     # x
        wspec((L, H, H)), wspec((L, 1, H)),                   # Wq, bq
        wspec((L, H, H)), wspec((L, 1, H)),                   # Wk, bk
        wspec((L, H, H)), wspec((L, 1, H)),                   # Wv, bv
        wspec((L, 1, H)), wspec((L, 1, H)),                   # ln1 w, b
        wspec((L, H, I)), wspec((L, 1, I)),                   # W1, b1
        wspec((L, I, H)), wspec((L, 1, H)),                   # W2, b2
        wspec((L, 1, H)), wspec((L, 1, H)),                   # ln2 w, b
    ]

    grid_spec = pltpu.PrefetchScalarGridSpec(
        num_scalar_prefetch=0,
        grid=grid,
        in_specs=in_specs,
        out_specs=pl.BlockSpec((Bt, S, H), lambda b, l: (b, 0, 0)),
        scratch_shapes=[pltpu.VMEM((Bt * S, H), jnp.float32)],   # residual stream
    )

    itemsize = jnp.dtype(x.dtype).itemsize
    call = pl.pallas_call(
        functools.partial(encoder_stack_kernel, n_heads=n_heads),
        out_shape=jax.ShapeDtypeStruct((B, S, H), x.dtype),
        grid_spec=grid_spec,
        compiler_params=pltpu.CompilerParams(
            dimension_semantics=("parallel", "arbitrary"),
            vmem_limit_bytes=_vmem_limit_bytes(Bt, S, H, I, n_heads,
                                               itemsize, itemsize),
        ),
    )
    return call(
        x,
        stacked["wq"], stacked["bq"],
        stacked["wk"], stacked["bk"],
        stacked["wv"], stacked["bv"],
        stacked["ln1_w"], stacked["ln1_b"],
        stacked["w1"], stacked["b1"],
        stacked["w2"], stacked["b2"],
        stacked["ln2_w"], stacked["ln2_b"],
    )


# ---------------------------------------------------------------------------
# Pure-JAX reference (mirrors the PyTorch forward, exact erf GELU, f32)
# ---------------------------------------------------------------------------
def reference_layer(x, p, n_heads):
    B, S, H = x.shape
    hd = H // n_heads
    f32 = jnp.float32

    def w(name):
        return p[name].astype(f32)

    def heads(t):
        return t.reshape(B, S, n_heads, hd).transpose(0, 2, 1, 3)

    q = heads(x @ w("wq") + p["bq"])
    k = heads(x @ w("wk") + p["bk"])
    v = heads(x @ w("wv") + p["bv"])
    scores = jnp.einsum("bhqd,bhkd->bhqk", q, k) / math.sqrt(hd)
    probs = jax.nn.softmax(scores, axis=-1)
    att = jnp.einsum("bhqk,bhkd->bhqd", probs, v).transpose(0, 2, 1, 3).reshape(B, S, H)

    def ln(t, wgt, b, eps=1e-12):
        u = t.mean(-1, keepdims=True)
        s = ((t - u) ** 2).mean(-1, keepdims=True)
        return wgt * ((t - u) / jnp.sqrt(s + eps)) + b

    att_out = ln(att + x, p["ln1_w"], p["ln1_b"])
    h = att_out @ w("w1") + p["b1"]
    h = h * 0.5 * (1.0 + lax.erf(h / (2.0 ** 0.5)))          # exact-erf GELU
    y = h @ w("w2") + p["b2"]
    return ln(y + att_out, p["ln2_w"], p["ln2_b"])


# ---------------------------------------------------------------------------
# Deterministic parameter construction (synthetic, matching module shapes)
# ---------------------------------------------------------------------------
def init_layer_params(key, hidden, intermediate):
    ks = jax.random.split(key, 12)
    f32 = jnp.float32

    def lin_w(k, fan_in, fan_out):
        # weights stored bf16 (MXU operand dtype); biases / LN params stay f32
        return (0.02 * jax.random.normal(k, (fan_in, fan_out), f32)).astype(jnp.bfloat16)

    def vec(k, n, scale=0.02):
        return scale * jax.random.normal(k, (1, n), f32)

    return {
        "wq": lin_w(ks[0], hidden, hidden), "bq": vec(ks[1], hidden),
        "wk": lin_w(ks[2], hidden, hidden), "bk": vec(ks[3], hidden),
        "wv": lin_w(ks[4], hidden, hidden), "bv": vec(ks[5], hidden),
        "ln1_w": 1.0 + vec(ks[6], hidden, 0.05), "ln1_b": vec(ks[7], hidden, 0.05),
        "w1": lin_w(ks[8], hidden, intermediate), "b1": vec(ks[9], intermediate),
        "w2": lin_w(ks[10], intermediate, hidden), "b2": vec(ks[11], hidden),
        "ln2_w": jnp.ones((1, hidden), f32), "ln2_b": jnp.zeros((1, hidden), f32),
    }


if __name__ == "__main__":
    # Small shapes consistent with the module (defaults hidden=768,
    # intermediate=3072, n_heads=12; scaled down keeping intermediate=4*hidden,
    # head_dim=64).  B=16, S=16 -> batch tile Bt=8, M=128 matmul rows per grid
    # step, grid = (2 batch tiles, 2 layers).
    B, S, H, I, N_HEADS, N_LAYERS = 16, 16, 256, 1024, 4, 2

    key = jax.random.PRNGKey(0)
    kx, *klayers = jax.random.split(key, N_LAYERS + 1)
    img = jax.random.normal(kx, (B, S, H), jnp.float32)

    layer_params = [init_layer_params(k, H, I) for k in klayers]

    out = image_encoder(img, layer_params, n_heads=N_HEADS)
    out = jax.block_until_ready(out)

    # reference check (pure JAX, f32, exact-erf GELU)
    ref = img
    for p in layer_params:
        ref = reference_layer(ref, p, N_HEADS)
    np.testing.assert_allclose(np.asarray(out), np.asarray(ref), rtol=2e-2, atol=2e-2)

    print("KERNEL_OK")
</pallas_src>

<mosaic_0001>
module attributes {stable_mosaic.version = 11 : i64} {
  func.func @encoder_stack_kernel(%arg0: i32, %arg1: i32, %arg2: memref<8x16x256xf32, #tpu.memory_space<vmem>>, %arg3: memref<1x256x256xbf16, #tpu.memory_space<vmem>>, %arg4: memref<1x1x256xf32, #tpu.memory_space<vmem>>, %arg5: memref<1x256x256xbf16, #tpu.memory_space<vmem>>, %arg6: memref<1x1x256xf32, #tpu.memory_space<vmem>>, %arg7: memref<1x256x256xbf16, #tpu.memory_space<vmem>>, %arg8: memref<1x1x256xf32, #tpu.memory_space<vmem>>, %arg9: memref<1x1x256xf32, #tpu.memory_space<vmem>>, %arg10: memref<1x1x256xf32, #tpu.memory_space<vmem>>, %arg11: memref<1x256x1024xbf16, #tpu.memory_space<vmem>>, %arg12: memref<1x1x1024xf32, #tpu.memory_space<vmem>>, %arg13: memref<1x1024x256xbf16, #tpu.memory_space<vmem>>, %arg14: memref<1x1x256xf32, #tpu.memory_space<vmem>>, %arg15: memref<1x1x256xf32, #tpu.memory_space<vmem>>, %arg16: memref<1x1x256xf32, #tpu.memory_space<vmem>>, %arg17: memref<8x16x256xf32, #tpu.memory_space<vmem>>, %arg18: memref<128x256xf32, #tpu.memory_space<vmem>>) attributes {dimension_semantics = [#tpu.dimension_semantics<parallel>, #tpu.dimension_semantics<arbitrary>], iteration_bounds = array<i64: 2, 2>, scalar_prefetch = 0 : i64, scratch_operands = 1 : i64, tpu.core_type = #tpu.core_type<tc>, window_params = [{transform_indices = @transform_0, window_bounds = array<i64: 8, 16, 256>}, {transform_indices = @transform_1, window_bounds = array<i64: 1, 256, 256>}, {transform_indices = @transform_2, window_bounds = array<i64: 1, 1, 256>}, {transform_indices = @transform_3, window_bounds = array<i64: 1, 256, 256>}, {transform_indices = @transform_4, window_bounds = array<i64: 1, 1, 256>}, {transform_indices = @transform_5, window_bounds = array<i64: 1, 256, 256>}, {transform_indices = @transform_6, window_bounds = array<i64: 1, 1, 256>}, {transform_indices = @transform_7, window_bounds = array<i64: 1, 1, 256>}, {transform_indices = @transform_8, window_bounds = array<i64: 1, 1, 256>}, {transform_indices = @transform_9, window_bounds = array<i64: 1, 256, 1024>}, {transform_indices = @transform_10, window_bounds = array<i64: 1, 1, 1024>}, {transform_indices = @transform_11, window_bounds = array<i64: 1, 1024, 256>}, {transform_indices = @transform_12, window_bounds = array<i64: 1, 1, 256>}, {transform_indices = @transform_13, window_bounds = array<i64: 1, 1, 256>}, {transform_indices = @transform_14, window_bounds = array<i64: 1, 1, 256>}, {transform_indices = @transform_15, window_bounds = array<i64: 8, 16, 256>}]} {
    %c0_i32 = arith.constant 0 : i32
    %0 = arith.cmpi eq, %arg1, %c0_i32 : i32
    %1 = arith.extui %0 : i1 to i32
    %c0_i32_0 = arith.constant 0 : i32
    %2 = arith.cmpi ne, %1, %c0_i32_0 : i32
    scf.if %2 {
      %c0_70 = arith.constant 0 : index
      %c0_71 = arith.constant 0 : index
      %c0_72 = arith.constant 0 : index
      %155 = vector.load %arg2[%c0_70, %c0_71, %c0_72] : memref<8x16x256xf32, #tpu.memory_space<vmem>>, vector<8x16x256xf32>
      %156 = vector.shape_cast %155 : vector<8x16x256xf32> to vector<128x256xf32>
      %c0_73 = arith.constant 0 : index
      %c0_74 = arith.constant 0 : index
      %157 = vector.load %arg18[%c0_73, %c0_74] : memref<128x256xf32, #tpu.memory_space<vmem>>, vector<128x256xf32>
      tpu.vector_store %arg18[%c0_73, %c0_74], %156 {strides = array<i32>} : memref<128x256xf32, #tpu.memory_space<vmem>>, vector<128x256xf32>,
    } else {
    }
    %c0 = arith.constant 0 : index
    %c0_1 = arith.constant 0 : index
    %3 = vector.load %arg18[%c0, %c0_1] : memref<128x256xf32, #tpu.memory_space<vmem>>, vector<128x256xf32>
    %4 = arith.truncf %3 : vector<128x256xf32> to vector<128x256xbf16>
    %c0_2 = arith.constant 0 : index
    %c0_3 = arith.constant 0 : index
    %c0_4 = arith.constant 0 : index
    %5 = vector.load %arg3[%c0_2, %c0_3, %c0_4] : memref<1x256x256xbf16, #tpu.memory_space<vmem>>, vector<1x256x256xbf16>
    %6 = vector.shape_cast %5 : vector<1x256x256xbf16> to vector<256x256xbf16>
    %cst = arith.constant dense<0.000000e+00> : vector<128x256xf32>
    %7 = tpu.matmul %4, %6, %cst {dimension_numbers = #tpu.dot_dimension_numbers<[1], [0], [0], [1], [0, 0, 1, 1], [], []>} : vector<128x256xbf16>, vector<256x256xbf16>, vector<128x256xf32> -> vector<128x256xf32>
    %c0_5 = arith.constant 0 : index
    %c0_6 = arith.constant 0 : index
    %c0_7 = arith.constant 0 : index
    %8 = vector.load %arg4[%c0_5, %c0_6, %c0_7] : memref<1x1x256xf32, #tpu.memory_space<vmem>>, vector<1x1x256xf32>
    %9 = vector.shape_cast %8 : vector<1x1x256xf32> to vector<1x256xf32>
    %10 = vector.broadcast %9 : vector<1x256xf32> to vector<128x256xf32>
    %11 = arith.addf %7, %10 : vector<128x256xf32>
    %c0_8 = arith.constant 0 : index
    %c0_9 = arith.constant 0 : index
    %c0_10 = arith.constant 0 : index
    %12 = vector.load %arg5[%c0_8, %c0_9, %c0_10] : memref<1x256x256xbf16, #tpu.memory_space<vmem>>, vector<1x256x256xbf16>
    %13 = vector.shape_cast %12 : vector<1x256x256xbf16> to vector<256x256xbf16>
    %cst_11 = arith.constant dense<0.000000e+00> : vector<128x256xf32>
    %14 = tpu.matmul %4, %13, %cst_11 {dimension_numbers = #tpu.dot_dimension_numbers<[1], [0], [0], [1], [0, 0, 1, 1], [], []>} : vector<128x256xbf16>, vector<256x256xbf16>, vector<128x256xf32> -> vector<128x256xf32>
    %c0_12 = arith.constant 0 : index
    %c0_13 = arith.constant 0 : index
    %c0_14 = arith.constant 0 : index
    %15 = vector.load %arg6[%c0_12, %c0_13, %c0_14] : memref<1x1x256xf32, #tpu.memory_space<vmem>>, vector<1x1x256xf32>
    %16 = vector.shape_cast %15 : vector<1x1x256xf32> to vector<1x256xf32>
    %17 = vector.broadcast %16 : vector<1x256xf32> to vector<128x256xf32>
    %18 = arith.addf %14, %17 : vector<128x256xf32>
    %c0_15 = arith.constant 0 : index
    %c0_16 = arith.constant 0 : index
    %c0_17 = arith.constant 0 : index
    %19 = vector.load %arg7[%c0_15, %c0_16, %c0_17] : memref<1x256x256xbf16, #tpu.memory_space<vmem>>, vector<1x256x256xbf16>
    %20 = vector.shape_cast %19 : vector<1x256x256xbf16> to vector<256x256xbf16>
    %cst_18 = arith.constant dense<0.000000e+00> : vector<128x256xf32>
    %21 = tpu.matmul %4, %20, %cst_18 {dimension_numbers = #tpu.dot_dimension_numbers<[1], [0], [0], [1], [0, 0, 1, 1], [], []>} : vector<128x256xbf16>, vector<256x256xbf16>, vector<128x256xf32> -> vector<128x256xf32>
    %c0_19 = arith.constant 0 : index
    %c0_20 = arith.constant 0 : index
    %c0_21 = arith.constant 0 : index
    %22 = vector.load %arg8[%c0_19, %c0_20, %c0_21] : memref<1x1x256xf32, #tpu.memory_space<vmem>>, vector<1x1x256xf32>
    %23 = vector.shape_cast %22 : vector<1x1x256xf32> to vector<1x256xf32>
    %24 = vector.broadcast %23 : vector<1x256xf32> to vector<128x256xf32>
    %25 = arith.addf %21, %24 : vector<128x256xf32>
    %26 = vector.shape_cast %11 : vector<128x256xf32> to vector<8x16x256xf32>
    %27 = vector.extract_strided_slice %26 {offsets = [0, 0, 0], sizes = [8, 16, 64], strides = [1, 1, 1]} : vector<8x16x256xf32> to vector<8x16x64xf32>
    %28 = vector.extract_strided_slice %26 {offsets = [0, 0, 64], sizes = [8, 16, 64], strides = [1, 1, 1]} : vector<8x16x256xf32> to vector<8x16x64xf32>
    %29 = vector.extract_strided_slice %26 {offsets = [0, 0, 128], sizes = [8, 16, 64], strides = [1, 1, 1]} : vector<8x16x256xf32> to vector<8x16x64xf32>
    %30 = vector.extract_strided_slice %26 {offsets = [0, 0, 192], sizes = [8, 16, 64], strides = [1, 1, 1]} : vector<8x16x256xf32> to vector<8x16x64xf32>
    %31 = tpu.concatenate %27, %28, %29, %30 in 0 : vector<8x16x64xf32>, vector<8x16x64xf32>, vector<8x16x64xf32>, vector<8x16x64xf32> -> vector<32x16x64xf32>
    %32 = arith.truncf %31 : vector<32x16x64xf32> to vector<32x16x64xbf16>
    %33 = vector.shape_cast %18 : vector<128x256xf32> to vector<8x16x256xf32>
    %34 = vector.extract_strided_slice %33 {offsets = [0, 0, 0], sizes = [8, 16, 64], strides = [1, 1, 1]} : vector<8x16x256xf32> to vector<8x16x64xf32>
    %35 = vector.extract_strided_slice %33 {offsets = [0, 0, 64], sizes = [8, 16, 64], strides = [1, 1, 1]} : vector<8x16x256xf32> to vector<8x16x64xf32>
    %36 = vector.extract_strided_slice %33 {offsets = [0, 0, 128], sizes = [8, 16, 64], strides = [1, 1, 1]} : vector<8x16x256xf32> to vector<8x16x64xf32>
    %37 = vector.extract_strided_slice %33 {offsets = [0, 0, 192], sizes = [8, 16, 64], strides = [1, 1, 1]} : vector<8x16x256xf32> to vector<8x16x64xf32>
    %38 = tpu.concatenate %34, %35, %36, %37 in 0 : vector<8x16x64xf32>, vector<8x16x64xf32>, vector<8x16x64xf32>, vector<8x16x64xf32> -> vector<32x16x64xf32>
    %39 = arith.truncf %38 : vector<32x16x64xf32> to vector<32x16x64xbf16>
    %40 = vector.shape_cast %25 : vector<128x256xf32> to vector<8x16x256xf32>
    %41 = vector.extract_strided_slice %40 {offsets = [0, 0, 0], sizes = [8, 16, 64], strides = [1, 1, 1]} : vector<8x16x256xf32> to vector<8x16x64xf32>
    %42 = vector.extract_strided_slice %40 {offsets = [0, 0, 64], sizes = [8, 16, 64], strides = [1, 1, 1]} : vector<8x16x256xf32> to vector<8x16x64xf32>
    %43 = vector.extract_strided_slice %40 {offsets = [0, 0, 128], sizes = [8, 16, 64], strides = [1, 1, 1]} : vector<8x16x256xf32> to vector<8x16x64xf32>
    %44 = vector.extract_strided_slice %40 {offsets = [0, 0, 192], sizes = [8, 16, 64], strides = [1, 1, 1]} : vector<8x16x256xf32> to vector<8x16x64xf32>
    %45 = tpu.concatenate %41, %42, %43, %44 in 0 : vector<8x16x64xf32>, vector<8x16x64xf32>, vector<8x16x64xf32>, vector<8x16x64xf32> -> vector<32x16x64xf32>
    %46 = arith.truncf %45 : vector<32x16x64xf32> to vector<32x16x64xbf16>
    "tpu.trace_start"() <{level = 10 : i32, message = "gqd,gkd->gqk"}> : () -> ()
    %cst_22 = arith.constant dense<0.000000e+00> : vector<32x16x16xf32>
    %47 = tpu.matmul %32, %39, %cst_22 {dimension_numbers = #tpu.dot_dimension_numbers<[2], [2], [1], [1], [0, 0, 0, 1, 1, 1], [0], [0]>} : vector<32x16x64xbf16>, vector<32x16x64xbf16>, vector<32x16x16xf32> -> vector<32x16x16xf32>
    "tpu.trace_stop"() : () -> ()
    %cst_23 = arith.constant 1.250000e-01 : f32
    %48 = vector.broadcast %cst_23 : f32 to vector<32x16x16xf32>
    %49 = arith.mulf %47, %48 : vector<32x16x16xf32>
    %cst_24 = arith.constant dense<0xFF800000> : vector<32x16xf32>
    %50 = vector.multi_reduction <maximumf>, %49, %cst_24 [2] : vector<32x16x16xf32> to vector<32x16xf32>
    %51 = vector.shape_cast %50 : vector<32x16xf32> to vector<32x16x1xf32>
    %52 = vector.broadcast %51 : vector<32x16x1xf32> to vector<32x16x16xf32>
    %53 = arith.subf %49, %52 : vector<32x16x16xf32>
    %54 = math.exp %53 : vector<32x16x16xf32>
    %cst_25 = arith.constant dense<0.000000e+00> : vector<32x16xf32>
    %55 = vector.multi_reduction <add>, %54, %cst_25 [2] : vector<32x16x16xf32> to vector<32x16xf32>
    %56 = vector.shape_cast %55 : vector<32x16xf32> to vector<32x16x1xf32>
    %57 = tpu.reciprocal %56 {approx = true} : vector<32x16x1xf32> -> vector<32x16x1xf32>
    %58 = vector.broadcast %57 : vector<32x16x1xf32> to vector<32x16x16xf32>
    %59 = arith.mulf %54, %58 : vector<32x16x16xf32>
    %60 = arith.truncf %59 : vector<32x16x16xf32> to vector<32x16x16xbf16>
    "tpu.trace_start"() <{level = 10 : i32, message = "gqk,gkd->gqd"}> : () -> ()
    %cst_26 = arith.constant dense<0.000000e+00> : vector<32x16x64xf32>
    %61 = tpu.matmul %60, %46, %cst_26 {dimension_numbers = #tpu.dot_dimension_numbers<[2], [1], [1], [2], [0, 0, 0, 1, 1, 2], [0], [0]>} : vector<32x16x16xbf16>, vector<32x16x64xbf16>, vector<32x16x64xf32> -> vector<32x16x64xf32>
    "tpu.trace_stop"() : () -> ()
    %62 = vector.extract_strided_slice %61 {offsets = [0, 0, 0], sizes = [8, 16, 64], strides = [1, 1, 1]} : vector<32x16x64xf32> to vector<8x16x64xf32>
    %63 = vector.extract_strided_slice %61 {offsets = [8, 0, 0], sizes = [8, 16, 64], strides = [1, 1, 1]} : vector<32x16x64xf32> to vector<8x16x64xf32>
    %64 = vector.extract_strided_slice %61 {offsets = [16, 0, 0], sizes = [8, 16, 64], strides = [1, 1, 1]} : vector<32x16x64xf32> to vector<8x16x64xf32>
    %65 = vector.extract_strided_slice %61 {offsets = [24, 0, 0], sizes = [8, 16, 64], strides = [1, 1, 1]} : vector<32x16x64xf32> to vector<8x16x64xf32>
    %66 = tpu.concatenate %62, %63, %64, %65 in 2 : vector<8x16x64xf32>, vector<8x16x64xf32>, vector<8x16x64xf32>, vector<8x16x64xf32> -> vector<8x16x256xf32>
    %67 = vector.shape_cast %66 : vector<8x16x256xf32> to vector<128x256xf32>
    %68 = arith.addf %67, %3 : vector<128x256xf32>
    %c0_27 = arith.constant 0 : index
    %c0_28 = arith.constant 0 : index
    %c0_29 = arith.constant 0 : index
    %69 = vector.load %arg9[%c0_27, %c0_28, %c0_29] : memref<1x1x256xf32, #tpu.memory_space<vmem>>, vector<1x1x256xf32>
    %70 = vector.shape_cast %69 : vector<1x1x256xf32> to vector<1x256xf32>
    %c0_30 = arith.constant 0 : index
    %c0_31 = arith.constant 0 : index
    %c0_32 = arith.constant 0 : index
    %71 = vector.load %arg10[%c0_30, %c0_31, %c0_32] : memref<1x1x256xf32, #tpu.memory_space<vmem>>, vector<1x1x256xf32>
    %72 = vector.shape_cast %71 : vector<1x1x256xf32> to vector<1x256xf32>
    %cst_33 = arith.constant dense<0.000000e+00> : vector<128xf32>
    %73 = vector.multi_reduction <add>, %68, %cst_33 [1] : vector<128x256xf32> to vector<128xf32>
    %74 = vector.shape_cast %73 : vector<128xf32> to vector<128x1xf32>
    %cst_34 = arith.constant 2.560000e+02 : f32
    %75 = vector.broadcast %cst_34 : f32 to vector<128x1xf32>
    %76 = arith.divf %74, %75 : vector<128x1xf32>
    %77 = vector.broadcast %76 : vector<128x1xf32> to vector<128x256xf32>
    %78 = arith.subf %68, %77 : vector<128x256xf32>
    %79 = arith.mulf %78, %78 : vector<128x256xf32>
    %cst_35 = arith.constant dense<0.000000e+00> : vector<128xf32>
    %80 = vector.multi_reduction <add>, %79, %cst_35 [1] : vector<128x256xf32> to vector<128xf32>
    %81 = vector.shape_cast %80 : vector<128xf32> to vector<128x1xf32>
    %cst_36 = arith.constant 2.560000e+02 : f32
    %82 = vector.broadcast %cst_36 : f32 to vector<128x1xf32>
    %83 = arith.divf %81, %82 : vector<128x1xf32>
    %84 = vector.broadcast %76 : vector<128x1xf32> to vector<128x256xf32>
    %85 = arith.subf %68, %84 : vector<128x256xf32>
    %cst_37 = arith.constant 9.99999996E-13 : f32
    %86 = vector.broadcast %cst_37 : f32 to vector<128x1xf32>
    %87 = arith.addf %83, %86 : vector<128x1xf32>
    %88 = math.rsqrt %87 : vector<128x1xf32>
    %89 = vector.broadcast %88 : vector<128x1xf32> to vector<128x256xf32>
    %90 = arith.mulf %85, %89 : vector<128x256xf32>
    %91 = vector.broadcast %70 : vector<1x256xf32> to vector<128x256xf32>
    %92 = arith.mulf %91, %90 : vector<128x256xf32>
    %93 = vector.broadcast %72 : vector<1x256xf32> to vector<128x256xf32>
    %94 = arith.addf %92, %93 : vector<128x256xf32>
    %95 = arith.truncf %94 : vector<128x256xf32> to vector<128x256xbf16>
    %c0_38 = arith.constant 0 : index
    %c0_39 = arith.constant 0 : index
    %c0_40 = arith.constant 0 : index
    %96 = vector.load %arg11[%c0_38, %c0_39, %c0_40] : memref<1x256x1024xbf16, #tpu.memory_space<vmem>>, vector<1x256x1024xbf16>
    %97 = vector.shape_cast %96 : vector<1x256x1024xbf16> to vector<256x1024xbf16>
    %cst_41 = arith.constant dense<0.000000e+00> : vector<128x1024xf32>
    %98 = tpu.matmul %95, %97, %cst_41 {dimension_numbers = #tpu.dot_dimension_numbers<[1], [0], [0], [1], [0, 0, 1, 1], [], []>} : vector<128x256xbf16>, vector<256x1024xbf16>, vector<128x1024xf32> -> vector<128x1024xf32>
    %c0_42 = arith.constant 0 : index
    %c0_43 = arith.constant 0 : index
    %c0_44 = arith.constant 0 : index
    %99 = vector.load %arg12[%c0_42, %c0_43, %c0_44] : memref<1x1x1024xf32, #tpu.memory_space<vmem>>, vector<1x1x1024xf32>
    %100 = vector.shape_cast %99 : vector<1x1x1024xf32> to vector<1x1024xf32>
    %101 = vector.broadcast %100 : vector<1x1024xf32> to vector<128x1024xf32>
    %102 = arith.addf %98, %101 : vector<128x1024xf32>
    %cst_45 = arith.constant 5.000000e-01 : f32
    %103 = vector.broadcast %cst_45 : f32 to vector<128x1024xf32>
    %104 = arith.mulf %103, %102 : vector<128x1024xf32>
    %105 = arith.mulf %102, %102 : vector<128x1024xf32>
    %106 = arith.mulf %105, %102 : vector<128x1024xf32>
    %cst_46 = arith.constant 4.471500e-02 : f32
    %107 = vector.broadcast %cst_46 : f32 to vector<128x1024xf32>
    %108 = arith.mulf %107, %106 : vector<128x1024xf32>
    %109 = arith.addf %102, %108 : vector<128x1024xf32>
    %cst_47 = arith.constant 0.797884583 : f32
    %110 = vector.broadcast %cst_47 : f32 to vector<128x1024xf32>
    %111 = arith.mulf %110, %109 : vector<128x1024xf32>
    %112 = math.tanh %111 : vector<128x1024xf32>
    %cst_48 = arith.constant 1.000000e+00 : f32
    %113 = vector.broadcast %cst_48 : f32 to vector<128x1024xf32>
    %114 = arith.addf %113, %112 : vector<128x1024xf32>
    %115 = arith.mulf %104, %114 : vector<128x1024xf32>
    %116 = arith.truncf %115 : vector<128x1024xf32> to vector<128x1024xbf16>
    %c0_49 = arith.constant 0 : index
    %c0_50 = arith.constant 0 : index
    %c0_51 = arith.constant 0 : index
    %117 = vector.load %arg13[%c0_49, %c0_50, %c0_51] : memref<1x1024x256xbf16, #tpu.memory_space<vmem>>, vector<1x1024x256xbf16>
    %118 = vector.shape_cast %117 : vector<1x1024x256xbf16> to vector<1024x256xbf16>
    %cst_52 = arith.constant dense<0.000000e+00> : vector<128x256xf32>
    %119 = tpu.matmul %116, %118, %cst_52 {dimension_numbers = #tpu.dot_dimension_numbers<[1], [0], [0], [1], [0, 0, 1, 1], [], []>} : vector<128x1024xbf16>, vector<1024x256xbf16>, vector<128x256xf32> -> vector<128x256xf32>
    %c0_53 = arith.constant 0 : index
    %c0_54 = arith.constant 0 : index
    %c0_55 = arith.constant 0 : index
    %120 = vector.load %arg14[%c0_53, %c0_54, %c0_55] : memref<1x1x256xf32, #tpu.memory_space<vmem>>, vector<1x1x256xf32>
    %121 = vector.shape_cast %120 : vector<1x1x256xf32> to vector<1x256xf32>
    %122 = vector.broadcast %121 : vector<1x256xf32> to vector<128x256xf32>
    %123 = arith.addf %119, %122 : vector<128x256xf32>
    %124 = arith.addf %123, %94 : vector<128x256xf32>
    %c0_56 = arith.constant 0 : index
    %c0_57 = arith.constant 0 : index
    %c0_58 = arith.constant 0 : index
    %125 = vector.load %arg15[%c0_56, %c0_57, %c0_58] : memref<1x1x256xf32, #tpu.memory_space<vmem>>, vector<1x1x256xf32>
    %126 = vector.shape_cast %125 : vector<1x1x256xf32> to vector<1x256xf32>
    %c0_59 = arith.constant 0 : index
    %c0_60 = arith.constant 0 : index
    %c0_61 = arith.constant 0 : index
    %127 = vector.load %arg16[%c0_59, %c0_60, %c0_61] : memref<1x1x256xf32, #tpu.memory_space<vmem>>, vector<1x1x256xf32>
    %128 = vector.shape_cast %127 : vector<1x1x256xf32> to vector<1x256xf32>
    %cst_62 = arith.constant dense<0.000000e+00> : vector<128xf32>
    %129 = vector.multi_reduction <add>, %124, %cst_62 [1] : vector<128x256xf32> to vector<128xf32>
    %130 = vector.shape_cast %129 : vector<128xf32> to vector<128x1xf32>
    %cst_63 = arith.constant 2.560000e+02 : f32
    %131 = vector.broadcast %cst_63 : f32 to vector<128x1xf32>
    %132 = arith.divf %130, %131 : vector<128x1xf32>
    %133 = vector.broadcast %132 : vector<128x1xf32> to vector<128x256xf32>
    %134 = arith.subf %124, %133 : vector<128x256xf32>
    %135 = arith.mulf %134, %134 : vector<128x256xf32>
    %cst_64 = arith.constant dense<0.000000e+00> : vector<128xf32>
    %136 = vector.multi_reduction <add>, %135, %cst_64 [1] : vector<128x256xf32> to vector<128xf32>
    %137 = vector.shape_cast %136 : vector<128xf32> to vector<128x1xf32>
    %cst_65 = arith.constant 2.560000e+02 : f32
    %138 = vector.broadcast %cst_65 : f32 to vector<128x1xf32>
    %139 = arith.divf %137, %138 : vector<128x1xf32>
    %140 = vector.broadcast %132 : vector<128x1xf32> to vector<128x256xf32>
    %141 = arith.subf %124, %140 : vector<128x256xf32>
    %cst_66 = arith.constant 9.99999996E-13 : f32
    %142 = vector.broadcast %cst_66 : f32 to vector<128x1xf32>
    %143 = arith.addf %139, %142 : vector<128x1xf32>
    %144 = math.rsqrt %143 : vector<128x1xf32>
    %145 = vector.broadcast %144 : vector<128x1xf32> to vector<128x256xf32>
    %146 = arith.mulf %141, %145 : vector<128x256xf32>
    %147 = vector.broadcast %126 : vector<1x256xf32> to vector<128x256xf32>
    %148 = arith.mulf %147, %146 : vector<128x256xf32>
    %149 = vector.broadcast %128 : vector<1x256xf32> to vector<128x256xf32>
    %150 = arith.addf %148, %149 : vector<128x256xf32>
    %c0_67 = arith.constant 0 : index
    %c0_68 = arith.constant 0 : index
    %151 = vector.load %arg18[%c0_67, %c0_68] : memref<128x256xf32, #tpu.memory_space<vmem>>, vector<128x256xf32>
    tpu.vector_store %arg18[%c0_67, %c0_68], %150 {strides = array<i32>} : memref<128x256xf32, #tpu.memory_space<vmem>>, vector<128x256xf32>,
    %c1_i32 = arith.constant 1 : i32
    %152 = arith.cmpi eq, %arg1, %c1_i32 : i32
    %153 = arith.extui %152 : i1 to i32
    %c0_i32_69 = arith.constant 0 : i32
    %154 = arith.cmpi ne, %153, %c0_i32_69 : i32
    scf.if %154 {
      %155 = vector.shape_cast %150 : vector<128x256xf32> to vector<8x16x256xf32>
      %c0_70 = arith.constant 0 : index
      %c0_71 = arith.constant 0 : index
      %c0_72 = arith.constant 0 : index
      %156 = vector.load %arg17[%c0_70, %c0_71, %c0_72] : memref<8x16x256xf32, #tpu.memory_space<vmem>>, vector<8x16x256xf32>
      tpu.vector_store %arg17[%c0_70, %c0_71, %c0_72], %155 {strides = array<i32>} : memref<8x16x256xf32, #tpu.memory_space<vmem>>, vector<8x16x256xf32>,
    } else {
    }
    return
  }
  func.func @transform_0(%arg0: i32, %arg1: i32) -> (i32, i32, i32) {
    %c0_i32 = arith.constant 0 : i32
    %c0_i32_0 = arith.constant 0 : i32
    %c0_i32_1 = arith.constant 0 : i32
    return %arg0, %c0_i32, %c0_i32_0 : i32, i32, i32
  }
  func.func @transform_1(%arg0: i32, %arg1: i32) -> (i32, i32, i32) {
    %c0_i32 = arith.constant 0 : i32
    %c0_i32_0 = arith.constant 0 : i32
    %c0_i32_1 = arith.constant 0 : i32
    return %arg1, %c0_i32, %c0_i32_0 : i32, i32, i32
  }
  func.func @transform_2(%arg0: i32, %arg1: i32) -> (i32, i32, i32) {
    %c0_i32 = arith.constant 0 : i32
    %c0_i32_0 = arith.constant 0 : i32
    %c0_i32_1 = arith.constant 0 : i32
    return %arg1, %c0_i32, %c0_i32_0 : i32, i32, i32
  }
  func.func @transform_3(%arg0: i32, %arg1: i32) -> (i32, i32, i32) {
    %c0_i32 = arith.constant 0 : i32
    %c0_i32_0 = arith.constant 0 : i32
    %c0_i32_1 = arith.constant 0 : i32
    return %arg1, %c0_i32, %c0_i32_0 : i32, i32, i32
  }
  func.func @transform_4(%arg0: i32, %arg1: i32) -> (i32, i32, i32) {
    %c0_i32 = arith.constant 0 : i32
    %c0_i32_0 = arith.constant 0 : i32
    %c0_i32_1 = arith.constant 0 : i32
    return %arg1, %c0_i32, %c0_i32_0 : i32, i32, i32
  }
  func.func @transform_5(%arg0: i32, %arg1: i32) -> (i32, i32, i32) {
    %c0_i32 = arith.constant 0 : i32
    %c0_i32_0 = arith.constant 0 : i32
    %c0_i32_1 = arith.constant 0 : i32
    return %arg1, %c0_i32, %c0_i32_0 : i32, i32, i32
  }
  func.func @transform_6(%arg0: i32, %arg1: i32) -> (i32, i32, i32) {
    %c0_i32 = arith.constant 0 : i32
    %c0_i32_0 = arith.constant 0 : i32
    %c0_i32_1 = arith.constant 0 : i32
    return %arg1, %c0_i32, %c0_i32_0 : i32, i32, i32
  }
  func.func @transform_7(%arg0: i32, %arg1: i32) -> (i32, i32, i32) {
    %c0_i32 = arith.constant 0 : i32
    %c0_i32_0 = arith.constant 0 : i32
    %c0_i32_1 = arith.constant 0 : i32
    return %arg1, %c0_i32, %c0_i32_0 : i32, i32, i32
  }
  func.func @transform_8(%arg0: i32, %arg1: i32) -> (i32, i32, i32) {
    %c0_i32 = arith.constant 0 : i32
    %c0_i32_0 = arith.constant 0 : i32
    %c0_i32_1 = arith.constant 0 : i32
    return %arg1, %c0_i32, %c0_i32_0 : i32, i32, i32
  }
  func.func @transform_9(%arg0: i32, %arg1: i32) -> (i32, i32, i32) {
    %c0_i32 = arith.constant 0 : i32
    %c0_i32_0 = arith.constant 0 : i32
    %c0_i32_1 = arith.constant 0 : i32
    return %arg1, %c0_i32, %c0_i32_0 : i32, i32, i32
  }
  func.func @transform_10(%arg0: i32, %arg1: i32) -> (i32, i32, i32) {
    %c0_i32 = arith.constant 0 : i32
    %c0_i32_0 = arith.constant 0 : i32
    %c0_i32_1 = arith.constant 0 : i32
    return %arg1, %c0_i32, %c0_i32_0 : i32, i32, i32
  }
  func.func @transform_11(%arg0: i32, %arg1: i32) -> (i32, i32, i32) {
    %c0_i32 = arith.constant 0 : i32
    %c0_i32_0 = arith.constant 0 : i32
    %c0_i32_1 = arith.constant 0 : i32
    return %arg1, %c0_i32, %c0_i32_0 : i32, i32, i32
  }
  func.func @transform_12(%arg0: i32, %arg1: i32) -> (i32, i32, i32) {
    %c0_i32 = arith.constant 0 : i32
    %c0_i32_0 = arith.constant 0 : i32
    %c0_i32_1 = arith.constant 0 : i32
    return %arg1, %c0_i32, %c0_i32_0 : i32, i32, i32
  }
  func.func @transform_13(%arg0: i32, %arg1: i32) -> (i32, i32, i32) {
    %c0_i32 = arith.constant 0 : i32
    %c0_i32_0 = arith.constant 0 : i32
    %c0_i32_1 = arith.constant 0 : i32
    return %arg1, %c0_i32, %c0_i32_0 : i32, i32, i32
  }
  func.func @transform_14(%arg0: i32, %arg1: i32) -> (i32, i32, i32) {
    %c0_i32 = arith.constant 0 : i32
    %c0_i32_0 = arith.constant 0 : i32
    %c0_i32_1 = arith.constant 0 : i32
    return %arg1, %c0_i32, %c0_i32_0 : i32, i32, i32
  }
  func.func @transform_15(%arg0: i32, %arg1: i32) -> (i32, i32, i32) {
    %c0_i32 = arith.constant 0 : i32
    %c0_i32_0 = arith.constant 0 : i32
    %c0_i32_1 = arith.constant 0 : i32
    return %arg0, %c0_i32, %c0_i32_0 : i32, i32, i32
  }
}

</mosaic_0001>

<llo_original>
// kernel: tpu_custom_call.1
$region0: #{tpu_custom_call.1}
  #allocation0 [shape = 'u32[]', space=smem, size = 0x4, offset = 0x4, fixed_abs, tag = 'smem constant byte address 0x4 - core index']
  #allocation1 [shape = 'u32[144,128]{1,0:T(1,128)}', space=vmem, size = 0x12000, scoped, tag = 'internal scratch']
  #allocation2 [shape = 'f32[128,256]{1,0:T(8,128)}', space=vmem, size = 0x20000, scoped, tag = 'scratch operand']
  %s0 = inlined_call_operand.hbm [shape: f32[16,16,256], index: 0, kind: input, shape index: {}]
  %s1 = inlined_call_operand.hbm [shape: bf16[2,256,256], index: 1, kind: input, shape index: {}]
  %s2 = inlined_call_operand.vmem [shape: f32[2,1,256], index: 2, kind: input, shape index: {}]
  %s3 = inlined_call_operand.hbm [shape: bf16[2,256,256], index: 3, kind: input, shape index: {}]
  %s4 = inlined_call_operand.vmem [shape: f32[2,1,256], index: 4, kind: input, shape index: {}]
  %s5 = inlined_call_operand.hbm [shape: bf16[2,256,256], index: 5, kind: input, shape index: {}]
  %s6 = inlined_call_operand.vmem [shape: f32[2,1,256], index: 6, kind: input, shape index: {}]
  %s7 = inlined_call_operand.hbm [shape: f32[2,1,256], index: 7, kind: input, shape index: {}]
  %s8 = inlined_call_operand.hbm [shape: f32[2,1,256], index: 8, kind: input, shape index: {}]
  %s9 = inlined_call_operand.hbm [shape: bf16[2,256,1024], index: 9, kind: input, shape index: {}]
  %s10 = inlined_call_operand.vmem [shape: f32[2,1,1024], index: 10, kind: input, shape index: {}]
  %s11 = inlined_call_operand.hbm [shape: bf16[2,1024,256], index: 11, kind: input, shape index: {}]
  %s12 = inlined_call_operand.vmem [shape: f32[2,1,256], index: 12, kind: input, shape index: {}]
  %s13 = inlined_call_operand.vmem [shape: f32[2,1,256], index: 13, kind: input, shape index: {}]
  %s14 = inlined_call_operand.vmem [shape: f32[2,1,256], index: 14, kind: input, shape index: {}]
  %s15 = inlined_call_operand.hbm [shape: f32[16,16,256], index: 15, kind: output, shape index: {}]
  %s16 = sld [smem:[#allocation0]]
  $region133: #{tpu_custom_call.1} parent=0
    _
  %s18 = ssub.s32 1, %s16
  %s19 = scalar_select 0, %s18, %s16
  $region1: #{tpu_custom_call.1} parent=0
    #allocation3 [shape = 'u8[262144]{0}', space=vmem, size = 0x40000, scoped, tag = 'input window, operand 0']
    #allocation4 [shape = 's32[2]{0}', space=sflag, size = 0x8, scoped, tag = 'scoped memory for tpu_custom_call.1']
    #allocation5 [shape = 's32[2]{0}', space=sflag, size = 0x8, scoped, tag = 'scoped memory for tpu_custom_call.1']
    #allocation6 [shape = 'u8[262144]{0}', space=vmem, size = 0x40000, scoped, tag = 'input window, operand 1']
    #allocation7 [shape = 's32[2]{0}', space=sflag, size = 0x8, scoped, tag = 'scoped memory for tpu_custom_call.1']
    #allocation8 [shape = 'u8[262144]{0}', space=vmem, size = 0x40000, scoped, tag = 'input window, operand 3']
    #allocation9 [shape = 'u8[262144]{0}', space=vmem, size = 0x40000, scoped, tag = 'input window, operand 5']
    #allocation10 [shape = 's32[2]{0}', space=sflag, size = 0x8, scoped, tag = 'scoped memory for tpu_custom_call.1']
    #allocation11 [shape = 'u8[2048]{0}', space=vmem, size = 0x800, scoped, tag = 'input window, operand 7']
    #allocation12 [shape = 'u8[2048]{0}', space=vmem, size = 0x800, scoped, tag = 'input window, operand 8']
    #allocation13 [shape = 's32[2]{0}', space=sflag, size = 0x8, scoped, tag = 'scoped memory for tpu_custom_call.1']
    #allocation14 [shape = 'u8[1048576]{0}', space=vmem, size = 0x100000, scoped, tag = 'input window, operand 9']
    #allocation15 [shape = 'u8[1048576]{0}', space=vmem, size = 0x100000, scoped, tag = 'input window, operand 11']
    #allocation16 [shape = 's32[2]{0}', space=sflag, size = 0x8, scoped, tag = 'scoped memory for tpu_custom_call.1']
    #allocation17 [shape = 'u8[262144]{0}', space=vmem, size = 0x40000, scoped, tag = 'output window, operand 0']
    %20 = vsyncpa [#allocation4], 0
    %s21 = scalar_lea.sflag [#allocation4], 1
    %22 = vsyncpa %s21, 0
    %23 = vsyncpa [#allocation7], 0
    %s24 = scalar_lea.sflag [#allocation7], 1
    %25 = vsyncpa %s24, 0
    %26 = vsyncpa [#allocation10], 0
    %s27 = scalar_lea.sflag [#allocation10], 1
    %28 = vsyncpa %s27, 0
    %29 = vsyncpa [#allocation13], 0
    %s30 = scalar_lea.sflag [#allocation13], 1
    %31 = vsyncpa %s30, 0
    %32 = vsyncpa [#allocation16], 0
    %s33 = scalar_lea.sflag [#allocation16], 1
    %34 = vsyncpa %s33, 0
    %35 = vsyncpa [#allocation5], 0
    %s36 = scalar_lea.sflag [#allocation5], 1
    %37 = vsyncpa %s36, 0
    loop: start=0, step=1, limit=6
    $region2: #{tpu_custom_call.1} parent=1 // loop_pre_header
      _
    $region3: #{tpu_custom_call.1} parent=1 // loop_header
      %s39 = sphi 0, %s43
      %p40 = scmp.ge.s32.totalorder %s39, 6
      %s46 = sphi 0, %s58
      %s47 = sphi 0, %s54
      %s48 = sphi 0, %s46
      %s49 = sphi 0, %s47
      %s50 = sphi 0, %s48
      %s51 = sphi 0, %s49
      %s61 = sphi 0, %s63
      %s64 = sphi 0, %s61
      %s65 = sphi 0, %s64
      %s81 = sphi 0, %s65
      %s87 = sphi 0, %s89
      %s90 = sphi 0, %s87
      %s91 = sphi 0, %s90
      %s107 = sphi 0, %s91
      %s113 = sphi 0, %s115
      %s116 = sphi 0, %s113
      %s117 = sphi 0, %s116
      %s133 = sphi 0, %s117
      %s139 = sphi 0, %s141
      %s142 = sphi 0, %s139
      %s143 = sphi 0, %s142
      %s159 = sphi 0, %s143
      %s165 = sphi 0, %s167
      %s168 = sphi 0, %s165
      %s169 = sphi 0, %s168
      %s185 = sphi 0, %s169
      %s191 = sphi 0, %s193
      %s194 = sphi 0, %s191
      %s195 = sphi 0, %s194
      %s211 = sphi 0, %s195
      %s217 = sphi 0, %s219
      %s220 = sphi 0, %s217
      %s221 = sphi 0, %s220
      %s237 = sphi 0, %s221
      %s243 = sphi 0, %s245
      %s246 = sphi 0, %s243
      %s247 = sphi 0, %s246
      %s263 = sphi 0, %s247
      %s269 = sphi 0, %s271
      %s272 = sphi 0, %s269
      %s273 = sphi 0, %s272
      %s289 = sphi 0, %s273
      %s295 = sphi 0, %s297
      %s298 = sphi 0, %s295
      %s299 = sphi 0, %s298
      %s315 = sphi 0, %s299
      %s321 = sphi 0, %s323
      %s324 = sphi 0, %s321
      %s325 = sphi 0, %s324
      %s341 = sphi 0, %s325
      %s347 = sphi 0, %s349
      %s350 = sphi 0, %s347
      %s351 = sphi 0, %s350
      %s367 = sphi 0, %s351
      %s373 = sphi 0, %s375
      %s376 = sphi 0, %s373
      %s377 = sphi 0, %s376
      %s393 = sphi 0, %s377
      %s399 = sphi 0, %s401
      %s402 = sphi 0, %s399
      %s403 = sphi 0, %s402
      %s419 = sphi 0, %s403
      %s425 = sphi 0, %s427
      %s428 = sphi 0, %s425
      %s429 = sphi 0, %s428
      %s445 = sphi 0, %s429
      %s451 = sphi 0, %s453
      %s454 = sphi 0, %s451
      %s455 = sphi 0, %s454
      %s471 = sphi 0, %s455
    $region4: #{tpu_custom_call.1} parent=1 // loop_header_branch
      %42 = sbr.rel (%p40) target = $region8
    $region5: #{tpu_custom_call.1} parent=1 // loop_body
      %s44 = ssub.s32 %s39, 1
      %s45 = ssub.s32 %s39, 2
      %s52 = sadd.s32 1, %s47
      %p53 = scmp.ge.s32.totalorder %s52, 2
      %s54 = scalar_select %p53, 0, %s52
      %s55 = sadd.s32 1, %s46
      %s56 = scalar_select %p53, %s55, %s46
      %p57 = scmp.ge.s32.totalorder %s56, 2
      %s58 = scalar_select %p57, 0, %s56
      %s59 = ssub.s32 %s46, %s58
      %p60 = scmp.eq.s32.totalorder %s59, 0
      %s62 = sadd.s32 %s61, 1
      %s63 = scalar_select %p60, %s61, %s62
      %p66 = pneg %p60
      %p67 = scmp.eq.s32.totalorder %s39, 3
      %p68 = por %p66, %p67
      %p69 = scmp.ne.s32.totalorder %s61, %s64
      %p70 = scmp.eq.s32.totalorder %s39, 0
      %p71 = por %p69, %p70
      %p72 = scmp.ne.s32.totalorder %s61, %s64
      %p73 = scmp.eq.s32.totalorder %s44, 3
      %p74 = por %p72, %p73
      %p75 = scmp.ne.s32.totalorder %s64, %s65
      %p76 = scmp.eq.s32.totalorder %s44, 0
      %p77 = por %p75, %p76
      %p78 = scmp.ne.s32.totalorder %s64, %s65
      %p79 = scmp.eq.s32.totalorder %s45, 3
      %p80 = por %p78, %p79
      %p82 = scmp.ne.s32.totalorder %s65, %s81
      %p83 = scmp.eq.s32.totalorder %s45, 0
      %p84 = por %p82, %p83
      %s85 = ssub.s32 %s47, %s54
      %p86 = scmp.eq.s32.totalorder %s85, 0
      %s88 = sadd.s32 %s87, 1
      %s89 = scalar_select %p86, %s87, %s88
      %p92 = pneg %p86
      %p93 = scmp.eq.s32.totalorder %s39, 3
      %p94 = por %p92, %p93
      %p95 = scmp.ne.s32.totalorder %s87, %s90
      %p96 = scmp.eq.s32.totalorder %s39, 0
      %p97 = por %p95, %p96
      %p98 = scmp.ne.s32.totalorder %s87, %s90
      %p99 = scmp.eq.s32.totalorder %s44, 3
      %p100 = por %p98, %p99
      %p101 = scmp.ne.s32.totalorder %s90, %s91
      %p102 = scmp.eq.s32.totalorder %s44, 0
      %p103 = por %p101, %p102
      %p104 = scmp.ne.s32.totalorder %s90, %s91
      %p105 = scmp.eq.s32.totalorder %s45, 3
      %p106 = por %p104, %p105
      %p108 = scmp.ne.s32.totalorder %s91, %s107
      %p109 = scmp.eq.s32.totalorder %s45, 0
      %p110 = por %p108, %p109
      %s111 = ssub.s32 %s47, %s54
      %p112 = scmp.eq.s32.totalorder %s111, 0
      %s114 = sadd.s32 %s113, 1
      %s115 = scalar_select %p112, %s113, %s114
      %p118 = pneg %p112
      %p119 = scmp.eq.s32.totalorder %s39, 3
      %p120 = por %p118, %p119
      %p121 = scmp.ne.s32.totalorder %s113, %s116
      %p122 = scmp.eq.s32.totalorder %s39, 0
      %p123 = por %p121, %p122
      %p124 = scmp.ne.s32.totalorder %s113, %s116
      %p125 = scmp.eq.s32.totalorder %s44, 3
      %p126 = por %p124, %p125
      %p127 = scmp.ne.s32.totalorder %s116, %s117
      %p128 = scmp.eq.s32.totalorder %s44, 0
      %p129 = por %p127, %p128
      %p130 = scmp.ne.s32.totalorder %s116, %s117
      %p131 = scmp.eq.s32.totalorder %s45, 3
      %p132 = por %p130, %p131
      %p134 = scmp.ne.s32.totalorder %s117, %s133
      %p135 = scmp.eq.s32.totalorder %s45, 0
      %p136 = por %p134, %p135
      %s137 = ssub.s32 %s47, %s54
      %p138 = scmp.eq.s32.totalorder %s137, 0
      %s140 = sadd.s32 %s139, 1
      %s141 = scalar_select %p138, %s139, %s140
      %p144 = pneg %p138
      %p145 = scmp.eq.s32.totalorder %s39, 3
      %p146 = por %p144, %p145
      %p147 = scmp.ne.s32.totalorder %s139, %s142
      %p148 = scmp.eq.s32.totalorder %s39, 0
      %p149 = por %p147, %p148
      %p150 = scmp.ne.s32.totalorder %s139, %s142
      %p151 = scmp.eq.s32.totalorder %s44, 3
      %p152 = por %p150, %p151
      %p153 = scmp.ne.s32.totalorder %s142, %s143
      %p154 = scmp.eq.s32.totalorder %s44, 0
      %p155 = por %p153, %p154
      %p156 = scmp.ne.s32.totalorder %s142, %s143
      %p157 = scmp.eq.s32.totalorder %s45, 3
      %p158 = por %p156, %p157
      %p160 = scmp.ne.s32.totalorder %s143, %s159
      %p161 = scmp.eq.s32.totalorder %s45, 0
      %p162 = por %p160, %p161
      %s163 = ssub.s32 %s47, %s54
      %p164 = scmp.eq.s32.totalorder %s163, 0
      %s166 = sadd.s32 %s165, 1
      %s167 = scalar_select %p164, %s165, %s166
      %p170 = pneg %p164
      %p171 = scmp.eq.s32.totalorder %s39, 3
      %p172 = por %p170, %p171
      %p173 = scmp.ne.s32.totalorder %s165, %s168
      %p174 = scmp.eq.s32.totalorder %s39, 0
      %p175 = por %p173, %p174
      %p176 = scmp.ne.s32.totalorder %s165, %s168
      %p177 = scmp.eq.s32.totalorder %s44, 3
      %p178 = por %p176, %p177
      %p179 = scmp.ne.s32.totalorder %s168, %s169
      %p180 = scmp.eq.s32.totalorder %s44, 0
      %p181 = por %p179, %p180
      %p182 = scmp.ne.s32.totalorder %s168, %s169
      %p183 = scmp.eq.s32.totalorder %s45, 3
      %p184 = por %p182, %p183
      %p186 = scmp.ne.s32.totalorder %s169, %s185
      %p187 = scmp.eq.s32.totalorder %s45, 0
      %p188 = por %p186, %p187
      %s189 = ssub.s32 %s47, %s54
      %p190 = scmp.eq.s32.totalorder %s189, 0
      %s192 = sadd.s32 %s191, 1
      %s193 = scalar_select %p190, %s191, %s192
      %p196 = pneg %p190
      %p197 = scmp.eq.s32.totalorder %s39, 3
      %p198 = por %p196, %p197
      %p199 = scmp.ne.s32.totalorder %s191, %s194
      %p200 = scmp.eq.s32.totalorder %s39, 0
      %p201 = por %p199, %p200
      %p202 = scmp.ne.s32.totalorder %s191, %s194
      %p203 = scmp.eq.s32.totalorder %s44, 3
      %p204 = por %p202, %p203
      %p205 = scmp.ne.s32.totalorder %s194, %s195
      %p206 = scmp.eq.s32.totalorder %s44, 0
      %p207 = por %p205, %p206
      %p208 = scmp.ne.s32.totalorder %s194, %s195
      %p209 = scmp.eq.s32.totalorder %s45, 3
      %p210 = por %p208, %p209
      %p212 = scmp.ne.s32.totalorder %s195, %s211
      %p213 = scmp.eq.s32.totalorder %s45, 0
      %p214 = por %p212, %p213
      %s215 = ssub.s32 %s47, %s54
      %p216 = scmp.eq.s32.totalorder %s215, 0
      %s218 = sadd.s32 %s217, 1
      %s219 = scalar_select %p216, %s217, %s218
      %p222 = pneg %p216
      %p223 = scmp.eq.s32.totalorder %s39, 3
      %p224 = por %p222, %p223
      %p225 = scmp.ne.s32.totalorder %s217, %s220
      %p226 = scmp.eq.s32.totalorder %s39, 0
      %p227 = por %p225, %p226
      %p228 = scmp.ne.s32.totalorder %s217, %s220
      %p229 = scmp.eq.s32.totalorder %s44, 3
      %p230 = por %p228, %p229
      %p231 = scmp.ne.s32.totalorder %s220, %s221
      %p232 = scmp.eq.s32.totalorder %s44, 0
      %p233 = por %p231, %p232
      %p234 = scmp.ne.s32.totalorder %s220, %s221
      %p235 = scmp.eq.s32.totalorder %s45, 3
      %p236 = por %p234, %p235
      %p238 = scmp.ne.s32.totalorder %s221, %s237
      %p239 = scmp.eq.s32.totalorder %s45, 0
      %p240 = por %p238, %p239
      %s241 = ssub.s32 %s47, %s54
      %p242 = scmp.eq.s32.totalorder %s241, 0
      %s244 = sadd.s32 %s243, 1
      %s245 = scalar_select %p242, %s243, %s244
      %p248 = pneg %p242
      %p249 = scmp.eq.s32.totalorder %s39, 3
      %p250 = por %p248, %p249
      %p251 = scmp.ne.s32.totalorder %s243, %s246
      %p252 = scmp.eq.s32.totalorder %s39, 0
      %p253 = por %p251, %p252
      %p254 = scmp.ne.s32.totalorder %s243, %s246
      %p255 = scmp.eq.s32.totalorder %s44, 3
      %p256 = por %p254, %p255
      %p257 = scmp.ne.s32.totalorder %s246, %s247
      %p258 = scmp.eq.s32.totalorder %s44, 0
      %p259 = por %p257, %p258
      %p260 = scmp.ne.s32.totalorder %s246, %s247
      %p261 = scmp.eq.s32.totalorder %s45, 3
      %p262 = por %p260, %p261
      %p264 = scmp.ne.s32.totalorder %s247, %s263
      %p265 = scmp.eq.s32.totalorder %s45, 0
      %p266 = por %p264, %p265
      %s267 = ssub.s32 %s47, %s54
      %p268 = scmp.eq.s32.totalorder %s267, 0
      %s270 = sadd.s32 %s269, 1
      %s271 = scalar_select %p268, %s269, %s270
      %p274 = pneg %p268
      %p275 = scmp.eq.s32.totalorder %s39, 3
      %p276 = por %p274, %p275
      %p277 = scmp.ne.s32.totalorder %s269, %s272
      %p278 = scmp.eq.s32.totalorder %s39, 0
      %p279 = por %p277, %p278
      %p280 = scmp.ne.s32.totalorder %s269, %s272
      %p281 = scmp.eq.s32.totalorder %s44, 3
      %p282 = por %p280, %p281
      %p283 = scmp.ne.s32.totalorder %s272, %s273
      %p284 = scmp.eq.s32.totalorder %s44, 0
      %p285 = por %p283, %p284
      %p286 = scmp.ne.s32.totalorder %s272, %s273
      %p287 = scmp.eq.s32.totalorder %s45, 3
      %p288 = por %p286, %p287
      %p290 = scmp.ne.s32.totalorder %s273, %s289
      %p291 = scmp.eq.s32.totalorder %s45, 0
      %p292 = por %p290, %p291
      %s293 = ssub.s32 %s47, %s54
      %p294 = scmp.eq.s32.totalorder %s293, 0
      %s296 = sadd.s32 %s295, 1
      %s297 = scalar_select %p294, %s295, %s296
      %p300 = pneg %p294
      %p301 = scmp.eq.s32.totalorder %s39, 3
      %p302 = por %p300, %p301
      %p303 = scmp.ne.s32.totalorder %s295, %s298
      %p304 = scmp.eq.s32.totalorder %s39, 0
      %p305 = por %p303, %p304
      %p306 = scmp.ne.s32.totalorder %s295, %s298
      %p307 = scmp.eq.s32.totalorder %s44, 3
      %p308 = por %p306, %p307
      %p309 = scmp.ne.s32.totalorder %s298, %s299
      %p310 = scmp.eq.s32.totalorder %s44, 0
      %p311 = por %p309, %p310
      %p312 = scmp.ne.s32.totalorder %s298, %s299
      %p313 = scmp.eq.s32.totalorder %s45, 3
      %p314 = por %p312, %p313
      %p316 = scmp.ne.s32.totalorder %s299, %s315
      %p317 = scmp.eq.s32.totalorder %s45, 0
      %p318 = por %p316, %p317
      %s319 = ssub.s32 %s47, %s54
      %p320 = scmp.eq.s32.totalorder %s319, 0
      %s322 = sadd.s32 %s321, 1
      %s323 = scalar_select %p320, %s321, %s322
      %p326 = pneg %p320
      %p327 = scmp.eq.s32.totalorder %s39, 3
      %p328 = por %p326, %p327
      %p329 = scmp.ne.s32.totalorder %s321, %s324
      %p330 = scmp.eq.s32.totalorder %s39, 0
      %p331 = por %p329, %p330
      %p332 = scmp.ne.s32.totalorder %s321, %s324
      %p333 = scmp.eq.s32.totalorder %s44, 3
      %p334 = por %p332, %p333
      %p335 = scmp.ne.s32.totalorder %s324, %s325
      %p336 = scmp.eq.s32.totalorder %s44, 0
      %p337 = por %p335, %p336
      %p338 = scmp.ne.s32.totalorder %s324, %s325
      %p339 = scmp.eq.s32.totalorder %s45, 3
      %p340 = por %p338, %p339
      %p342 = scmp.ne.s32.totalorder %s325, %s341
      %p343 = scmp.eq.s32.totalorder %s45, 0
      %p344 = por %p342, %p343
      %s345 = ssub.s32 %s47, %s54
      %p346 = scmp.eq.s32.totalorder %s345, 0
      %s348 = sadd.s32 %s347, 1
      %s349 = scalar_select %p346, %s347, %s348
      %p352 = pneg %p346
      %p353 = scmp.eq.s32.totalorder %s39, 3
      %p354 = por %p352, %p353
      %p355 = scmp.ne.s32.totalorder %s347, %s350
      %p356 = scmp.eq.s32.totalorder %s39, 0
      %p357 = por %p355, %p356
      %p358 = scmp.ne.s32.totalorder %s347, %s350
      %p359 = scmp.eq.s32.totalorder %s44, 3
      %p360 = por %p358, %p359
      %p361 = scmp.ne.s32.totalorder %s350, %s351
      %p362 = scmp.eq.s32.totalorder %s44, 0
      %p363 = por %p361, %p362
      %p364 = scmp.ne.s32.totalorder %s350, %s351
      %p365 = scmp.eq.s32.totalorder %s45, 3
      %p366 = por %p364, %p365
      %p368 = scmp.ne.s32.totalorder %s351, %s367
      %p369 = scmp.eq.s32.totalorder %s45, 0
      %p370 = por %p368, %p369
      %s371 = ssub.s32 %s47, %s54
      %p372 = scmp.eq.s32.totalorder %s371, 0
      %s374 = sadd.s32 %s373, 1
      %s375 = scalar_select %p372, %s373, %s374
      %p378 = pneg %p372
      %p379 = scmp.eq.s32.totalorder %s39, 3
      %p380 = por %p378, %p379
      %p381 = scmp.ne.s32.totalorder %s373, %s376
      %p382 = scmp.eq.s32.totalorder %s39, 0
      %p383 = por %p381, %p382
      %p384 = scmp.ne.s32.totalorder %s373, %s376
      %p385 = scmp.eq.s32.totalorder %s44, 3
      %p386 = por %p384, %p385
      %p387 = scmp.ne.s32.totalorder %s376, %s377
      %p388 = scmp.eq.s32.totalorder %s44, 0
      %p389 = por %p387, %p388
      %p390 = scmp.ne.s32.totalorder %s376, %s377
      %p391 = scmp.eq.s32.totalorder %s45, 3
      %p392 = por %p390, %p391
      %p394 = scmp.ne.s32.totalorder %s377, %s393
      %p395 = scmp.eq.s32.totalorder %s45, 0
      %p396 = por %p394, %p395
      %s397 = ssub.s32 %s47, %s54
      %p398 = scmp.eq.s32.totalorder %s397, 0
      %s400 = sadd.s32 %s399, 1
      %s401 = scalar_select %p398, %s399, %s400
      %p404 = pneg %p398
      %p405 = scmp.eq.s32.totalorder %s39, 3
      %p406 = por %p404, %p405
      %p407 = scmp.ne.s32.totalorder %s399, %s402
      %p408 = scmp.eq.s32.totalorder %s39, 0
      %p409 = por %p407, %p408
      %p410 = scmp.ne.s32.totalorder %s399, %s402
      %p411 = scmp.eq.s32.totalorder %s44, 3
      %p412 = por %p410, %p411
      %p413 = scmp.ne.s32.totalorder %s402, %s403
      %p414 = scmp.eq.s32.totalorder %s44, 0
      %p415 = por %p413, %p414
      %p416 = scmp.ne.s32.totalorder %s402, %s403
      %p417 = scmp.eq.s32.totalorder %s45, 3
      %p418 = por %p416, %p417
      %p420 = scmp.ne.s32.totalorder %s403, %s419
      %p421 = scmp.eq.s32.totalorder %s45, 0
      %p422 = por %p420, %p421
      %s423 = ssub.s32 %s47, %s54
      %p424 = scmp.eq.s32.totalorder %s423, 0
      %s426 = sadd.s32 %s425, 1
      %s427 = scalar_select %p424, %s425, %s426
      %p430 = pneg %p424
      %p431 = scmp.eq.s32.totalorder %s39, 3
      %p432 = por %p430, %p431
      %p433 = scmp.ne.s32.totalorder %s425, %s428
      %p434 = scmp.eq.s32.totalorder %s39, 0
      %p435 = por %p433, %p434
      %p436 = scmp.ne.s32.totalorder %s425, %s428
      %p437 = scmp.eq.s32.totalorder %s44, 3
      %p438 = por %p436, %p437
      %p439 = scmp.ne.s32.totalorder %s428, %s429
      %p440 = scmp.eq.s32.totalorder %s44, 0
      %p441 = por %p439, %p440
      %p442 = scmp.ne.s32.totalorder %s428, %s429
      %p443 = scmp.eq.s32.totalorder %s45, 3
      %p444 = por %p442, %p443
      %p446 = scmp.ne.s32.totalorder %s429, %s445
      %p447 = scmp.eq.s32.totalorder %s45, 0
      %p448 = por %p446, %p447
      %s449 = ssub.s32 %s46, %s58
      %p450 = scmp.eq.s32.totalorder %s449, 0
      %s452 = sadd.s32 %s451, 1
      %s453 = scalar_select %p450, %s451, %s452
      %p456 = pneg %p450
      %p457 = scmp.eq.s32.totalorder %s39, 3
      %p458 = por %p456, %p457
      %p459 = scmp.ne.s32.totalorder %s451, %s454
      %p460 = scmp.eq.s32.totalorder %s39, 0
      %p461 = por %p459, %p460
      %p462 = scmp.ne.s32.totalorder %s451, %s454
      %p463 = scmp.eq.s32.totalorder %s44, 3
      %p464 = por %p462, %p463
      %p465 = scmp.ne.s32.totalorder %s454, %s455
      %p466 = scmp.eq.s32.totalorder %s44, 0
      %p467 = por %p465, %p466
      %p468 = scmp.ne.s32.totalorder %s454, %s455
      %p469 = scmp.eq.s32.totalorder %s45, 3
      %p470 = por %p468, %p469
      %p472 = scmp.ne.s32.totalorder %s455, %s471
      %p473 = scmp.eq.s32.totalorder %s45, 0
      %p474 = por %p472, %p473
      %p475 = scmp.le.s32.totalorder 1, %s39
      %p476 = scmp.lt.s32.totalorder %s39, 5
      %p477 = pnand %p475, %p476
      %p478 = pneg %p477
      // Predicated region
      $region9: #{tpu_custom_call.1} parent=5 // pred_check
        _
      $region10: #{tpu_custom_call.1} parent=5 // pred_check_branch
        %480 = sbr.rel (%p477) target = $region12
      $region11: #{tpu_custom_call.1} parent=5 // pred_region
        %s481 = ssub.s32 %s39, 1
      $region12: #{tpu_custom_call.1} parent=5 // pred_fallthru
        _
      %p482 = scmp.lt.s32.totalorder %s39, 4
      // Predicated region
      $region13: #{tpu_custom_call.1} parent=5 // pred_check
        %p483 = pneg %p482
      $region14: #{tpu_custom_call.1} parent=5 // pred_check_branch
        %485 = sbr.rel (%p483) target = $region16
      $region15: #{tpu_custom_call.1} parent=5 // pred_region
        // Predicated region
        $region17: #{tpu_custom_call.1} parent=15 // pred_check
          %p486 = pneg %p71
        $region18: #{tpu_custom_call.1} parent=15 // pred_check_branch
          %488 = sbr.rel (%p486) target = $region20
        $region19: #{tpu_custom_call.1} parent=15 // pred_region
          %s489 = sand.u32 %s61, 1
          %s490 = scalar_lea.sflag [#allocation4], %s489
          %s491 = sand.u32 %s61, 1
          %s492 = smul.addr %s491, 256
          %s493 = scalar_lea.vmem [#allocation3], %s492
          %s494 = smul.u32 8, %s46
          %s496 = ssub.s32 4096, 4096
          %497 = vsyncadd %s490, %s496
          %s498 = smul.addr %s494, 4
          %s499 = smul.addr %s498, 128
          %s500 = scalar_lea.hbm %s0, %s499
          %s501 = sshll.u32 %s493, 4
          %s502 = int_to_ptr.vmem [resolvable:$true] %s501
          %507 = dma.hbm_to_vmem [thread:$0]  %s500, 4096, %s502, %s490, 256, 256, 16
        $region20: #{tpu_custom_call.1} parent=15 // pred_fallthru
          _
        // Predicated region
        $region21: #{tpu_custom_call.1} parent=15 // pred_check
          %p508 = pneg %p97
        $region22: #{tpu_custom_call.1} parent=15 // pred_check_branch
          %510 = sbr.rel (%p508) target = $region24
        $region23: #{tpu_custom_call.1} parent=15 // pred_region
          %s511 = sand.u32 %s39, 1
          %s512 = scalar_lea.sflag [#allocation7], %s511
          %s513 = sand.u32 %s87, 1
          %s514 = smul.addr %s513, 256
          %s515 = scalar_lea.vmem [#allocation6], %s514
          %s517 = ssub.s32 4096, 4096
          %518 = vsyncadd %s512, %s517
          %s519 = smul.addr %s47, 64
          %s520 = smul.addr %s519, 64
          %s521 = scalar_lea.hbm %s1, %s520
          %s522 = sshll.u32 %s515, 4
          %s523 = int_to_ptr.vmem [resolvable:$true] %s522
          %528 = dma.hbm_to_vmem [thread:$0]  %s521, 4096, %s523, %s512, 128, 128, 8
        $region24: #{tpu_custom_call.1} parent=15 // pred_fallthru
          _
        // Predicated region
        $region25: #{tpu_custom_call.1} parent=15 // pred_check
          %p529 = pneg %p123
        $region26: #{tpu_custom_call.1} parent=15 // pred_check_branch
          %531 = sbr.rel (%p529) target = $region28
        $region27: #{tpu_custom_call.1} parent=15 // pred_region
          %p532 = scmp.lt.s32.totalorder %s47, 1
          %s533 = scalar_select %p532, %s47, 1
          %s534 = smul.addr %s533, 2
          %s535 = scalar_lea.vmem %s2, %s534
        $region28: #{tpu_custom_call.1} parent=15 // pred_fallthru
          _
        // Predicated region
        $region29: #{tpu_custom_call.1} parent=15 // pred_check
          %p536 = pneg %p149
        $region30: #{tpu_custom_call.1} parent=15 // pred_check_branch
          %538 = sbr.rel (%p536) target = $region32
        $region31: #{tpu_custom_call.1} parent=15 // pred_region
          %s539 = sand.u32 %s39, 1
          %s540 = scalar_lea.sflag [#allocation7], %s539
          %s541 = sand.u32 %s139, 1
          %s542 = smul.addr %s541, 256
          %s543 = scalar_lea.vmem [#allocation8], %s542
          %s545 = ssub.s32 4096, 4096
          %546 = vsyncadd %s540, %s545
          %s547 = smul.addr %s47, 64
          %s548 = smul.addr %s547, 64
          %s549 = scalar_lea.hbm %s3, %s548
          %s550 = sshll.u32 %s543, 4
          %s551 = int_to_ptr.vmem [resolvable:$true] %s550
          %556 = dma.hbm_to_vmem [thread:$0]  %s549, 4096, %s551, %s540, 128, 128, 8
        $region32: #{tpu_custom_call.1} parent=15 // pred_fallthru
          _
        // Predicated region
        $region33: #{tpu_custom_call.1} parent=15 // pred_check
          %p557 = pneg %p175
        $region34: #{tpu_custom_call.1} parent=15 // pred_check_branch
          %559 = sbr.rel (%p557) target = $region36
        $region35: #{tpu_custom_call.1} parent=15 // pred_region
          %p560 = scmp.lt.s32.totalorder %s47, 1
          %s561 = scalar_select %p560, %s47, 1
          %s562 = smul.addr %s561, 2
          %s563 = scalar_lea.vmem %s4, %s562
        $region36: #{tpu_custom_call.1} parent=15 // pred_fallthru
          _
        // Predicated region
        $region37: #{tpu_custom_call.1} parent=15 // pred_check
          %p564 = pneg %p201
        $region38: #{tpu_custom_call.1} parent=15 // pred_check_branch
          %566 = sbr.rel (%p564) target = $region40
        $region39: #{tpu_custom_call.1} parent=15 // pred_region
          %s567 = sand.u32 %s39, 1
          %s568 = scalar_lea.sflag [#allocation10], %s567
          %s569 = sand.u32 %s191, 1
          %s570 = smul.addr %s569, 256
          %s571 = scalar_lea.vmem [#allocation9], %s570
          %s573 = ssub.s32 4096, 4096
          %574 = vsyncadd %s568, %s573
          %s575 = smul.addr %s47, 64
          %s576 = smul.addr %s575, 64
          %s577 = scalar_lea.hbm %s5, %s576
          %s578 = sshll.u32 %s571, 4
          %s579 = int_to_ptr.vmem [resolvable:$true] %s578
          %584 = dma.hbm_to_vmem [thread:$0]  %s577, 4096, %s579, %s568, 128, 128, 8
        $region40: #{tpu_custom_call.1} parent=15 // pred_fallthru
          _
        // Predicated region
        $region41: #{tpu_custom_call.1} parent=15 // pred_check
          %p585 = pneg %p227
        $region42: #{tpu_custom_call.1} parent=15 // pred_check_branch
          %587 = sbr.rel (%p585) target = $region44
        $region43: #{tpu_custom_call.1} parent=15 // pred_region
          %p588 = scmp.lt.s32.totalorder %s47, 1
          %s589 = scalar_select %p588, %s47, 1
          %s590 = smul.addr %s589, 2
          %s591 = scalar_lea.vmem %s6, %s590
        $region44: #{tpu_custom_call.1} parent=15 // pred_fallthru
          _
        // Predicated region
        $region45: #{tpu_custom_call.1} parent=15 // pred_check
          %p592 = pneg %p253
        $region46: #{tpu_custom_call.1} parent=15 // pred_check_branch
          %594 = sbr.rel (%p592) target = $region48
        $region47: #{tpu_custom_call.1} parent=15 // pred_region
          %s595 = sand.u32 %s39, 1
          %s596 = scalar_lea.sflag [#allocation10], %s595
          %s597 = sand.u32 %s243, 1
          %s598 = smul.addr %s597, 2
          %s599 = scalar_lea.vmem [#allocation11], %s598
          %s601 = ssub.s32 32, 32
          %602 = vsyncadd %s596, %s601
          %s603 = smul.addr %s47, 2
          %s604 = smul.addr %s603, 16
          %s605 = scalar_lea.hbm %s7, %s604
          %s607 = sshll.u32 %s599, 4
          %s608 = int_to_ptr.vmem [resolvable:$true] %s607
          %610 = dma.hbm_to_vmem [thread:$0]  %s605, 32, %s608, %s596
        $region48: #{tpu_custom_call.1} parent=15 // pred_fallthru
          _
        // Predicated region
        $region49: #{tpu_custom_call.1} parent=15 // pred_check
          %p611 = pneg %p279
        $region50: #{tpu_custom_call.1} parent=15 // pred_check_branch
          %613 = sbr.rel (%p611) target = $region52
        $region51: #{tpu_custom_call.1} parent=15 // pred_region
          %s614 = sand.u32 %s39, 1
          %s615 = scalar_lea.sflag [#allocation13], %s614
          %s616 = sand.u32 %s269, 1
          %s617 = smul.addr %s616, 2
          %s618 = scalar_lea.vmem [#allocation12], %s617
          %s620 = ssub.s32 32, 32
          %621 = vsyncadd %s615, %s620
          %s622 = smul.addr %s47, 2
          %s623 = smul.addr %s622, 16
          %s624 = scalar_lea.hbm %s8, %s623
          %s626 = sshll.u32 %s618, 4
          %s627 = int_to_ptr.vmem [resolvable:$true] %s626
          %629 = dma.hbm_to_vmem [thread:$0]  %s624, 32, %s627, %s615
        $region52: #{tpu_custom_call.1} parent=15 // pred_fallthru
          _
        // Predicated region
        $region53: #{tpu_custom_call.1} parent=15 // pred_check
          %p630 = pneg %p305
        $region54: #{tpu_custom_call.1} parent=15 // pred_check_branch
          %632 = sbr.rel (%p630) target = $region56
        $region55: #{tpu_custom_call.1} parent=15 // pred_region
          %s633 = sand.u32 %s39, 1
          %s634 = scalar_lea.sflag [#allocation13], %s633
          %s635 = sand.u32 %s295, 1
          %s636 = smul.addr %s635, 1024
          %s637 = scalar_lea.vmem [#allocation14], %s636
          %s639 = ssub.s32 16384, 16384
          %640 = vsyncadd %s634, %s639
          %s641 = smul.addr %s47, 256
          %s642 = smul.addr %s641, 64
          %s643 = scalar_lea.hbm %s9, %s642
          %s644 = sshll.u32 %s637, 4
          %s645 = int_to_ptr.vmem [resolvable:$true] %s644
          %650 = dma.hbm_to_vmem [thread:$0]  %s643, 16384, %s645, %s634, 512, 512, 32
        $region56: #{tpu_custom_call.1} parent=15 // pred_fallthru
          _
        // Predicated region
        $region57: #{tpu_custom_call.1} parent=15 // pred_check
          %p651 = pneg %p331
        $region58: #{tpu_custom_call.1} parent=15 // pred_check_branch
          %653 = sbr.rel (%p651) target = $region60
        $region59: #{tpu_custom_call.1} parent=15 // pred_region
          %p654 = scmp.lt.s32.totalorder %s47, 1
          %s655 = scalar_select %p654, %s47, 1
          %s656 = smul.addr %s655, 8
          %s657 = scalar_lea.vmem %s10, %s656
        $region60: #{tpu_custom_call.1} parent=15 // pred_fallthru
          _
        // Predicated region
        $region61: #{tpu_custom_call.1} parent=15 // pred_check
          %p658 = pneg %p357
        $region62: #{tpu_custom_call.1} parent=15 // pred_check_branch
          %660 = sbr.rel (%p658) target = $region64
        $region63: #{tpu_custom_call.1} parent=15 // pred_region
          %s661 = sand.u32 %s347, 1
          %s662 = scalar_lea.sflag [#allocation16], %s661
          %s663 = sand.u32 %s347, 1
          %s664 = smul.addr %s663, 1024
          %s665 = scalar_lea.vmem [#allocation15], %s664
          %s667 = ssub.s32 16384, 16384
          %668 = vsyncadd %s662, %s667
          %s669 = smul.addr %s47, 256
          %s670 = smul.addr %s669, 64
          %s671 = scalar_lea.hbm %s11, %s670
          %s672 = sshll.u32 %s665, 4
          %s673 = int_to_ptr.vmem [resolvable:$true] %s672
          %678 = dma.hbm_to_vmem [thread:$0]  %s671, 16384, %s673, %s662, 128, 128, 8
        $region64: #{tpu_custom_call.1} parent=15 // pred_fallthru
          _
        // Predicated region
        $region65: #{tpu_custom_call.1} parent=15 // pred_check
          %p679 = pneg %p383
        $region66: #{tpu_custom_call.1} parent=15 // pred_check_branch
          %681 = sbr.rel (%p679) target = $region68
        $region67: #{tpu_custom_call.1} parent=15 // pred_region
          %p682 = scmp.lt.s32.totalorder %s47, 1
          %s683 = scalar_select %p682, %s47, 1
          %s684 = smul.addr %s683, 2
          %s685 = scalar_lea.vmem %s12, %s684
        $region68: #{tpu_custom_call.1} parent=15 // pred_fallthru
          _
        // Predicated region
        $region69: #{tpu_custom_call.1} parent=15 // pred_check
          %p686 = pneg %p409
        $region70: #{tpu_custom_call.1} parent=15 // pred_check_branch
          %688 = sbr.rel (%p686) target = $region72
        $region71: #{tpu_custom_call.1} parent=15 // pred_region
          %p689 = scmp.lt.s32.totalorder %s47, 1
          %s690 = scalar_select %p689, %s47, 1
          %s691 = smul.addr %s690, 2
          %s692 = scalar_lea.vmem %s13, %s691
        $region72: #{tpu_custom_call.1} parent=15 // pred_fallthru
          _
        // Predicated region
        $region73: #{tpu_custom_call.1} parent=15 // pred_check
          %p693 = pneg %p435
        $region74: #{tpu_custom_call.1} parent=15 // pred_check_branch
          %695 = sbr.rel (%p693) target = $region76
        $region75: #{tpu_custom_call.1} parent=15 // pred_region
          %p696 = scmp.lt.s32.totalorder %s47, 1
          %s697 = scalar_select %p696, %s47, 1
          %s698 = smul.addr %s697, 2
          %s699 = scalar_lea.vmem %s14, %s698
        $region76: #{tpu_custom_call.1} parent=15 // pred_fallthru
          _
      $region16: #{tpu_custom_call.1} parent=5 // pred_fallthru
        _
      %p700 = scmp.le.s32.totalorder 1, %s39
      %p701 = scmp.lt.s32.totalorder %s39, 5
      %p702 = pnand %p700, %p701
      %p703 = pneg %p702
      // Predicated region
      $region77: #{tpu_custom_call.1} parent=5 // pred_check
        _
      $region78: #{tpu_custom_call.1} parent=5 // pred_check_branch
        %705 = sbr.rel (%p702) target = $region80
      $region79: #{tpu_custom_call.1} parent=5 // pred_region
        %s706 = ssub.s32 %s39, 1
        %s707 = sand.u32 %s64, 1
        %s708 = scalar_lea.sflag [#allocation4], %s707
        %s709 = sand.u32 %s64, 1
        %s710 = smul.addr %s709, 256
        %s711 = scalar_lea.vmem [#allocation3], %s710
        // Predicated region
        $region81: #{tpu_custom_call.1} parent=79 // pred_check
          %p712 = pneg %p77
        $region82: #{tpu_custom_call.1} parent=79 // pred_check_branch
          %714 = sbr.rel (%p712) target = $region84
        $region83: #{tpu_custom_call.1} parent=79 // pred_region
          %715 = dma.done %s708, 4096
        $region84: #{tpu_custom_call.1} parent=79 // pred_fallthru
          _
        %s716 = sand.u32 %s44, 1
        %s717 = scalar_lea.sflag [#allocation7], %s716
        %s718 = sand.u32 %s90, 1
        %s719 = smul.addr %s718, 256
        %s720 = scalar_lea.vmem [#allocation6], %s719
        // Predicated region
        $region85: #{tpu_custom_call.1} parent=79 // pred_check
          %p721 = pneg %p103
        $region86: #{tpu_custom_call.1} parent=79 // pred_check_branch
          %723 = sbr.rel (%p721) target = $region88
        $region87: #{tpu_custom_call.1} parent=79 // pred_region
          %724 = dma.done %s717, 4096
        $region88: #{tpu_custom_call.1} parent=79 // pred_fallthru
          _
        %s725 = sand.u32 %s44, 1
        %s726 = scalar_lea.sflag [#allocation7], %s725
        %s727 = sand.u32 %s142, 1
        %s728 = smul.addr %s727, 256
        %s729 = scalar_lea.vmem [#allocation8], %s728
        // Predicated region
        $region89: #{tpu_custom_call.1} parent=79 // pred_check
          %p730 = pneg %p155
        $region90: #{tpu_custom_call.1} parent=79 // pred_check_branch
          %732 = sbr.rel (%p730) target = $region92
        $region91: #{tpu_custom_call.1} parent=79 // pred_region
          %733 = dma.done %s726, 4096
        $region92: #{tpu_custom_call.1} parent=79 // pred_fallthru
          _
        %s734 = sand.u32 %s44, 1
        %s735 = scalar_lea.sflag [#allocation10], %s734
        %s736 = sand.u32 %s194, 1
        %s737 = smul.addr %s736, 256
        %s738 = scalar_lea.vmem [#allocation9], %s737
        // Predicated region
        $region93: #{tpu_custom_call.1} parent=79 // pred_check
          %p739 = pneg %p207
        $region94: #{tpu_custom_call.1} parent=79 // pred_check_branch
          %741 = sbr.rel (%p739) target = $region96
        $region95: #{tpu_custom_call.1} parent=79 // pred_region
          %742 = dma.done %s735, 4096
        $region96: #{tpu_custom_call.1} parent=79 // pred_fallthru
          _
        %s743 = sand.u32 %s44, 1
        %s744 = scalar_lea.sflag [#allocation10], %s743
        %s745 = sand.u32 %s246, 1
        %s746 = smul.addr %s745, 2
        %s747 = scalar_lea.vmem [#allocation11], %s746
        // Predicated region
        $region97: #{tpu_custom_call.1} parent=79 // pred_check
          %p748 = pneg %p259
        $region98: #{tpu_custom_call.1} parent=79 // pred_check_branch
          %750 = sbr.rel (%p748) target = $region100
        $region99: #{tpu_custom_call.1} parent=79 // pred_region
          %751 = dma.done %s744, 32
        $region100: #{tpu_custom_call.1} parent=79 // pred_fallthru
          _
        %s752 = sand.u32 %s44, 1
        %s753 = scalar_lea.sflag [#allocation13], %s752
        %s754 = sand.u32 %s272, 1
        %s755 = smul.addr %s754, 2
        %s756 = scalar_lea.vmem [#allocation12], %s755
        // Predicated region
        $region101: #{tpu_custom_call.1} parent=79 // pred_check
          %p757 = pneg %p285
        $region102: #{tpu_custom_call.1} parent=79 // pred_check_branch
          %759 = sbr.rel (%p757) target = $region104
        $region103: #{tpu_custom_call.1} parent=79 // pred_region
          %760 = dma.done %s753, 32
        $region104: #{tpu_custom_call.1} parent=79 // pred_fallthru
          _
        %s761 = sand.u32 %s44, 1
        %s762 = scalar_lea.sflag [#allocation13], %s761
        %s763 = sand.u32 %s298, 1
        %s764 = smul.addr %s763, 1024
        %s765 = scalar_lea.vmem [#allocation14], %s764
        // Predicated region
        $region105: #{tpu_custom_call.1} parent=79 // pred_check
          %p766 = pneg %p311
        $region106: #{tpu_custom_call.1} parent=79 // pred_check_branch
          %768 = sbr.rel (%p766) target = $region108
        $region107: #{tpu_custom_call.1} parent=79 // pred_region
          %769 = dma.done %s762, 16384
        $region108: #{tpu_custom_call.1} parent=79 // pred_fallthru
          _
        %s770 = sand.u32 %s350, 1
        %s771 = scalar_lea.sflag [#allocation16], %s770
        %s772 = sand.u32 %s350, 1
        %s773 = smul.addr %s772, 1024
        %s774 = scalar_lea.vmem [#allocation15], %s773
        // Predicated region
        $region109: #{tpu_custom_call.1} parent=79 // pred_check
          %p775 = pneg %p363
        $region110: #{tpu_custom_call.1} parent=79 // pred_check_branch
          %777 = sbr.rel (%p775) target = $region112
        $region111: #{tpu_custom_call.1} parent=79 // pred_region
          %778 = dma.done %s771, 16384
        $region112: #{tpu_custom_call.1} parent=79 // pred_fallthru
          _
        %s779 = sand.u32 %s64, 1
        %s780 = scalar_lea.sflag [#allocation4], %s779
        %s781 = sand.u32 %s64, 1
        %s782 = smul.addr %s781, 256
        %s783 = scalar_lea.vmem [#allocation3], %s782
        %p784 = pneg %p77
        %p785 = pneg %p74
        %s786 = sand.u32 %s44, 1
        %s787 = scalar_lea.sflag [#allocation7], %s786
        %s788 = sand.u32 %s90, 1
        %s789 = smul.addr %s788, 256
        %s790 = scalar_lea.vmem [#allocation6], %s789
        %p791 = pneg %p103
        %p792 = pneg %p100
        %p793 = scmp.lt.s32.totalorder %s49, 1
        %s794 = scalar_select %p793, %s49, 1
        %s795 = smul.addr %s794, 2
        %s796 = scalar_lea.vmem %s2, %s795
        %p797 = pneg %p129
        %p798 = pneg %p126
        %s799 = sand.u32 %s44, 1
        %s800 = scalar_lea.sflag [#allocation7], %s799
        %s801 = sand.u32 %s142, 1
        %s802 = smul.addr %s801, 256
        %s803 = scalar_lea.vmem [#allocation8], %s802
        %p804 = pneg %p155
        %p805 = pneg %p152
        %p806 = scmp.lt.s32.totalorder %s49, 1
        %s807 = scalar_select %p806, %s49, 1
        %s808 = smul.addr %s807, 2
        %s809 = scalar_lea.vmem %s4, %s808
        %p810 = pneg %p181
        %p811 = pneg %p178
        %s812 = sand.u32 %s44, 1
        %s813 = scalar_lea.sflag [#allocation10], %s812
        %s814 = sand.u32 %s194, 1
        %s815 = smul.addr %s814, 256
        %s816 = scalar_lea.vmem [#allocation9], %s815
        %p817 = pneg %p207
        %p818 = pneg %p204
        %p819 = scmp.lt.s32.totalorder %s49, 1
        %s820 = scalar_select %p819, %s49, 1
        %s821 = smul.addr %s820, 2
        %s822 = scalar_lea.vmem %s6, %s821
        %p823 = pneg %p233
        %p824 = pneg %p230
        %s825 = sand.u32 %s44, 1
        %s826 = scalar_lea.sflag [#allocation10], %s825
        %s827 = sand.u32 %s246, 1
        %s828 = smul.addr %s827, 2
        %s829 = scalar_lea.vmem [#allocation11], %s828
        %p830 = pneg %p259
        %p831 = pneg %p256
        %s832 = sand.u32 %s44, 1
        %s833 = scalar_lea.sflag [#allocation13], %s832
        %s834 = sand.u32 %s272, 1
        %s835 = smul.addr %s834, 2
        %s836 = scalar_lea.vmem [#allocation12], %s835
        %p837 = pneg %p285
        %p838 = pneg %p282
        %s839 = sand.u32 %s44, 1
        %s840 = scalar_lea.sflag [#allocation13], %s839
        %s841 = sand.u32 %s298, 1
        %s842 = smul.addr %s841, 1024
        %s843 = scalar_lea.vmem [#allocation14], %s842
        %p844 = pneg %p311
        %p845 = pneg %p308
        %p846 = scmp.lt.s32.totalorder %s49, 1
        %s847 = scalar_select %p846, %s49, 1
        %s848 = smul.addr %s847, 8
        %s849 = scalar_lea.vmem %s10, %s848
        %p850 = pneg %p337
        %p851 = pneg %p334
        %s852 = sand.u32 %s350, 1
        %s853 = scalar_lea.sflag [#allocation16], %s852
        %s854 = sand.u32 %s350, 1
        %s855 = smul.addr %s854, 1024
        %s856 = scalar_lea.vmem [#allocation15], %s855
        %p857 = pneg %p363
        %p858 = pneg %p360
        %p859 = scmp.lt.s32.totalorder %s49, 1
        %s860 = scalar_select %p859, %s49, 1
        %s861 = smul.addr %s860, 2
        %s862 = scalar_lea.vmem %s12, %s861
        %p863 = pneg %p389
        %p864 = pneg %p386
        %p865 = scmp.lt.s32.totalorder %s49, 1
        %s866 = scalar_select %p865, %s49, 1
        %s867 = smul.addr %s866, 2
        %s868 = scalar_lea.vmem %s13, %s867
        %p869 = pneg %p415
        %p870 = pneg %p412
        %p871 = scmp.lt.s32.totalorder %s49, 1
        %s872 = scalar_select %p871, %s49, 1
        %s873 = smul.addr %s872, 2
        %s874 = scalar_lea.vmem %s14, %s873
        %p875 = pneg %p441
        %p876 = pneg %p438
        %p877 = pneg %p467
        %p878 = pneg %p464
        %s879 = sand.u32 %s454, 1
        %s880 = scalar_lea.sflag [#allocation5], %s879
        %s881 = sand.u32 %s454, 1
        %s882 = smul.addr %s881, 256
        %s883 = scalar_lea.vmem [#allocation17], %s882
        %s884 = smul.u32 8, %s48
        %p885 = scmp.lt.s32.totalorder %s49, 1
        %s886 = scalar_select %p885, %s49, 1
        %s887 = smul.addr %s886, 2
        %s888 = scalar_lea.vmem %s2, %s887
        %p889 = scmp.lt.s32.totalorder %s49, 1
        %s890 = scalar_select %p889, %s49, 1
        %s891 = smul.addr %s890, 2
        %s892 = scalar_lea.vmem %s4, %s891
        %p893 = scmp.lt.s32.totalorder %s49, 1
        %s894 = scalar_select %p893, %s49, 1
        %s895 = smul.addr %s894, 2
        %s896 = scalar_lea.vmem %s6, %s895
        %p897 = scmp.lt.s32.totalorder %s49, 1
        %s898 = scalar_select %p897, %s49, 1
        %s899 = smul.addr %s898, 8
        %s900 = scalar_lea.vmem %s10, %s899
        %p901 = scmp.lt.s32.totalorder %s49, 1
        %s902 = scalar_select %p901, %s49, 1
        %s903 = smul.addr %s902, 2
        %s904 = scalar_lea.vmem %s12, %s903
        %p905 = scmp.lt.s32.totalorder %s49, 1
        %s906 = scalar_select %p905, %s49, 1
        %s907 = smul.addr %s906, 2
        %s908 = scalar_lea.vmem %s13, %s907
        %p909 = scmp.lt.s32.totalorder %s49, 1
        %s910 = scalar_select %p909, %s49, 1
        %s911 = smul.addr %s910, 2
        %s912 = scalar_lea.vmem %s14, %s911
        %s913 = smul.u32 8, %s48
        %p915 = scmp.eq.s32.totalorder %s49, 0
        // Predicated region
        $region113: #{tpu_custom_call.1} parent=79 // pred_check
          %p916 = pneg %p915
        $region114: #{tpu_custom_call.1} parent=79 // pred_check_branch
          %918 = sbr.rel (%p916) target = $region116
        $region115: #{tpu_custom_call.1} parent=79 // pred_region
          %v919 = vld [vmem:[%s711] sm:$0xff]
          %v920 = vld [vmem:[%s711 + $0x8] sm:$0xff]
          %v921 = vld [vmem:[%s711 + $0x10] sm:$0xff]
          %v922 = vld [vmem:[%s711 + $0x18] sm:$0xff]
          %v923 = vld [vmem:[%s711 + $0x20] sm:$0xff]
          %v924 = vld [vmem:[%s711 + $0x28] sm:$0xff]
          %v925 = vld [vmem:[%s711 + $0x30] sm:$0xff]
          %v926 = vld [vmem:[%s711 + $0x38] sm:$0xff]
          %v927 = vld [vmem:[%s711 + $0x40] sm:$0xff]
          %v928 = vld [vmem:[%s711 + $0x48] sm:$0xff]
          %v929 = vld [vmem:[%s711 + $0x50] sm:$0xff]
          %v930 = vld [vmem:[%s711 + $0x58] sm:$0xff]
          %v931 = vld [vmem:[%s711 + $0x60] sm:$0xff]
          %v932 = vld [vmem:[%s711 + $0x68] sm:$0xff]
          %v933 = vld [vmem:[%s711 + $0x70] sm:$0xff]
          %v934 = vld [vmem:[%s711 + $0x78] sm:$0xff]
          %v935 = vld [vmem:[%s711 + $0x80] sm:$0xff]
          %v936 = vld [vmem:[%s711 + $0x88] sm:$0xff]
          %v937 = vld [vmem:[%s711 + $0x90] sm:$0xff]
          %v938 = vld [vmem:[%s711 + $0x98] sm:$0xff]
          %v939 = vld [vmem:[%s711 + $0xa0] sm:$0xff]
          %v940 = vld [vmem:[%s711 + $0xa8] sm:$0xff]
          %v941 = vld [vmem:[%s711 + $0xb0] sm:$0xff]
          %v942 = vld [vmem:[%s711 + $0xb8] sm:$0xff]
          %v943 = vld [vmem:[%s711 + $0xc0] sm:$0xff]
          %v944 = vld [vmem:[%s711 + $0xc8] sm:$0xff]
          %v945 = vld [vmem:[%s711 + $0xd0] sm:$0xff]
          %v946 = vld [vmem:[%s711 + $0xd8] sm:$0xff]
          %v947 = vld [vmem:[%s711 + $0xe0] sm:$0xff]
          %v948 = vld [vmem:[%s711 + $0xe8] sm:$0xff]
          %v949 = vld [vmem:[%s711 + $0xf0] sm:$0xff]
          %v950 = vld [vmem:[%s711 + $0xf8] sm:$0xff]
          %951 = vst [vmem:[#allocation2] sm:$0xff] %v919
          %952 = vst [vmem:[#allocation2 + $0x8] sm:$0xff] %v920
          %953 = vst [vmem:[#allocation2 + $0x10] sm:$0xff] %v921
          %954 = vst [vmem:[#allocation2 + $0x18] sm:$0xff] %v922
          %955 = vst [vmem:[#allocation2 + $0x20] sm:$0xff] %v923
          %956 = vst [vmem:[#allocation2 + $0x28] sm:$0xff] %v924
          %957 = vst [vmem:[#allocation2 + $0x30] sm:$0xff] %v925
          %958 = vst [vmem:[#allocation2 + $0x38] sm:$0xff] %v926
          %959 = vst [vmem:[#allocation2 + $0x40] sm:$0xff] %v927
          %960 = vst [vmem:[#allocation2 + $0x48] sm:$0xff] %v928
          %961 = vst [vmem:[#allocation2 + $0x50] sm:$0xff] %v929
          %962 = vst [vmem:[#allocation2 + $0x58] sm:$0xff] %v930
          %963 = vst [vmem:[#allocation2 + $0x60] sm:$0xff] %v931
          %964 = vst [vmem:[#allocation2 + $0x68] sm:$0xff] %v932
          %965 = vst [vmem:[#allocation2 + $0x70] sm:$0xff] %v933
          %966 = vst [vmem:[#allocation2 + $0x78] sm:$0xff] %v934
          %967 = vst [vmem:[#allocation2 + $0x80] sm:$0xff] %v935
          %968 = vst [vmem:[#allocation2 + $0x88] sm:$0xff] %v936
          %969 = vst [vmem:[#allocation2 + $0x90] sm:$0xff] %v937
          %970 = vst [vmem:[#allocation2 + $0x98] sm:$0xff] %v938
          %971 = vst [vmem:[#allocation2 + $0xa0] sm:$0xff] %v939
          %972 = vst [vmem:[#allocation2 + $0xa8] sm:$0xff] %v940
          %973 = vst [vmem:[#allocation2 + $0xb0] sm:$0xff] %v941
          %974 = vst [vmem:[#allocation2 + $0xb8] sm:$0xff] %v942
          %975 = vst [vmem:[#allocation2 + $0xc0] sm:$0xff] %v943
          %976 = vst [vmem:[#allocation2 + $0xc8] sm:$0xff] %v944
          %977 = vst [vmem:[#allocation2 + $0xd0] sm:$0xff] %v945
          %978 = vst [vmem:[#allocation2 + $0xd8] sm:$0xff] %v946
          %979 = vst [vmem:[#allocation2 + $0xe0] sm:$0xff] %v947
          %980 = vst [vmem:[#allocation2 + $0xe8] sm:$0xff] %v948
          %981 = vst [vmem:[#allocation2 + $0xf0] sm:$0xff] %v949
          %982 = vst [vmem:[#allocation2 + $0xf8] sm:$0xff] %v950
        $region116: #{tpu_custom_call.1} parent=79 // pred_fallthru
          _
        %v983 = vld [vmem:[#allocation2] sm:$0xff]
        %v984 = vld [vmem:[#allocation2 + $0x8] sm:$0xff]
        %v985 = vld [vmem:[#allocation2 + $0x10] sm:$0xff]
        %v986 = vld [vmem:[#allocation2 + $0x18] sm:$0xff]
        %v987 = vld [vmem:[#allocation2 + $0x20] sm:$0xff]
        %v988 = vld [vmem:[#allocation2 + $0x28] sm:$0xff]
        %v989 = vld [vmem:[#allocation2 + $0x30] sm:$0xff]
        %v990 = vld [vmem:[#allocation2 + $0x38] sm:$0xff]
        %v991 = vld [vmem:[#allocation2 + $0x40] sm:$0xff]
        %v992 = vld [vmem:[#allocation2 + $0x48] sm:$0xff]
        %v993 = vld [vmem:[#allocation2 + $0x50] sm:$0xff]
        %v994 = vld [vmem:[#allocation2 + $0x58] sm:$0xff]
        %v995 = vld [vmem:[#allocation2 + $0x60] sm:$0xff]
        %v996 = vld [vmem:[#allocation2 + $0x68] sm:$0xff]
        %v997 = vld [vmem:[#allocation2 + $0x70] sm:$0xff]
        %v998 = vld [vmem:[#allocation2 + $0x78] sm:$0xff]
        %v999 = vld [vmem:[#allocation2 + $0x80] sm:$0xff]
        %v1000 = vld [vmem:[#allocation2 + $0x88] sm:$0xff]
        %v1001 = vld [vmem:[#allocation2 + $0x90] sm:$0xff]
        %v1002 = vld [vmem:[#allocation2 + $0x98] sm:$0xff]
        %v1003 = vld [vmem:[#allocation2 + $0xa0] sm:$0xff]
        %v1004 = vld [vmem:[#allocation2 + $0xa8] sm:$0xff]
        %v1005 = vld [vmem:[#allocation2 + $0xb0] sm:$0xff]
        %v1006 = vld [vmem:[#allocation2 + $0xb8] sm:$0xff]
        %v1007 = vld [vmem:[#allocation2 + $0xc0] sm:$0xff]
        %v1008 = vld [vmem:[#allocation2 + $0xc8] sm:$0xff]
        %v1009 = vld [vmem:[#allocation2 + $0xd0] sm:$0xff]
        %v1010 = vld [vmem:[#allocation2 + $0xd8] sm:$0xff]
        %v1011 = vld [vmem:[#allocation2 + $0xe0] sm:$0xff]
        %v1012 = vld [vmem:[#allocation2 + $0xe8] sm:$0xff]
        %v1013 = vld [vmem:[#allocation2 + $0xf0] sm:$0xff]
        %v1014 = vld [vmem:[#allocation2 + $0xf8] sm:$0xff]
        %v1015 = vpack.c.bf16 %v985, %v983
        %v1016 = vpack.c.bf16 %v986, %v984
        %v1017 = vpack.c.bf16 %v989, %v987
        %v1018 = vpack.c.bf16 %v990, %v988
        %v1019 = vpack.c.bf16 %v993, %v991
        %v1020 = vpack.c.bf16 %v994, %v992
        %v1021 = vpack.c.bf16 %v997, %v995
        %v1022 = vpack.c.bf16 %v998, %v996
        %v1023 = vpack.c.bf16 %v1001, %v999
        %v1024 = vpack.c.bf16 %v1002, %v1000
        %v1025 = vpack.c.bf16 %v1005, %v1003
        %v1026 = vpack.c.bf16 %v1006, %v1004
        %v1027 = vpack.c.bf16 %v1009, %v1007
        %v1028 = vpack.c.bf16 %v1010, %v1008
        %v1029 = vpack.c.bf16 %v1013, %v1011
        %v1030 = vpack.c.bf16 %v1014, %v1012
        %v1031 = vld [vmem:[%s720] sm:$0xff]
        %v1032 = vld [vmem:[%s720 + $0x8] sm:$0xff]
        %v1033 = vld [vmem:[%s720 + $0x10] sm:$0xff]
        %v1034 = vld [vmem:[%s720 + $0x18] sm:$0xff]
        %v1035 = vld [vmem:[%s720 + $0x20] sm:$0xff]
        %v1036 = vld [vmem:[%s720 + $0x28] sm:$0xff]
        %v1037 = vld [vmem:[%s720 + $0x30] sm:$0xff]
        %v1038 = vld [vmem:[%s720 + $0x38] sm:$0xff]
        %v1039 = vld [vmem:[%s720 + $0x40] sm:$0xff]
        %v1040 = vld [vmem:[%s720 + $0x48] sm:$0xff]
        %v1041 = vld [vmem:[%s720 + $0x50] sm:$0xff]
        %v1042 = vld [vmem:[%s720 + $0x58] sm:$0xff]
        %v1043 = vld [vmem:[%s720 + $0x60] sm:$0xff]
        %v1044 = vld [vmem:[%s720 + $0x68] sm:$0xff]
        %v1045 = vld [vmem:[%s720 + $0x70] sm:$0xff]
        %v1046 = vld [vmem:[%s720 + $0x78] sm:$0xff]
        %v1047 = vld [vmem:[%s720 + $0x80] sm:$0xff]
        %v1048 = vld [vmem:[%s720 + $0x88] sm:$0xff]
        %v1049 = vld [vmem:[%s720 + $0x90] sm:$0xff]
        %v1050 = vld [vmem:[%s720 + $0x98] sm:$0xff]
        %v1051 = vld [vmem:[%s720 + $0xa0] sm:$0xff]
        %v1052 = vld [vmem:[%s720 + $0xa8] sm:$0xff]
        %v1053 = vld [vmem:[%s720 + $0xb0] sm:$0xff]
        %v1054 = vld [vmem:[%s720 + $0xb8] sm:$0xff]
        %v1055 = vld [vmem:[%s720 + $0xc0] sm:$0xff]
        %v1056 = vld [vmem:[%s720 + $0xc8] sm:$0xff]
        %v1057 = vld [vmem:[%s720 + $0xd0] sm:$0xff]
        %v1058 = vld [vmem:[%s720 + $0xd8] sm:$0xff]
        %v1059 = vld [vmem:[%s720 + $0xe0] sm:$0xff]
        %v1060 = vld [vmem:[%s720 + $0xe8] sm:$0xff]
        %v1061 = vld [vmem:[%s720 + $0xf0] sm:$0xff]
        %v1062 = vld [vmem:[%s720 + $0xf8] sm:$0xff]
        %v1063 = vld [vmem:[%s888] sm:$0x3]
        %v1065 = vlaneseq
        %v1066 = vshrl.u32 %v1065, 7
        %v1067 = vsub.s32 0, %v1066
        %v1068 = vrot.slane %v1063, %v1067
        %v1069 = vlaneseq
        %v1070 = vshrl.u32 %v1069, 7
        %v1071 = vsub.s32 1, %v1070
        %v1072 = vrot.slane %v1063, %v1071
        %v1107 = vunpack.c.l.b16 %v1031
        %v1108 = vunpack.c.h.b16 %v1031
        %v1109 = vunpack.c.l.b16 %v1032
        %v1110 = vunpack.c.h.b16 %v1032
        %v1111 = vunpack.c.l.b16 %v1033
        %v1112 = vunpack.c.h.b16 %v1033
        %v1113 = vunpack.c.l.b16 %v1034
        %v1114 = vunpack.c.h.b16 %v1034
        %v1115 = vunpack.c.l.b16 %v1035
        %v1116 = vunpack.c.h.b16 %v1035
        %v1117 = vunpack.c.l.b16 %v1036
        %v1118 = vunpack.c.h.b16 %v1036
        %v1119 = vunpack.c.l.b16 %v1037
        %v1120 = vunpack.c.h.b16 %v1037
        %v1121 = vunpack.c.l.b16 %v1038
        %v1122 = vunpack.c.h.b16 %v1038
        %v1123 = vunpack.c.l.b16 %v1039
        %v1124 = vunpack.c.h.b16 %v1039
        %v1125 = vunpack.c.l.b16 %v1040
        %v1126 = vunpack.c.h.b16 %v1040
        %v1127 = vunpack.c.l.b16 %v1041
        %v1128 = vunpack.c.h.b16 %v1041
        %v1129 = vunpack.c.l.b16 %v1042
        %v1130 = vunpack.c.h.b16 %v1042
        %v1131 = vunpack.c.l.b16 %v1043
        %v1132 = vunpack.c.h.b16 %v1043
        %v1133 = vunpack.c.l.b16 %v1044
        %v1134 = vunpack.c.h.b16 %v1044
        %v1135 = vunpack.c.l.b16 %v1045
        %v1136 = vunpack.c.h.b16 %v1045
        %v1137 = vunpack.c.l.b16 %v1046
        %v1138 = vunpack.c.h.b16 %v1046
        %v1139 = vunpack.c.l.b16 %v1047
        %v1140 = vunpack.c.h.b16 %v1047
        %v1141 = vunpack.c.l.b16 %v1048
        %v1142 = vunpack.c.h.b16 %v1048
        %v1143 = vunpack.c.l.b16 %v1049
        %v1144 = vunpack.c.h.b16 %v1049
        %v1145 = vunpack.c.l.b16 %v1050
        %v1146 = vunpack.c.h.b16 %v1050
        %v1147 = vunpack.c.l.b16 %v1051
        %v1148 = vunpack.c.h.b16 %v1051
        %v1149 = vunpack.c.l.b16 %v1052
        %v1150 = vunpack.c.h.b16 %v1052
        %v1151 = vunpack.c.l.b16 %v1053
        %v1152 = vunpack.c.h.b16 %v1053
        %v1153 = vunpack.c.l.b16 %v1054
        %v1154 = vunpack.c.h.b16 %v1054
        %v1155 = vunpack.c.l.b16 %v1055
        %v1156 = vunpack.c.h.b16 %v1055
        %v1157 = vunpack.c.l.b16 %v1056
        %v1158 = vunpack.c.h.b16 %v1056
        %v1159 = vunpack.c.l.b16 %v1057
        %v1160 = vunpack.c.h.b16 %v1057
        %v1161 = vunpack.c.l.b16 %v1058
        %v1162 = vunpack.c.h.b16 %v1058
        %v1163 = vunpack.c.l.b16 %v1059
        %v1164 = vunpack.c.h.b16 %v1059
        %v1165 = vunpack.c.l.b16 %v1060
        %v1166 = vunpack.c.h.b16 %v1060
        %v1167 = vunpack.c.l.b16 %v1061
        %v1168 = vunpack.c.h.b16 %v1061
        %v1169 = vunpack.c.l.b16 %v1062
        %v1170 = vunpack.c.h.b16 %v1062
        %v1171 = vpack.c.b16 %v1109, %v1107
        %v1172 = vpack.c.b16 %v1110, %v1108
        %v1173 = vpack.c.b16 %v1113, %v1111
        %v1174 = vpack.c.b16 %v1114, %v1112
        %v1175 = vpack.c.b16 %v1117, %v1115
        %v1176 = vpack.c.b16 %v1118, %v1116
        %v1177 = vpack.c.b16 %v1121, %v1119
        %v1178 = vpack.c.b16 %v1122, %v1120
        %v1179 = vpack.c.b16 %v1125, %v1123
        %v1180 = vpack.c.b16 %v1126, %v1124
        %v1181 = vpack.c.b16 %v1129, %v1127
        %v1182 = vpack.c.b16 %v1130, %v1128
        %v1183 = vpack.c.b16 %v1133, %v1131
        %v1184 = vpack.c.b16 %v1134, %v1132
        %v1185 = vpack.c.b16 %v1137, %v1135
        %v1186 = vpack.c.b16 %v1138, %v1136
        %v1187 = vpack.c.b16 %v1141, %v1139
        %v1188 = vpack.c.b16 %v1142, %v1140
        %v1189 = vpack.c.b16 %v1145, %v1143
        %v1190 = vpack.c.b16 %v1146, %v1144
        %v1191 = vpack.c.b16 %v1149, %v1147
        %v1192 = vpack.c.b16 %v1150, %v1148
        %v1193 = vpack.c.b16 %v1153, %v1151
        %v1194 = vpack.c.b16 %v1154, %v1152
        %v1195 = vpack.c.b16 %v1157, %v1155
        %v1196 = vpack.c.b16 %v1158, %v1156
        %v1197 = vpack.c.b16 %v1161, %v1159
        %v1198 = vpack.c.b16 %v1162, %v1160
        %v1199 = vpack.c.b16 %v1165, %v1163
        %v1200 = vpack.c.b16 %v1166, %v1164
        %v1201 = vpack.c.b16 %v1169, %v1167
        %v1202 = vpack.c.b16 %v1170, %v1168
        %1235 = vmatprep.subr.bf16.mxu0 %v1172
        %1236 = vmatpush1.bf16.msra.mxu0 %v1171
        %1237 = vmatprep.subr.bf16.mxu0 %v1174
        %1238 = vmatpush1.bf16.msra.mxu0 %v1173
        %1239 = vmatprep.subr.bf16.mxu0 %v1176
        %1240 = vmatpush1.bf16.msra.mxu0 %v1175
        %1241 = vmatprep.subr.bf16.mxu0 %v1178
        %1242 = vmatpush1.bf16.msra.mxu0 %v1177
        %1243 = vmatprep.subr.bf16.mxu0 %v1180
        %1244 = vmatpush1.bf16.msra.mxu0 %v1179
        %1245 = vmatprep.subr.bf16.mxu0 %v1182
        %1246 = vmatpush1.bf16.msra.mxu0 %v1181
        %1247 = vmatprep.subr.bf16.mxu0 %v1184
        %1248 = vmatpush1.bf16.msra.mxu0 %v1183
        %1249 = vmatprep.subr.bf16.mxu0 %v1186
        %1250 = vmatpush1.bf16.msra.mxu0 %v1185
        %1251 = vmatprep.subr.bf16.mxu0 %v1188
        %1252 = vmatpush1.bf16.msra.mxu0 %v1187
        %1253 = vmatprep.subr.bf16.mxu0 %v1190
        %1254 = vmatpush1.bf16.msra.mxu0 %v1189
        %1255 = vmatprep.subr.bf16.mxu0 %v1192
        %1256 = vmatpush1.bf16.msra.mxu0 %v1191
        %1257 = vmatprep.subr.bf16.mxu0 %v1194
        %1258 = vmatpush1.bf16.msra.mxu0 %v1193
        %1259 = vmatprep.subr.bf16.mxu0 %v1196
        %1260 = vmatpush1.bf16.msra.mxu0 %v1195
        %1261 = vmatprep.subr.bf16.mxu0 %v1198
        %1262 = vmatpush1.bf16.msra.mxu0 %v1197
        %1263 = vmatprep.subr.bf16.mxu0 %v1200
        %1264 = vmatpush1.bf16.msra.mxu0 %v1199
        %1265 = vmatprep.subr.bf16.mxu0 %v1202
        %1266 = vmatpush1.bf16.msra.mxu0 %v1201
        %1267 = vmatprep.mubr.bf16.mxu0 %v1016
        %1268 = vmatmul.mubr.bf16.gmra.mrb[0].mxu0 %v1015
        %v1269 = vpop.f32.mrb[0].mxu0
        %v1270 = vadd.f32 %v1068, %v1269
        %v1271 = vpop.f32.mrb[0].mxu0
        %v1272 = vadd.f32 %v1072, %v1271
        %v1273 = vpop.f32.mrb[0].mxu0
        %v1274 = vadd.f32 %v1068, %v1273
        %v1275 = vpop.f32.mrb[0].mxu0
        %v1276 = vadd.f32 %v1072, %v1275
        %1277 = vmatprep.mubr.bf16.mxu0 %v1018
        %1278 = vmatmul.mubr.bf16.gmra.mrb[0].mxu0 %v1017
        %v1279 = vpop.f32.mrb[0].mxu0
        %v1280 = vadd.f32 %v1068, %v1279
        %v1281 = vpop.f32.mrb[0].mxu0
        %v1282 = vadd.f32 %v1072, %v1281
        %v1283 = vpop.f32.mrb[0].mxu0
        %v1284 = vadd.f32 %v1068, %v1283
        %v1285 = vpop.f32.mrb[0].mxu0
        %v1286 = vadd.f32 %v1072, %v1285
        %1287 = vmatprep.mubr.bf16.mxu0 %v1020
        %1288 = vmatmul.mubr.bf16.gmra.mrb[0].mxu0 %v1019
        %v1289 = vpop.f32.mrb[0].mxu0
        %v1290 = vadd.f32 %v1068, %v1289
        %v1291 = vpop.f32.mrb[0].mxu0
        %v1292 = vadd.f32 %v1072, %v1291
        %v1293 = vpop.f32.mrb[0].mxu0
        %v1294 = vadd.f32 %v1068, %v1293
        %v1295 = vpop.f32.mrb[0].mxu0
        %v1296 = vadd.f32 %v1072, %v1295
        %1297 = vmatprep.mubr.bf16.mxu0 %v1022
        %1298 = vmatmul.mubr.bf16.gmra.mrb[0].mxu0 %v1021
        %v1299 = vpop.f32.mrb[0].mxu0
        %v1300 = vadd.f32 %v1068, %v1299
        %v1301 = vpop.f32.mrb[0].mxu0
        %v1302 = vadd.f32 %v1072, %v1301
        %v1303 = vpop.f32.mrb[0].mxu0
        %v1304 = vadd.f32 %v1068, %v1303
        %v1305 = vpop.f32.mrb[0].mxu0
        %v1306 = vadd.f32 %v1072, %v1305
        %1307 = vmatprep.mubr.bf16.mxu0 %v1024
        %1308 = vmatmul.mubr.bf16.gmra.mrb[0].mxu0 %v1023
        %v1309 = vpop.f32.mrb[0].mxu0
        %v1310 = vadd.f32 %v1068, %v1309
        %v1311 = vpop.f32.mrb[0].mxu0
        %v1312 = vadd.f32 %v1072, %v1311
        %v1313 = vpop.f32.mrb[0].mxu0
        %v1314 = vadd.f32 %v1068, %v1313
        %v1315 = vpop.f32.mrb[0].mxu0
        %v1316 = vadd.f32 %v1072, %v1315
        %1317 = vmatprep.mubr.bf16.mxu0 %v1026
        %1318 = vmatmul.mubr.bf16.gmra.mrb[0].mxu0 %v1025
        %v1319 = vpop.f32.mrb[0].mxu0
        %v1320 = vadd.f32 %v1068, %v1319
        %v1321 = vpop.f32.mrb[0].mxu0
        %v1322 = vadd.f32 %v1072, %v1321
        %v1323 = vpop.f32.mrb[0].mxu0
        %v1324 = vadd.f32 %v1068, %v1323
        %v1325 = vpop.f32.mrb[0].mxu0
        %v1326 = vadd.f32 %v1072, %v1325
        %1327 = vmatprep.mubr.bf16.mxu0 %v1028
        %1328 = vmatmul.mubr.bf16.gmra.mrb[0].mxu0 %v1027
        %v1329 = vpop.f32.mrb[0].mxu0
        %v1330 = vadd.f32 %v1068, %v1329
        %v1331 = vpop.f32.mrb[0].mxu0
        %v1332 = vadd.f32 %v1072, %v1331
        %v1333 = vpop.f32.mrb[0].mxu0
        %v1334 = vadd.f32 %v1068, %v1333
        %v1335 = vpop.f32.mrb[0].mxu0
        %v1336 = vadd.f32 %v1072, %v1335
        %1337 = vmatprep.mubr.bf16.mxu0 %v1030
        %1338 = vmatmul.mubr.bf16.gmra.mrb[0].mxu0 %v1029
        %v1339 = vpop.f32.mrb[0].mxu0
        %v1340 = vadd.f32 %v1068, %v1339
        %v1341 = vpop.f32.mrb[0].mxu0
        %v1342 = vadd.f32 %v1072, %v1341
        %v1343 = vpop.f32.mrb[0].mxu0
        %v1344 = vadd.f32 %v1068, %v1343
        %v1345 = vpop.f32.mrb[0].mxu0
        %v1346 = vadd.f32 %v1072, %v1345
        %1347 = vdwg.mxu0
        %v1348 = vld [vmem:[%s729] sm:$0xff]
        %v1349 = vld [vmem:[%s729 + $0x8] sm:$0xff]
        %v1350 = vld [vmem:[%s729 + $0x10] sm:$0xff]
        %v1351 = vld [vmem:[%s729 + $0x18] sm:$0xff]
        %v1352 = vld [vmem:[%s729 + $0x20] sm:$0xff]
        %v1353 = vld [vmem:[%s729 + $0x28] sm:$0xff]
        %v1354 = vld [vmem:[%s729 + $0x30] sm:$0xff]
        %v1355 = vld [vmem:[%s729 + $0x38] sm:$0xff]
        %v1356 = vld [vmem:[%s729 + $0x40] sm:$0xff]
        %v1357 = vld [vmem:[%s729 + $0x48] sm:$0xff]
        %v1358 = vld [vmem:[%s729 + $0x50] sm:$0xff]
        %v1359 = vld [vmem:[%s729 + $0x58] sm:$0xff]
        %v1360 = vld [vmem:[%s729 + $0x60] sm:$0xff]
        %v1361 = vld [vmem:[%s729 + $0x68] sm:$0xff]
        %v1362 = vld [vmem:[%s729 + $0x70] sm:$0xff]
        %v1363 = vld [vmem:[%s729 + $0x78] sm:$0xff]
        %v1364 = vld [vmem:[%s729 + $0x80] sm:$0xff]
        %v1365 = vld [vmem:[%s729 + $0x88] sm:$0xff]
        %v1366 = vld [vmem:[%s729 + $0x90] sm:$0xff]
        %v1367 = vld [vmem:[%s729 + $0x98] sm:$0xff]
        %v1368 = vld [vmem:[%s729 + $0xa0] sm:$0xff]
        %v1369 = vld [vmem:[%s729 + $0xa8] sm:$0xff]
        %v1370 = vld [vmem:[%s729 + $0xb0] sm:$0xff]
        %v1371 = vld [vmem:[%s729 + $0xb8] sm:$0xff]
        %v1372 = vld [vmem:[%s729 + $0xc0] sm:$0xff]
        %v1373 = vld [vmem:[%s729 + $0xc8] sm:$0xff]
        %v1374 = vld [vmem:[%s729 + $0xd0] sm:$0xff]
        %v1375 = vld [vmem:[%s729 + $0xd8] sm:$0xff]
        %v1376 = vld [vmem:[%s729 + $0xe0] sm:$0xff]
        %v1377 = vld [vmem:[%s729 + $0xe8] sm:$0xff]
        %v1378 = vld [vmem:[%s729 + $0xf0] sm:$0xff]
        %v1379 = vld [vmem:[%s729 + $0xf8] sm:$0xff]
        %v1380 = vld [vmem:[%s892] sm:$0x3]
        %v1382 = vlaneseq
        %v1383 = vshrl.u32 %v1382, 7
        %v1384 = vsub.s32 0, %v1383
        %v1385 = vrot.slane %v1380, %v1384
        %v1386 = vlaneseq
        %v1387 = vshrl.u32 %v1386, 7
        %v1388 = vsub.s32 1, %v1387
        %v1389 = vrot.slane %v1380, %v1388
        %v1424 = vunpack.c.l.b16 %v1348
        %v1425 = vunpack.c.h.b16 %v1348
        %v1426 = vunpack.c.l.b16 %v1349
        %v1427 = vunpack.c.h.b16 %v1349
        %v1428 = vunpack.c.l.b16 %v1350
        %v1429 = vunpack.c.h.b16 %v1350
        %v1430 = vunpack.c.l.b16 %v1351
        %v1431 = vunpack.c.h.b16 %v1351
        %v1432 = vunpack.c.l.b16 %v1352
        %v1433 = vunpack.c.h.b16 %v1352
        %v1434 = vunpack.c.l.b16 %v1353
        %v1435 = vunpack.c.h.b16 %v1353
        %v1436 = vunpack.c.l.b16 %v1354
        %v1437 = vunpack.c.h.b16 %v1354
        %v1438 = vunpack.c.l.b16 %v1355
        %v1439 = vunpack.c.h.b16 %v1355
        %v1440 = vunpack.c.l.b16 %v1356
        %v1441 = vunpack.c.h.b16 %v1356
        %v1442 = vunpack.c.l.b16 %v1357
        %v1443 = vunpack.c.h.b16 %v1357
        %v1444 = vunpack.c.l.b16 %v1358
        %v1445 = vunpack.c.h.b16 %v1358
        %v1446 = vunpack.c.l.b16 %v1359
        %v1447 = vunpack.c.h.b16 %v1359
        %v1448 = vunpack.c.l.b16 %v1360
        %v1449 = vunpack.c.h.b16 %v1360
        %v1450 = vunpack.c.l.b16 %v1361
        %v1451 = vunpack.c.h.b16 %v1361
        %v1452 = vunpack.c.l.b16 %v1362
        %v1453 = vunpack.c.h.b16 %v1362
        %v1454 = vunpack.c.l.b16 %v1363
        %v1455 = vunpack.c.h.b16 %v1363
        %v1456 = vunpack.c.l.b16 %v1364
        %v1457 = vunpack.c.h.b16 %v1364
        %v1458 = vunpack.c.l.b16 %v1365
        %v1459 = vunpack.c.h.b16 %v1365
        %v1460 = vunpack.c.l.b16 %v1366
        %v1461 = vunpack.c.h.b16 %v1366
        %v1462 = vunpack.c.l.b16 %v1367
        %v1463 = vunpack.c.h.b16 %v1367
        %v1464 = vunpack.c.l.b16 %v1368
        %v1465 = vunpack.c.h.b16 %v1368
        %v1466 = vunpack.c.l.b16 %v1369
        %v1467 = vunpack.c.h.b16 %v1369
        %v1468 = vunpack.c.l.b16 %v1370
        %v1469 = vunpack.c.h.b16 %v1370
        %v1470 = vunpack.c.l.b16 %v1371
        %v1471 = vunpack.c.h.b16 %v1371
        %v1472 = vunpack.c.l.b16 %v1372
        %v1473 = vunpack.c.h.b16 %v1372
        %v1474 = vunpack.c.l.b16 %v1373
        %v1475 = vunpack.c.h.b16 %v1373
        %v1476 = vunpack.c.l.b16 %v1374
        %v1477 = vunpack.c.h.b16 %v1374
        %v1478 = vunpack.c.l.b16 %v1375
        %v1479 = vunpack.c.h.b16 %v1375
        %v1480 = vunpack.c.l.b16 %v1376
        %v1481 = vunpack.c.h.b16 %v1376
        %v1482 = vunpack.c.l.b16 %v1377
        %v1483 = vunpack.c.h.b16 %v1377
        %v1484 = vunpack.c.l.b16 %v1378
        %v1485 = vunpack.c.h.b16 %v1378
        %v1486 = vunpack.c.l.b16 %v1379
        %v1487 = vunpack.c.h.b16 %v1379
        %v1488 = vpack.c.b16 %v1426, %v1424
        %v1489 = vpack.c.b16 %v1427, %v1425
        %v1490 = vpack.c.b16 %v1430, %v1428
        %v1491 = vpack.c.b16 %v1431, %v1429
        %v1492 = vpack.c.b16 %v1434, %v1432
        %v1493 = vpack.c.b16 %v1435, %v1433
        %v1494 = vpack.c.b16 %v1438, %v1436
        %v1495 = vpack.c.b16 %v1439, %v1437
        %v1496 = vpack.c.b16 %v1442, %v1440
        %v1497 = vpack.c.b16 %v1443, %v1441
        %v1498 = vpack.c.b16 %v1446, %v1444
        %v1499 = vpack.c.b16 %v1447, %v1445
        %v1500 = vpack.c.b16 %v1450, %v1448
        %v1501 = vpack.c.b16 %v1451, %v1449
        %v1502 = vpack.c.b16 %v1454, %v1452
        %v1503 = vpack.c.b16 %v1455, %v1453
        %v1504 = vpack.c.b16 %v1458, %v1456
        %v1505 = vpack.c.b16 %v1459, %v1457
        %v1506 = vpack.c.b16 %v1462, %v1460
        %v1507 = vpack.c.b16 %v1463, %v1461
        %v1508 = vpack.c.b16 %v1466, %v1464
        %v1509 = vpack.c.b16 %v1467, %v1465
        %v1510 = vpack.c.b16 %v1470, %v1468
        %v1511 = vpack.c.b16 %v1471, %v1469
        %v1512 = vpack.c.b16 %v1474, %v1472
        %v1513 = vpack.c.b16 %v1475, %v1473
        %v1514 = vpack.c.b16 %v1478, %v1476
        %v1515 = vpack.c.b16 %v1479, %v1477
        %v1516 = vpack.c.b16 %v1482, %v1480
        %v1517 = vpack.c.b16 %v1483, %v1481
        %v1518 = vpack.c.b16 %v1486, %v1484
        %v1519 = vpack.c.b16 %v1487, %v1485
        %1552 = vmatprep.subr.bf16.mxu0 %v1489
        %1553 = vmatpush1.bf16.msra.mxu0 %v1488
        %1554 = vmatprep.subr.bf16.mxu0 %v1491
        %1555 = vmatpush1.bf16.msra.mxu0 %v1490
        %1556 = vmatprep.subr.bf16.mxu0 %v1493
        %1557 = vmatpush1.bf16.msra.mxu0 %v1492
        %1558 = vmatprep.subr.bf16.mxu0 %v1495
        %1559 = vmatpush1.bf16.msra.mxu0 %v1494
        %1560 = vmatprep.subr.bf16.mxu0 %v1497
        %1561 = vmatpush1.bf16.msra.mxu0 %v1496
        %1562 = vmatprep.subr.bf16.mxu0 %v1499
        %1563 = vmatpush1.bf16.msra.mxu0 %v1498
        %1564 = vmatprep.subr.bf16.mxu0 %v1501
        %1565 = vmatpush1.bf16.msra.mxu0 %v1500
        %1566 = vmatprep.subr.bf16.mxu0 %v1503
        %1567 = vmatpush1.bf16.msra.mxu0 %v1502
        %1568 = vmatprep.subr.bf16.mxu0 %v1505
        %1569 = vmatpush1.bf16.msra.mxu0 %v1504
        %1570 = vmatprep.subr.bf16.mxu0 %v1507
        %1571 = vmatpush1.bf16.msra.mxu0 %v1506
        %1572 = vmatprep.subr.bf16.mxu0 %v1509
        %1573 = vmatpush1.bf16.msra.mxu0 %v1508
        %1574 = vmatprep.subr.bf16.mxu0 %v1511
        %1575 = vmatpush1.bf16.msra.mxu0 %v1510
        %1576 = vmatprep.subr.bf16.mxu0 %v1513
        %1577 = vmatpush1.bf16.msra.mxu0 %v1512
        %1578 = vmatprep.subr.bf16.mxu0 %v1515
        %1579 = vmatpush1.bf16.msra.mxu0 %v1514
        %1580 = vmatprep.subr.bf16.mxu0 %v1517
        %1581 = vmatpush1.bf16.msra.mxu0 %v1516
        %1582 = vmatprep.subr.bf16.mxu0 %v1519
        %1583 = vmatpush1.bf16.msra.mxu0 %v1518
        %1584 = vmatprep.mubr.bf16.mxu0 %v1016
        %1585 = vmatmul.mubr.bf16.gmra.mrb[0].mxu0 %v1015
        %v1586 = vpop.f32.mrb[0].mxu0
        %v1587 = vadd.f32 %v1385, %v1586
        %v1588 = vpop.f32.mrb[0].mxu0
        %v1589 = vadd.f32 %v1389, %v1588
        %v1590 = vpop.f32.mrb[0].mxu0
        %v1591 = vadd.f32 %v1385, %v1590
        %v1592 = vpop.f32.mrb[0].mxu0
        %v1593 = vadd.f32 %v1389, %v1592
        %1594 = vmatprep.mubr.bf16.mxu0 %v1018
        %1595 = vmatmul.mubr.bf16.gmra.mrb[0].mxu0 %v1017
        %v1596 = vpop.f32.mrb[0].mxu0
        %v1597 = vadd.f32 %v1385, %v1596
        %v1598 = vpop.f32.mrb[0].mxu0
        %v1599 = vadd.f32 %v1389, %v1598
        %v1600 = vpop.f32.mrb[0].mxu0
        %v1601 = vadd.f32 %v1385, %v1600
        %v1602 = vpop.f32.mrb[0].mxu0
        %v1603 = vadd.f32 %v1389, %v1602
        %1604 = vmatprep.mubr.bf16.mxu0 %v1020
        %1605 = vmatmul.mubr.bf16.gmra.mrb[0].mxu0 %v1019
        %v1606 = vpop.f32.mrb[0].mxu0
        %v1607 = vadd.f32 %v1385, %v1606
        %v1608 = vpop.f32.mrb[0].mxu0
        %v1609 = vadd.f32 %v1389, %v1608
        %v1610 = vpop.f32.mrb[0].mxu0
        %v1611 = vadd.f32 %v1385, %v1610
        %v1612 = vpop.f32.mrb[0].mxu0
        %v1613 = vadd.f32 %v1389, %v1612
        %1614 = vmatprep.mubr.bf16.mxu0 %v1022
        %1615 = vmatmul.mubr.bf16.gmra.mrb[0].mxu0 %v1021
        %v1616 = vpop.f32.mrb[0].mxu0
        %v1617 = vadd.f32 %v1385, %v1616
        %v1618 = vpop.f32.mrb[0].mxu0
        %v1619 = vadd.f32 %v1389, %v1618
        %v1620 = vpop.f32.mrb[0].mxu0
        %v1621 = vadd.f32 %v1385, %v1620
        %v1622 = vpop.f32.mrb[0].mxu0
        %v1623 = vadd.f32 %v1389, %v1622
        %1624 = vmatprep.mubr.bf16.mxu0 %v1024
        %1625 = vmatmul.mubr.bf16.gmra.mrb[0].mxu0 %v1023
        %v1626 = vpop.f32.mrb[0].mxu0
        %v1627 = vadd.f32 %v1385, %v1626
        %v1628 = vpop.f32.mrb[0].mxu0
        %v1629 = vadd.f32 %v1389, %v1628
        %v1630 = vpop.f32.mrb[0].mxu0
        %v1631 = vadd.f32 %v1385, %v1630
        %v1632 = vpop.f32.mrb[0].mxu0
        %v1633 = vadd.f32 %v1389, %v1632
        %1634 = vmatprep.mubr.bf16.mxu0 %v1026
        %1635 = vmatmul.mubr.bf16.gmra.mrb[0].mxu0 %v1025
        %v1636 = vpop.f32.mrb[0].mxu0
        %v1637 = vadd.f32 %v1385, %v1636
        %v1638 = vpop.f32.mrb[0].mxu0
        %v1639 = vadd.f32 %v1389, %v1638
        %v1640 = vpop.f32.mrb[0].mxu0
        %v1641 = vadd.f32 %v1385, %v1640
        %v1642 = vpop.f32.mrb[0].mxu0
        %v1643 = vadd.f32 %v1389, %v1642
        %1644 = vmatprep.mubr.bf16.mxu0 %v1028
        %1645 = vmatmul.mubr.bf16.gmra.mrb[0].mxu0 %v1027
        %v1646 = vpop.f32.mrb[0].mxu0
        %v1647 = vadd.f32 %v1385, %v1646
        %v1648 = vpop.f32.mrb[0].mxu0
        %v1649 = vadd.f32 %v1389, %v1648
        %v1650 = vpop.f32.mrb[0].mxu0
        %v1651 = vadd.f32 %v1385, %v1650
        %v1652 = vpop.f32.mrb[0].mxu0
        %v1653 = vadd.f32 %v1389, %v1652
        %1654 = vmatprep.mubr.bf16.mxu0 %v1030
        %1655 = vmatmul.mubr.bf16.gmra.mrb[0].mxu0 %v1029
        %v1656 = vpop.f32.mrb[0].mxu0
        %v1657 = vadd.f32 %v1385, %v1656
        %v1658 = vpop.f32.mrb[0].mxu0
        %v1659 = vadd.f32 %v1389, %v1658
        %v1660 = vpop.f32.mrb[0].mxu0
        %v1661 = vadd.f32 %v1385, %v1660
        %v1662 = vpop.f32.mrb[0].mxu0
        %v1663 = vadd.f32 %v1389, %v1662
        %1664 = vdwg.mxu0
        %v1665 = vld [vmem:[%s738] sm:$0xff]
        %v1666 = vld [vmem:[%s738 + $0x8] sm:$0xff]
        %v1667 = vld [vmem:[%s738 + $0x10] sm:$0xff]
        %v1668 = vld [vmem:[%s738 + $0x18] sm:$0xff]
        %v1669 = vld [vmem:[%s738 + $0x20] sm:$0xff]
        %v1670 = vld [vmem:[%s738 + $0x28] sm:$0xff]
        %v1671 = vld [vmem:[%s738 + $0x30] sm:$0xff]
        %v1672 = vld [vmem:[%s738 + $0x38] sm:$0xff]
        %v1673 = vld [vmem:[%s738 + $0x40] sm:$0xff]
        %v1674 = vld [vmem:[%s738 + $0x48] sm:$0xff]
        %v1675 = vld [vmem:[%s738 + $0x50] sm:$0xff]
        %v1676 = vld [vmem:[%s738 + $0x58] sm:$0xff]
        %v1677 = vld [vmem:[%s738 + $0x60] sm:$0xff]
        %v1678 = vld [vmem:[%s738 + $0x68] sm:$0xff]
        %v1679 = vld [vmem:[%s738 + $0x70] sm:$0xff]
        %v1680 = vld [vmem:[%s738 + $0x78] sm:$0xff]
        %v1681 = vld [vmem:[%s738 + $0x80] sm:$0xff]
        %v1682 = vld [vmem:[%s738 + $0x88] sm:$0xff]
        %v1683 = vld [vmem:[%s738 + $0x90] sm:$0xff]
        %v1684 = vld [vmem:[%s738 + $0x98] sm:$0xff]
        %v1685 = vld [vmem:[%s738 + $0xa0] sm:$0xff]
        %v1686 = vld [vmem:[%s738 + $0xa8] sm:$0xff]
        %v1687 = vld [vmem:[%s738 + $0xb0] sm:$0xff]
        %v1688 = vld [vmem:[%s738 + $0xb8] sm:$0xff]
        %v1689 = vld [vmem:[%s738 + $0xc0] sm:$0xff]
        %v1690 = vld [vmem:[%s738 + $0xc8] sm:$0xff]
        %v1691 = vld [vmem:[%s738 + $0xd0] sm:$0xff]
        %v1692 = vld [vmem:[%s738 + $0xd8] sm:$0xff]
        %v1693 = vld [vmem:[%s738 + $0xe0] sm:$0xff]
        %v1694 = vld [vmem:[%s738 + $0xe8] sm:$0xff]
        %v1695 = vld [vmem:[%s738 + $0xf0] sm:$0xff]
        %v1696 = vld [vmem:[%s738 + $0xf8] sm:$0xff]
        %v1697 = vld [vmem:[%s896] sm:$0x3]
        %v1699 = vlaneseq
        %v1700 = vshrl.u32 %v1699, 7
        %v1701 = vsub.s32 0, %v1700
        %v1702 = vrot.slane %v1697, %v1701
        %v1703 = vlaneseq
        %v1704 = vshrl.u32 %v1703, 7
        %v1705 = vsub.s32 1, %v1704
        %v1706 = vrot.slane %v1697, %v1705
        %v1741 = vunpack.c.l.b16 %v1665
        %v1742 = vunpack.c.h.b16 %v1665
        %v1743 = vunpack.c.l.b16 %v1666
        %v1744 = vunpack.c.h.b16 %v1666
        %v1745 = vunpack.c.l.b16 %v1667
        %v1746 = vunpack.c.h.b16 %v1667
        %v1747 = vunpack.c.l.b16 %v1668
        %v1748 = vunpack.c.h.b16 %v1668
        %v1749 = vunpack.c.l.b16 %v1669
        %v1750 = vunpack.c.h.b16 %v1669
        %v1751 = vunpack.c.l.b16 %v1670
        %v1752 = vunpack.c.h.b16 %v1670
        %v1753 = vunpack.c.l.b16 %v1671
        %v1754 = vunpack.c.h.b16 %v1671
        %v1755 = vunpack.c.l.b16 %v1672
        %v1756 = vunpack.c.h.b16 %v1672
        %v1757 = vunpack.c.l.b16 %v1673
        %v1758 = vunpack.c.h.b16 %v1673
        %v1759 = vunpack.c.l.b16 %v1674
        %v1760 = vunpack.c.h.b16 %v1674
        %v1761 = vunpack.c.l.b16 %v1675
        %v1762 = vunpack.c.h.b16 %v1675
        %v1763 = vunpack.c.l.b16 %v1676
        %v1764 = vunpack.c.h.b16 %v1676
        %v1765 = vunpack.c.l.b16 %v1677
        %v1766 = vunpack.c.h.b16 %v1677
        %v1767 = vunpack.c.l.b16 %v1678
        %v1768 = vunpack.c.h.b16 %v1678
        %v1769 = vunpack.c.l.b16 %v1679
        %v1770 = vunpack.c.h.b16 %v1679
        %v1771 = vunpack.c.l.b16 %v1680
        %v1772 = vunpack.c.h.b16 %v1680
        %v1773 = vunpack.c.l.b16 %v1681
        %v1774 = vunpack.c.h.b16 %v1681
        %v1775 = vunpack.c.l.b16 %v1682
        %v1776 = vunpack.c.h.b16 %v1682
        %v1777 = vunpack.c.l.b16 %v1683
        %v1778 = vunpack.c.h.b16 %v1683
        %v1779 = vunpack.c.l.b16 %v1684
        %v1780 = vunpack.c.h.b16 %v1684
        %v1781 = vunpack.c.l.b16 %v1685
        %v1782 = vunpack.c.h.b16 %v1685
        %v1783 = vunpack.c.l.b16 %v1686
        %v1784 = vunpack.c.h.b16 %v1686
        %v1785 = vunpack.c.l.b16 %v1687
        %v1786 = vunpack.c.h.b16 %v1687
        %v1787 = vunpack.c.l.b16 %v1688
        %v1788 = vunpack.c.h.b16 %v1688
        %v1789 = vunpack.c.l.b16 %v1689
        %v1790 = vunpack.c.h.b16 %v1689
        %v1791 = vunpack.c.l.b16 %v1690
        %v1792 = vunpack.c.h.b16 %v1690
        %v1793 = vunpack.c.l.b16 %v1691
        %v1794 = vunpack.c.h.b16 %v1691
        %v1795 = vunpack.c.l.b16 %v1692
        %v1796 = vunpack.c.h.b16 %v1692
        %v1797 = vunpack.c.l.b16 %v1693
        %v1798 = vunpack.c.h.b16 %v1693
        %v1799 = vunpack.c.l.b16 %v1694
        %v1800 = vunpack.c.h.b16 %v1694
        %v1801 = vunpack.c.l.b16 %v1695
        %v1802 = vunpack.c.h.b16 %v1695
        %v1803 = vunpack.c.l.b16 %v1696
        %v1804 = vunpack.c.h.b16 %v1696
        %v1805 = vpack.c.b16 %v1743, %v1741
        %v1806 = vpack.c.b16 %v1744, %v1742
        %v1807 = vpack.c.b16 %v1747, %v1745
        %v1808 = vpack.c.b16 %v1748, %v1746
        %v1809 = vpack.c.b16 %v1751, %v1749
        %v1810 = vpack.c.b16 %v1752, %v1750
        %v1811 = vpack.c.b16 %v1755, %v1753
        %v1812 = vpack.c.b16 %v1756, %v1754
        %v1813 = vpack.c.b16 %v1759, %v1757
        %v1814 = vpack.c.b16 %v1760, %v1758
        %v1815 = vpack.c.b16 %v1763, %v1761
        %v1816 = vpack.c.b16 %v1764, %v1762
        %v1817 = vpack.c.b16 %v1767, %v1765
        %v1818 = vpack.c.b16 %v1768, %v1766
        %v1819 = vpack.c.b16 %v1771, %v1769
        %v1820 = vpack.c.b16 %v1772, %v1770
        %v1821 = vpack.c.b16 %v1775, %v1773
        %v1822 = vpack.c.b16 %v1776, %v1774
        %v1823 = vpack.c.b16 %v1779, %v1777
        %v1824 = vpack.c.b16 %v1780, %v1778
        %v1825 = vpack.c.b16 %v1783, %v1781
        %v1826 = vpack.c.b16 %v1784, %v1782
        %v1827 = vpack.c.b16 %v1787, %v1785
        %v1828 = vpack.c.b16 %v1788, %v1786
        %v1829 = vpack.c.b16 %v1791, %v1789
        %v1830 = vpack.c.b16 %v1792, %v1790
        %v1831 = vpack.c.b16 %v1795, %v1793
        %v1832 = vpack.c.b16 %v1796, %v1794
        %v1833 = vpack.c.b16 %v1799, %v1797
        %v1834 = vpack.c.b16 %v1800, %v1798
        %v1835 = vpack.c.b16 %v1803, %v1801
        %v1836 = vpack.c.b16 %v1804, %v1802
        %1869 = vmatprep.subr.bf16.mxu0 %v1806
        %1870 = vmatpush1.bf16.msra.mxu0 %v1805
        %1871 = vmatprep.subr.bf16.mxu0 %v1808
        %1872 = vmatpush1.bf16.msra.mxu0 %v1807
        %1873 = vmatprep.subr.bf16.mxu0 %v1810
        %1874 = vmatpush1.bf16.msra.mxu0 %v1809
        %1875 = vmatprep.subr.bf16.mxu0 %v1812
        %1876 = vmatpush1.bf16.msra.mxu0 %v1811
        %1877 = vmatprep.subr.bf16.mxu0 %v1814
        %1878 = vmatpush1.bf16.msra.mxu0 %v1813
        %1879 = vmatprep.subr.bf16.mxu0 %v1816
        %1880 = vmatpush1.bf16.msra.mxu0 %v1815
        %1881 = vmatprep.subr.bf16.mxu0 %v1818
        %1882 = vmatpush1.bf16.msra.mxu0 %v1817
        %1883 = vmatprep.subr.bf16.mxu0 %v1820
        %1884 = vmatpush1.bf16.msra.mxu0 %v1819
        %1885 = vmatprep.subr.bf16.mxu0 %v1822
        %1886 = vmatpush1.bf16.msra.mxu0 %v1821
        %1887 = vmatprep.subr.bf16.mxu0 %v1824
        %1888 = vmatpush1.bf16.msra.mxu0 %v1823
        %1889 = vmatprep.subr.bf16.mxu0 %v1826
        %1890 = vmatpush1.bf16.msra.mxu0 %v1825
        %1891 = vmatprep.subr.bf16.mxu0 %v1828
        %1892 = vmatpush1.bf16.msra.mxu0 %v1827
        %1893 = vmatprep.subr.bf16.mxu0 %v1830
        %1894 = vmatpush1.bf16.msra.mxu0 %v1829
        %1895 = vmatprep.subr.bf16.mxu0 %v1832
        %1896 = vmatpush1.bf16.msra.mxu0 %v1831
        %1897 = vmatprep.subr.bf16.mxu0 %v1834
        %1898 = vmatpush1.bf16.msra.mxu0 %v1833
        %1899 = vmatprep.subr.bf16.mxu0 %v1836
        %1900 = vmatpush1.bf16.msra.mxu0 %v1835
        %1901 = vmatprep.mubr.bf16.mxu0 %v1016
        %1902 = vmatmul.mubr.bf16.gmra.mrb[0].mxu0 %v1015
        %v1903 = vpop.f32.mrb[0].mxu0
        %v1904 = vadd.f32 %v1702, %v1903
        %v1905 = vpop.f32.mrb[0].mxu0
        %v1906 = vadd.f32 %v1706, %v1905
        %v1907 = vpop.f32.mrb[0].mxu0
        %v1908 = vadd.f32 %v1702, %v1907
        %v1909 = vpop.f32.mrb[0].mxu0
        %v1910 = vadd.f32 %v1706, %v1909
        %1911 = vmatprep.mubr.bf16.mxu0 %v1018
        %1912 = vmatmul.mubr.bf16.gmra.mrb[0].mxu0 %v1017
        %v1913 = vpop.f32.mrb[0].mxu0
        %v1914 = vadd.f32 %v1702, %v1913
        %v1915 = vpop.f32.mrb[0].mxu0
        %v1916 = vadd.f32 %v1706, %v1915
        %v1917 = vpop.f32.mrb[0].mxu0
        %v1918 = vadd.f32 %v1702, %v1917
        %v1919 = vpop.f32.mrb[0].mxu0
        %v1920 = vadd.f32 %v1706, %v1919
        %1921 = vmatprep.mubr.bf16.mxu0 %v1020
        %1922 = vmatmul.mubr.bf16.gmra.mrb[0].mxu0 %v1019
        %v1923 = vpop.f32.mrb[0].mxu0
        %v1924 = vadd.f32 %v1702, %v1923
        %v1925 = vpop.f32.mrb[0].mxu0
        %v1926 = vadd.f32 %v1706, %v1925
        %v1927 = vpop.f32.mrb[0].mxu0
        %v1928 = vadd.f32 %v1702, %v1927
        %v1929 = vpop.f32.mrb[0].mxu0
        %v1930 = vadd.f32 %v1706, %v1929
        %1931 = vmatprep.mubr.bf16.mxu0 %v1022
        %1932 = vmatmul.mubr.bf16.gmra.mrb[0].mxu0 %v1021
        %v1933 = vpop.f32.mrb[0].mxu0
        %v1934 = vadd.f32 %v1702, %v1933
        %v1935 = vpop.f32.mrb[0].mxu0
        %v1936 = vadd.f32 %v1706, %v1935
        %v1937 = vpop.f32.mrb[0].mxu0
        %v1938 = vadd.f32 %v1702, %v1937
        %v1939 = vpop.f32.mrb[0].mxu0
        %v1940 = vadd.f32 %v1706, %v1939
        %1941 = vmatprep.mubr.bf16.mxu0 %v1024
        %1942 = vmatmul.mubr.bf16.gmra.mrb[0].mxu0 %v1023
        %v1943 = vpop.f32.mrb[0].mxu0
        %v1944 = vadd.f32 %v1702, %v1943
        %v1945 = vpop.f32.mrb[0].mxu0
        %v1946 = vadd.f32 %v1706, %v1945
        %v1947 = vpop.f32.mrb[0].mxu0
        %v1948 = vadd.f32 %v1702, %v1947
        %v1949 = vpop.f32.mrb[0].mxu0
        %v1950 = vadd.f32 %v1706, %v1949
        %1951 = vmatprep.mubr.bf16.mxu0 %v1026
        %1952 = vmatmul.mubr.bf16.gmra.mrb[0].mxu0 %v1025
        %v1953 = vpop.f32.mrb[0].mxu0
        %v1954 = vadd.f32 %v1702, %v1953
        %v1955 = vpop.f32.mrb[0].mxu0
        %v1956 = vadd.f32 %v1706, %v1955
        %v1957 = vpop.f32.mrb[0].mxu0
        %v1958 = vadd.f32 %v1702, %v1957
        %v1959 = vpop.f32.mrb[0].mxu0
        %v1960 = vadd.f32 %v1706, %v1959
        %1961 = vmatprep.mubr.bf16.mxu0 %v1028
        %1962 = vmatmul.mubr.bf16.gmra.mrb[0].mxu0 %v1027
        %v1963 = vpop.f32.mrb[0].mxu0
        %v1964 = vadd.f32 %v1702, %v1963
        %v1965 = vpop.f32.mrb[0].mxu0
        %v1966 = vadd.f32 %v1706, %v1965
        %v1967 = vpop.f32.mrb[0].mxu0
        %v1968 = vadd.f32 %v1702, %v1967
        %v1969 = vpop.f32.mrb[0].mxu0
        %v1970 = vadd.f32 %v1706, %v1969
        %1971 = vmatprep.mubr.bf16.mxu0 %v1030
        %1972 = vmatmul.mubr.bf16.gmra.mrb[0].mxu0 %v1029
        %v1973 = vpop.f32.mrb[0].mxu0
        %v1974 = vadd.f32 %v1702, %v1973
        %v1975 = vpop.f32.mrb[0].mxu0
        %v1976 = vadd.f32 %v1706, %v1975
        %v1977 = vpop.f32.mrb[0].mxu0
        %v1978 = vadd.f32 %v1702, %v1977
        %v1979 = vpop.f32.mrb[0].mxu0
        %v1980 = vadd.f32 %v1706, %v1979
        %1981 = vdwg.mxu0
        %1998 = vrot.lane.b32.xlu0 %v1270, 64
        %v1999 = vpop.permute.xlu0 %1998
        %2000 = vrot.lane.b32.xlu0 %v1274, 64
        %v2001 = vpop.permute.xlu0 %2000
        %2002 = vrot.lane.b32.xlu0 %v1280, 64
        %v2003 = vpop.permute.xlu0 %2002
        %2004 = vrot.lane.b32.xlu0 %v1284, 64
        %v2005 = vpop.permute.xlu0 %2004
        %2006 = vrot.lane.b32.xlu0 %v1290, 64
        %v2007 = vpop.permute.xlu0 %2006
        %2008 = vrot.lane.b32.xlu0 %v1294, 64
        %v2009 = vpop.permute.xlu0 %2008
        %2010 = vrot.lane.b32.xlu0 %v1300, 64
        %v2011 = vpop.permute.xlu0 %2010
        %2012 = vrot.lane.b32.xlu0 %v1304, 64
        %v2013 = vpop.permute.xlu0 %2012
        %2014 = vrot.lane.b32.xlu0 %v1310, 64
        %v2015 = vpop.permute.xlu0 %2014
        %2016 = vrot.lane.b32.xlu0 %v1314, 64
        %v2017 = vpop.permute.xlu0 %2016
        %2018 = vrot.lane.b32.xlu0 %v1320, 64
        %v2019 = vpop.permute.xlu0 %2018
        %2020 = vrot.lane.b32.xlu0 %v1324, 64
        %v2021 = vpop.permute.xlu0 %2020
        %2022 = vrot.lane.b32.xlu0 %v1330, 64
        %v2023 = vpop.permute.xlu0 %2022
        %2024 = vrot.lane.b32.xlu0 %v1334, 64
        %v2025 = vpop.permute.xlu0 %2024
        %2026 = vrot.lane.b32.xlu0 %v1340, 64
        %v2027 = vpop.permute.xlu0 %2026
        %2028 = vrot.lane.b32.xlu0 %v1344, 64
        %v2029 = vpop.permute.xlu0 %2028
        %2062 = vrot.lane.b32.xlu0 %v1272, 64
        %v2063 = vpop.permute.xlu0 %2062
        %2064 = vrot.lane.b32.xlu0 %v1276, 64
        %v2065 = vpop.permute.xlu0 %2064
        %2066 = vrot.lane.b32.xlu0 %v1282, 64
        %v2067 = vpop.permute.xlu0 %2066
        %2068 = vrot.lane.b32.xlu0 %v1286, 64
        %v2069 = vpop.permute.xlu0 %2068
        %2070 = vrot.lane.b32.xlu0 %v1292, 64
        %v2071 = vpop.permute.xlu0 %2070
        %2072 = vrot.lane.b32.xlu0 %v1296, 64
        %v2073 = vpop.permute.xlu0 %2072
        %2074 = vrot.lane.b32.xlu0 %v1302, 64
        %v2075 = vpop.permute.xlu0 %2074
        %2076 = vrot.lane.b32.xlu0 %v1306, 64
        %v2077 = vpop.permute.xlu0 %2076
        %2078 = vrot.lane.b32.xlu0 %v1312, 64
        %v2079 = vpop.permute.xlu0 %2078
        %2080 = vrot.lane.b32.xlu0 %v1316, 64
        %v2081 = vpop.permute.xlu0 %2080
        %2082 = vrot.lane.b32.xlu0 %v1322, 64
        %v2083 = vpop.permute.xlu0 %2082
        %2084 = vrot.lane.b32.xlu0 %v1326, 64
        %v2085 = vpop.permute.xlu0 %2084
        %2086 = vrot.lane.b32.xlu0 %v1332, 64
        %v2087 = vpop.permute.xlu0 %2086
        %2088 = vrot.lane.b32.xlu0 %v1336, 64
        %v2089 = vpop.permute.xlu0 %2088
        %2090 = vrot.lane.b32.xlu0 %v1342, 64
        %v2091 = vpop.permute.xlu0 %2090
        %2092 = vrot.lane.b32.xlu0 %v1346, 64
        %v2093 = vpop.permute.xlu0 %2092
        %v2110 = vpack.c.bf16 %v1274, %v1270
        %v2111 = vpack.c.bf16 %v1284, %v1280
        %v2112 = vpack.c.bf16 %v1294, %v1290
        %v2113 = vpack.c.bf16 %v1304, %v1300
        %v2114 = vpack.c.bf16 %v1314, %v1310
        %v2115 = vpack.c.bf16 %v1324, %v1320
        %v2116 = vpack.c.bf16 %v1334, %v1330
        %v2117 = vpack.c.bf16 %v1344, %v1340
        %v2118 = vpack.c.bf16 %v2001, %v1999
        %v2119 = vpack.c.bf16 %v2005, %v2003
        %v2120 = vpack.c.bf16 %v2009, %v2007
        %v2121 = vpack.c.bf16 %v2013, %v2011
        %v2122 = vpack.c.bf16 %v2017, %v2015
        %v2123 = vpack.c.bf16 %v2021, %v2019
        %v2124 = vpack.c.bf16 %v2025, %v2023
        %v2125 = vpack.c.bf16 %v2029, %v2027
        %v2126 = vpack.c.bf16 %v1276, %v1272
        %v2127 = vpack.c.bf16 %v1286, %v1282
        %v2128 = vpack.c.bf16 %v1296, %v1292
        %v2129 = vpack.c.bf16 %v1306, %v1302
        %v2130 = vpack.c.bf16 %v1316, %v1312
        %v2131 = vpack.c.bf16 %v1326, %v1322
        %v2132 = vpack.c.bf16 %v1336, %v1332
        %v2133 = vpack.c.bf16 %v1346, %v1342
        %v2134 = vpack.c.bf16 %v2065, %v2063
        %v2135 = vpack.c.bf16 %v2069, %v2067
        %v2136 = vpack.c.bf16 %v2073, %v2071
        %v2137 = vpack.c.bf16 %v2077, %v2075
        %v2138 = vpack.c.bf16 %v2081, %v2079
        %v2139 = vpack.c.bf16 %v2085, %v2083
        %v2140 = vpack.c.bf16 %v2089, %v2087
        %v2141 = vpack.c.bf16 %v2093, %v2091
        %2158 = vrot.lane.b32.xlu0 %v1587, 64
        %v2159 = vpop.permute.xlu0 %2158
        %2160 = vrot.lane.b32.xlu0 %v1591, 64
        %v2161 = vpop.permute.xlu0 %2160
        %2162 = vrot.lane.b32.xlu0 %v1597, 64
        %v2163 = vpop.permute.xlu0 %2162
        %2164 = vrot.lane.b32.xlu0 %v1601, 64
        %v2165 = vpop.permute.xlu0 %2164
        %2166 = vrot.lane.b32.xlu0 %v1607, 64
        %v2167 = vpop.permute.xlu0 %2166
        %2168 = vrot.lane.b32.xlu0 %v1611, 64
        %v2169 = vpop.permute.xlu0 %2168
        %2170 = vrot.lane.b32.xlu0 %v1617, 64
        %v2171 = vpop.permute.xlu0 %2170
        %2172 = vrot.lane.b32.xlu0 %v1621, 64
        %v2173 = vpop.permute.xlu0 %2172
        %2174 = vrot.lane.b32.xlu0 %v1627, 64
        %v2175 = vpop.permute.xlu0 %2174
        %2176 = vrot.lane.b32.xlu0 %v1631, 64
        %v2177 = vpop.permute.xlu0 %2176
        %2178 = vrot.lane.b32.xlu0 %v1637, 64
        %v2179 = vpop.permute.xlu0 %2178
        %2180 = vrot.lane.b32.xlu0 %v1641, 64
        %v2181 = vpop.permute.xlu0 %2180
        %2182 = vrot.lane.b32.xlu0 %v1647, 64
        %v2183 = vpop.permute.xlu0 %2182
        %2184 = vrot.lane.b32.xlu0 %v1651, 64
        %v2185 = vpop.permute.xlu0 %2184
        %2186 = vrot.lane.b32.xlu0 %v1657, 64
        %v2187 = vpop.permute.xlu0 %2186
        %2188 = vrot.lane.b32.xlu0 %v1661, 64
        %v2189 = vpop.permute.xlu0 %2188
        %2222 = vrot.lane.b32.xlu0 %v1589, 64
        %v2223 = vpop.permute.xlu0 %2222
        %2224 = vrot.lane.b32.xlu0 %v1593, 64
        %v2225 = vpop.permute.xlu0 %2224
        %2226 = vrot.lane.b32.xlu0 %v1599, 64
        %v2227 = vpop.permute.xlu0 %2226
        %2228 = vrot.lane.b32.xlu0 %v1603, 64
        %v2229 = vpop.permute.xlu0 %2228
        %2230 = vrot.lane.b32.xlu0 %v1609, 64
        %v2231 = vpop.permute.xlu0 %2230
        %2232 = vrot.lane.b32.xlu0 %v1613, 64
        %v2233 = vpop.permute.xlu0 %2232
        %2234 = vrot.lane.b32.xlu0 %v1619, 64
        %v2235 = vpop.permute.xlu0 %2234
        %2236 = vrot.lane.b32.xlu0 %v1623, 64
        %v2237 = vpop.permute.xlu0 %2236
        %2238 = vrot.lane.b32.xlu0 %v1629, 64
        %v2239 = vpop.permute.xlu0 %2238
        %2240 = vrot.lane.b32.xlu0 %v1633, 64
        %v2241 = vpop.permute.xlu0 %2240
        %2242 = vrot.lane.b32.xlu0 %v1639, 64
        %v2243 = vpop.permute.xlu0 %2242
        %2244 = vrot.lane.b32.xlu0 %v1643, 64
        %v2245 = vpop.permute.xlu0 %2244
        %2246 = vrot.lane.b32.xlu0 %v1649, 64
        %v2247 = vpop.permute.xlu0 %2246
        %2248 = vrot.lane.b32.xlu0 %v1653, 64
        %v2249 = vpop.permute.xlu0 %2248
        %2250 = vrot.lane.b32.xlu0 %v1659, 64
        %v2251 = vpop.permute.xlu0 %2250
        %2252 = vrot.lane.b32.xlu0 %v1663, 64
        %v2253 = vpop.permute.xlu0 %2252
        %v2270 = vpack.c.bf16 %v1591, %v1587
        %v2271 = vpack.c.bf16 %v1601, %v1597
        %v2272 = vpack.c.bf16 %v1611, %v1607
        %v2273 = vpack.c.bf16 %v1621, %v1617
        %v2274 = vpack.c.bf16 %v1631, %v1627
        %v2275 = vpack.c.bf16 %v1641, %v1637
        %v2276 = vpack.c.bf16 %v1651, %v1647
        %v2277 = vpack.c.bf16 %v1661, %v1657
        %v2278 = vpack.c.bf16 %v2161, %v2159
        %v2279 = vpack.c.bf16 %v2165, %v2163
        %v2280 = vpack.c.bf16 %v2169, %v2167
        %v2281 = vpack.c.bf16 %v2173, %v2171
        %v2282 = vpack.c.bf16 %v2177, %v2175
        %v2283 = vpack.c.bf16 %v2181, %v2179
        %v2284 = vpack.c.bf16 %v2185, %v2183
        %v2285 = vpack.c.bf16 %v2189, %v2187
        %v2286 = vpack.c.bf16 %v1593, %v1589
        %v2287 = vpack.c.bf16 %v1603, %v1599
        %v2288 = vpack.c.bf16 %v1613, %v1609
        %v2289 = vpack.c.bf16 %v1623, %v1619
        %v2290 = vpack.c.bf16 %v1633, %v1629
        %v2291 = vpack.c.bf16 %v1643, %v1639
        %v2292 = vpack.c.bf16 %v1653, %v1649
        %v2293 = vpack.c.bf16 %v1663, %v1659
        %v2294 = vpack.c.bf16 %v2225, %v2223
        %v2295 = vpack.c.bf16 %v2229, %v2227
        %v2296 = vpack.c.bf16 %v2233, %v2231
        %v2297 = vpack.c.bf16 %v2237, %v2235
        %v2298 = vpack.c.bf16 %v2241, %v2239
        %v2299 = vpack.c.bf16 %v2245, %v2243
        %v2300 = vpack.c.bf16 %v2249, %v2247
        %v2301 = vpack.c.bf16 %v2253, %v2251
        %2318 = vrot.lane.b32.xlu0 %v1904, 64
        %v2319 = vpop.permute.xlu0 %2318
        %2320 = vrot.lane.b32.xlu0 %v1908, 64
        %v2321 = vpop.permute.xlu0 %2320
        %2322 = vrot.lane.b32.xlu0 %v1914, 64
        %v2323 = vpop.permute.xlu0 %2322
        %2324 = vrot.lane.b32.xlu0 %v1918, 64
        %v2325 = vpop.permute.xlu0 %2324
        %2326 = vrot.lane.b32.xlu0 %v1924, 64
        %v2327 = vpop.permute.xlu0 %2326
        %2328 = vrot.lane.b32.xlu0 %v1928, 64
        %v2329 = vpop.permute.xlu0 %2328
        %2330 = vrot.lane.b32.xlu0 %v1934, 64
        %v2331 = vpop.permute.xlu0 %2330
        %2332 = vrot.lane.b32.xlu0 %v1938, 64
        %v2333 = vpop.permute.xlu0 %2332
        %2334 = vrot.lane.b32.xlu0 %v1944, 64
        %v2335 = vpop.permute.xlu0 %2334
        %2336 = vrot.lane.b32.xlu0 %v1948, 64
        %v2337 = vpop.permute.xlu0 %2336
        %2338 = vrot.lane.b32.xlu0 %v1954, 64
        %v2339 = vpop.permute.xlu0 %2338
        %2340 = vrot.lane.b32.xlu0 %v1958, 64
        %v2341 = vpop.permute.xlu0 %2340
        %2342 = vrot.lane.b32.xlu0 %v1964, 64
        %v2343 = vpop.permute.xlu0 %2342
        %2344 = vrot.lane.b32.xlu0 %v1968, 64
        %v2345 = vpop.permute.xlu0 %2344
        %2346 = vrot.lane.b32.xlu0 %v1974, 64
        %v2347 = vpop.permute.xlu0 %2346
        %2348 = vrot.lane.b32.xlu0 %v1978, 64
        %v2349 = vpop.permute.xlu0 %2348
        %2382 = vrot.lane.b32.xlu0 %v1906, 64
        %v2383 = vpop.permute.xlu0 %2382
        %2384 = vrot.lane.b32.xlu0 %v1910, 64
        %v2385 = vpop.permute.xlu0 %2384
        %2386 = vrot.lane.b32.xlu0 %v1916, 64
        %v2387 = vpop.permute.xlu0 %2386
        %2388 = vrot.lane.b32.xlu0 %v1920, 64
        %v2389 = vpop.permute.xlu0 %2388
        %2390 = vrot.lane.b32.xlu0 %v1926, 64
        %v2391 = vpop.permute.xlu0 %2390
        %2392 = vrot.lane.b32.xlu0 %v1930, 64
        %v2393 = vpop.permute.xlu0 %2392
        %2394 = vrot.lane.b32.xlu0 %v1936, 64
        %v2395 = vpop.permute.xlu0 %2394
        %2396 = vrot.lane.b32.xlu0 %v1940, 64
        %v2397 = vpop.permute.xlu0 %2396
        %2398 = vrot.lane.b32.xlu0 %v1946, 64
        %v2399 = vpop.permute.xlu0 %2398
        %2400 = vrot.lane.b32.xlu0 %v1950, 64
        %v2401 = vpop.permute.xlu0 %2400
        %2402 = vrot.lane.b32.xlu0 %v1956, 64
        %v2403 = vpop.permute.xlu0 %2402
        %2404 = vrot.lane.b32.xlu0 %v1960, 64
        %v2405 = vpop.permute.xlu0 %2404
        %2406 = vrot.lane.b32.xlu0 %v1966, 64
        %v2407 = vpop.permute.xlu0 %2406
        %2408 = vrot.lane.b32.xlu0 %v1970, 64
        %v2409 = vpop.permute.xlu0 %2408
        %2410 = vrot.lane.b32.xlu0 %v1976, 64
        %v2411 = vpop.permute.xlu0 %2410
        %2412 = vrot.lane.b32.xlu0 %v1980, 64
        %v2413 = vpop.permute.xlu0 %2412
        %v2430 = vpack.c.bf16 %v1908, %v1904
        %v2431 = vpack.c.bf16 %v1918, %v1914
        %v2432 = vpack.c.bf16 %v1928, %v1924
        %v2433 = vpack.c.bf16 %v1938, %v1934
        %v2434 = vpack.c.bf16 %v1948, %v1944
        %v2435 = vpack.c.bf16 %v1958, %v1954
        %v2436 = vpack.c.bf16 %v1968, %v1964
        %v2437 = vpack.c.bf16 %v1978, %v1974
        %v2438 = vpack.c.bf16 %v2321, %v2319
        %v2439 = vpack.c.bf16 %v2325, %v2323
        %v2440 = vpack.c.bf16 %v2329, %v2327
        %v2441 = vpack.c.bf16 %v2333, %v2331
        %v2442 = vpack.c.bf16 %v2337, %v2335
        %v2443 = vpack.c.bf16 %v2341, %v2339
        %v2444 = vpack.c.bf16 %v2345, %v2343
        %v2445 = vpack.c.bf16 %v2349, %v2347
        %v2446 = vpack.c.bf16 %v1910, %v1906
        %v2447 = vpack.c.bf16 %v1920, %v1916
        %v2448 = vpack.c.bf16 %v1930, %v1926
        %v2449 = vpack.c.bf16 %v1940, %v1936
        %v2450 = vpack.c.bf16 %v1950, %v1946
        %v2451 = vpack.c.bf16 %v1960, %v1956
        %v2452 = vpack.c.bf16 %v1970, %v1966
        %v2453 = vpack.c.bf16 %v1980, %v1976
        %v2454 = vpack.c.bf16 %v2385, %v2383
        %v2455 = vpack.c.bf16 %v2389, %v2387
        %v2456 = vpack.c.bf16 %v2393, %v2391
        %v2457 = vpack.c.bf16 %v2397, %v2395
        %v2458 = vpack.c.bf16 %v2401, %v2399
        %v2459 = vpack.c.bf16 %v2405, %v2403
        %v2460 = vpack.c.bf16 %v2409, %v2407
        %v2461 = vpack.c.bf16 %v2413, %v2411
        %vm2462 = vcmask 523264
        %v2464 = vsel %vm2462, %v2110, 0
        %v2467 = vsel %vm2462, %v2270, 0
        %2469 = vmatprep.subr.bf16.mxu0 0
        %2470 = vmatpush1.bf16.xpose.msra.mxu0 %v2467
        %2471 = vmatprep.subr.bf16.mxu0 0
        %2472 = vmatpush1.bf16.xpose.msra.mxu0 0
        %2473 = vmatprep.subr.bf16.mxu0 0
        %2474 = vmatpush1.bf16.xpose.msra.mxu0 0
        %2475 = vmatprep.subr.bf16.mxu0 0
        %2476 = vmatpush1.bf16.xpose.msra.mxu0 0
        %2477 = vmatprep.subr.bf16.mxu0 0
        %2478 = vmatpush1.bf16.xpose.msra.mxu0 0
        %2479 = vmatprep.subr.bf16.mxu0 0
        %2480 = vmatpush1.bf16.xpose.msra.mxu0 0
        %2481 = vmatprep.subr.bf16.mxu0 0
        %2482 = vmatpush1.bf16.xpose.msra.mxu0 0
        %2483 = vmatprep.subr.bf16.mxu0 0
        %2484 = vmatpush1.bf16.xpose.msra.mxu0 0
        %2485 = vmatprep.subr.bf16.mxu0 0
        %2486 = vmatpush1.bf16.xpose.msra.mxu0 0
        %2487 = vmatprep.subr.bf16.mxu0 0
        %2488 = vmatpush1.bf16.xpose.msra.mxu0 0
        %2489 = vmatprep.subr.bf16.mxu0 0
        %2490 = vmatpush1.bf16.xpose.msra.mxu0 0
        %2491 = vmatprep.subr.bf16.mxu0 0
        %2492 = vmatpush1.bf16.xpose.msra.mxu0 0
        %2493 = vmatprep.subr.bf16.mxu0 0
        %2494 = vmatpush1.bf16.xpose.msra.mxu0 0
        %2495 = vmatprep.subr.bf16.mxu0 0
        %2496 = vmatpush1.bf16.xpose.msra.mxu0 0
        %2497 = vmatprep.subr.bf16.mxu0 0
        %2498 = vmatpush1.bf16.xpose.msra.mxu0 0
        %2499 = vmatprep.subr.bf16.mxu0 0
        %2500 = vmatpush1.bf16.xpose.msra.mxu0 0
        %2501 = vmatprep.mubr.bf16.mxu0 0
        %2502 = vmatmul.mubr.bf16.gmra.mrb[0].mxu0 %v2464
        %v2503 = vpop.f32.mrb[0].mxu0
        %v2504 = vadd.f32 0.0, %v2503
        %v2505 = vpop.f32.mrb[0].mxu0
        %v2506 = vpop.f32.mrb[0].mxu0
        %v2507 = vadd.f32 0.0, %v2506
        %v2508 = vpop.f32.mrb[0].mxu0
        %2509 = vdwg.mxu0
        %v2511 = vsel %vm2462, %v2111, 0
        %v2514 = vsel %vm2462, %v2271, 0
        %2516 = vmatprep.subr.bf16.mxu0 0
        %2517 = vmatpush1.bf16.xpose.msra.mxu0 %v2514
        %2518 = vmatprep.subr.bf16.mxu0 0
        %2519 = vmatpush1.bf16.xpose.msra.mxu0 0
        %2520 = vmatprep.subr.bf16.mxu0 0
        %2521 = vmatpush1.bf16.xpose.msra.mxu0 0
        %2522 = vmatprep.subr.bf16.mxu0 0
        %2523 = vmatpush1.bf16.xpose.msra.mxu0 0
        %2524 = vmatprep.subr.bf16.mxu0 0
        %2525 = vmatpush1.bf16.xpose.msra.mxu0 0
        %2526 = vmatprep.subr.bf16.mxu0 0
        %2527 = vmatpush1.bf16.xpose.msra.mxu0 0
        %2528 = vmatprep.subr.bf16.mxu0 0
        %2529 = vmatpush1.bf16.xpose.msra.mxu0 0
        %2530 = vmatprep.subr.bf16.mxu0 0
        %2531 = vmatpush1.bf16.xpose.msra.mxu0 0
        %2532 = vmatprep.subr.bf16.mxu0 0
        %2533 = vmatpush1.bf16.xpose.msra.mxu0 0
        %2534 = vmatprep.subr.bf16.mxu0 0
        %2535 = vmatpush1.bf16.xpose.msra.mxu0 0
        %2536 = vmatprep.subr.bf16.mxu0 0
        %2537 = vmatpush1.bf16.xpose.msra.mxu0 0
        %2538 = vmatprep.subr.bf16.mxu0 0
        %2539 = vmatpush1.bf16.xpose.msra.mxu0 0
        %2540 = vmatprep.subr.bf16.mxu0 0
        %2541 = vmatpush1.bf16.xpose.msra.mxu0 0
        %2542 = vmatprep.subr.bf16.mxu0 0
        %2543 = vmatpush1.bf16.xpose.msra.mxu0 0
        %2544 = vmatprep.subr.bf16.mxu0 0
        %2545 = vmatpush1.bf16.xpose.msra.mxu0 0
        %2546 = vmatprep.subr.bf16.mxu0 0
        %2547 = vmatpush1.bf16.xpose.msra.mxu0 0
        %2548 = vmatprep.mubr.bf16.mxu0 0
        %2549 = vmatmul.mubr.bf16.gmra.mrb[0].mxu0 %v2511
        %v2550 = vpop.f32.mrb[0].mxu0
        %v2551 = vadd.f32 0.0, %v2550
        %v2552 = vpop.f32.mrb[0].mxu0
        %v2553 = vpop.f32.mrb[0].mxu0
        %v2554 = vadd.f32 0.0, %v2553
        %v2555 = vpop.f32.mrb[0].mxu0
        %2556 = vdwg.mxu0
        %v2558 = vsel %vm2462, %v2112, 0
        %v2561 = vsel %vm2462, %v2272, 0
        %2563 = vmatprep.subr.bf16.mxu0 0
        %2564 = vmatpush1.bf16.xpose.msra.mxu0 %v2561
        %2565 = vmatprep.subr.bf16.mxu0 0
        %2566 = vmatpush1.bf16.xpose.msra.mxu0 0
        %2567 = vmatprep.subr.bf16.mxu0 0
        %2568 = vmatpush1.bf16.xpose.msra.mxu0 0
        %2569 = vmatprep.subr.bf16.mxu0 0
        %2570 = vmatpush1.bf16.xpose.msra.mxu0 0
        %2571 = vmatprep.subr.bf16.mxu0 0
        %2572 = vmatpush1.bf16.xpose.msra.mxu0 0
        %2573 = vmatprep.subr.bf16.mxu0 0
        %2574 = vmatpush1.bf16.xpose.msra.mxu0 0
        %2575 = vmatprep.subr.bf16.mxu0 0
        %2576 = vmatpush1.bf16.xpose.msra.mxu0 0
        %2577 = vmatprep.subr.bf16.mxu0 0
        %2578 = vmatpush1.bf16.xpose.msra.mxu0 0
        %2579 = vmatprep.subr.bf16.mxu0 0
        %2580 = vmatpush1.bf16.xpose.msra.mxu0 0
        %2581 = vmatprep.subr.bf16.mxu0 0
        %2582 = vmatpush1.bf16.xpose.msra.mxu0 0
        %2583 = vmatprep.subr.bf16.mxu0 0
        %2584 = vmatpush1.bf16.xpose.msra.mxu0 0
        %2585 = vmatprep.subr.bf16.mxu0 0
        %2586 = vmatpush1.bf16.xpose.msra.mxu0 0
        %2587 = vmatprep.subr.bf16.mxu0 0
        %2588 = vmatpush1.bf16.xpose.msra.mxu0 0
        %2589 = vmatprep.subr.bf16.mxu0 0
        %2590 = vmatpush1.bf16.xpose.msra.mxu0 0
        %2591 = vmatprep.subr.bf16.mxu0 0
        %2592 = vmatpush1.bf16.xpose.msra.mxu0 0
        %2593 = vmatprep.subr.bf16.mxu0 0
        %2594 = vmatpush1.bf16.xpose.msra.mxu0 0
        %2595 = vmatprep.mubr.bf16.mxu0 0
        %2596 = vmatmul.mubr.bf16.gmra.mrb[0].mxu0 %v2558
        %v2597 = vpop.f32.mrb[0].mxu0
        %v2598 = vadd.f32 0.0, %v2597
        %v2599 = vpop.f32.mrb[0].mxu0
        %v2600 = vpop.f32.mrb[0].mxu0
        %v2601 = vadd.f32 0.0, %v2600
        %v2602 = vpop.f32.mrb[0].mxu0
        %2603 = vdwg.mxu0
        %v2605 = vsel %vm2462, %v2113, 0
        %v2608 = vsel %vm2462, %v2273, 0
        %2610 = vmatprep.subr.bf16.mxu0 0
        %2611 = vmatpush1.bf16.xpose.msra.mxu0 %v2608
        %2612 = vmatprep.subr.bf16.mxu0 0
        %2613 = vmatpush1.bf16.xpose.msra.mxu0 0
        %2614 = vmatprep.subr.bf16.mxu0 0
        %2615 = vmatpush1.bf16.xpose.msra.mxu0 0
        %2616 = vmatprep.subr.bf16.mxu0 0
        %2617 = vmatpush1.bf16.xpose.msra.mxu0 0
        %2618 = vmatprep.subr.bf16.mxu0 0
        %2619 = vmatpush1.bf16.xpose.msra.mxu0 0
        %2620 = vmatprep.subr.bf16.mxu0 0
        %2621 = vmatpush1.bf16.xpose.msra.mxu0 0
        %2622 = vmatprep.subr.bf16.mxu0 0
        %2623 = vmatpush1.bf16.xpose.msra.mxu0 0
        %2624 = vmatprep.subr.bf16.mxu0 0
        %2625 = vmatpush1.bf16.xpose.msra.mxu0 0
        %2626 = vmatprep.subr.bf16.mxu0 0
        %2627 = vmatpush1.bf16.xpose.msra.mxu0 0
        %2628 = vmatprep.subr.bf16.mxu0 0
        %2629 = vmatpush1.bf16.xpose.msra.mxu0 0
        %2630 = vmatprep.subr.bf16.mxu0 0
        %2631 = vmatpush1.bf16.xpose.msra.mxu0 0
        %2632 = vmatprep.subr.bf16.mxu0 0
        %2633 = vmatpush1.bf16.xpose.msra.mxu0 0
        %2634 = vmatprep.subr.bf16.mxu0 0
        %2635 = vmatpush1.bf16.xpose.msra.mxu0 0
        %2636 = vmatprep.subr.bf16.mxu0 0
        %2637 = vmatpush1.bf16.xpose.msra.mxu0 0
        %2638 = vmatprep.subr.bf16.mxu0 0
        %2639 = vmatpush1.bf16.xpose.msra.mxu0 0
        %2640 = vmatprep.subr.bf16.mxu0 0
        %2641 = vmatpush1.bf16.xpose.msra.mxu0 0
        %2642 = vmatprep.mubr.bf16.mxu0 0
        %2643 = vmatmul.mubr.bf16.gmra.mrb[0].mxu0 %v2605
        %v2644 = vpop.f32.mrb[0].mxu0
        %v2645 = vadd.f32 0.0, %v2644
        %v2646 = vpop.f32.mrb[0].mxu0
        %v2647 = vpop.f32.mrb[0].mxu0
        %v2648 = vadd.f32 0.0, %v2647
        %v2649 = vpop.f32.mrb[0].mxu0
        %2650 = vdwg.mxu0
        %v2652 = vsel %vm2462, %v2114, 0
        %v2655 = vsel %vm2462, %v2274, 0
        %2657 = vmatprep.subr.bf16.mxu0 0
        %2658 = vmatpush1.bf16.xpose.msra.mxu0 %v2655
        %2659 = vmatprep.subr.bf16.mxu0 0
        %2660 = vmatpush1.bf16.xpose.msra.mxu0 0
        %2661 = vmatprep.subr.bf16.mxu0 0
        %2662 = vmatpush1.bf16.xpose.msra.mxu0 0
        %2663 = vmatprep.subr.bf16.mxu0 0
        %2664 = vmatpush1.bf16.xpose.msra.mxu0 0
        %2665 = vmatprep.subr.bf16.mxu0 0
        %2666 = vmatpush1.bf16.xpose.msra.mxu0 0
        %2667 = vmatprep.subr.bf16.mxu0 0
        %2668 = vmatpush1.bf16.xpose.msra.mxu0 0
        %2669 = vmatprep.subr.bf16.mxu0 0
        %2670 = vmatpush1.bf16.xpose.msra.mxu0 0
        %2671 = vmatprep.subr.bf16.mxu0 0
        %2672 = vmatpush1.bf16.xpose.msra.mxu0 0
        %2673 = vmatprep.subr.bf16.mxu0 0
        %2674 = vmatpush1.bf16.xpose.msra.mxu0 0
        %2675 = vmatprep.subr.bf16.mxu0 0
        %2676 = vmatpush1.bf16.xpose.msra.mxu0 0
        %2677 = vmatprep.subr.bf16.mxu0 0
        %2678 = vmatpush1.bf16.xpose.msra.mxu0 0
        %2679 = vmatprep.subr.bf16.mxu0 0
        %2680 = vmatpush1.bf16.xpose.msra.mxu0 0
        %2681 = vmatprep.subr.bf16.mxu0 0
        %2682 = vmatpush1.bf16.xpose.msra.mxu0 0
        %2683 = vmatprep.subr.bf16.mxu0 0
        %2684 = vmatpush1.bf16.xpose.msra.mxu0 0
        %2685 = vmatprep.subr.bf16.mxu0 0
        %2686 = vmatpush1.bf16.xpose.msra.mxu0 0
        %2687 = vmatprep.subr.bf16.mxu0 0
        %2688 = vmatpush1.bf16.xpose.msra.mxu0 0
        %2689 = vmatprep.mubr.bf16.mxu0 0
        %2690 = vmatmul.mubr.bf16.gmra.mrb[0].mxu0 %v2652
        %v2691 = vpop.f32.mrb[0].mxu0
        %v2692 = vadd.f32 0.0, %v2691
        %v2693 = vpop.f32.mrb[0].mxu0
        %v2694 = vpop.f32.mrb[0].mxu0
        %v2695 = vadd.f32 0.0, %v2694
        %v2696 = vpop.f32.mrb[0].mxu0
        %2697 = vdwg.mxu0
        %v2699 = vsel %vm2462, %v2115, 0
        %v2702 = vsel %vm2462, %v2275, 0
        %2704 = vmatprep.subr.bf16.mxu0 0
        %2705 = vmatpush1.bf16.xpose.msra.mxu0 %v2702
        %2706 = vmatprep.subr.bf16.mxu0 0
        %2707 = vmatpush1.bf16.xpose.msra.mxu0 0
        %2708 = vmatprep.subr.bf16.mxu0 0
        %2709 = vmatpush1.bf16.xpose.msra.mxu0 0
        %2710 = vmatprep.subr.bf16.mxu0 0
        %2711 = vmatpush1.bf16.xpose.msra.mxu0 0
        %2712 = vmatprep.subr.bf16.mxu0 0
        %2713 = vmatpush1.bf16.xpose.msra.mxu0 0
        %2714 = vmatprep.subr.bf16.mxu0 0
        %2715 = vmatpush1.bf16.xpose.msra.mxu0 0
        %2716 = vmatprep.subr.bf16.mxu0 0
        %2717 = vmatpush1.bf16.xpose.msra.mxu0 0
        %2718 = vmatprep.subr.bf16.mxu0 0
        %2719 = vmatpush1.bf16.xpose.msra.mxu0 0
        %2720 = vmatprep.subr.bf16.mxu0 0
        %2721 = vmatpush1.bf16.xpose.msra.mxu0 0
        %2722 = vmatprep.subr.bf16.mxu0 0
        %2723 = vmatpush1.bf16.xpose.msra.mxu0 0
        %2724 = vmatprep.subr.bf16.mxu0 0
        %2725 = vmatpush1.bf16.xpose.msra.mxu0 0
        %2726 = vmatprep.subr.bf16.mxu0 0
        %2727 = vmatpush1.bf16.xpose.msra.mxu0 0
        %2728 = vmatprep.subr.bf16.mxu0 0
        %2729 = vmatpush1.bf16.xpose.msra.mxu0 0
        %2730 = vmatprep.subr.bf16.mxu0 0
        %2731 = vmatpush1.bf16.xpose.msra.mxu0 0
        %2732 = vmatprep.subr.bf16.mxu0 0
        %2733 = vmatpush1.bf16.xpose.msra.mxu0 0
        %2734 = vmatprep.subr.bf16.mxu0 0
        %2735 = vmatpush1.bf16.xpose.msra.mxu0 0
        %2736 = vmatprep.mubr.bf16.mxu0 0
        %2737 = vmatmul.mubr.bf16.gmra.mrb[0].mxu0 %v2699
        %v2738 = vpop.f32.mrb[0].mxu0
        %v2739 = vadd.f32 0.0, %v2738
        %v2740 = vpop.f32.mrb[0].mxu0
        %v2741 = vpop.f32.mrb[0].mxu0
        %v2742 = vadd.f32 0.0, %v2741
        %v2743 = vpop.f32.mrb[0].mxu0
        %2744 = vdwg.mxu0
        %v2746 = vsel %vm2462, %v2116, 0
        %v2749 = vsel %vm2462, %v2276, 0
        %2751 = vmatprep.subr.bf16.mxu0 0
        %2752 = vmatpush1.bf16.xpose.msra.mxu0 %v2749
        %2753 = vmatprep.subr.bf16.mxu0 0
        %2754 = vmatpush1.bf16.xpose.msra.mxu0 0
        %2755 = vmatprep.subr.bf16.mxu0 0
        %2756 = vmatpush1.bf16.xpose.msra.mxu0 0
        %2757 = vmatprep.subr.bf16.mxu0 0
        %2758 = vmatpush1.bf16.xpose.msra.mxu0 0
        %2759 = vmatprep.subr.bf16.mxu0 0
        %2760 = vmatpush1.bf16.xpose.msra.mxu0 0
        %2761 = vmatprep.subr.bf16.mxu0 0
        %2762 = vmatpush1.bf16.xpose.msra.mxu0 0
        %2763 = vmatprep.subr.bf16.mxu0 0
        %2764 = vmatpush1.bf16.xpose.msra.mxu0 0
        %2765 = vmatprep.subr.bf16.mxu0 0
        %2766 = vmatpush1.bf16.xpose.msra.mxu0 0
        %2767 = vmatprep.subr.bf16.mxu0 0
        %2768 = vmatpush1.bf16.xpose.msra.mxu0 0
        %2769 = vmatprep.subr.bf16.mxu0 0
        %2770 = vmatpush1.bf16.xpose.msra.mxu0 0
        %2771 = vmatprep.subr.bf16.mxu0 0
        %2772 = vmatpush1.bf16.xpose.msra.mxu0 0
        %2773 = vmatprep.subr.bf16.mxu0 0
        %2774 = vmatpush1.bf16.xpose.msra.mxu0 0
        %2775 = vmatprep.subr.bf16.mxu0 0
        %2776 = vmatpush1.bf16.xpose.msra.mxu0 0
        %2777 = vmatprep.subr.bf16.mxu0 0
        %2778 = vmatpush1.bf16.xpose.msra.mxu0 0
        %2779 = vmatprep.subr.bf16.mxu0 0
        %2780 = vmatpush1.bf16.xpose.msra.mxu0 0
        %2781 = vmatprep.subr.bf16.mxu0 0
        %2782 = vmatpush1.bf16.xpose.msra.mxu0 0
        %2783 = vmatprep.mubr.bf16.mxu0 0
        %2784 = vmatmul.mubr.bf16.gmra.mrb[0].mxu0 %v2746
        %v2785 = vpop.f32.mrb[0].mxu0
        %v2786 = vadd.f32 0.0, %v2785
        %v2787 = vpop.f32.mrb[0].mxu0
        %v2788 = vpop.f32.mrb[0].mxu0
        %v2789 = vadd.f32 0.0, %v2788
        %v2790 = vpop.f32.mrb[0].mxu0
        %2791 = vdwg.mxu0
        %v2793 = vsel %vm2462, %v2117, 0
        %v2796 = vsel %vm2462, %v2277, 0
        %2798 = vmatprep.subr.bf16.mxu0 0
        %2799 = vmatpush1.bf16.xpose.msra.mxu0 %v2796
        %2800 = vmatprep.subr.bf16.mxu0 0
        %2801 = vmatpush1.bf16.xpose.msra.mxu0 0
        %2802 = vmatprep.subr.bf16.mxu0 0
        %2803 = vmatpush1.bf16.xpose.msra.mxu0 0
        %2804 = vmatprep.subr.bf16.mxu0 0
        %2805 = vmatpush1.bf16.xpose.msra.mxu0 0
        %2806 = vmatprep.subr.bf16.mxu0 0
        %2807 = vmatpush1.bf16.xpose.msra.mxu0 0
        %2808 = vmatprep.subr.bf16.mxu0 0
        %2809 = vmatpush1.bf16.xpose.msra.mxu0 0
        %2810 = vmatprep.subr.bf16.mxu0 0
        %2811 = vmatpush1.bf16.xpose.msra.mxu0 0
        %2812 = vmatprep.subr.bf16.mxu0 0
        %2813 = vmatpush1.bf16.xpose.msra.mxu0 0
        %2814 = vmatprep.subr.bf16.mxu0 0
        %2815 = vmatpush1.bf16.xpose.msra.mxu0 0
        %2816 = vmatprep.subr.bf16.mxu0 0
        %2817 = vmatpush1.bf16.xpose.msra.mxu0 0
        %2818 = vmatprep.subr.bf16.mxu0 0
        %2819 = vmatpush1.bf16.xpose.msra.mxu0 0
        %2820 = vmatprep.subr.bf16.mxu0 0
        %2821 = vmatpush1.bf16.xpose.msra.mxu0 0
        %2822 = vmatprep.subr.bf16.mxu0 0
        %2823 = vmatpush1.bf16.xpose.msra.mxu0 0
        %2824 = vmatprep.subr.bf16.mxu0 0
        %2825 = vmatpush1.bf16.xpose.msra.mxu0 0
        %2826 = vmatprep.subr.bf16.mxu0 0
        %2827 = vmatpush1.bf16.xpose.msra.mxu0 0
        %2828 = vmatprep.subr.bf16.mxu0 0
        %2829 = vmatpush1.bf16.xpose.msra.mxu0 0
        %2830 = vmatprep.mubr.bf16.mxu0 0
        %2831 = vmatmul.mubr.bf16.gmra.mrb[0].mxu0 %v2793
        %v2832 = vpop.f32.mrb[0].mxu0
        %v2833 = vadd.f32 0.0, %v2832
        %v2834 = vpop.f32.mrb[0].mxu0
        %v2835 = vpop.f32.mrb[0].mxu0
        %v2836 = vadd.f32 0.0, %v2835
        %v2837 = vpop.f32.mrb[0].mxu0
        %2838 = vdwg.mxu0
        %v2840 = vsel %vm2462, %v2118, 0
        %v2843 = vsel %vm2462, %v2278, 0
        %2845 = vmatprep.subr.bf16.mxu0 0
        %2846 = vmatpush1.bf16.xpose.msra.mxu0 %v2843
        %2847 = vmatprep.subr.bf16.mxu0 0
        %2848 = vmatpush1.bf16.xpose.msra.mxu0 0
        %2849 = vmatprep.subr.bf16.mxu0 0
        %2850 = vmatpush1.bf16.xpose.msra.mxu0 0
        %2851 = vmatprep.subr.bf16.mxu0 0
        %2852 = vmatpush1.bf16.xpose.msra.mxu0 0
        %2853 = vmatprep.subr.bf16.mxu0 0
        %2854 = vmatpush1.bf16.xpose.msra.mxu0 0
        %2855 = vmatprep.subr.bf16.mxu0 0
        %2856 = vmatpush1.bf16.xpose.msra.mxu0 0
        %2857 = vmatprep.subr.bf16.mxu0 0
        %2858 = vmatpush1.bf16.xpose.msra.mxu0 0
        %2859 = vmatprep.subr.bf16.mxu0 0
        %2860 = vmatpush1.bf16.xpose.msra.mxu0 0
        %2861 = vmatprep.subr.bf16.mxu0 0
        %2862 = vmatpush1.bf16.xpose.msra.mxu0 0
        %2863 = vmatprep.subr.bf16.mxu0 0
        %2864 = vmatpush1.bf16.xpose.msra.mxu0 0
        %2865 = vmatprep.subr.bf16.mxu0 0
        %2866 = vmatpush1.bf16.xpose.msra.mxu0 0
        %2867 = vmatprep.subr.bf16.mxu0 0
        %2868 = vmatpush1.bf16.xpose.msra.mxu0 0
        %2869 = vmatprep.subr.bf16.mxu0 0
        %2870 = vmatpush1.bf16.xpose.msra.mxu0 0
        %2871 = vmatprep.subr.bf16.mxu0 0
        %2872 = vmatpush1.bf16.xpose.msra.mxu0 0
        %2873 = vmatprep.subr.bf16.mxu0 0
        %2874 = vmatpush1.bf16.xpose.msra.mxu0 0
        %2875 = vmatprep.subr.bf16.mxu0 0
        %2876 = vmatpush1.bf16.xpose.msra.mxu0 0
        %2877 = vmatprep.mubr.bf16.mxu0 0
        %2878 = vmatmul.mubr.bf16.gmra.mrb[0].mxu0 %v2840
        %v2879 = vpop.f32.mrb[0].mxu0
        %v2880 = vadd.f32 0.0, %v2879
        %v2881 = vpop.f32.mrb[0].mxu0
        %v2882 = vpop.f32.mrb[0].mxu0
        %v2883 = vadd.f32 0.0, %v2882
        %v2884 = vpop.f32.mrb[0].mxu0
        %2885 = vdwg.mxu0
        %v2887 = vsel %vm2462, %v2119, 0
        %v2890 = vsel %vm2462, %v2279, 0
        %2892 = vmatprep.subr.bf16.mxu0 0
        %2893 = vmatpush1.bf16.xpose.msra.mxu0 %v2890
        %2894 = vmatprep.subr.bf16.mxu0 0
        %2895 = vmatpush1.bf16.xpose.msra.mxu0 0
        %2896 = vmatprep.subr.bf16.mxu0 0
        %2897 = vmatpush1.bf16.xpose.msra.mxu0 0
        %2898 = vmatprep.subr.bf16.mxu0 0
        %2899 = vmatpush1.bf16.xpose.msra.mxu0 0
        %2900 = vmatprep.subr.bf16.mxu0 0
        %2901 = vmatpush1.bf16.xpose.msra.mxu0 0
        %2902 = vmatprep.subr.bf16.mxu0 0
        %2903 = vmatpush1.bf16.xpose.msra.mxu0 0
        %2904 = vmatprep.subr.bf16.mxu0 0
        %2905 = vmatpush1.bf16.xpose.msra.mxu0 0
        %2906 = vmatprep.subr.bf16.mxu0 0
        %2907 = vmatpush1.bf16.xpose.msra.mxu0 0
        %2908 = vmatprep.subr.bf16.mxu0 0
        %2909 = vmatpush1.bf16.xpose.msra.mxu0 0
        %2910 = vmatprep.subr.bf16.mxu0 0
        %2911 = vmatpush1.bf16.xpose.msra.mxu0 0
        %2912 = vmatprep.subr.bf16.mxu0 0
        %2913 = vmatpush1.bf16.xpose.msra.mxu0 0
        %2914 = vmatprep.subr.bf16.mxu0 0
        %2915 = vmatpush1.bf16.xpose.msra.mxu0 0
        %2916 = vmatprep.subr.bf16.mxu0 0
        %2917 = vmatpush1.bf16.xpose.msra.mxu0 0
        %2918 = vmatprep.subr.bf16.mxu0 0
        %2919 = vmatpush1.bf16.xpose.msra.mxu0 0
        %2920 = vmatprep.subr.bf16.mxu0 0
        %2921 = vmatpush1.bf16.xpose.msra.mxu0 0
        %2922 = vmatprep.subr.bf16.mxu0 0
        %2923 = vmatpush1.bf16.xpose.msra.mxu0 0
        %2924 = vmatprep.mubr.bf16.mxu0 0
        %2925 = vmatmul.mubr.bf16.gmra.mrb[0].mxu0 %v2887
        %v2926 = vpop.f32.mrb[0].mxu0
        %v2927 = vadd.f32 0.0, %v2926
        %v2928 = vpop.f32.mrb[0].mxu0
        %v2929 = vpop.f32.mrb[0].mxu0
        %v2930 = vadd.f32 0.0, %v2929
        %v2931 = vpop.f32.mrb[0].mxu0
        %2932 = vdwg.mxu0
        %v2934 = vsel %vm2462, %v2120, 0
        %v2937 = vsel %vm2462, %v2280, 0
        %2939 = vmatprep.subr.bf16.mxu0 0
        %2940 = vmatpush1.bf16.xpose.msra.mxu0 %v2937
        %2941 = vmatprep.subr.bf16.mxu0 0
        %2942 = vmatpush1.bf16.xpose.msra.mxu0 0
        %2943 = vmatprep.subr.bf16.mxu0 0
        %2944 = vmatpush1.bf16.xpose.msra.mxu0 0
        %2945 = vmatprep.subr.bf16.mxu0 0
        %2946 = vmatpush1.bf16.xpose.msra.mxu0 0
        %2947 = vmatprep.subr.bf16.mxu0 0
        %2948 = vmatpush1.bf16.xpose.msra.mxu0 0
        %2949 = vmatprep.subr.bf16.mxu0 0
        %2950 = vmatpush1.bf16.xpose.msra.mxu0 0
        %2951 = vmatprep.subr.bf16.mxu0 0
        %2952 = vmatpush1.bf16.xpose.msra.mxu0 0
        %2953 = vmatprep.subr.bf16.mxu0 0
        %2954 = vmatpush1.bf16.xpose.msra.mxu0 0
        %2955 = vmatprep.subr.bf16.mxu0 0
        %2956 = vmatpush1.bf16.xpose.msra.mxu0 0
        %2957 = vmatprep.subr.bf16.mxu0 0
        %2958 = vmatpush1.bf16.xpose.msra.mxu0 0
        %2959 = vmatprep.subr.bf16.mxu0 0
        %2960 = vmatpush1.bf16.xpose.msra.mxu0 0
        %2961 = vmatprep.subr.bf16.mxu0 0
        %2962 = vmatpush1.bf16.xpose.msra.mxu0 0
        %2963 = vmatprep.subr.bf16.mxu0 0
        %2964 = vmatpush1.bf16.xpose.msra.mxu0 0
        %2965 = vmatprep.subr.bf16.mxu0 0
        %2966 = vmatpush1.bf16.xpose.msra.mxu0 0
        %2967 = vmatprep.subr.bf16.mxu0 0
        %2968 = vmatpush1.bf16.xpose.msra.mxu0 0
        %2969 = vmatprep.subr.bf16.mxu0 0
        %2970 = vmatpush1.bf16.xpose.msra.mxu0 0
        %2971 = vmatprep.mubr.bf16.mxu0 0
        %2972 = vmatmul.mubr.bf16.gmra.mrb[0].mxu0 %v2934
        %v2973 = vpop.f32.mrb[0].mxu0
        %v2974 = vadd.f32 0.0, %v2973
        %v2975 = vpop.f32.mrb[0].mxu0
        %v2976 = vpop.f32.mrb[0].mxu0
        %v2977 = vadd.f32 0.0, %v2976
        %v2978 = vpop.f32.mrb[0].mxu0
        %2979 = vdwg.mxu0
        %v2981 = vsel %vm2462, %v2121, 0
        %v2984 = vsel %vm2462, %v2281, 0
        %2986 = vmatprep.subr.bf16.mxu0 0
        %2987 = vmatpush1.bf16.xpose.msra.mxu0 %v2984
        %2988 = vmatprep.subr.bf16.mxu0 0
        %2989 = vmatpush1.bf16.xpose.msra.mxu0 0
        %2990 = vmatprep.subr.bf16.mxu0 0
        %2991 = vmatpush1.bf16.xpose.msra.mxu0 0
        %2992 = vmatprep.subr.bf16.mxu0 0
        %2993 = vmatpush1.bf16.xpose.msra.mxu0 0
        %2994 = vmatprep.subr.bf16.mxu0 0
        %2995 = vmatpush1.bf16.xpose.msra.mxu0 0
        %2996 = vmatprep.subr.bf16.mxu0 0
        %2997 = vmatpush1.bf16.xpose.msra.mxu0 0
        %2998 = vmatprep.subr.bf16.mxu0 0
        %2999 = vmatpush1.bf16.xpose.msra.mxu0 0
        %3000 = vmatprep.subr.bf16.mxu0 0
        %3001 = vmatpush1.bf16.xpose.msra.mxu0 0
        %3002 = vmatprep.subr.bf16.mxu0 0
        %3003 = vmatpush1.bf16.xpose.msra.mxu0 0
        %3004 = vmatprep.subr.bf16.mxu0 0
        %3005 = vmatpush1.bf16.xpose.msra.mxu0 0
        %3006 = vmatprep.subr.bf16.mxu0 0
        %3007 = vmatpush1.bf16.xpose.msra.mxu0 0
        %3008 = vmatprep.subr.bf16.mxu0 0
        %3009 = vmatpush1.bf16.xpose.msra.mxu0 0
        %3010 = vmatprep.subr.bf16.mxu0 0
        %3011 = vmatpush1.bf16.xpose.msra.mxu0 0
        %3012 = vmatprep.subr.bf16.mxu0 0
        %3013 = vmatpush1.bf16.xpose.msra.mxu0 0
        %3014 = vmatprep.subr.bf16.mxu0 0
        %3015 = vmatpush1.bf16.xpose.msra.mxu0 0
        %3016 = vmatprep.subr.bf16.mxu0 0
        %3017 = vmatpush1.bf16.xpose.msra.mxu0 0
        %3018 = vmatprep.mubr.bf16.mxu0 0
        %3019 = vmatmul.mubr.bf16.gmra.mrb[0].mxu0 %v2981
        %v3020 = vpop.f32.mrb[0].mxu0
        %v3021 = vadd.f32 0.0, %v3020
        %v3022 = vpop.f32.mrb[0].mxu0
        %v3023 = vpop.f32.mrb[0].mxu0
        %v3024 = vadd.f32 0.0, %v3023
        %v3025 = vpop.f32.mrb[0].mxu0
        %3026 = vdwg.mxu0
        %v3028 = vsel %vm2462, %v2122, 0
        %v3031 = vsel %vm2462, %v2282, 0
        %3033 = vmatprep.subr.bf16.mxu0 0
        %3034 = vmatpush1.bf16.xpose.msra.mxu0 %v3031
        %3035 = vmatprep.subr.bf16.mxu0 0
        %3036 = vmatpush1.bf16.xpose.msra.mxu0 0
        %3037 = vmatprep.subr.bf16.mxu0 0
        %3038 = vmatpush1.bf16.xpose.msra.mxu0 0
        %3039 = vmatprep.subr.bf16.mxu0 0
        %3040 = vmatpush1.bf16.xpose.msra.mxu0 0
        %3041 = vmatprep.subr.bf16.mxu0 0
        %3042 = vmatpush1.bf16.xpose.msra.mxu0 0
        %3043 = vmatprep.subr.bf16.mxu0 0
        %3044 = vmatpush1.bf16.xpose.msra.mxu0 0
        %3045 = vmatprep.subr.bf16.mxu0 0
        %3046 = vmatpush1.bf16.xpose.msra.mxu0 0
        %3047 = vmatprep.subr.bf16.mxu0 0
        %3048 = vmatpush1.bf16.xpose.msra.mxu0 0
        %3049 = vmatprep.subr.bf16.mxu0 0
        %3050 = vmatpush1.bf16.xpose.msra.mxu0 0
        %3051 = vmatprep.subr.bf16.mxu0 0
        %3052 = vmatpush1.bf16.xpose.msra.mxu0 0
        %3053 = vmatprep.subr.bf16.mxu0 0
        %3054 = vmatpush1.bf16.xpose.msra.mxu0 0
        %3055 = vmatprep.subr.bf16.mxu0 0
        %3056 = vmatpush1.bf16.xpose.msra.mxu0 0
        %3057 = vmatprep.subr.bf16.mxu0 0
        %3058 = vmatpush1.bf16.xpose.msra.mxu0 0
        %3059 = vmatprep.subr.bf16.mxu0 0
        %3060 = vmatpush1.bf16.xpose.msra.mxu0 0
        %3061 = vmatprep.subr.bf16.mxu0 0
        %3062 = vmatpush1.bf16.xpose.msra.mxu0 0
        %3063 = vmatprep.subr.bf16.mxu0 0
        %3064 = vmatpush1.bf16.xpose.msra.mxu0 0
        %3065 = vmatprep.mubr.bf16.mxu0 0
        %3066 = vmatmul.mubr.bf16.gmra.mrb[0].mxu0 %v3028
        %v3067 = vpop.f32.mrb[0].mxu0
        %v3068 = vadd.f32 0.0, %v3067
        %v3069 = vpop.f32.mrb[0].mxu0
        %v3070 = vpop.f32.mrb[0].mxu0
        %v3071 = vadd.f32 0.0, %v3070
        %v3072 = vpop.f32.mrb[0].mxu0
        %3073 = vdwg.mxu0
        %v3075 = vsel %vm2462, %v2123, 0
        %v3078 = vsel %vm2462, %v2283, 0
        %3080 = vmatprep.subr.bf16.mxu0 0
        %3081 = vmatpush1.bf16.xpose.msra.mxu0 %v3078
        %3082 = vmatprep.subr.bf16.mxu0 0
        %3083 = vmatpush1.bf16.xpose.msra.mxu0 0
        %3084 = vmatprep.subr.bf16.mxu0 0
        %3085 = vmatpush1.bf16.xpose.msra.mxu0 0
        %3086 = vmatprep.subr.bf16.mxu0 0
        %3087 = vmatpush1.bf16.xpose.msra.mxu0 0
        %3088 = vmatprep.subr.bf16.mxu0 0
        %3089 = vmatpush1.bf16.xpose.msra.mxu0 0
        %3090 = vmatprep.subr.bf16.mxu0 0
        %3091 = vmatpush1.bf16.xpose.msra.mxu0 0
        %3092 = vmatprep.subr.bf16.mxu0 0
        %3093 = vmatpush1.bf16.xpose.msra.mxu0 0
        %3094 = vmatprep.subr.bf16.mxu0 0
        %3095 = vmatpush1.bf16.xpose.msra.mxu0 0
        %3096 = vmatprep.subr.bf16.mxu0 0
        %3097 = vmatpush1.bf16.xpose.msra.mxu0 0
        %3098 = vmatprep.subr.bf16.mxu0 0
        %3099 = vmatpush1.bf16.xpose.msra.mxu0 0
        %3100 = vmatprep.subr.bf16.mxu0 0
        %3101 = vmatpush1.bf16.xpose.msra.mxu0 0
        %3102 = vmatprep.subr.bf16.mxu0 0
        %3103 = vmatpush1.bf16.xpose.msra.mxu0 0
        %3104 = vmatprep.subr.bf16.mxu0 0
        %3105 = vmatpush1.bf16.xpose.msra.mxu0 0
        %3106 = vmatprep.subr.bf16.mxu0 0
        %3107 = vmatpush1.bf16.xpose.msra.mxu0 0
        %3108 = vmatprep.subr.bf16.mxu0 0
        %3109 = vmatpush1.bf16.xpose.msra.mxu0 0
        %3110 = vmatprep.subr.bf16.mxu0 0
        %3111 = vmatpush1.bf16.xpose.msra.mxu0 0
        %3112 = vmatprep.mubr.bf16.mxu0 0
        %3113 = vmatmul.mubr.bf16.gmra.mrb[0].mxu0 %v3075
        %v3114 = vpop.f32.mrb[0].mxu0
        %v3115 = vadd.f32 0.0, %v3114
        %v3116 = vpop.f32.mrb[0].mxu0
        %v3117 = vpop.f32.mrb[0].mxu0
        %v3118 = vadd.f32 0.0, %v3117
        %v3119 = vpop.f32.mrb[0].mxu0
        %3120 = vdwg.mxu0
        %v3122 = vsel %vm2462, %v2124, 0
        %v3125 = vsel %vm2462, %v2284, 0
        %3127 = vmatprep.subr.bf16.mxu0 0
        %3128 = vmatpush1.bf16.xpose.msra.mxu0 %v3125
        %3129 = vmatprep.subr.bf16.mxu0 0
        %3130 = vmatpush1.bf16.xpose.msra.mxu0 0
        %3131 = vmatprep.subr.bf16.mxu0 0
        %3132 = vmatpush1.bf16.xpose.msra.mxu0 0
        %3133 = vmatprep.subr.bf16.mxu0 0
        %3134 = vmatpush1.bf16.xpose.msra.mxu0 0
        %3135 = vmatprep.subr.bf16.mxu0 0
        %3136 = vmatpush1.bf16.xpose.msra.mxu0 0
        %3137 = vmatprep.subr.bf16.mxu0 0
        %3138 = vmatpush1.bf16.xpose.msra.mxu0 0
        %3139 = vmatprep.subr.bf16.mxu0 0
        %3140 = vmatpush1.bf16.xpose.msra.mxu0 0
        %3141 = vmatprep.subr.bf16.mxu0 0
        %3142 = vmatpush1.bf16.xpose.msra.mxu0 0
        %3143 = vmatprep.subr.bf16.mxu0 0
        %3144 = vmatpush1.bf16.xpose.msra.mxu0 0
        %3145 = vmatprep.subr.bf16.mxu0 0
        %3146 = vmatpush1.bf16.xpose.msra.mxu0 0
        %3147 = vmatprep.subr.bf16.mxu0 0
        %3148 = vmatpush1.bf16.xpose.msra.mxu0 0
        %3149 = vmatprep.subr.bf16.mxu0 0
        %3150 = vmatpush1.bf16.xpose.msra.mxu0 0
        %3151 = vmatprep.subr.bf16.mxu0 0
        %3152 = vmatpush1.bf16.xpose.msra.mxu0 0
        %3153 = vmatprep.subr.bf16.mxu0 0
        %3154 = vmatpush1.bf16.xpose.msra.mxu0 0
        %3155 = vmatprep.subr.bf16.mxu0 0
        %3156 = vmatpush1.bf16.xpose.msra.mxu0 0
        %3157 = vmatprep.subr.bf16.mxu0 0
        %3158 = vmatpush1.bf16.xpose.msra.mxu0 0
        %3159 = vmatprep.mubr.bf16.mxu0 0
        %3160 = vmatmul.mubr.bf16.gmra.mrb[0].mxu0 %v3122
        %v3161 = vpop.f32.mrb[0].mxu0
        %v3162 = vadd.f32 0.0, %v3161
        %v3163 = vpop.f32.mrb[0].mxu0
        %v3164 = vpop.f32.mrb[0].mxu0
        %v3165 = vadd.f32 0.0, %v3164
        %v3166 = vpop.f32.mrb[0].mxu0
        %3167 = vdwg.mxu0
        %v3169 = vsel %vm2462, %v2125, 0
        %v3172 = vsel %vm2462, %v2285, 0
        %3174 = vmatprep.subr.bf16.mxu0 0
        %3175 = vmatpush1.bf16.xpose.msra.mxu0 %v3172
        %3176 = vmatprep.subr.bf16.mxu0 0
        %3177 = vmatpush1.bf16.xpose.msra.mxu0 0
        %3178 = vmatprep.subr.bf16.mxu0 0
        %3179 = vmatpush1.bf16.xpose.msra.mxu0 0
        %3180 = vmatprep.subr.bf16.mxu0 0
        %3181 = vmatpush1.bf16.xpose.msra.mxu0 0
        %3182 = vmatprep.subr.bf16.mxu0 0
        %3183 = vmatpush1.bf16.xpose.msra.mxu0 0
        %3184 = vmatprep.subr.bf16.mxu0 0
        %3185 = vmatpush1.bf16.xpose.msra.mxu0 0
        %3186 = vmatprep.subr.bf16.mxu0 0
        %3187 = vmatpush1.bf16.xpose.msra.mxu0 0
        %3188 = vmatprep.subr.bf16.mxu0 0
        %3189 = vmatpush1.bf16.xpose.msra.mxu0 0
        %3190 = vmatprep.subr.bf16.mxu0 0
        %3191 = vmatpush1.bf16.xpose.msra.mxu0 0
        %3192 = vmatprep.subr.bf16.mxu0 0
        %3193 = vmatpush1.bf16.xpose.msra.mxu0 0
        %3194 = vmatprep.subr.bf16.mxu0 0
        %3195 = vmatpush1.bf16.xpose.msra.mxu0 0
        %3196 = vmatprep.subr.bf16.mxu0 0
        %3197 = vmatpush1.bf16.xpose.msra.mxu0 0
        %3198 = vmatprep.subr.bf16.mxu0 0
        %3199 = vmatpush1.bf16.xpose.msra.mxu0 0
        %3200 = vmatprep.subr.bf16.mxu0 0
        %3201 = vmatpush1.bf16.xpose.msra.mxu0 0
        %3202 = vmatprep.subr.bf16.mxu0 0
        %3203 = vmatpush1.bf16.xpose.msra.mxu0 0
        %3204 = vmatprep.subr.bf16.mxu0 0
        %3205 = vmatpush1.bf16.xpose.msra.mxu0 0
        %3206 = vmatprep.mubr.bf16.mxu0 0
        %3207 = vmatmul.mubr.bf16.gmra.mrb[0].mxu0 %v3169
        %v3208 = vpop.f32.mrb[0].mxu0
        %v3209 = vadd.f32 0.0, %v3208
        %v3210 = vpop.f32.mrb[0].mxu0
        %v3211 = vpop.f32.mrb[0].mxu0
        %v3212 = vadd.f32 0.0, %v3211
        %v3213 = vpop.f32.mrb[0].mxu0
        %3214 = vdwg.mxu0
        %v3216 = vsel %vm2462, %v2126, 0
        %v3219 = vsel %vm2462, %v2286, 0
        %3221 = vmatprep.subr.bf16.mxu0 0
        %3222 = vmatpush1.bf16.xpose.msra.mxu0 %v3219
        %3223 = vmatprep.subr.bf16.mxu0 0
        %3224 = vmatpush1.bf16.xpose.msra.mxu0 0
        %3225 = vmatprep.subr.bf16.mxu0 0
        %3226 = vmatpush1.bf16.xpose.msra.mxu0 0
        %3227 = vmatprep.subr.bf16.mxu0 0
        %3228 = vmatpush1.bf16.xpose.msra.mxu0 0
        %3229 = vmatprep.subr.bf16.mxu0 0
        %3230 = vmatpush1.bf16.xpose.msra.mxu0 0
        %3231 = vmatprep.subr.bf16.mxu0 0
        %3232 = vmatpush1.bf16.xpose.msra.mxu0 0
        %3233 = vmatprep.subr.bf16.mxu0 0
        %3234 = vmatpush1.bf16.xpose.msra.mxu0 0
        %3235 = vmatprep.subr.bf16.mxu0 0
        %3236 = vmatpush1.bf16.xpose.msra.mxu0 0
        %3237 = vmatprep.subr.bf16.mxu0 0
        %3238 = vmatpush1.bf16.xpose.msra.mxu0 0
        %3239 = vmatprep.subr.bf16.mxu0 0
        %3240 = vmatpush1.bf16.xpose.msra.mxu0 0
        %3241 = vmatprep.subr.bf16.mxu0 0
        %3242 = vmatpush1.bf16.xpose.msra.mxu0 0
        %3243 = vmatprep.subr.bf16.mxu0 0
        %3244 = vmatpush1.bf16.xpose.msra.mxu0 0
        %3245 = vmatprep.subr.bf16.mxu0 0
        %3246 = vmatpush1.bf16.xpose.msra.mxu0 0
        %3247 = vmatprep.subr.bf16.mxu0 0
        %3248 = vmatpush1.bf16.xpose.msra.mxu0 0
        %3249 = vmatprep.subr.bf16.mxu0 0
        %3250 = vmatpush1.bf16.xpose.msra.mxu0 0
        %3251 = vmatprep.subr.bf16.mxu0 0
        %3252 = vmatpush1.bf16.xpose.msra.mxu0 0
        %3253 = vmatprep.mubr.bf16.mxu0 0
        %3254 = vmatmul.mubr.bf16.gmra.mrb[0].mxu0 %v3216
        %v3255 = vpop.f32.mrb[0].mxu0
        %v3256 = vadd.f32 0.0, %v3255
        %v3257 = vpop.f32.mrb[0].mxu0
        %v3258 = vpop.f32.mrb[0].mxu0
        %v3259 = vadd.f32 0.0, %v3258
        %v3260 = vpop.f32.mrb[0].mxu0
        %3261 = vdwg.mxu0
        %v3263 = vsel %vm2462, %v2127, 0
        %v3266 = vsel %vm2462, %v2287, 0
        %3268 = vmatprep.subr.bf16.mxu0 0
        %3269 = vmatpush1.bf16.xpose.msra.mxu0 %v3266
        %3270 = vmatprep.subr.bf16.mxu0 0
        %3271 = vmatpush1.bf16.xpose.msra.mxu0 0
        %3272 = vmatprep.subr.bf16.mxu0 0
        %3273 = vmatpush1.bf16.xpose.msra.mxu0 0
        %3274 = vmatprep.subr.bf16.mxu0 0
        %3275 = vmatpush1.bf16.xpose.msra.mxu0 0
        %3276 = vmatprep.subr.bf16.mxu0 0
        %3277 = vmatpush1.bf16.xpose.msra.mxu0 0
        %3278 = vmatprep.subr.bf16.mxu0 0
        %3279 = vmatpush1.bf16.xpose.msra.mxu0 0
        %3280 = vmatprep.subr.bf16.mxu0 0
        %3281 = vmatpush1.bf16.xpose.msra.mxu0 0
        %3282 = vmatprep.subr.bf16.mxu0 0
        %3283 = vmatpush1.bf16.xpose.msra.mxu0 0
        %3284 = vmatprep.subr.bf16.mxu0 0
        %3285 = vmatpush1.bf16.xpose.msra.mxu0 0
        %3286 = vmatprep.subr.bf16.mxu0 0
        %3287 = vmatpush1.bf16.xpose.msra.mxu0 0
        %3288 = vmatprep.subr.bf16.mxu0 0
        %3289 = vmatpush1.bf16.xpose.msra.mxu0 0
        %3290 = vmatprep.subr.bf16.mxu0 0
        %3291 = vmatpush1.bf16.xpose.msra.mxu0 0
        %3292 = vmatprep.subr.bf16.mxu0 0
        %3293 = vmatpush1.bf16.xpose.msra.mxu0 0
        %3294 = vmatprep.subr.bf16.mxu0 0
        %3295 = vmatpush1.bf16.xpose.msra.mxu0 0
        %3296 = vmatprep.subr.bf16.mxu0 0
        %3297 = vmatpush1.bf16.xpose.msra.mxu0 0
        %3298 = vmatprep.subr.bf16.mxu0 0
        %3299 = vmatpush1.bf16.xpose.msra.mxu0 0
        %3300 = vmatprep.mubr.bf16.mxu0 0
        %3301 = vmatmul.mubr.bf16.gmra.mrb[0].mxu0 %v3263
        %v3302 = vpop.f32.mrb[0].mxu0
        %v3303 = vadd.f32 0.0, %v3302
        %v3304 = vpop.f32.mrb[0].mxu0
        %v3305 = vpop.f32.mrb[0].mxu0
        %v3306 = vadd.f32 0.0, %v3305
        %v3307 = vpop.f32.mrb[0].mxu0
        %3308 = vdwg.mxu0
        %v3310 = vsel %vm2462, %v2128, 0
        %v3313 = vsel %vm2462, %v2288, 0
        %3315 = vmatprep.subr.bf16.mxu0 0
        %3316 = vmatpush1.bf16.xpose.msra.mxu0 %v3313
        %3317 = vmatprep.subr.bf16.mxu0 0
        %3318 = vmatpush1.bf16.xpose.msra.mxu0 0
        %3319 = vmatprep.subr.bf16.mxu0 0
        %3320 = vmatpush1.bf16.xpose.msra.mxu0 0
        %3321 = vmatprep.subr.bf16.mxu0 0
        %3322 = vmatpush1.bf16.xpose.msra.mxu0 0
        %3323 = vmatprep.subr.bf16.mxu0 0
        %3324 = vmatpush1.bf16.xpose.msra.mxu0 0
        %3325 = vmatprep.subr.bf16.mxu0 0
        %3326 = vmatpush1.bf16.xpose.msra.mxu0 0
        %3327 = vmatprep.subr.bf16.mxu0 0
        %3328 = vmatpush1.bf16.xpose.msra.mxu0 0
        %3329 = vmatprep.subr.bf16.mxu0 0
        %3330 = vmatpush1.bf16.xpose.msra.mxu0 0
        %3331 = vmatprep.subr.bf16.mxu0 0
        %3332 = vmatpush1.bf16.xpose.msra.mxu0 0
        %3333 = vmatprep.subr.bf16.mxu0 0
        %3334 = vmatpush1.bf16.xpose.msra.mxu0 0
        %3335 = vmatprep.subr.bf16.mxu0 0
        %3336 = vmatpush1.bf16.xpose.msra.mxu0 0
        %3337 = vmatprep.subr.bf16.mxu0 0
        %3338 = vmatpush1.bf16.xpose.msra.mxu0 0
        %3339 = vmatprep.subr.bf16.mxu0 0
        %3340 = vmatpush1.bf16.xpose.msra.mxu0 0
        %3341 = vmatprep.subr.bf16.mxu0 0
        %3342 = vmatpush1.bf16.xpose.msra.mxu0 0
        %3343 = vmatprep.subr.bf16.mxu0 0
        %3344 = vmatpush1.bf16.xpose.msra.mxu0 0
        %3345 = vmatprep.subr.bf16.mxu0 0
        %3346 = vmatpush1.bf16.xpose.msra.mxu0 0
        %3347 = vmatprep.mubr.bf16.mxu0 0
        %3348 = vmatmul.mubr.bf16.gmra.mrb[0].mxu0 %v3310
        %v3349 = vpop.f32.mrb[0].mxu0
        %v3350 = vadd.f32 0.0, %v3349
        %v3351 = vpop.f32.mrb[0].mxu0
        %v3352 = vpop.f32.mrb[0].mxu0
        %v3353 = vadd.f32 0.0, %v3352
        %v3354 = vpop.f32.mrb[0].mxu0
        %3355 = vdwg.mxu0
        %v3357 = vsel %vm2462, %v2129, 0
        %v3360 = vsel %vm2462, %v2289, 0
        %3362 = vmatprep.subr.bf16.mxu0 0
        %3363 = vmatpush1.bf16.xpose.msra.mxu0 %v3360
        %3364 = vmatprep.subr.bf16.mxu0 0
        %3365 = vmatpush1.bf16.xpose.msra.mxu0 0
        %3366 = vmatprep.subr.bf16.mxu0 0
        %3367 = vmatpush1.bf16.xpose.msra.mxu0 0
        %3368 = vmatprep.subr.bf16.mxu0 0
        %3369 = vmatpush1.bf16.xpose.msra.mxu0 0
        %3370 = vmatprep.subr.bf16.mxu0 0
        %3371 = vmatpush1.bf16.xpose.msra.mxu0 0
        %3372 = vmatprep.subr.bf16.mxu0 0
        %3373 = vmatpush1.bf16.xpose.msra.mxu0 0
        %3374 = vmatprep.subr.bf16.mxu0 0
        %3375 = vmatpush1.bf16.xpose.msra.mxu0 0
        %3376 = vmatprep.subr.bf16.mxu0 0
        %3377 = vmatpush1.bf16.xpose.msra.mxu0 0
        %3378 = vmatprep.subr.bf16.mxu0 0
        %3379 = vmatpush1.bf16.xpose.msra.mxu0 0
        %3380 = vmatprep.subr.bf16.mxu0 0
        %3381 = vmatpush1.bf16.xpose.msra.mxu0 0
        %3382 = vmatprep.subr.bf16.mxu0 0
        %3383 = vmatpush1.bf16.xpose.msra.mxu0 0
        %3384 = vmatprep.subr.bf16.mxu0 0
        %3385 = vmatpush1.bf16.xpose.msra.mxu0 0
        %3386 = vmatprep.subr.bf16.mxu0 0
        %3387 = vmatpush1.bf16.xpose.msra.mxu0 0
        %3388 = vmatprep.subr.bf16.mxu0 0
        %3389 = vmatpush1.bf16.xpose.msra.mxu0 0
        %3390 = vmatprep.subr.bf16.mxu0 0
        %3391 = vmatpush1.bf16.xpose.msra.mxu0 0
        %3392 = vmatprep.subr.bf16.mxu0 0
        %3393 = vmatpush1.bf16.xpose.msra.mxu0 0
        %3394 = vmatprep.mubr.bf16.mxu0 0
        %3395 = vmatmul.mubr.bf16.gmra.mrb[0].mxu0 %v3357
        %v3396 = vpop.f32.mrb[0].mxu0
        %v3397 = vadd.f32 0.0, %v3396
        %v3398 = vpop.f32.mrb[0].mxu0
        %v3399 = vpop.f32.mrb[0].mxu0
        %v3400 = vadd.f32 0.0, %v3399
        %v3401 = vpop.f32.mrb[0].mxu0
        %3402 = vdwg.mxu0
        %v3404 = vsel %vm2462, %v2130, 0
        %v3407 = vsel %vm2462, %v2290, 0
        %3409 = vmatprep.subr.bf16.mxu0 0
        %3410 = vmatpush1.bf16.xpose.msra.mxu0 %v3407
        %3411 = vmatprep.subr.bf16.mxu0 0
        %3412 = vmatpush1.bf16.xpose.msra.mxu0 0
        %3413 = vmatprep.subr.bf16.mxu0 0
        %3414 = vmatpush1.bf16.xpose.msra.mxu0 0
        %3415 = vmatprep.subr.bf16.mxu0 0
        %3416 = vmatpush1.bf16.xpose.msra.mxu0 0
        %3417 = vmatprep.subr.bf16.mxu0 0
        %3418 = vmatpush1.bf16.xpose.msra.mxu0 0
        %3419 = vmatprep.subr.bf16.mxu0 0
        %3420 = vmatpush1.bf16.xpose.msra.mxu0 0
        %3421 = vmatprep.subr.bf16.mxu0 0
        %3422 = vmatpush1.bf16.xpose.msra.mxu0 0
        %3423 = vmatprep.subr.bf16.mxu0 0
        %3424 = vmatpush1.bf16.xpose.msra.mxu0 0
        %3425 = vmatprep.subr.bf16.mxu0 0
        %3426 = vmatpush1.bf16.xpose.msra.mxu0 0
        %3427 = vmatprep.subr.bf16.mxu0 0
        %3428 = vmatpush1.bf16.xpose.msra.mxu0 0
        %3429 = vmatprep.subr.bf16.mxu0 0
        %3430 = vmatpush1.bf16.xpose.msra.mxu0 0
        %3431 = vmatprep.subr.bf16.mxu0 0
        %3432 = vmatpush1.bf16.xpose.msra.mxu0 0
        %3433 = vmatprep.subr.bf16.mxu0 0
        %3434 = vmatpush1.bf16.xpose.msra.mxu0 0
        %3435 = vmatprep.subr.bf16.mxu0 0
        %3436 = vmatpush1.bf16.xpose.msra.mxu0 0
        %3437 = vmatprep.subr.bf16.mxu0 0
        %3438 = vmatpush1.bf16.xpose.msra.mxu0 0
        %3439 = vmatprep.subr.bf16.mxu0 0
        %3440 = vmatpush1.bf16.xpose.msra.mxu0 0
        %3441 = vmatprep.mubr.bf16.mxu0 0
        %3442 = vmatmul.mubr.bf16.gmra.mrb[0].mxu0 %v3404
        %v3443 = vpop.f32.mrb[0].mxu0
        %v3444 = vadd.f32 0.0, %v3443
        %v3445 = vpop.f32.mrb[0].mxu0
        %v3446 = vpop.f32.mrb[0].mxu0
        %v3447 = vadd.f32 0.0, %v3446
        %v3448 = vpop.f32.mrb[0].mxu0
        %3449 = vdwg.mxu0
        %v3451 = vsel %vm2462, %v2131, 0
        %v3454 = vsel %vm2462, %v2291, 0
        %3456 = vmatprep.subr.bf16.mxu0 0
        %3457 = vmatpush1.bf16.xpose.msra.mxu0 %v3454
        %3458 = vmatprep.subr.bf16.mxu0 0
        %3459 = vmatpush1.bf16.xpose.msra.mxu0 0
        %3460 = vmatprep.subr.bf16.mxu0 0
        %3461 = vmatpush1.bf16.xpose.msra.mxu0 0
        %3462 = vmatprep.subr.bf16.mxu0 0
        %3463 = vmatpush1.bf16.xpose.msra.mxu0 0
        %3464 = vmatprep.subr.bf16.mxu0 0
        %3465 = vmatpush1.bf16.xpose.msra.mxu0 0
        %3466 = vmatprep.subr.bf16.mxu0 0
        %3467 = vmatpush1.bf16.xpose.msra.mxu0 0
        %3468 = vmatprep.subr.bf16.mxu0 0
        %3469 = vmatpush1.bf16.xpose.msra.mxu0 0
        %3470 = vmatprep.subr.bf16.mxu0 0
        %3471 = vmatpush1.bf16.xpose.msra.mxu0 0
        %3472 = vmatprep.subr.bf16.mxu0 0
        %3473 = vmatpush1.bf16.xpose.msra.mxu0 0
        %3474 = vmatprep.subr.bf16.mxu0 0
        %3475 = vmatpush1.bf16.xpose.msra.mxu0 0
        %3476 = vmatprep.subr.bf16.mxu0 0
        %3477 = vmatpush1.bf16.xpose.msra.mxu0 0
        %3478 = vmatprep.subr.bf16.mxu0 0
        %3479 = vmatpush1.bf16.xpose.msra.mxu0 0
        %3480 = vmatprep.subr.bf16.mxu0 0
        %3481 = vmatpush1.bf16.xpose.msra.mxu0 0
        %3482 = vmatprep.subr.bf16.mxu0 0
        %3483 = vmatpush1.bf16.xpose.msra.mxu0 0
        %3484 = vmatprep.subr.bf16.mxu0 0
        %3485 = vmatpush1.bf16.xpose.msra.mxu0 0
        %3486 = vmatprep.subr.bf16.mxu0 0
        %3487 = vmatpush1.bf16.xpose.msra.mxu0 0
        %3488 = vmatprep.mubr.bf16.mxu0 0
        %3489 = vmatmul.mubr.bf16.gmra.mrb[0].mxu0 %v3451
        %v3490 = vpop.f32.mrb[0].mxu0
        %v3491 = vadd.f32 0.0, %v3490
        %v3492 = vpop.f32.mrb[0].mxu0
        %v3493 = vpop.f32.mrb[0].mxu0
        %v3494 = vadd.f32 0.0, %v3493
        %v3495 = vpop.f32.mrb[0].mxu0
        %3496 = vdwg.mxu0
        %v3498 = vsel %vm2462, %v2132, 0
        %v3501 = vsel %vm2462, %v2292, 0
        %3503 = vmatprep.subr.bf16.mxu0 0
        %3504 = vmatpush1.bf16.xpose.msra.mxu0 %v3501
        %3505 = vmatprep.subr.bf16.mxu0 0
        %3506 = vmatpush1.bf16.xpose.msra.mxu0 0
        %3507 = vmatprep.subr.bf16.mxu0 0
        %3508 = vmatpush1.bf16.xpose.msra.mxu0 0
        %3509 = vmatprep.subr.bf16.mxu0 0
        %3510 = vmatpush1.bf16.xpose.msra.mxu0 0
        %3511 = vmatprep.subr.bf16.mxu0 0
        %3512 = vmatpush1.bf16.xpose.msra.mxu0 0
        %3513 = vmatprep.subr.bf16.mxu0 0
        %3514 = vmatpush1.bf16.xpose.msra.mxu0 0
        %3515 = vmatprep.subr.bf16.mxu0 0
        %3516 = vmatpush1.bf16.xpose.msra.mxu0 0
        %3517 = vmatprep.subr.bf16.mxu0 0
        %3518 = vmatpush1.bf16.xpose.msra.mxu0 0
        %3519 = vmatprep.subr.bf16.mxu0 0
        %3520 = vmatpush1.bf16.xpose.msra.mxu0 0
        %3521 = vmatprep.subr.bf16.mxu0 0
        %3522 = vmatpush1.bf16.xpose.msra.mxu0 0
        %3523 = vmatprep.subr.bf16.mxu0 0
        %3524 = vmatpush1.bf16.xpose.msra.mxu0 0
        %3525 = vmatprep.subr.bf16.mxu0 0
        %3526 = vmatpush1.bf16.xpose.msra.mxu0 0
        %3527 = vmatprep.subr.bf16.mxu0 0
        %3528 = vmatpush1.bf16.xpose.msra.mxu0 0
        %3529 = vmatprep.subr.bf16.mxu0 0
        %3530 = vmatpush1.bf16.xpose.msra.mxu0 0
        %3531 = vmatprep.subr.bf16.mxu0 0
        %3532 = vmatpush1.bf16.xpose.msra.mxu0 0
        %3533 = vmatprep.subr.bf16.mxu0 0
        %3534 = vmatpush1.bf16.xpose.msra.mxu0 0
        %3535 = vmatprep.mubr.bf16.mxu0 0
        %3536 = vmatmul.mubr.bf16.gmra.mrb[0].mxu0 %v3498
        %v3537 = vpop.f32.mrb[0].mxu0
        %v3538 = vadd.f32 0.0, %v3537
        %v3539 = vpop.f32.mrb[0].mxu0
        %v3540 = vpop.f32.mrb[0].mxu0
        %v3541 = vadd.f32 0.0, %v3540
        %v3542 = vpop.f32.mrb[0].mxu0
        %3543 = vdwg.mxu0
        %v3545 = vsel %vm2462, %v2133, 0
        %v3548 = vsel %vm2462, %v2293, 0
        %3550 = vmatprep.subr.bf16.mxu0 0
        %3551 = vmatpush1.bf16.xpose.msra.mxu0 %v3548
        %3552 = vmatprep.subr.bf16.mxu0 0
        %3553 = vmatpush1.bf16.xpose.msra.mxu0 0
        %3554 = vmatprep.subr.bf16.mxu0 0
        %3555 = vmatpush1.bf16.xpose.msra.mxu0 0
        %3556 = vmatprep.subr.bf16.mxu0 0
        %3557 = vmatpush1.bf16.xpose.msra.mxu0 0
        %3558 = vmatprep.subr.bf16.mxu0 0
        %3559 = vmatpush1.bf16.xpose.msra.mxu0 0
        %3560 = vmatprep.subr.bf16.mxu0 0
        %3561 = vmatpush1.bf16.xpose.msra.mxu0 0
        %3562 = vmatprep.subr.bf16.mxu0 0
        %3563 = vmatpush1.bf16.xpose.msra.mxu0 0
        %3564 = vmatprep.subr.bf16.mxu0 0
        %3565 = vmatpush1.bf16.xpose.msra.mxu0 0
        %3566 = vmatprep.subr.bf16.mxu0 0
        %3567 = vmatpush1.bf16.xpose.msra.mxu0 0
        %3568 = vmatprep.subr.bf16.mxu0 0
        %3569 = vmatpush1.bf16.xpose.msra.mxu0 0
        %3570 = vmatprep.subr.bf16.mxu0 0
        %3571 = vmatpush1.bf16.xpose.msra.mxu0 0
        %3572 = vmatprep.subr.bf16.mxu0 0
        %3573 = vmatpush1.bf16.xpose.msra.mxu0 0
        %3574 = vmatprep.subr.bf16.mxu0 0
        %3575 = vmatpush1.bf16.xpose.msra.mxu0 0
        %3576 = vmatprep.subr.bf16.mxu0 0
        %3577 = vmatpush1.bf16.xpose.msra.mxu0 0
        %3578 = vmatprep.subr.bf16.mxu0 0
        %3579 = vmatpush1.bf16.xpose.msra.mxu0 0
        %3580 = vmatprep.subr.bf16.mxu0 0
        %3581 = vmatpush1.bf16.xpose.msra.mxu0 0
        %3582 = vmatprep.mubr.bf16.mxu0 0
        %3583 = vmatmul.mubr.bf16.gmra.mrb[0].mxu0 %v3545
        %v3584 = vpop.f32.mrb[0].mxu0
        %v3585 = vadd.f32 0.0, %v3584
        %v3586 = vpop.f32.mrb[0].mxu0
        %v3587 = vpop.f32.mrb[0].mxu0
        %v3588 = vadd.f32 0.0, %v3587
        %v3589 = vpop.f32.mrb[0].mxu0
        %3590 = vdwg.mxu0
        %v3592 = vsel %vm2462, %v2134, 0
        %v3595 = vsel %vm2462, %v2294, 0
        %3597 = vmatprep.subr.bf16.mxu0 0
        %3598 = vmatpush1.bf16.xpose.msra.mxu0 %v3595
        %3599 = vmatprep.subr.bf16.mxu0 0
        %3600 = vmatpush1.bf16.xpose.msra.mxu0 0
        %3601 = vmatprep.subr.bf16.mxu0 0
        %3602 = vmatpush1.bf16.xpose.msra.mxu0 0
        %3603 = vmatprep.subr.bf16.mxu0 0
        %3604 = vmatpush1.bf16.xpose.msra.mxu0 0
        %3605 = vmatprep.subr.bf16.mxu0 0
        %3606 = vmatpush1.bf16.xpose.msra.mxu0 0
        %3607 = vmatprep.subr.bf16.mxu0 0
        %3608 = vmatpush1.bf16.xpose.msra.mxu0 0
        %3609 = vmatprep.subr.bf16.mxu0 0
        %3610 = vmatpush1.bf16.xpose.msra.mxu0 0
        %3611 = vmatprep.subr.bf16.mxu0 0
        %3612 = vmatpush1.bf16.xpose.msra.mxu0 0
        %3613 = vmatprep.subr.bf16.mxu0 0
        %3614 = vmatpush1.bf16.xpose.msra.mxu0 0
        %3615 = vmatprep.subr.bf16.mxu0 0
        %3616 = vmatpush1.bf16.xpose.msra.mxu0 0
        %3617 = vmatprep.subr.bf16.mxu0 0
        %3618 = vmatpush1.bf16.xpose.msra.mxu0 0
        %3619 = vmatprep.subr.bf16.mxu0 0
        %3620 = vmatpush1.bf16.xpose.msra.mxu0 0
        %3621 = vmatprep.subr.bf16.mxu0 0
        %3622 = vmatpush1.bf16.xpose.msra.mxu0 0
        %3623 = vmatprep.subr.bf16.mxu0 0
        %3624 = vmatpush1.bf16.xpose.msra.mxu0 0
        %3625 = vmatprep.subr.bf16.mxu0 0
        %3626 = vmatpush1.bf16.xpose.msra.mxu0 0
        %3627 = vmatprep.subr.bf16.mxu0 0
        %3628 = vmatpush1.bf16.xpose.msra.mxu0 0
        %3629 = vmatprep.mubr.bf16.mxu0 0
        %3630 = vmatmul.mubr.bf16.gmra.mrb[0].mxu0 %v3592
        %v3631 = vpop.f32.mrb[0].mxu0
        %v3632 = vadd.f32 0.0, %v3631
        %v3633 = vpop.f32.mrb[0].mxu0
        %v3634 = vpop.f32.mrb[0].mxu0
        %v3635 = vadd.f32 0.0, %v3634
        %v3636 = vpop.f32.mrb[0].mxu0
        %3637 = vdwg.mxu0
        %v3639 = vsel %vm2462, %v2135, 0
        %v3642 = vsel %vm2462, %v2295, 0
        %3644 = vmatprep.subr.bf16.mxu0 0
        %3645 = vmatpush1.bf16.xpose.msra.mxu0 %v3642
        %3646 = vmatprep.subr.bf16.mxu0 0
        %3647 = vmatpush1.bf16.xpose.msra.mxu0 0
        %3648 = vmatprep.subr.bf16.mxu0 0
        %3649 = vmatpush1.bf16.xpose.msra.mxu0 0
        %3650 = vmatprep.subr.bf16.mxu0 0
        %3651 = vmatpush1.bf16.xpose.msra.mxu0 0
        %3652 = vmatprep.subr.bf16.mxu0 0
        %3653 = vmatpush1.bf16.xpose.msra.mxu0 0
        %3654 = vmatprep.subr.bf16.mxu0 0
        %3655 = vmatpush1.bf16.xpose.msra.mxu0 0
        %3656 = vmatprep.subr.bf16.mxu0 0
        %3657 = vmatpush1.bf16.xpose.msra.mxu0 0
        %3658 = vmatprep.subr.bf16.mxu0 0
        %3659 = vmatpush1.bf16.xpose.msra.mxu0 0
        %3660 = vmatprep.subr.bf16.mxu0 0
        %3661 = vmatpush1.bf16.xpose.msra.mxu0 0
        %3662 = vmatprep.subr.bf16.mxu0 0
        %3663 = vmatpush1.bf16.xpose.msra.mxu0 0
        %3664 = vmatprep.subr.bf16.mxu0 0
        %3665 = vmatpush1.bf16.xpose.msra.mxu0 0
        %3666 = vmatprep.subr.bf16.mxu0 0
        %3667 = vmatpush1.bf16.xpose.msra.mxu0 0
        %3668 = vmatprep.subr.bf16.mxu0 0
        %3669 = vmatpush1.bf16.xpose.msra.mxu0 0
        %3670 = vmatprep.subr.bf16.mxu0 0
        %3671 = vmatpush1.bf16.xpose.msra.mxu0 0
        %3672 = vmatprep.subr.bf16.mxu0 0
        %3673 = vmatpush1.bf16.xpose.msra.mxu0 0
        %3674 = vmatprep.subr.bf16.mxu0 0
        %3675 = vmatpush1.bf16.xpose.msra.mxu0 0
        %3676 = vmatprep.mubr.bf16.mxu0 0
        %3677 = vmatmul.mubr.bf16.gmra.mrb[0].mxu0 %v3639
        %v3678 = vpop.f32.mrb[0].mxu0
        %v3679 = vadd.f32 0.0, %v3678
        %v3680 = vpop.f32.mrb[0].mxu0
        %v3681 = vpop.f32.mrb[0].mxu0
        %v3682 = vadd.f32 0.0, %v3681
        %v3683 = vpop.f32.mrb[0].mxu0
        %3684 = vdwg.mxu0
        %v3686 = vsel %vm2462, %v2136, 0
        %v3689 = vsel %vm2462, %v2296, 0
        %3691 = vmatprep.subr.bf16.mxu0 0
        %3692 = vmatpush1.bf16.xpose.msra.mxu0 %v3689
        %3693 = vmatprep.subr.bf16.mxu0 0
        %3694 = vmatpush1.bf16.xpose.msra.mxu0 0
        %3695 = vmatprep.subr.bf16.mxu0 0
        %3696 = vmatpush1.bf16.xpose.msra.mxu0 0
        %3697 = vmatprep.subr.bf16.mxu0 0
        %3698 = vmatpush1.bf16.xpose.msra.mxu0 0
        %3699 = vmatprep.subr.bf16.mxu0 0
        %3700 = vmatpush1.bf16.xpose.msra.mxu0 0
        %3701 = vmatprep.subr.bf16.mxu0 0
        %3702 = vmatpush1.bf16.xpose.msra.mxu0 0
        %3703 = vmatprep.subr.bf16.mxu0 0
        %3704 = vmatpush1.bf16.xpose.msra.mxu0 0
        %3705 = vmatprep.subr.bf16.mxu0 0
        %3706 = vmatpush1.bf16.xpose.msra.mxu0 0
        %3707 = vmatprep.subr.bf16.mxu0 0
        %3708 = vmatpush1.bf16.xpose.msra.mxu0 0
        %3709 = vmatprep.subr.bf16.mxu0 0
        %3710 = vmatpush1.bf16.xpose.msra.mxu0 0
        %3711 = vmatprep.subr.bf16.mxu0 0
        %3712 = vmatpush1.bf16.xpose.msra.mxu0 0
        %3713 = vmatprep.subr.bf16.mxu0 0
        %3714 = vmatpush1.bf16.xpose.msra.mxu0 0
        %3715 = vmatprep.subr.bf16.mxu0 0
        %3716 = vmatpush1.bf16.xpose.msra.mxu0 0
        %3717 = vmatprep.subr.bf16.mxu0 0
        %3718 = vmatpush1.bf16.xpose.msra.mxu0 0
        %3719 = vmatprep.subr.bf16.mxu0 0
        %3720 = vmatpush1.bf16.xpose.msra.mxu0 0
        %3721 = vmatprep.subr.bf16.mxu0 0
        %3722 = vmatpush1.bf16.xpose.msra.mxu0 0
        %3723 = vmatprep.mubr.bf16.mxu0 0
        %3724 = vmatmul.mubr.bf16.gmra.mrb[0].mxu0 %v3686
        %v3725 = vpop.f32.mrb[0].mxu0
        %v3726 = vadd.f32 0.0, %v3725
        %v3727 = vpop.f32.mrb[0].mxu0
        %v3728 = vpop.f32.mrb[0].mxu0
        %v3729 = vadd.f32 0.0, %v3728
        %v3730 = vpop.f32.mrb[0].mxu0
        %3731 = vdwg.mxu0
        %v3733 = vsel %vm2462, %v2137, 0
        %v3736 = vsel %vm2462, %v2297, 0
        %3738 = vmatprep.subr.bf16.mxu0 0
        %3739 = vmatpush1.bf16.xpose.msra.mxu0 %v3736
        %3740 = vmatprep.subr.bf16.mxu0 0
        %3741 = vmatpush1.bf16.xpose.msra.mxu0 0
        %3742 = vmatprep.subr.bf16.mxu0 0
        %3743 = vmatpush1.bf16.xpose.msra.mxu0 0
        %3744 = vmatprep.subr.bf16.mxu0 0
        %3745 = vmatpush1.bf16.xpose.msra.mxu0 0
        %3746 = vmatprep.subr.bf16.mxu0 0
        %3747 = vmatpush1.bf16.xpose.msra.mxu0 0
        %3748 = vmatprep.subr.bf16.mxu0 0
        %3749 = vmatpush1.bf16.xpose.msra.mxu0 0
        %3750 = vmatprep.subr.bf16.mxu0 0
        %3751 = vmatpush1.bf16.xpose.msra.mxu0 0
        %3752 = vmatprep.subr.bf16.mxu0 0
        %3753 = vmatpush1.bf16.xpose.msra.mxu0 0
        %3754 = vmatprep.subr.bf16.mxu0 0
        %3755 = vmatpush1.bf16.xpose.msra.mxu0 0
        %3756 = vmatprep.subr.bf16.mxu0 0
        %3757 = vmatpush1.bf16.xpose.msra.mxu0 0
        %3758 = vmatprep.subr.bf16.mxu0 0
        %3759 = vmatpush1.bf16.xpose.msra.mxu0 0
        %3760 = vmatprep.subr.bf16.mxu0 0
        %3761 = vmatpush1.bf16.xpose.msra.mxu0 0
        %3762 = vmatprep.subr.bf16.mxu0 0
        %3763 = vmatpush1.bf16.xpose.msra.mxu0 0
        %3764 = vmatprep.subr.bf16.mxu0 0
        %3765 = vmatpush1.bf16.xpose.msra.mxu0 0
        %3766 = vmatprep.subr.bf16.mxu0 0
        %3767 = vmatpush1.bf16.xpose.msra.mxu0 0
        %3768 = vmatprep.subr.bf16.mxu0 0
        %3769 = vmatpush1.bf16.xpose.msra.mxu0 0
        %3770 = vmatprep.mubr.bf16.mxu0 0
        %3771 = vmatmul.mubr.bf16.gmra.mrb[0].mxu0 %v3733
        %v3772 = vpop.f32.mrb[0].mxu0
        %v3773 = vadd.f32 0.0, %v3772
        %v3774 = vpop.f32.mrb[0].mxu0
        %v3775 = vpop.f32.mrb[0].mxu0
        %v3776 = vadd.f32 0.0, %v3775
        %v3777 = vpop.f32.mrb[0].mxu0
        %3778 = vdwg.mxu0
        %v3780 = vsel %vm2462, %v2138, 0
        %v3783 = vsel %vm2462, %v2298, 0
        %3785 = vmatprep.subr.bf16.mxu0 0
        %3786 = vmatpush1.bf16.xpose.msra.mxu0 %v3783
        %3787 = vmatprep.subr.bf16.mxu0 0
        %3788 = vmatpush1.bf16.xpose.msra.mxu0 0
        %3789 = vmatprep.subr.bf16.mxu0 0
        %3790 = vmatpush1.bf16.xpose.msra.mxu0 0
        %3791 = vmatprep.subr.bf16.mxu0 0
        %3792 = vmatpush1.bf16.xpose.msra.mxu0 0
        %3793 = vmatprep.subr.bf16.mxu0 0
        %3794 = vmatpush1.bf16.xpose.msra.mxu0 0
        %3795 = vmatprep.subr.bf16.mxu0 0
        %3796 = vmatpush1.bf16.xpose.msra.mxu0 0
        %3797 = vmatprep.subr.bf16.mxu0 0
        %3798 = vmatpush1.bf16.xpose.msra.mxu0 0
        %3799 = vmatprep.subr.bf16.mxu0 0
        %3800 = vmatpush1.bf16.xpose.msra.mxu0 0
        %3801 = vmatprep.subr.bf16.mxu0 0
        %3802 = vmatpush1.bf16.xpose.msra.mxu0 0
        %3803 = vmatprep.subr.bf16.mxu0 0
        %3804 = vmatpush1.bf16.xpose.msra.mxu0 0
        %3805 = vmatprep.subr.bf16.mxu0 0
        %3806 = vmatpush1.bf16.xpose.msra.mxu0 0
        %3807 = vmatprep.subr.bf16.mxu0 0
        %3808 = vmatpush1.bf16.xpose.msra.mxu0 0
        %3809 = vmatprep.subr.bf16.mxu0 0
        %3810 = vmatpush1.bf16.xpose.msra.mxu0 0
        %3811 = vmatprep.subr.bf16.mxu0 0
        %3812 = vmatpush1.bf16.xpose.msra.mxu0 0
        %3813 = vmatprep.subr.bf16.mxu0 0
        %3814 = vmatpush1.bf16.xpose.msra.mxu0 0
        %3815 = vmatprep.subr.bf16.mxu0 0
        %3816 = vmatpush1.bf16.xpose.msra.mxu0 0
        %3817 = vmatprep.mubr.bf16.mxu0 0
        %3818 = vmatmul.mubr.bf16.gmra.mrb[0].mxu0 %v3780
        %v3819 = vpop.f32.mrb[0].mxu0
        %v3820 = vadd.f32 0.0, %v3819
        %v3821 = vpop.f32.mrb[0].mxu0
        %v3822 = vpop.f32.mrb[0].mxu0
        %v3823 = vadd.f32 0.0, %v3822
        %v3824 = vpop.f32.mrb[0].mxu0
        %3825 = vdwg.mxu0
        %v3827 = vsel %vm2462, %v2139, 0
        %v3830 = vsel %vm2462, %v2299, 0
        %3832 = vmatprep.subr.bf16.mxu0 0
        %3833 = vmatpush1.bf16.xpose.msra.mxu0 %v3830
        %3834 = vmatprep.subr.bf16.mxu0 0
        %3835 = vmatpush1.bf16.xpose.msra.mxu0 0
        %3836 = vmatprep.subr.bf16.mxu0 0
        %3837 = vmatpush1.bf16.xpose.msra.mxu0 0
        %3838 = vmatprep.subr.bf16.mxu0 0
        %3839 = vmatpush1.bf16.xpose.msra.mxu0 0
        %3840 = vmatprep.subr.bf16.mxu0 0
        %3841 = vmatpush1.bf16.xpose.msra.mxu0 0
        %3842 = vmatprep.subr.bf16.mxu0 0
        %3843 = vmatpush1.bf16.xpose.msra.mxu0 0
        %3844 = vmatprep.subr.bf16.mxu0 0
        %3845 = vmatpush1.bf16.xpose.msra.mxu0 0
        %3846 = vmatprep.subr.bf16.mxu0 0
        %3847 = vmatpush1.bf16.xpose.msra.mxu0 0
        %3848 = vmatprep.subr.bf16.mxu0 0
        %3849 = vmatpush1.bf16.xpose.msra.mxu0 0
        %3850 = vmatprep.subr.bf16.mxu0 0
        %3851 = vmatpush1.bf16.xpose.msra.mxu0 0
        %3852 = vmatprep.subr.bf16.mxu0 0
        %3853 = vmatpush1.bf16.xpose.msra.mxu0 0
        %3854 = vmatprep.subr.bf16.mxu0 0
        %3855 = vmatpush1.bf16.xpose.msra.mxu0 0
        %3856 = vmatprep.subr.bf16.mxu0 0
        %3857 = vmatpush1.bf16.xpose.msra.mxu0 0
        %3858 = vmatprep.subr.bf16.mxu0 0
        %3859 = vmatpush1.bf16.xpose.msra.mxu0 0
        %3860 = vmatprep.subr.bf16.mxu0 0
        %3861 = vmatpush1.bf16.xpose.msra.mxu0 0
        %3862 = vmatprep.subr.bf16.mxu0 0
        %3863 = vmatpush1.bf16.xpose.msra.mxu0 0
        %3864 = vmatprep.mubr.bf16.mxu0 0
        %3865 = vmatmul.mubr.bf16.gmra.mrb[0].mxu0 %v3827
        %v3866 = vpop.f32.mrb[0].mxu0
        %v3867 = vadd.f32 0.0, %v3866
        %v3868 = vpop.f32.mrb[0].mxu0
        %v3869 = vpop.f32.mrb[0].mxu0
        %v3870 = vadd.f32 0.0, %v3869
        %v3871 = vpop.f32.mrb[0].mxu0
        %3872 = vdwg.mxu0
        %v3874 = vsel %vm2462, %v2140, 0
        %v3877 = vsel %vm2462, %v2300, 0
        %3879 = vmatprep.subr.bf16.mxu0 0
        %3880 = vmatpush1.bf16.xpose.msra.mxu0 %v3877
        %3881 = vmatprep.subr.bf16.mxu0 0
        %3882 = vmatpush1.bf16.xpose.msra.mxu0 0
        %3883 = vmatprep.subr.bf16.mxu0 0
        %3884 = vmatpush1.bf16.xpose.msra.mxu0 0
        %3885 = vmatprep.subr.bf16.mxu0 0
        %3886 = vmatpush1.bf16.xpose.msra.mxu0 0
        %3887 = vmatprep.subr.bf16.mxu0 0
        %3888 = vmatpush1.bf16.xpose.msra.mxu0 0
        %3889 = vmatprep.subr.bf16.mxu0 0
        %3890 = vmatpush1.bf16.xpose.msra.mxu0 0
        %3891 = vmatprep.subr.bf16.mxu0 0
        %3892 = vmatpush1.bf16.xpose.msra.mxu0 0
        %3893 = vmatprep.subr.bf16.mxu0 0
        %3894 = vmatpush1.bf16.xpose.msra.mxu0 0
        %3895 = vmatprep.subr.bf16.mxu0 0
        %3896 = vmatpush1.bf16.xpose.msra.mxu0 0
        %3897 = vmatprep.subr.bf16.mxu0 0
        %3898 = vmatpush1.bf16.xpose.msra.mxu0 0
        %3899 = vmatprep.subr.bf16.mxu0 0
        %3900 = vmatpush1.bf16.xpose.msra.mxu0 0
        %3901 = vmatprep.subr.bf16.mxu0 0
        %3902 = vmatpush1.bf16.xpose.msra.mxu0 0
        %3903 = vmatprep.subr.bf16.mxu0 0
        %3904 = vmatpush1.bf16.xpose.msra.mxu0 0
        %3905 = vmatprep.subr.bf16.mxu0 0
        %3906 = vmatpush1.bf16.xpose.msra.mxu0 0
        %3907 = vmatprep.subr.bf16.mxu0 0
        %3908 = vmatpush1.bf16.xpose.msra.mxu0 0
        %3909 = vmatprep.subr.bf16.mxu0 0
        %3910 = vmatpush1.bf16.xpose.msra.mxu0 0
        %3911 = vmatprep.mubr.bf16.mxu0 0
        %3912 = vmatmul.mubr.bf16.gmra.mrb[0].mxu0 %v3874
        %v3913 = vpop.f32.mrb[0].mxu0
        %v3914 = vadd.f32 0.0, %v3913
        %v3915 = vpop.f32.mrb[0].mxu0
        %v3916 = vpop.f32.mrb[0].mxu0
        %v3917 = vadd.f32 0.0, %v3916
        %v3918 = vpop.f32.mrb[0].mxu0
        %3919 = vdwg.mxu0
        %v3921 = vsel %vm2462, %v2141, 0
        %v3924 = vsel %vm2462, %v2301, 0
        %3926 = vmatprep.subr.bf16.mxu0 0
        %3927 = vmatpush1.bf16.xpose.msra.mxu0 %v3924
        %3928 = vmatprep.subr.bf16.mxu0 0
        %3929 = vmatpush1.bf16.xpose.msra.mxu0 0
        %3930 = vmatprep.subr.bf16.mxu0 0
        %3931 = vmatpush1.bf16.xpose.msra.mxu0 0
        %3932 = vmatprep.subr.bf16.mxu0 0
        %3933 = vmatpush1.bf16.xpose.msra.mxu0 0
        %3934 = vmatprep.subr.bf16.mxu0 0
        %3935 = vmatpush1.bf16.xpose.msra.mxu0 0
        %3936 = vmatprep.subr.bf16.mxu0 0
        %3937 = vmatpush1.bf16.xpose.msra.mxu0 0
        %3938 = vmatprep.subr.bf16.mxu0 0
        %3939 = vmatpush1.bf16.xpose.msra.mxu0 0
        %3940 = vmatprep.subr.bf16.mxu0 0
        %3941 = vmatpush1.bf16.xpose.msra.mxu0 0
        %3942 = vmatprep.subr.bf16.mxu0 0
        %3943 = vmatpush1.bf16.xpose.msra.mxu0 0
        %3944 = vmatprep.subr.bf16.mxu0 0
        %3945 = vmatpush1.bf16.xpose.msra.mxu0 0
        %3946 = vmatprep.subr.bf16.mxu0 0
        %3947 = vmatpush1.bf16.xpose.msra.mxu0 0
        %3948 = vmatprep.subr.bf16.mxu0 0
        %3949 = vmatpush1.bf16.xpose.msra.mxu0 0
        %3950 = vmatprep.subr.bf16.mxu0 0
        %3951 = vmatpush1.bf16.xpose.msra.mxu0 0
        %3952 = vmatprep.subr.bf16.mxu0 0
        %3953 = vmatpush1.bf16.xpose.msra.mxu0 0
        %3954 = vmatprep.subr.bf16.mxu0 0
        %3955 = vmatpush1.bf16.xpose.msra.mxu0 0
        %3956 = vmatprep.subr.bf16.mxu0 0
        %3957 = vmatpush1.bf16.xpose.msra.mxu0 0
        %3958 = vmatprep.mubr.bf16.mxu0 0
        %3959 = vmatmul.mubr.bf16.gmra.mrb[0].mxu0 %v3921
        %v3960 = vpop.f32.mrb[0].mxu0
        %v3961 = vadd.f32 0.0, %v3960
        %v3962 = vpop.f32.mrb[0].mxu0
        %v3963 = vpop.f32.mrb[0].mxu0
        %v3964 = vadd.f32 0.0, %v3963
        %v3965 = vpop.f32.mrb[0].mxu0
        %3966 = vdwg.mxu0
        %v3967 = vmul.f32 %v2504, 0.125
        %v3968 = vmul.f32 %v2507, 0.125
        %v3969 = vmul.f32 %v2551, 0.125
        %v3970 = vmul.f32 %v2554, 0.125
        %v3971 = vmul.f32 %v2598, 0.125
        %v3972 = vmul.f32 %v2601, 0.125
        %v3973 = vmul.f32 %v2645, 0.125
        %v3974 = vmul.f32 %v2648, 0.125
        %v3975 = vmul.f32 %v2692, 0.125
        %v3976 = vmul.f32 %v2695, 0.125
        %v3977 = vmul.f32 %v2739, 0.125
        %v3978 = vmul.f32 %v2742, 0.125
        %v3979 = vmul.f32 %v2786, 0.125
        %v3980 = vmul.f32 %v2789, 0.125
        %v3981 = vmul.f32 %v2833, 0.125
        %v3982 = vmul.f32 %v2836, 0.125
        %v3983 = vmul.f32 %v2880, 0.125
        %v3984 = vmul.f32 %v2883, 0.125
        %v3985 = vmul.f32 %v2927, 0.125
        %v3986 = vmul.f32 %v2930, 0.125
        %v3987 = vmul.f32 %v2974, 0.125
        %v3988 = vmul.f32 %v2977, 0.125
        %v3989 = vmul.f32 %v3021, 0.125
        %v3990 = vmul.f32 %v3024, 0.125
        %v3991 = vmul.f32 %v3068, 0.125
        %v3992 = vmul.f32 %v3071, 0.125
        %v3993 = vmul.f32 %v3115, 0.125
        %v3994 = vmul.f32 %v3118, 0.125
        %v3995 = vmul.f32 %v3162, 0.125
        %v3996 = vmul.f32 %v3165, 0.125
        %v3997 = vmul.f32 %v3209, 0.125
        %v3998 = vmul.f32 %v3212, 0.125
        %v3999 = vmul.f32 %v3256, 0.125
        %v4000 = vmul.f32 %v3259, 0.125
        %v4001 = vmul.f32 %v3303, 0.125
        %v4002 = vmul.f32 %v3306, 0.125
        %v4003 = vmul.f32 %v3350, 0.125
        %v4004 = vmul.f32 %v3353, 0.125
        %v4005 = vmul.f32 %v3397, 0.125
        %v4006 = vmul.f32 %v3400, 0.125
        %v4007 = vmul.f32 %v3444, 0.125
        %v4008 = vmul.f32 %v3447, 0.125
        %v4009 = vmul.f32 %v3491, 0.125
        %v4010 = vmul.f32 %v3494, 0.125
        %v4011 = vmul.f32 %v3538, 0.125
        %v4012 = vmul.f32 %v3541, 0.125
        %v4013 = vmul.f32 %v3585, 0.125
        %v4014 = vmul.f32 %v3588, 0.125
        %v4015 = vmul.f32 %v3632, 0.125
        %v4016 = vmul.f32 %v3635, 0.125
        %v4017 = vmul.f32 %v3679, 0.125
        %v4018 = vmul.f32 %v3682, 0.125
        %v4019 = vmul.f32 %v3726, 0.125
        %v4020 = vmul.f32 %v3729, 0.125
        %v4021 = vmul.f32 %v3773, 0.125
        %v4022 = vmul.f32 %v3776, 0.125
        %v4023 = vmul.f32 %v3820, 0.125
        %v4024 = vmul.f32 %v3823, 0.125
        %v4025 = vmul.f32 %v3867, 0.125
        %v4026 = vmul.f32 %v3870, 0.125
        %v4027 = vmul.f32 %v3914, 0.125
        %v4028 = vmul.f32 %v3917, 0.125
        %v4029 = vmul.f32 %v3961, 0.125
        %v4030 = vmul.f32 %v3964, 0.125
        %vm4031 = vcmask 130048
        %v4032 = vsel %vm4031, %v3967, -inf
        %4033 = vmax.xlane.f32.xlu0 %v4032
        %v4034 = vpop.xlane.xlu0 %4033
        %v4035 = vsel %vm4031, %v3968, -inf
        %4036 = vmax.xlane.f32.xlu0 %v4035
        %v4037 = vpop.xlane.xlu0 %4036
        %v4038 = vsel %vm4031, %v3969, -inf
        %4039 = vmax.xlane.f32.xlu0 %v4038
        %v4040 = vpop.xlane.xlu0 %4039
        %v4041 = vsel %vm4031, %v3970, -inf
        %4042 = vmax.xlane.f32.xlu0 %v4041
        %v4043 = vpop.xlane.xlu0 %4042
        %v4044 = vsel %vm4031, %v3971, -inf
        %4045 = vmax.xlane.f32.xlu0 %v4044
        %v4046 = vpop.xlane.xlu0 %4045
        %v4047 = vsel %vm4031, %v3972, -inf
        %4048 = vmax.xlane.f32.xlu0 %v4047
        %v4049 = vpop.xlane.xlu0 %4048
        %v4050 = vsel %vm4031, %v3973, -inf
        %4051 = vmax.xlane.f32.xlu0 %v4050
        %v4052 = vpop.xlane.xlu0 %4051
        %v4053 = vsel %vm4031, %v3974, -inf
        %4054 = vmax.xlane.f32.xlu0 %v4053
        %v4055 = vpop.xlane.xlu0 %4054
        %v4056 = vsel %vm4031, %v3975, -inf
        %4057 = vmax.xlane.f32.xlu0 %v4056
        %v4058 = vpop.xlane.xlu0 %4057
        %v4059 = vsel %vm4031, %v3976, -inf
        %4060 = vmax.xlane.f32.xlu0 %v4059
        %v4061 = vpop.xlane.xlu0 %4060
        %v4062 = vsel %vm4031, %v3977, -inf
        %4063 = vmax.xlane.f32.xlu0 %v4062
        %v4064 = vpop.xlane.xlu0 %4063
        %v4065 = vsel %vm4031, %v3978, -inf
        %4066 = vmax.xlane.f32.xlu0 %v4065
        %v4067 = vpop.xlane.xlu0 %4066
        %v4068 = vsel %vm4031, %v3979, -inf
        %4069 = vmax.xlane.f32.xlu0 %v4068
        %v4070 = vpop.xlane.xlu0 %4069
        %v4071 = vsel %vm4031, %v3980, -inf
        %4072 = vmax.xlane.f32.xlu0 %v4071
        %v4073 = vpop.xlane.xlu0 %4072
        %v4074 = vsel %vm4031, %v3981, -inf
        %4075 = vmax.xlane.f32.xlu0 %v4074
        %v4076 = vpop.xlane.xlu0 %4075
        %v4077 = vsel %vm4031, %v3982, -inf
        %4078 = vmax.xlane.f32.xlu0 %v4077
        %v4079 = vpop.xlane.xlu0 %4078
        %v4080 = vsel %vm4031, %v3983, -inf
        %4081 = vmax.xlane.f32.xlu0 %v4080
        %v4082 = vpop.xlane.xlu0 %4081
        %v4083 = vsel %vm4031, %v3984, -inf
        %4084 = vmax.xlane.f32.xlu0 %v4083
        %v4085 = vpop.xlane.xlu0 %4084
        %v4086 = vsel %vm4031, %v3985, -inf
        %4087 = vmax.xlane.f32.xlu0 %v4086
        %v4088 = vpop.xlane.xlu0 %4087
        %v4089 = vsel %vm4031, %v3986, -inf
        %4090 = vmax.xlane.f32.xlu0 %v4089
        %v4091 = vpop.xlane.xlu0 %4090
        %v4092 = vsel %vm4031, %v3987, -inf
        %4093 = vmax.xlane.f32.xlu0 %v4092
        %v4094 = vpop.xlane.xlu0 %4093
        %v4095 = vsel %vm4031, %v3988, -inf
        %4096 = vmax.xlane.f32.xlu0 %v4095
        %v4097 = vpop.xlane.xlu0 %4096
        %v4098 = vsel %vm4031, %v3989, -inf
        %4099 = vmax.xlane.f32.xlu0 %v4098
        %v4100 = vpop.xlane.xlu0 %4099
        %v4101 = vsel %vm4031, %v3990, -inf
        %4102 = vmax.xlane.f32.xlu0 %v4101
        %v4103 = vpop.xlane.xlu0 %4102
        %v4104 = vsel %vm4031, %v3991, -inf
        %4105 = vmax.xlane.f32.xlu0 %v4104
        %v4106 = vpop.xlane.xlu0 %4105
        %v4107 = vsel %vm4031, %v3992, -inf
        %4108 = vmax.xlane.f32.xlu0 %v4107
        %v4109 = vpop.xlane.xlu0 %4108
        %v4110 = vsel %vm4031, %v3993, -inf
        %4111 = vmax.xlane.f32.xlu0 %v4110
        %v4112 = vpop.xlane.xlu0 %4111
        %v4113 = vsel %vm4031, %v3994, -inf
        %4114 = vmax.xlane.f32.xlu0 %v4113
        %v4115 = vpop.xlane.xlu0 %4114
        %v4116 = vsel %vm4031, %v3995, -inf
        %4117 = vmax.xlane.f32.xlu0 %v4116
        %v4118 = vpop.xlane.xlu0 %4117
        %v4119 = vsel %vm4031, %v3996, -inf
        %4120 = vmax.xlane.f32.xlu0 %v4119
        %v4121 = vpop.xlane.xlu0 %4120
        %v4122 = vsel %vm4031, %v3997, -inf
        %4123 = vmax.xlane.f32.xlu0 %v4122
        %v4124 = vpop.xlane.xlu0 %4123
        %v4125 = vsel %vm4031, %v3998, -inf
        %4126 = vmax.xlane.f32.xlu0 %v4125
        %v4127 = vpop.xlane.xlu0 %4126
        %v4128 = vsel %vm4031, %v3999, -inf
        %4129 = vmax.xlane.f32.xlu0 %v4128
        %v4130 = vpop.xlane.xlu0 %4129
        %v4131 = vsel %vm4031, %v4000, -inf
        %4132 = vmax.xlane.f32.xlu0 %v4131
        %v4133 = vpop.xlane.xlu0 %4132
        %v4134 = vsel %vm4031, %v4001, -inf
        %4135 = vmax.xlane.f32.xlu0 %v4134
        %v4136 = vpop.xlane.xlu0 %4135
        %v4137 = vsel %vm4031, %v4002, -inf
        %4138 = vmax.xlane.f32.xlu0 %v4137
        %v4139 = vpop.xlane.xlu0 %4138
        %v4140 = vsel %vm4031, %v4003, -inf
        %4141 = vmax.xlane.f32.xlu0 %v4140
        %v4142 = vpop.xlane.xlu0 %4141
        %v4143 = vsel %vm4031, %v4004, -inf
        %4144 = vmax.xlane.f32.xlu0 %v4143
        %v4145 = vpop.xlane.xlu0 %4144
        %v4146 = vsel %vm4031, %v4005, -inf
        %4147 = vmax.xlane.f32.xlu0 %v4146
        %v4148 = vpop.xlane.xlu0 %4147
        %v4149 = vsel %vm4031, %v4006, -inf
        %4150 = vmax.xlane.f32.xlu0 %v4149
        %v4151 = vpop.xlane.xlu0 %4150
        %v4152 = vsel %vm4031, %v4007, -inf
        %4153 = vmax.xlane.f32.xlu0 %v4152
        %v4154 = vpop.xlane.xlu0 %4153
        %v4155 = vsel %vm4031, %v4008, -inf
        %4156 = vmax.xlane.f32.xlu0 %v4155
        %v4157 = vpop.xlane.xlu0 %4156
        %v4158 = vsel %vm4031, %v4009, -inf
        %4159 = vmax.xlane.f32.xlu0 %v4158
        %v4160 = vpop.xlane.xlu0 %4159
        %v4161 = vsel %vm4031, %v4010, -inf
        %4162 = vmax.xlane.f32.xlu0 %v4161
        %v4163 = vpop.xlane.xlu0 %4162
        %v4164 = vsel %vm4031, %v4011, -inf
        %4165 = vmax.xlane.f32.xlu0 %v4164
        %v4166 = vpop.xlane.xlu0 %4165
        %v4167 = vsel %vm4031, %v4012, -inf
        %4168 = vmax.xlane.f32.xlu0 %v4167
        %v4169 = vpop.xlane.xlu0 %4168
        %v4170 = vsel %vm4031, %v4013, -inf
        %4171 = vmax.xlane.f32.xlu0 %v4170
        %v4172 = vpop.xlane.xlu0 %4171
        %v4173 = vsel %vm4031, %v4014, -inf
        %4174 = vmax.xlane.f32.xlu0 %v4173
        %v4175 = vpop.xlane.xlu0 %4174
        %v4176 = vsel %vm4031, %v4015, -inf
        %4177 = vmax.xlane.f32.xlu0 %v4176
        %v4178 = vpop.xlane.xlu0 %4177
        %v4179 = vsel %vm4031, %v4016, -inf
        %4180 = vmax.xlane.f32.xlu0 %v4179
        %v4181 = vpop.xlane.xlu0 %4180
        %v4182 = vsel %vm4031, %v4017, -inf
        %4183 = vmax.xlane.f32.xlu0 %v4182
        %v4184 = vpop.xlane.xlu0 %4183
        %v4185 = vsel %vm4031, %v4018, -inf
        %4186 = vmax.xlane.f32.xlu0 %v4185
        %v4187 = vpop.xlane.xlu0 %4186
        %v4188 = vsel %vm4031, %v4019, -inf
        %4189 = vmax.xlane.f32.xlu0 %v4188
        %v4190 = vpop.xlane.xlu0 %4189
        %v4191 = vsel %vm4031, %v4020, -inf
        %4192 = vmax.xlane.f32.xlu0 %v4191
        %v4193 = vpop.xlane.xlu0 %4192
        %v4194 = vsel %vm4031, %v4021, -inf
        %4195 = vmax.xlane.f32.xlu0 %v4194
        %v4196 = vpop.xlane.xlu0 %4195
        %v4197 = vsel %vm4031, %v4022, -inf
        %4198 = vmax.xlane.f32.xlu0 %v4197
        %v4199 = vpop.xlane.xlu0 %4198
        %v4200 = vsel %vm4031, %v4023, -inf
        %4201 = vmax.xlane.f32.xlu0 %v4200
        %v4202 = vpop.xlane.xlu0 %4201
        %v4203 = vsel %vm4031, %v4024, -inf
        %4204 = vmax.xlane.f32.xlu0 %v4203
        %v4205 = vpop.xlane.xlu0 %4204
        %v4206 = vsel %vm4031, %v4025, -inf
        %4207 = vmax.xlane.f32.xlu0 %v4206
        %v4208 = vpop.xlane.xlu0 %4207
        %v4209 = vsel %vm4031, %v4026, -inf
        %4210 = vmax.xlane.f32.xlu0 %v4209
        %v4211 = vpop.xlane.xlu0 %4210
        %v4212 = vsel %vm4031, %v4027, -inf
        %4213 = vmax.xlane.f32.xlu0 %v4212
        %v4214 = vpop.xlane.xlu0 %4213
        %v4215 = vsel %vm4031, %v4028, -inf
        %4216 = vmax.xlane.f32.xlu0 %v4215
        %v4217 = vpop.xlane.xlu0 %4216
        %v4218 = vsel %vm4031, %v4029, -inf
        %4219 = vmax.xlane.f32.xlu0 %v4218
        %v4220 = vpop.xlane.xlu0 %4219
        %v4221 = vsel %vm4031, %v4030, -inf
        %4222 = vmax.xlane.f32.xlu0 %v4221
        %v4223 = vpop.xlane.xlu0 %4222
        %v4224 = vsub.f32 %v3967, %v4034
        %v4225 = vsub.f32 %v3968, %v4037
        %v4226 = vsub.f32 %v3969, %v4040
        %v4227 = vsub.f32 %v3970, %v4043
        %v4228 = vsub.f32 %v3971, %v4046
        %v4229 = vsub.f32 %v3972, %v4049
        %v4230 = vsub.f32 %v3973, %v4052
        %v4231 = vsub.f32 %v3974, %v4055
        %v4232 = vsub.f32 %v3975, %v4058
        %v4233 = vsub.f32 %v3976, %v4061
        %v4234 = vsub.f32 %v3977, %v4064
        %v4235 = vsub.f32 %v3978, %v4067
        %v4236 = vsub.f32 %v3979, %v4070
        %v4237 = vsub.f32 %v3980, %v4073
        %v4238 = vsub.f32 %v3981, %v4076
        %v4239 = vsub.f32 %v3982, %v4079
        %v4240 = vsub.f32 %v3983, %v4082
        %v4241 = vsub.f32 %v3984, %v4085
        %v4242 = vsub.f32 %v3985, %v4088
        %v4243 = vsub.f32 %v3986, %v4091
        %v4244 = vsub.f32 %v3987, %v4094
        %v4245 = vsub.f32 %v3988, %v4097
        %v4246 = vsub.f32 %v3989, %v4100
        %v4247 = vsub.f32 %v3990, %v4103
        %v4248 = vsub.f32 %v3991, %v4106
        %v4249 = vsub.f32 %v3992, %v4109
        %v4250 = vsub.f32 %v3993, %v4112
        %v4251 = vsub.f32 %v3994, %v4115
        %v4252 = vsub.f32 %v3995, %v4118
        %v4253 = vsub.f32 %v3996, %v4121
        %v4254 = vsub.f32 %v3997, %v4124
        %v4255 = vsub.f32 %v3998, %v4127
        %v4256 = vsub.f32 %v3999, %v4130
        %v4257 = vsub.f32 %v4000, %v4133
        %v4258 = vsub.f32 %v4001, %v4136
        %v4259 = vsub.f32 %v4002, %v4139
        %v4260 = vsub.f32 %v4003, %v4142
        %v4261 = vsub.f32 %v4004, %v4145
        %v4262 = vsub.f32 %v4005, %v4148
        %v4263 = vsub.f32 %v4006, %v4151
        %v4264 = vsub.f32 %v4007, %v4154
        %v4265 = vsub.f32 %v4008, %v4157
        %v4266 = vsub.f32 %v4009, %v4160
        %v4267 = vsub.f32 %v4010, %v4163
        %v4268 = vsub.f32 %v4011, %v4166
        %v4269 = vsub.f32 %v4012, %v4169
        %v4270 = vsub.f32 %v4013, %v4172
        %v4271 = vsub.f32 %v4014, %v4175
        %v4272 = vsub.f32 %v4015, %v4178
        %v4273 = vsub.f32 %v4016, %v4181
        %v4274 = vsub.f32 %v4017, %v4184
        %v4275 = vsub.f32 %v4018, %v4187
        %v4276 = vsub.f32 %v4019, %v4190
        %v4277 = vsub.f32 %v4020, %v4193
        %v4278 = vsub.f32 %v4021, %v4196
        %v4279 = vsub.f32 %v4022, %v4199
        %v4280 = vsub.f32 %v4023, %v4202
        %v4281 = vsub.f32 %v4024, %v4205
        %v4282 = vsub.f32 %v4025, %v4208
        %v4283 = vsub.f32 %v4026, %v4211
        %v4284 = vsub.f32 %v4027, %v4214
        %v4285 = vsub.f32 %v4028, %v4217
        %v4286 = vsub.f32 %v4029, %v4220
        %v4287 = vsub.f32 %v4030, %v4223
        %v4288 = vmul.f32 %v4224, 1.442695
        %v4289 = vpow.pop %v4288
        %v4290 = vmul.f32 %v4225, 1.442695
        %v4291 = vpow.pop %v4290
        %v4292 = vmul.f32 %v4226, 1.442695
        %v4293 = vpow.pop %v4292
        %v4294 = vmul.f32 %v4227, 1.442695
        %v4295 = vpow.pop %v4294
        %v4296 = vmul.f32 %v4228, 1.442695
        %v4297 = vpow.pop %v4296
        %v4298 = vmul.f32 %v4229, 1.442695
        %v4299 = vpow.pop %v4298
        %v4300 = vmul.f32 %v4230, 1.442695
        %v4301 = vpow.pop %v4300
        %v4302 = vmul.f32 %v4231, 1.442695
        %v4303 = vpow.pop %v4302
        %v4304 = vmul.f32 %v4232, 1.442695
        %v4305 = vpow.pop %v4304
        %v4306 = vmul.f32 %v4233, 1.442695
        %v4307 = vpow.pop %v4306
        %v4308 = vmul.f32 %v4234, 1.442695
        %v4309 = vpow.pop %v4308
        %v4310 = vmul.f32 %v4235, 1.442695
        %v4311 = vpow.pop %v4310
        %v4312 = vmul.f32 %v4236, 1.442695
        %v4313 = vpow.pop %v4312
        %v4314 = vmul.f32 %v4237, 1.442695
        %v4315 = vpow.pop %v4314
        %v4316 = vmul.f32 %v4238, 1.442695
        %v4317 = vpow.pop %v4316
        %v4318 = vmul.f32 %v4239, 1.442695
        %v4319 = vpow.pop %v4318
        %v4320 = vmul.f32 %v4240, 1.442695
        %v4321 = vpow.pop %v4320
        %v4322 = vmul.f32 %v4241, 1.442695
        %v4323 = vpow.pop %v4322
        %v4324 = vmul.f32 %v4242, 1.442695
        %v4325 = vpow.pop %v4324
        %v4326 = vmul.f32 %v4243, 1.442695
        %v4327 = vpow.pop %v4326
        %v4328 = vmul.f32 %v4244, 1.442695
        %v4329 = vpow.pop %v4328
        %v4330 = vmul.f32 %v4245, 1.442695
        %v4331 = vpow.pop %v4330
        %v4332 = vmul.f32 %v4246, 1.442695
        %v4333 = vpow.pop %v4332
        %v4334 = vmul.f32 %v4247, 1.442695
        %v4335 = vpow.pop %v4334
        %v4336 = vmul.f32 %v4248, 1.442695
        %v4337 = vpow.pop %v4336
        %v4338 = vmul.f32 %v4249, 1.442695
        %v4339 = vpow.pop %v4338
        %v4340 = vmul.f32 %v4250, 1.442695
        %v4341 = vpow.pop %v4340
        %v4342 = vmul.f32 %v4251, 1.442695
        %v4343 = vpow.pop %v4342
        %v4344 = vmul.f32 %v4252, 1.442695
        %v4345 = vpow.pop %v4344
        %v4346 = vmul.f32 %v4253, 1.442695
        %v4347 = vpow.pop %v4346
        %v4348 = vmul.f32 %v4254, 1.442695
        %v4349 = vpow.pop %v4348
        %v4350 = vmul.f32 %v4255, 1.442695
        %v4351 = vpow.pop %v4350
        %v4352 = vmul.f32 %v4256, 1.442695
        %v4353 = vpow.pop %v4352
        %v4354 = vmul.f32 %v4257, 1.442695
        %v4355 = vpow.pop %v4354
        %v4356 = vmul.f32 %v4258, 1.442695
        %v4357 = vpow.pop %v4356
        %v4358 = vmul.f32 %v4259, 1.442695
        %v4359 = vpow.pop %v4358
        %v4360 = vmul.f32 %v4260, 1.442695
        %v4361 = vpow.pop %v4360
        %v4362 = vmul.f32 %v4261, 1.442695
        %v4363 = vpow.pop %v4362
        %v4364 = vmul.f32 %v4262, 1.442695
        %v4365 = vpow.pop %v4364
        %v4366 = vmul.f32 %v4263, 1.442695
        %v4367 = vpow.pop %v4366
        %v4368 = vmul.f32 %v4264, 1.442695
        %v4369 = vpow.pop %v4368
        %v4370 = vmul.f32 %v4265, 1.442695
        %v4371 = vpow.pop %v4370
        %v4372 = vmul.f32 %v4266, 1.442695
        %v4373 = vpow.pop %v4372
        %v4374 = vmul.f32 %v4267, 1.442695
        %v4375 = vpow.pop %v4374
        %v4376 = vmul.f32 %v4268, 1.442695
        %v4377 = vpow.pop %v4376
        %v4378 = vmul.f32 %v4269, 1.442695
        %v4379 = vpow.pop %v4378
        %v4380 = vmul.f32 %v4270, 1.442695
        %v4381 = vpow.pop %v4380
        %v4382 = vmul.f32 %v4271, 1.442695
        %v4383 = vpow.pop %v4382
        %v4384 = vmul.f32 %v4272, 1.442695
        %v4385 = vpow.pop %v4384
        %v4386 = vmul.f32 %v4273, 1.442695
        %v4387 = vpow.pop %v4386
        %v4388 = vmul.f32 %v4274, 1.442695
        %v4389 = vpow.pop %v4388
        %v4390 = vmul.f32 %v4275, 1.442695
        %v4391 = vpow.pop %v4390
        %v4392 = vmul.f32 %v4276, 1.442695
        %v4393 = vpow.pop %v4392
        %v4394 = vmul.f32 %v4277, 1.442695
        %v4395 = vpow.pop %v4394
        %v4396 = vmul.f32 %v4278, 1.442695
        %v4397 = vpow.pop %v4396
        %v4398 = vmul.f32 %v4279, 1.442695
        %v4399 = vpow.pop %v4398
        %v4400 = vmul.f32 %v4280, 1.442695
        %v4401 = vpow.pop %v4400
        %v4402 = vmul.f32 %v4281, 1.442695
        %v4403 = vpow.pop %v4402
        %v4404 = vmul.f32 %v4282, 1.442695
        %v4405 = vpow.pop %v4404
        %v4406 = vmul.f32 %v4283, 1.442695
        %v4407 = vpow.pop %v4406
        %v4408 = vmul.f32 %v4284, 1.442695
        %v4409 = vpow.pop %v4408
        %v4410 = vmul.f32 %v4285, 1.442695
        %v4411 = vpow.pop %v4410
        %v4412 = vmul.f32 %v4286, 1.442695
        %v4413 = vpow.pop %v4412
        %v4414 = vmul.f32 %v4287, 1.442695
        %v4415 = vpow.pop %v4414
        %v4416 = vsel %vm4031, %v4289, 0.0
        %4417 = vadd.xlane.f32.xlu0 %v4416
        %v4418 = vpop.xlane.xlu0 %4417
        %v4419 = vsel %vm4031, %v4291, 0.0
        %4420 = vadd.xlane.f32.xlu0 %v4419
        %v4421 = vpop.xlane.xlu0 %4420
        %v4422 = vsel %vm4031, %v4293, 0.0
        %4423 = vadd.xlane.f32.xlu0 %v4422
        %v4424 = vpop.xlane.xlu0 %4423
        %v4425 = vsel %vm4031, %v4295, 0.0
        %4426 = vadd.xlane.f32.xlu0 %v4425
        %v4427 = vpop.xlane.xlu0 %4426
        %v4428 = vsel %vm4031, %v4297, 0.0
        %4429 = vadd.xlane.f32.xlu0 %v4428
        %v4430 = vpop.xlane.xlu0 %4429
        %v4431 = vsel %vm4031, %v4299, 0.0
        %4432 = vadd.xlane.f32.xlu0 %v4431
        %v4433 = vpop.xlane.xlu0 %4432
        %v4434 = vsel %vm4031, %v4301, 0.0
        %4435 = vadd.xlane.f32.xlu0 %v4434
        %v4436 = vpop.xlane.xlu0 %4435
        %v4437 = vsel %vm4031, %v4303, 0.0
        %4438 = vadd.xlane.f32.xlu0 %v4437
        %v4439 = vpop.xlane.xlu0 %4438
        %v4440 = vsel %vm4031, %v4305, 0.0
        %4441 = vadd.xlane.f32.xlu0 %v4440
        %v4442 = vpop.xlane.xlu0 %4441
        %v4443 = vsel %vm4031, %v4307, 0.0
        %4444 = vadd.xlane.f32.xlu0 %v4443
        %v4445 = vpop.xlane.xlu0 %4444
        %v4446 = vsel %vm4031, %v4309, 0.0
        %4447 = vadd.xlane.f32.xlu0 %v4446
        %v4448 = vpop.xlane.xlu0 %4447
        %v4449 = vsel %vm4031, %v4311, 0.0
        %4450 = vadd.xlane.f32.xlu0 %v4449
        %v4451 = vpop.xlane.xlu0 %4450
        %v4452 = vsel %vm4031, %v4313, 0.0
        %4453 = vadd.xlane.f32.xlu0 %v4452
        %v4454 = vpop.xlane.xlu0 %4453
        %v4455 = vsel %vm4031, %v4315, 0.0
        %4456 = vadd.xlane.f32.xlu0 %v4455
        %v4457 = vpop.xlane.xlu0 %4456
        %v4458 = vsel %vm4031, %v4317, 0.0
        %4459 = vadd.xlane.f32.xlu0 %v4458
        %v4460 = vpop.xlane.xlu0 %4459
        %v4461 = vsel %vm4031, %v4319, 0.0
        %4462 = vadd.xlane.f32.xlu0 %v4461
        %v4463 = vpop.xlane.xlu0 %4462
        %v4464 = vsel %vm4031, %v4321, 0.0
        %4465 = vadd.xlane.f32.xlu0 %v4464
        %v4466 = vpop.xlane.xlu0 %4465
        %v4467 = vsel %vm4031, %v4323, 0.0
        %4468 = vadd.xlane.f32.xlu0 %v4467
        %v4469 = vpop.xlane.xlu0 %4468
        %v4470 = vsel %vm4031, %v4325, 0.0
        %4471 = vadd.xlane.f32.xlu0 %v4470
        %v4472 = vpop.xlane.xlu0 %4471
        %v4473 = vsel %vm4031, %v4327, 0.0
        %4474 = vadd.xlane.f32.xlu0 %v4473
        %v4475 = vpop.xlane.xlu0 %4474
        %v4476 = vsel %vm4031, %v4329, 0.0
        %4477 = vadd.xlane.f32.xlu0 %v4476
        %v4478 = vpop.xlane.xlu0 %4477
        %v4479 = vsel %vm4031, %v4331, 0.0
        %4480 = vadd.xlane.f32.xlu0 %v4479
        %v4481 = vpop.xlane.xlu0 %4480
        %v4482 = vsel %vm4031, %v4333, 0.0
        %4483 = vadd.xlane.f32.xlu0 %v4482
        %v4484 = vpop.xlane.xlu0 %4483
        %v4485 = vsel %vm4031, %v4335, 0.0
        %4486 = vadd.xlane.f32.xlu0 %v4485
        %v4487 = vpop.xlane.xlu0 %4486
        %v4488 = vsel %vm4031, %v4337, 0.0
        %4489 = vadd.xlane.f32.xlu0 %v4488
        %v4490 = vpop.xlane.xlu0 %4489
        %v4491 = vsel %vm4031, %v4339, 0.0
        %4492 = vadd.xlane.f32.xlu0 %v4491
        %v4493 = vpop.xlane.xlu0 %4492
        %v4494 = vsel %vm4031, %v4341, 0.0
        %4495 = vadd.xlane.f32.xlu0 %v4494
        %v4496 = vpop.xlane.xlu0 %4495
        %v4497 = vsel %vm4031, %v4343, 0.0
        %4498 = vadd.xlane.f32.xlu0 %v4497
        %v4499 = vpop.xlane.xlu0 %4498
        %v4500 = vsel %vm4031, %v4345, 0.0
        %4501 = vadd.xlane.f32.xlu0 %v4500
        %v4502 = vpop.xlane.xlu0 %4501
        %v4503 = vsel %vm4031, %v4347, 0.0
        %4504 = vadd.xlane.f32.xlu0 %v4503
        %v4505 = vpop.xlane.xlu0 %4504
        %v4506 = vsel %vm4031, %v4349, 0.0
        %4507 = vadd.xlane.f32.xlu0 %v4506
        %v4508 = vpop.xlane.xlu0 %4507
        %v4509 = vsel %vm4031, %v4351, 0.0
        %4510 = vadd.xlane.f32.xlu0 %v4509
        %v4511 = vpop.xlane.xlu0 %4510
        %v4512 = vsel %vm4031, %v4353, 0.0
        %4513 = vadd.xlane.f32.xlu0 %v4512
        %v4514 = vpop.xlane.xlu0 %4513
        %v4515 = vsel %vm4031, %v4355, 0.0
        %4516 = vadd.xlane.f32.xlu0 %v4515
        %v4517 = vpop.xlane.xlu0 %4516
        %v4518 = vsel %vm4031, %v4357, 0.0
        %4519 = vadd.xlane.f32.xlu0 %v4518
        %v4520 = vpop.xlane.xlu0 %4519
        %v4521 = vsel %vm4031, %v4359, 0.0
        %4522 = vadd.xlane.f32.xlu0 %v4521
        %v4523 = vpop.xlane.xlu0 %4522
        %v4524 = vsel %vm4031, %v4361, 0.0
        %4525 = vadd.xlane.f32.xlu0 %v4524
        %v4526 = vpop.xlane.xlu0 %4525
        %v4527 = vsel %vm4031, %v4363, 0.0
        %4528 = vadd.xlane.f32.xlu0 %v4527
        %v4529 = vpop.xlane.xlu0 %4528
        %v4530 = vsel %vm4031, %v4365, 0.0
        %4531 = vadd.xlane.f32.xlu0 %v4530
        %v4532 = vpop.xlane.xlu0 %4531
        %v4533 = vsel %vm4031, %v4367, 0.0
        %4534 = vadd.xlane.f32.xlu0 %v4533
        %v4535 = vpop.xlane.xlu0 %4534
        %v4536 = vsel %vm4031, %v4369, 0.0
        %4537 = vadd.xlane.f32.xlu0 %v4536
        %v4538 = vpop.xlane.xlu0 %4537
        %v4539 = vsel %vm4031, %v4371, 0.0
        %4540 = vadd.xlane.f32.xlu0 %v4539
        %v4541 = vpop.xlane.xlu0 %4540
        %v4542 = vsel %vm4031, %v4373, 0.0
        %4543 = vadd.xlane.f32.xlu0 %v4542
        %v4544 = vpop.xlane.xlu0 %4543
        %v4545 = vsel %vm4031, %v4375, 0.0
        %4546 = vadd.xlane.f32.xlu0 %v4545
        %v4547 = vpop.xlane.xlu0 %4546
        %v4548 = vsel %vm4031, %v4377, 0.0
        %4549 = vadd.xlane.f32.xlu0 %v4548
        %v4550 = vpop.xlane.xlu0 %4549
        %v4551 = vsel %vm4031, %v4379, 0.0
        %4552 = vadd.xlane.f32.xlu0 %v4551
        %v4553 = vpop.xlane.xlu0 %4552
        %v4554 = vsel %vm4031, %v4381, 0.0
        %4555 = vadd.xlane.f32.xlu0 %v4554
        %v4556 = vpop.xlane.xlu0 %4555
        %v4557 = vsel %vm4031, %v4383, 0.0
        %4558 = vadd.xlane.f32.xlu0 %v4557
        %v4559 = vpop.xlane.xlu0 %4558
        %v4560 = vsel %vm4031, %v4385, 0.0
        %4561 = vadd.xlane.f32.xlu0 %v4560
        %v4562 = vpop.xlane.xlu0 %4561
        %v4563 = vsel %vm4031, %v4387, 0.0
        %4564 = vadd.xlane.f32.xlu0 %v4563
        %v4565 = vpop.xlane.xlu0 %4564
        %v4566 = vsel %vm4031, %v4389, 0.0
        %4567 = vadd.xlane.f32.xlu0 %v4566
        %v4568 = vpop.xlane.xlu0 %4567
        %v4569 = vsel %vm4031, %v4391, 0.0
        %4570 = vadd.xlane.f32.xlu0 %v4569
        %v4571 = vpop.xlane.xlu0 %4570
        %v4572 = vsel %vm4031, %v4393, 0.0
        %4573 = vadd.xlane.f32.xlu0 %v4572
        %v4574 = vpop.xlane.xlu0 %4573
        %v4575 = vsel %vm4031, %v4395, 0.0
        %4576 = vadd.xlane.f32.xlu0 %v4575
        %v4577 = vpop.xlane.xlu0 %4576
        %v4578 = vsel %vm4031, %v4397, 0.0
        %4579 = vadd.xlane.f32.xlu0 %v4578
        %v4580 = vpop.xlane.xlu0 %4579
        %v4581 = vsel %vm4031, %v4399, 0.0
        %4582 = vadd.xlane.f32.xlu0 %v4581
        %v4583 = vpop.xlane.xlu0 %4582
        %v4584 = vsel %vm4031, %v4401, 0.0
        %4585 = vadd.xlane.f32.xlu0 %v4584
        %v4586 = vpop.xlane.xlu0 %4585
        %v4587 = vsel %vm4031, %v4403, 0.0
        %4588 = vadd.xlane.f32.xlu0 %v4587
        %v4589 = vpop.xlane.xlu0 %4588
        %v4590 = vsel %vm4031, %v4405, 0.0
        %4591 = vadd.xlane.f32.xlu0 %v4590
        %v4592 = vpop.xlane.xlu0 %4591
        %v4593 = vsel %vm4031, %v4407, 0.0
        %4594 = vadd.xlane.f32.xlu0 %v4593
        %v4595 = vpop.xlane.xlu0 %4594
        %v4596 = vsel %vm4031, %v4409, 0.0
        %4597 = vadd.xlane.f32.xlu0 %v4596
        %v4598 = vpop.xlane.xlu0 %4597
        %v4599 = vsel %vm4031, %v4411, 0.0
        %4600 = vadd.xlane.f32.xlu0 %v4599
        %v4601 = vpop.xlane.xlu0 %4600
        %v4602 = vsel %vm4031, %v4413, 0.0
        %4603 = vadd.xlane.f32.xlu0 %v4602
        %v4604 = vpop.xlane.xlu0 %4603
        %v4605 = vsel %vm4031, %v4415, 0.0
        %4606 = vadd.xlane.f32.xlu0 %v4605
        %v4607 = vpop.xlane.xlu0 %4606
        %v4608 = vrcp.pop %v4418
        %v4609 = vrcp.pop %v4421
        %v4610 = vrcp.pop %v4424
        %v4611 = vrcp.pop %v4427
        %v4612 = vrcp.pop %v4430
        %v4613 = vrcp.pop %v4433
        %v4614 = vrcp.pop %v4436
        %v4615 = vrcp.pop %v4439
        %v4616 = vrcp.pop %v4442
        %v4617 = vrcp.pop %v4445
        %v4618 = vrcp.pop %v4448
        %v4619 = vrcp.pop %v4451
        %v4620 = vrcp.pop %v4454
        %v4621 = vrcp.pop %v4457
        %v4622 = vrcp.pop %v4460
        %v4623 = vrcp.pop %v4463
        %v4624 = vrcp.pop %v4466
        %v4625 = vrcp.pop %v4469
        %v4626 = vrcp.pop %v4472
        %v4627 = vrcp.pop %v4475
        %v4628 = vrcp.pop %v4478
        %v4629 = vrcp.pop %v4481
        %v4630 = vrcp.pop %v4484
        %v4631 = vrcp.pop %v4487
        %v4632 = vrcp.pop %v4490
        %v4633 = vrcp.pop %v4493
        %v4634 = vrcp.pop %v4496
        %v4635 = vrcp.pop %v4499
        %v4636 = vrcp.pop %v4502
        %v4637 = vrcp.pop %v4505
        %v4638 = vrcp.pop %v4508
        %v4639 = vrcp.pop %v4511
        %v4640 = vrcp.pop %v4514
        %v4641 = vrcp.pop %v4517
        %v4642 = vrcp.pop %v4520
        %v4643 = vrcp.pop %v4523
        %v4644 = vrcp.pop %v4526
        %v4645 = vrcp.pop %v4529
        %v4646 = vrcp.pop %v4532
        %v4647 = vrcp.pop %v4535
        %v4648 = vrcp.pop %v4538
        %v4649 = vrcp.pop %v4541
        %v4650 = vrcp.pop %v4544
        %v4651 = vrcp.pop %v4547
        %v4652 = vrcp.pop %v4550
        %v4653 = vrcp.pop %v4553
        %v4654 = vrcp.pop %v4556
        %v4655 = vrcp.pop %v4559
        %v4656 = vrcp.pop %v4562
        %v4657 = vrcp.pop %v4565
        %v4658 = vrcp.pop %v4568
        %v4659 = vrcp.pop %v4571
        %v4660 = vrcp.pop %v4574
        %v4661 = vrcp.pop %v4577
        %v4662 = vrcp.pop %v4580
        %v4663 = vrcp.pop %v4583
        %v4664 = vrcp.pop %v4586
        %v4665 = vrcp.pop %v4589
        %v4666 = vrcp.pop %v4592
        %v4667 = vrcp.pop %v4595
        %v4668 = vrcp.pop %v4598
        %v4669 = vrcp.pop %v4601
        %v4670 = vrcp.pop %v4604
        %v4671 = vrcp.pop %v4607
        %v4672 = vmul.f32 %v4289, %v4608
        %v4673 = vmul.f32 %v4291, %v4609
        %v4674 = vmul.f32 %v4293, %v4610
        %v4675 = vmul.f32 %v4295, %v4611
        %v4676 = vmul.f32 %v4297, %v4612
        %v4677 = vmul.f32 %v4299, %v4613
        %v4678 = vmul.f32 %v4301, %v4614
        %v4679 = vmul.f32 %v4303, %v4615
        %v4680 = vmul.f32 %v4305, %v4616
        %v4681 = vmul.f32 %v4307, %v4617
        %v4682 = vmul.f32 %v4309, %v4618
        %v4683 = vmul.f32 %v4311, %v4619
        %v4684 = vmul.f32 %v4313, %v4620
        %v4685 = vmul.f32 %v4315, %v4621
        %v4686 = vmul.f32 %v4317, %v4622
        %v4687 = vmul.f32 %v4319, %v4623
        %v4688 = vmul.f32 %v4321, %v4624
        %v4689 = vmul.f32 %v4323, %v4625
        %v4690 = vmul.f32 %v4325, %v4626
        %v4691 = vmul.f32 %v4327, %v4627
        %v4692 = vmul.f32 %v4329, %v4628
        %v4693 = vmul.f32 %v4331, %v4629
        %v4694 = vmul.f32 %v4333, %v4630
        %v4695 = vmul.f32 %v4335, %v4631
        %v4696 = vmul.f32 %v4337, %v4632
        %v4697 = vmul.f32 %v4339, %v4633
        %v4698 = vmul.f32 %v4341, %v4634
        %v4699 = vmul.f32 %v4343, %v4635
        %v4700 = vmul.f32 %v4345, %v4636
        %v4701 = vmul.f32 %v4347, %v4637
        %v4702 = vmul.f32 %v4349, %v4638
        %v4703 = vmul.f32 %v4351, %v4639
        %v4704 = vmul.f32 %v4353, %v4640
        %v4705 = vmul.f32 %v4355, %v4641
        %v4706 = vmul.f32 %v4357, %v4642
        %v4707 = vmul.f32 %v4359, %v4643
        %v4708 = vmul.f32 %v4361, %v4644
        %v4709 = vmul.f32 %v4363, %v4645
        %v4710 = vmul.f32 %v4365, %v4646
        %v4711 = vmul.f32 %v4367, %v4647
        %v4712 = vmul.f32 %v4369, %v4648
        %v4713 = vmul.f32 %v4371, %v4649
        %v4714 = vmul.f32 %v4373, %v4650
        %v4715 = vmul.f32 %v4375, %v4651
        %v4716 = vmul.f32 %v4377, %v4652
        %v4717 = vmul.f32 %v4379, %v4653
        %v4718 = vmul.f32 %v4381, %v4654
        %v4719 = vmul.f32 %v4383, %v4655
        %v4720 = vmul.f32 %v4385, %v4656
        %v4721 = vmul.f32 %v4387, %v4657
        %v4722 = vmul.f32 %v4389, %v4658
        %v4723 = vmul.f32 %v4391, %v4659
        %v4724 = vmul.f32 %v4393, %v4660
        %v4725 = vmul.f32 %v4395, %v4661
        %v4726 = vmul.f32 %v4397, %v4662
        %v4727 = vmul.f32 %v4399, %v4663
        %v4728 = vmul.f32 %v4401, %v4664
        %v4729 = vmul.f32 %v4403, %v4665
        %v4730 = vmul.f32 %v4405, %v4666
        %v4731 = vmul.f32 %v4407, %v4667
        %v4732 = vmul.f32 %v4409, %v4668
        %v4733 = vmul.f32 %v4411, %v4669
        %v4734 = vmul.f32 %v4413, %v4670
        %v4735 = vmul.f32 %v4415, %v4671
        %v4736 = vpack.c.bf16 %v4673, %v4672
        %v4737 = vpack.c.bf16 %v4675, %v4674
        %v4738 = vpack.c.bf16 %v4677, %v4676
        %v4739 = vpack.c.bf16 %v4679, %v4678
        %v4740 = vpack.c.bf16 %v4681, %v4680
        %v4741 = vpack.c.bf16 %v4683, %v4682
        %v4742 = vpack.c.bf16 %v4685, %v4684
        %v4743 = vpack.c.bf16 %v4687, %v4686
        %v4744 = vpack.c.bf16 %v4689, %v4688
        %v4745 = vpack.c.bf16 %v4691, %v4690
        %v4746 = vpack.c.bf16 %v4693, %v4692
        %v4747 = vpack.c.bf16 %v4695, %v4694
        %v4748 = vpack.c.bf16 %v4697, %v4696
        %v4749 = vpack.c.bf16 %v4699, %v4698
        %v4750 = vpack.c.bf16 %v4701, %v4700
        %v4751 = vpack.c.bf16 %v4703, %v4702
        %v4752 = vpack.c.bf16 %v4705, %v4704
        %v4753 = vpack.c.bf16 %v4707, %v4706
        %v4754 = vpack.c.bf16 %v4709, %v4708
        %v4755 = vpack.c.bf16 %v4711, %v4710
        %v4756 = vpack.c.bf16 %v4713, %v4712
        %v4757 = vpack.c.bf16 %v4715, %v4714
        %v4758 = vpack.c.bf16 %v4717, %v4716
        %v4759 = vpack.c.bf16 %v4719, %v4718
        %v4760 = vpack.c.bf16 %v4721, %v4720
        %v4761 = vpack.c.bf16 %v4723, %v4722
        %v4762 = vpack.c.bf16 %v4725, %v4724
        %v4763 = vpack.c.bf16 %v4727, %v4726
        %v4764 = vpack.c.bf16 %v4729, %v4728
        %v4765 = vpack.c.bf16 %v4731, %v4730
        %v4766 = vpack.c.bf16 %v4733, %v4732
        %v4767 = vpack.c.bf16 %v4735, %v4734
        %v4769 = vsel %vm4031, %v4736, 0
        %4771 = vmatprep.subr.bf16.mxu0 0
        %4772 = vmatpush1.bf16.msra.mxu0 %v2430
        %4773 = vmatprep.subr.bf16.mxu0 0
        %4774 = vmatpush1.bf16.msra.mxu0 0
        %4775 = vmatprep.subr.bf16.mxu0 0
        %4776 = vmatpush1.bf16.msra.mxu0 0
        %4777 = vmatprep.subr.bf16.mxu0 0
        %4778 = vmatpush1.bf16.msra.mxu0 0
        %4779 = vmatprep.subr.bf16.mxu0 0
        %4780 = vmatpush1.bf16.msra.mxu0 0
        %4781 = vmatprep.subr.bf16.mxu0 0
        %4782 = vmatpush1.bf16.msra.mxu0 0
        %4783 = vmatprep.subr.bf16.mxu0 0
        %4784 = vmatpush1.bf16.msra.mxu0 0
        %4785 = vmatprep.subr.bf16.mxu0 0
        %4786 = vmatpush1.bf16.msra.mxu0 0
        %4787 = vmatprep.subr.bf16.mxu0 0
        %4788 = vmatpush1.bf16.msra.mxu0 0
        %4789 = vmatprep.subr.bf16.mxu0 0
        %4790 = vmatpush1.bf16.msra.mxu0 0
        %4791 = vmatprep.subr.bf16.mxu0 0
        %4792 = vmatpush1.bf16.msra.mxu0 0
        %4793 = vmatprep.subr.bf16.mxu0 0
        %4794 = vmatpush1.bf16.msra.mxu0 0
        %4795 = vmatprep.subr.bf16.mxu0 0
        %4796 = vmatpush1.bf16.msra.mxu0 0
        %4797 = vmatprep.subr.bf16.mxu0 0
        %4798 = vmatpush1.bf16.msra.mxu0 0
        %4799 = vmatprep.subr.bf16.mxu0 0
        %4800 = vmatpush1.bf16.msra.mxu0 0
        %4801 = vmatprep.subr.bf16.mxu0 0
        %4802 = vmatpush1.bf16.msra.mxu0 0
        %4803 = vmatprep.mubr.bf16.mxu0 0
        %4804 = vmatmul.mubr.bf16.gmra.mrb[0].mxu0 %v4769
        %v4805 = vpop.f32.mrb[0].mxu0
        %v4806 = vadd.f32 0.0, %v4805
        %v4807 = vpop.f32.mrb[0].mxu0
        %v4808 = vpop.f32.mrb[0].mxu0
        %v4809 = vadd.f32 0.0, %v4808
        %v4810 = vpop.f32.mrb[0].mxu0
        %4811 = vdwg.mxu0
        %v4813 = vsel %vm4031, %v4737, 0
        %4815 = vmatprep.subr.bf16.mxu0 0
        %4816 = vmatpush1.bf16.msra.mxu0 %v2431
        %4817 = vmatprep.subr.bf16.mxu0 0
        %4818 = vmatpush1.bf16.msra.mxu0 0
        %4819 = vmatprep.subr.bf16.mxu0 0
        %4820 = vmatpush1.bf16.msra.mxu0 0
        %4821 = vmatprep.subr.bf16.mxu0 0
        %4822 = vmatpush1.bf16.msra.mxu0 0
        %4823 = vmatprep.subr.bf16.mxu0 0
        %4824 = vmatpush1.bf16.msra.mxu0 0
        %4825 = vmatprep.subr.bf16.mxu0 0
        %4826 = vmatpush1.bf16.msra.mxu0 0
        %4827 = vmatprep.subr.bf16.mxu0 0
        %4828 = vmatpush1.bf16.msra.mxu0 0
        %4829 = vmatprep.subr.bf16.mxu0 0
        %4830 = vmatpush1.bf16.msra.mxu0 0
        %4831 = vmatprep.subr.bf16.mxu0 0
        %4832 = vmatpush1.bf16.msra.mxu0 0
        %4833 = vmatprep.subr.bf16.mxu0 0
        %4834 = vmatpush1.bf16.msra.mxu0 0
        %4835 = vmatprep.subr.bf16.mxu0 0
        %4836 = vmatpush1.bf16.msra.mxu0 0
        %4837 = vmatprep.subr.bf16.mxu0 0
        %4838 = vmatpush1.bf16.msra.mxu0 0
        %4839 = vmatprep.subr.bf16.mxu0 0
        %4840 = vmatpush1.bf16.msra.mxu0 0
        %4841 = vmatprep.subr.bf16.mxu0 0
        %4842 = vmatpush1.bf16.msra.mxu0 0
        %4843 = vmatprep.subr.bf16.mxu0 0
        %4844 = vmatpush1.bf16.msra.mxu0 0
        %4845 = vmatprep.subr.bf16.mxu0 0
        %4846 = vmatpush1.bf16.msra.mxu0 0
        %4847 = vmatprep.mubr.bf16.mxu0 0
        %4848 = vmatmul.mubr.bf16.gmra.mrb[0].mxu0 %v4813
        %v4849 = vpop.f32.mrb[0].mxu0
        %v4850 = vadd.f32 0.0, %v4849
        %v4851 = vpop.f32.mrb[0].mxu0
        %v4852 = vpop.f32.mrb[0].mxu0
        %v4853 = vadd.f32 0.0, %v4852
        %v4854 = vpop.f32.mrb[0].mxu0
        %4855 = vdwg.mxu0
        %v4857 = vsel %vm4031, %v4738, 0
        %4859 = vmatprep.subr.bf16.mxu0 0
        %4860 = vmatpush1.bf16.msra.mxu0 %v2432
        %4861 = vmatprep.subr.bf16.mxu0 0
        %4862 = vmatpush1.bf16.msra.mxu0 0
        %4863 = vmatprep.subr.bf16.mxu0 0
        %4864 = vmatpush1.bf16.msra.mxu0 0
        %4865 = vmatprep.subr.bf16.mxu0 0
        %4866 = vmatpush1.bf16.msra.mxu0 0
        %4867 = vmatprep.subr.bf16.mxu0 0
        %4868 = vmatpush1.bf16.msra.mxu0 0
        %4869 = vmatprep.subr.bf16.mxu0 0
        %4870 = vmatpush1.bf16.msra.mxu0 0
        %4871 = vmatprep.subr.bf16.mxu0 0
        %4872 = vmatpush1.bf16.msra.mxu0 0
        %4873 = vmatprep.subr.bf16.mxu0 0
        %4874 = vmatpush1.bf16.msra.mxu0 0
        %4875 = vmatprep.subr.bf16.mxu0 0
        %4876 = vmatpush1.bf16.msra.mxu0 0
        %4877 = vmatprep.subr.bf16.mxu0 0
        %4878 = vmatpush1.bf16.msra.mxu0 0
        %4879 = vmatprep.subr.bf16.mxu0 0
        %4880 = vmatpush1.bf16.msra.mxu0 0
        %4881 = vmatprep.subr.bf16.mxu0 0
        %4882 = vmatpush1.bf16.msra.mxu0 0
        %4883 = vmatprep.subr.bf16.mxu0 0
        %4884 = vmatpush1.bf16.msra.mxu0 0
        %4885 = vmatprep.subr.bf16.mxu0 0
        %4886 = vmatpush1.bf16.msra.mxu0 0
        %4887 = vmatprep.subr.bf16.mxu0 0
        %4888 = vmatpush1.bf16.msra.mxu0 0
        %4889 = vmatprep.subr.bf16.mxu0 0
        %4890 = vmatpush1.bf16.msra.mxu0 0
        %4891 = vmatprep.mubr.bf16.mxu0 0
        %4892 = vmatmul.mubr.bf16.gmra.mrb[0].mxu0 %v4857
        %v4893 = vpop.f32.mrb[0].mxu0
        %v4894 = vadd.f32 0.0, %v4893
        %v4895 = vpop.f32.mrb[0].mxu0
        %v4896 = vpop.f32.mrb[0].mxu0
        %v4897 = vadd.f32 0.0, %v4896
        %v4898 = vpop.f32.mrb[0].mxu0
        %4899 = vdwg.mxu0
        %v4901 = vsel %vm4031, %v4739, 0
        %4903 = vmatprep.subr.bf16.mxu0 0
        %4904 = vmatpush1.bf16.msra.mxu0 %v2433
        %4905 = vmatprep.subr.bf16.mxu0 0
        %4906 = vmatpush1.bf16.msra.mxu0 0
        %4907 = vmatprep.subr.bf16.mxu0 0
        %4908 = vmatpush1.bf16.msra.mxu0 0
        %4909 = vmatprep.subr.bf16.mxu0 0
        %4910 = vmatpush1.bf16.msra.mxu0 0
        %4911 = vmatprep.subr.bf16.mxu0 0
        %4912 = vmatpush1.bf16.msra.mxu0 0
        %4913 = vmatprep.subr.bf16.mxu0 0
        %4914 = vmatpush1.bf16.msra.mxu0 0
        %4915 = vmatprep.subr.bf16.mxu0 0
        %4916 = vmatpush1.bf16.msra.mxu0 0
        %4917 = vmatprep.subr.bf16.mxu0 0
        %4918 = vmatpush1.bf16.msra.mxu0 0
        %4919 = vmatprep.subr.bf16.mxu0 0
        %4920 = vmatpush1.bf16.msra.mxu0 0
        %4921 = vmatprep.subr.bf16.mxu0 0
        %4922 = vmatpush1.bf16.msra.mxu0 0
        %4923 = vmatprep.subr.bf16.mxu0 0
        %4924 = vmatpush1.bf16.msra.mxu0 0
        %4925 = vmatprep.subr.bf16.mxu0 0
        %4926 = vmatpush1.bf16.msra.mxu0 0
        %4927 = vmatprep.subr.bf16.mxu0 0
        %4928 = vmatpush1.bf16.msra.mxu0 0
        %4929 = vmatprep.subr.bf16.mxu0 0
        %4930 = vmatpush1.bf16.msra.mxu0 0
        %4931 = vmatprep.subr.bf16.mxu0 0
        %4932 = vmatpush1.bf16.msra.mxu0 0
        %4933 = vmatprep.subr.bf16.mxu0 0
        %4934 = vmatpush1.bf16.msra.mxu0 0
        %4935 = vmatprep.mubr.bf16.mxu0 0
        %4936 = vmatmul.mubr.bf16.gmra.mrb[0].mxu0 %v4901
        %v4937 = vpop.f32.mrb[0].mxu0
        %v4938 = vadd.f32 0.0, %v4937
        %v4939 = vpop.f32.mrb[0].mxu0
        %v4940 = vpop.f32.mrb[0].mxu0
        %v4941 = vadd.f32 0.0, %v4940
        %v4942 = vpop.f32.mrb[0].mxu0
        %4943 = vdwg.mxu0
        %v4945 = vsel %vm4031, %v4740, 0
        %4947 = vmatprep.subr.bf16.mxu0 0
        %4948 = vmatpush1.bf16.msra.mxu0 %v2434
        %4949 = vmatprep.subr.bf16.mxu0 0
        %4950 = vmatpush1.bf16.msra.mxu0 0
        %4951 = vmatprep.subr.bf16.mxu0 0
        %4952 = vmatpush1.bf16.msra.mxu0 0
        %4953 = vmatprep.subr.bf16.mxu0 0
        %4954 = vmatpush1.bf16.msra.mxu0 0
        %4955 = vmatprep.subr.bf16.mxu0 0
        %4956 = vmatpush1.bf16.msra.mxu0 0
        %4957 = vmatprep.subr.bf16.mxu0 0
        %4958 = vmatpush1.bf16.msra.mxu0 0
        %4959 = vmatprep.subr.bf16.mxu0 0
        %4960 = vmatpush1.bf16.msra.mxu0 0
        %4961 = vmatprep.subr.bf16.mxu0 0
        %4962 = vmatpush1.bf16.msra.mxu0 0
        %4963 = vmatprep.subr.bf16.mxu0 0
        %4964 = vmatpush1.bf16.msra.mxu0 0
        %4965 = vmatprep.subr.bf16.mxu0 0
        %4966 = vmatpush1.bf16.msra.mxu0 0
        %4967 = vmatprep.subr.bf16.mxu0 0
        %4968 = vmatpush1.bf16.msra.mxu0 0
        %4969 = vmatprep.subr.bf16.mxu0 0
        %4970 = vmatpush1.bf16.msra.mxu0 0
        %4971 = vmatprep.subr.bf16.mxu0 0
        %4972 = vmatpush1.bf16.msra.mxu0 0
        %4973 = vmatprep.subr.bf16.mxu0 0
        %4974 = vmatpush1.bf16.msra.mxu0 0
        %4975 = vmatprep.subr.bf16.mxu0 0
        %4976 = vmatpush1.bf16.msra.mxu0 0
        %4977 = vmatprep.subr.bf16.mxu0 0
        %4978 = vmatpush1.bf16.msra.mxu0 0
        %4979 = vmatprep.mubr.bf16.mxu0 0
        %4980 = vmatmul.mubr.bf16.gmra.mrb[0].mxu0 %v4945
        %v4981 = vpop.f32.mrb[0].mxu0
        %v4982 = vadd.f32 0.0, %v4981
        %v4983 = vpop.f32.mrb[0].mxu0
        %v4984 = vpop.f32.mrb[0].mxu0
        %v4985 = vadd.f32 0.0, %v4984
        %v4986 = vpop.f32.mrb[0].mxu0
        %4987 = vdwg.mxu0
        %v4989 = vsel %vm4031, %v4741, 0
        %4991 = vmatprep.subr.bf16.mxu0 0
        %4992 = vmatpush1.bf16.msra.mxu0 %v2435
        %4993 = vmatprep.subr.bf16.mxu0 0
        %4994 = vmatpush1.bf16.msra.mxu0 0
        %4995 = vmatprep.subr.bf16.mxu0 0
        %4996 = vmatpush1.bf16.msra.mxu0 0
        %4997 = vmatprep.subr.bf16.mxu0 0
        %4998 = vmatpush1.bf16.msra.mxu0 0
        %4999 = vmatprep.subr.bf16.mxu0 0
        %5000 = vmatpush1.bf16.msra.mxu0 0
        %5001 = vmatprep.subr.bf16.mxu0 0
        %5002 = vmatpush1.bf16.msra.mxu0 0
        %5003 = vmatprep.subr.bf16.mxu0 0
        %5004 = vmatpush1.bf16.msra.mxu0 0
        %5005 = vmatprep.subr.bf16.mxu0 0
        %5006 = vmatpush1.bf16.msra.mxu0 0
        %5007 = vmatprep.subr.bf16.mxu0 0
        %5008 = vmatpush1.bf16.msra.mxu0 0
        %5009 = vmatprep.subr.bf16.mxu0 0
        %5010 = vmatpush1.bf16.msra.mxu0 0
        %5011 = vmatprep.subr.bf16.mxu0 0
        %5012 = vmatpush1.bf16.msra.mxu0 0
        %5013 = vmatprep.subr.bf16.mxu0 0
        %5014 = vmatpush1.bf16.msra.mxu0 0
        %5015 = vmatprep.subr.bf16.mxu0 0
        %5016 = vmatpush1.bf16.msra.mxu0 0
        %5017 = vmatprep.subr.bf16.mxu0 0
        %5018 = vmatpush1.bf16.msra.mxu0 0
        %5019 = vmatprep.subr.bf16.mxu0 0
        %5020 = vmatpush1.bf16.msra.mxu0 0
        %5021 = vmatprep.subr.bf16.mxu0 0
        %5022 = vmatpush1.bf16.msra.mxu0 0
        %5023 = vmatprep.mubr.bf16.mxu0 0
        %5024 = vmatmul.mubr.bf16.gmra.mrb[0].mxu0 %v4989
        %v5025 = vpop.f32.mrb[0].mxu0
        %v5026 = vadd.f32 0.0, %v5025
        %v5027 = vpop.f32.mrb[0].mxu0
        %v5028 = vpop.f32.mrb[0].mxu0
        %v5029 = vadd.f32 0.0, %v5028
        %v5030 = vpop.f32.mrb[0].mxu0
        %5031 = vdwg.mxu0
        %v5033 = vsel %vm4031, %v4742, 0
        %5035 = vmatprep.subr.bf16.mxu0 0
        %5036 = vmatpush1.bf16.msra.mxu0 %v2436
        %5037 = vmatprep.subr.bf16.mxu0 0
        %5038 = vmatpush1.bf16.msra.mxu0 0
        %5039 = vmatprep.subr.bf16.mxu0 0
        %5040 = vmatpush1.bf16.msra.mxu0 0
        %5041 = vmatprep.subr.bf16.mxu0 0
        %5042 = vmatpush1.bf16.msra.mxu0 0
        %5043 = vmatprep.subr.bf16.mxu0 0
        %5044 = vmatpush1.bf16.msra.mxu0 0
        %5045 = vmatprep.subr.bf16.mxu0 0
        %5046 = vmatpush1.bf16.msra.mxu0 0
        %5047 = vmatprep.subr.bf16.mxu0 0
        %5048 = vmatpush1.bf16.msra.mxu0 0
        %5049 = vmatprep.subr.bf16.mxu0 0
        %5050 = vmatpush1.bf16.msra.mxu0 0
        %5051 = vmatprep.subr.bf16.mxu0 0
        %5052 = vmatpush1.bf16.msra.mxu0 0
        %5053 = vmatprep.subr.bf16.mxu0 0
        %5054 = vmatpush1.bf16.msra.mxu0 0
        %5055 = vmatprep.subr.bf16.mxu0 0
        %5056 = vmatpush1.bf16.msra.mxu0 0
        %5057 = vmatprep.subr.bf16.mxu0 0
        %5058 = vmatpush1.bf16.msra.mxu0 0
        %5059 = vmatprep.subr.bf16.mxu0 0
        %5060 = vmatpush1.bf16.msra.mxu0 0
        %5061 = vmatprep.subr.bf16.mxu0 0
        %5062 = vmatpush1.bf16.msra.mxu0 0
        %5063 = vmatprep.subr.bf16.mxu0 0
        %5064 = vmatpush1.bf16.msra.mxu0 0
        %5065 = vmatprep.subr.bf16.mxu0 0
        %5066 = vmatpush1.bf16.msra.mxu0 0
        %5067 = vmatprep.mubr.bf16.mxu0 0
        %5068 = vmatmul.mubr.bf16.gmra.mrb[0].mxu0 %v5033
        %v5069 = vpop.f32.mrb[0].mxu0
        %v5070 = vadd.f32 0.0, %v5069
        %v5071 = vpop.f32.mrb[0].mxu0
        %v5072 = vpop.f32.mrb[0].mxu0
        %v5073 = vadd.f32 0.0, %v5072
        %v5074 = vpop.f32.mrb[0].mxu0
        %5075 = vdwg.mxu0
        %v5077 = vsel %vm4031, %v4743, 0
        %5079 = vmatprep.subr.bf16.mxu0 0
        %5080 = vmatpush1.bf16.msra.mxu0 %v2437
        %5081 = vmatprep.subr.bf16.mxu0 0
        %5082 = vmatpush1.bf16.msra.mxu0 0
        %5083 = vmatprep.subr.bf16.mxu0 0
        %5084 = vmatpush1.bf16.msra.mxu0 0
        %5085 = vmatprep.subr.bf16.mxu0 0
        %5086 = vmatpush1.bf16.msra.mxu0 0
        %5087 = vmatprep.subr.bf16.mxu0 0
        %5088 = vmatpush1.bf16.msra.mxu0 0
        %5089 = vmatprep.subr.bf16.mxu0 0
        %5090 = vmatpush1.bf16.msra.mxu0 0
        %5091 = vmatprep.subr.bf16.mxu0 0
        %5092 = vmatpush1.bf16.msra.mxu0 0
        %5093 = vmatprep.subr.bf16.mxu0 0
        %5094 = vmatpush1.bf16.msra.mxu0 0
        %5095 = vmatprep.subr.bf16.mxu0 0
        %5096 = vmatpush1.bf16.msra.mxu0 0
        %5097 = vmatprep.subr.bf16.mxu0 0
        %5098 = vmatpush1.bf16.msra.mxu0 0
        %5099 = vmatprep.subr.bf16.mxu0 0
        %5100 = vmatpush1.bf16.msra.mxu0 0
        %5101 = vmatprep.subr.bf16.mxu0 0
        %5102 = vmatpush1.bf16.msra.mxu0 0
        %5103 = vmatprep.subr.bf16.mxu0 0
        %5104 = vmatpush1.bf16.msra.mxu0 0
        %5105 = vmatprep.subr.bf16.mxu0 0
        %5106 = vmatpush1.bf16.msra.mxu0 0
        %5107 = vmatprep.subr.bf16.mxu0 0
        %5108 = vmatpush1.bf16.msra.mxu0 0
        %5109 = vmatprep.subr.bf16.mxu0 0
        %5110 = vmatpush1.bf16.msra.mxu0 0
        %5111 = vmatprep.mubr.bf16.mxu0 0
        %5112 = vmatmul.mubr.bf16.gmra.mrb[0].mxu0 %v5077
        %v5113 = vpop.f32.mrb[0].mxu0
        %v5114 = vadd.f32 0.0, %v5113
        %v5115 = vpop.f32.mrb[0].mxu0
        %v5116 = vpop.f32.mrb[0].mxu0
        %v5117 = vadd.f32 0.0, %v5116
        %v5118 = vpop.f32.mrb[0].mxu0
        %5119 = vdwg.mxu0
        %v5121 = vsel %vm4031, %v4744, 0
        %5123 = vmatprep.subr.bf16.mxu0 0
        %5124 = vmatpush1.bf16.msra.mxu0 %v2438
        %5125 = vmatprep.subr.bf16.mxu0 0
        %5126 = vmatpush1.bf16.msra.mxu0 0
        %5127 = vmatprep.subr.bf16.mxu0 0
        %5128 = vmatpush1.bf16.msra.mxu0 0
        %5129 = vmatprep.subr.bf16.mxu0 0
        %5130 = vmatpush1.bf16.msra.mxu0 0
        %5131 = vmatprep.subr.bf16.mxu0 0
        %5132 = vmatpush1.bf16.msra.mxu0 0
        %5133 = vmatprep.subr.bf16.mxu0 0
        %5134 = vmatpush1.bf16.msra.mxu0 0
        %5135 = vmatprep.subr.bf16.mxu0 0
        %5136 = vmatpush1.bf16.msra.mxu0 0
        %5137 = vmatprep.subr.bf16.mxu0 0
        %5138 = vmatpush1.bf16.msra.mxu0 0
        %5139 = vmatprep.subr.bf16.mxu0 0
        %5140 = vmatpush1.bf16.msra.mxu0 0
        %5141 = vmatprep.subr.bf16.mxu0 0
        %5142 = vmatpush1.bf16.msra.mxu0 0
        %5143 = vmatprep.subr.bf16.mxu0 0
        %5144 = vmatpush1.bf16.msra.mxu0 0
        %5145 = vmatprep.subr.bf16.mxu0 0
        %5146 = vmatpush1.bf16.msra.mxu0 0
        %5147 = vmatprep.subr.bf16.mxu0 0
        %5148 = vmatpush1.bf16.msra.mxu0 0
        %5149 = vmatprep.subr.bf16.mxu0 0
        %5150 = vmatpush1.bf16.msra.mxu0 0
        %5151 = vmatprep.subr.bf16.mxu0 0
        %5152 = vmatpush1.bf16.msra.mxu0 0
        %5153 = vmatprep.subr.bf16.mxu0 0
        %5154 = vmatpush1.bf16.msra.mxu0 0
        %5155 = vmatprep.mubr.bf16.mxu0 0
        %5156 = vmatmul.mubr.bf16.gmra.mrb[0].mxu0 %v5121
        %v5157 = vpop.f32.mrb[0].mxu0
        %v5158 = vadd.f32 0.0, %v5157
        %v5159 = vpop.f32.mrb[0].mxu0
        %v5160 = vpop.f32.mrb[0].mxu0
        %v5161 = vadd.f32 0.0, %v5160
        %v5162 = vpop.f32.mrb[0].mxu0
        %5163 = vdwg.mxu0
        %v5165 = vsel %vm4031, %v4745, 0
        %5167 = vmatprep.subr.bf16.mxu0 0
        %5168 = vmatpush1.bf16.msra.mxu0 %v2439
        %5169 = vmatprep.subr.bf16.mxu0 0
        %5170 = vmatpush1.bf16.msra.mxu0 0
        %5171 = vmatprep.subr.bf16.mxu0 0
        %5172 = vmatpush1.bf16.msra.mxu0 0
        %5173 = vmatprep.subr.bf16.mxu0 0
        %5174 = vmatpush1.bf16.msra.mxu0 0
        %5175 = vmatprep.subr.bf16.mxu0 0
        %5176 = vmatpush1.bf16.msra.mxu0 0
        %5177 = vmatprep.subr.bf16.mxu0 0
        %5178 = vmatpush1.bf16.msra.mxu0 0
        %5179 = vmatprep.subr.bf16.mxu0 0
        %5180 = vmatpush1.bf16.msra.mxu0 0
        %5181 = vmatprep.subr.bf16.mxu0 0
        %5182 = vmatpush1.bf16.msra.mxu0 0
        %5183 = vmatprep.subr.bf16.mxu0 0
        %5184 = vmatpush1.bf16.msra.mxu0 0
        %5185 = vmatprep.subr.bf16.mxu0 0
        %5186 = vmatpush1.bf16.msra.mxu0 0
        %5187 = vmatprep.subr.bf16.mxu0 0
        %5188 = vmatpush1.bf16.msra.mxu0 0
        %5189 = vmatprep.subr.bf16.mxu0 0
        %5190 = vmatpush1.bf16.msra.mxu0 0
        %5191 = vmatprep.subr.bf16.mxu0 0
        %5192 = vmatpush1.bf16.msra.mxu0 0
        %5193 = vmatprep.subr.bf16.mxu0 0
        %5194 = vmatpush1.bf16.msra.mxu0 0
        %5195 = vmatprep.subr.bf16.mxu0 0
        %5196 = vmatpush1.bf16.msra.mxu0 0
        %5197 = vmatprep.subr.bf16.mxu0 0
        %5198 = vmatpush1.bf16.msra.mxu0 0
        %5199 = vmatprep.mubr.bf16.mxu0 0
        %5200 = vmatmul.mubr.bf16.gmra.mrb[0].mxu0 %v5165
        %v5201 = vpop.f32.mrb[0].mxu0
        %v5202 = vadd.f32 0.0, %v5201
        %v5203 = vpop.f32.mrb[0].mxu0
        %v5204 = vpop.f32.mrb[0].mxu0
        %v5205 = vadd.f32 0.0, %v5204
        %v5206 = vpop.f32.mrb[0].mxu0
        %5207 = vdwg.mxu0
        %v5209 = vsel %vm4031, %v4746, 0
        %5211 = vmatprep.subr.bf16.mxu0 0
        %5212 = vmatpush1.bf16.msra.mxu0 %v2440
        %5213 = vmatprep.subr.bf16.mxu0 0
        %5214 = vmatpush1.bf16.msra.mxu0 0
        %5215 = vmatprep.subr.bf16.mxu0 0
        %5216 = vmatpush1.bf16.msra.mxu0 0
        %5217 = vmatprep.subr.bf16.mxu0 0
        %5218 = vmatpush1.bf16.msra.mxu0 0
        %5219 = vmatprep.subr.bf16.mxu0 0
        %5220 = vmatpush1.bf16.msra.mxu0 0
        %5221 = vmatprep.subr.bf16.mxu0 0
        %5222 = vmatpush1.bf16.msra.mxu0 0
        %5223 = vmatprep.subr.bf16.mxu0 0
        %5224 = vmatpush1.bf16.msra.mxu0 0
        %5225 = vmatprep.subr.bf16.mxu0 0
        %5226 = vmatpush1.bf16.msra.mxu0 0
        %5227 = vmatprep.subr.bf16.mxu0 0
        %5228 = vmatpush1.bf16.msra.mxu0 0
        %5229 = vmatprep.subr.bf16.mxu0 0
        %5230 = vmatpush1.bf16.msra.mxu0 0
        %5231 = vmatprep.subr.bf16.mxu0 0
        %5232 = vmatpush1.bf16.msra.mxu0 0
        %5233 = vmatprep.subr.bf16.mxu0 0
        %5234 = vmatpush1.bf16.msra.mxu0 0
        %5235 = vmatprep.subr.bf16.mxu0 0
        %5236 = vmatpush1.bf16.msra.mxu0 0
        %5237 = vmatprep.subr.bf16.mxu0 0
        %5238 = vmatpush1.bf16.msra.mxu0 0
        %5239 = vmatprep.subr.bf16.mxu0 0
        %5240 = vmatpush1.bf16.msra.mxu0 0
        %5241 = vmatprep.subr.bf16.mxu0 0
        %5242 = vmatpush1.bf16.msra.mxu0 0
        %5243 = vmatprep.mubr.bf16.mxu0 0
        %5244 = vmatmul.mubr.bf16.gmra.mrb[0].mxu0 %v5209
        %v5245 = vpop.f32.mrb[0].mxu0
        %v5246 = vadd.f32 0.0, %v5245
        %v5247 = vpop.f32.mrb[0].mxu0
        %v5248 = vpop.f32.mrb[0].mxu0
        %v5249 = vadd.f32 0.0, %v5248
        %v5250 = vpop.f32.mrb[0].mxu0
        %5251 = vdwg.mxu0
        %v5253 = vsel %vm4031, %v4747, 0
        %5255 = vmatprep.subr.bf16.mxu0 0
        %5256 = vmatpush1.bf16.msra.mxu0 %v2441
        %5257 = vmatprep.subr.bf16.mxu0 0
        %5258 = vmatpush1.bf16.msra.mxu0 0
        %5259 = vmatprep.subr.bf16.mxu0 0
        %5260 = vmatpush1.bf16.msra.mxu0 0
        %5261 = vmatprep.subr.bf16.mxu0 0
        %5262 = vmatpush1.bf16.msra.mxu0 0
        %5263 = vmatprep.subr.bf16.mxu0 0
        %5264 = vmatpush1.bf16.msra.mxu0 0
        %5265 = vmatprep.subr.bf16.mxu0 0
        %5266 = vmatpush1.bf16.msra.mxu0 0
        %5267 = vmatprep.subr.bf16.mxu0 0
        %5268 = vmatpush1.bf16.msra.mxu0 0
        %5269 = vmatprep.subr.bf16.mxu0 0
        %5270 = vmatpush1.bf16.msra.mxu0 0
        %5271 = vmatprep.subr.bf16.mxu0 0
        %5272 = vmatpush1.bf16.msra.mxu0 0
        %5273 = vmatprep.subr.bf16.mxu0 0
        %5274 = vmatpush1.bf16.msra.mxu0 0
        %5275 = vmatprep.subr.bf16.mxu0 0
        %5276 = vmatpush1.bf16.msra.mxu0 0
        %5277 = vmatprep.subr.bf16.mxu0 0
        %5278 = vmatpush1.bf16.msra.mxu0 0
        %5279 = vmatprep.subr.bf16.mxu0 0
        %5280 = vmatpush1.bf16.msra.mxu0 0
        %5281 = vmatprep.subr.bf16.mxu0 0
        %5282 = vmatpush1.bf16.msra.mxu0 0
        %5283 = vmatprep.subr.bf16.mxu0 0
        %5284 = vmatpush1.bf16.msra.mxu0 0
        %5285 = vmatprep.subr.bf16.mxu0 0
        %5286 = vmatpush1.bf16.msra.mxu0 0
        %5287 = vmatprep.mubr.bf16.mxu0 0
        %5288 = vmatmul.mubr.bf16.gmra.mrb[0].mxu0 %v5253
        %v5289 = vpop.f32.mrb[0].mxu0
        %v5290 = vadd.f32 0.0, %v5289
        %v5291 = vpop.f32.mrb[0].mxu0
        %v5292 = vpop.f32.mrb[0].mxu0
        %v5293 = vadd.f32 0.0, %v5292
        %v5294 = vpop.f32.mrb[0].mxu0
        %5295 = vdwg.mxu0
        %v5297 = vsel %vm4031, %v4748, 0
        %5299 = vmatprep.subr.bf16.mxu0 0
        %5300 = vmatpush1.bf16.msra.mxu0 %v2442
        %5301 = vmatprep.subr.bf16.mxu0 0
        %5302 = vmatpush1.bf16.msra.mxu0 0
        %5303 = vmatprep.subr.bf16.mxu0 0
        %5304 = vmatpush1.bf16.msra.mxu0 0
        %5305 = vmatprep.subr.bf16.mxu0 0
        %5306 = vmatpush1.bf16.msra.mxu0 0
        %5307 = vmatprep.subr.bf16.mxu0 0
        %5308 = vmatpush1.bf16.msra.mxu0 0
        %5309 = vmatprep.subr.bf16.mxu0 0
        %5310 = vmatpush1.bf16.msra.mxu0 0
        %5311 = vmatprep.subr.bf16.mxu0 0
        %5312 = vmatpush1.bf16.msra.mxu0 0
        %5313 = vmatprep.subr.bf16.mxu0 0
        %5314 = vmatpush1.bf16.msra.mxu0 0
        %5315 = vmatprep.subr.bf16.mxu0 0
        %5316 = vmatpush1.bf16.msra.mxu0 0
        %5317 = vmatprep.subr.bf16.mxu0 0
        %5318 = vmatpush1.bf16.msra.mxu0 0
        %5319 = vmatprep.subr.bf16.mxu0 0
        %5320 = vmatpush1.bf16.msra.mxu0 0
        %5321 = vmatprep.subr.bf16.mxu0 0
        %5322 = vmatpush1.bf16.msra.mxu0 0
        %5323 = vmatprep.subr.bf16.mxu0 0
        %5324 = vmatpush1.bf16.msra.mxu0 0
        %5325 = vmatprep.subr.bf16.mxu0 0
        %5326 = vmatpush1.bf16.msra.mxu0 0
        %5327 = vmatprep.subr.bf16.mxu0 0
        %5328 = vmatpush1.bf16.msra.mxu0 0
        %5329 = vmatprep.subr.bf16.mxu0 0
        %5330 = vmatpush1.bf16.msra.mxu0 0
        %5331 = vmatprep.mubr.bf16.mxu0 0
        %5332 = vmatmul.mubr.bf16.gmra.mrb[0].mxu0 %v5297
        %v5333 = vpop.f32.mrb[0].mxu0
        %v5334 = vadd.f32 0.0, %v5333
        %v5335 = vpop.f32.mrb[0].mxu0
        %v5336 = vpop.f32.mrb[0].mxu0
        %v5337 = vadd.f32 0.0, %v5336
        %v5338 = vpop.f32.mrb[0].mxu0
        %5339 = vdwg.mxu0
        %v5341 = vsel %vm4031, %v4749, 0
        %5343 = vmatprep.subr.bf16.mxu0 0
        %5344 = vmatpush1.bf16.msra.mxu0 %v2443
        %5345 = vmatprep.subr.bf16.mxu0 0
        %5346 = vmatpush1.bf16.msra.mxu0 0
        %5347 = vmatprep.subr.bf16.mxu0 0
        %5348 = vmatpush1.bf16.msra.mxu0 0
        %5349 = vmatprep.subr.bf16.mxu0 0
        %5350 = vmatpush1.bf16.msra.mxu0 0
        %5351 = vmatprep.subr.bf16.mxu0 0
        %5352 = vmatpush1.bf16.msra.mxu0 0
        %5353 = vmatprep.subr.bf16.mxu0 0
        %5354 = vmatpush1.bf16.msra.mxu0 0
        %5355 = vmatprep.subr.bf16.mxu0 0
        %5356 = vmatpush1.bf16.msra.mxu0 0
        %5357 = vmatprep.subr.bf16.mxu0 0
        %5358 = vmatpush1.bf16.msra.mxu0 0
        %5359 = vmatprep.subr.bf16.mxu0 0
        %5360 = vmatpush1.bf16.msra.mxu0 0
        %5361 = vmatprep.subr.bf16.mxu0 0
        %5362 = vmatpush1.bf16.msra.mxu0 0
        %5363 = vmatprep.subr.bf16.mxu0 0
        %5364 = vmatpush1.bf16.msra.mxu0 0
        %5365 = vmatprep.subr.bf16.mxu0 0
        %5366 = vmatpush1.bf16.msra.mxu0 0
        %5367 = vmatprep.subr.bf16.mxu0 0
        %5368 = vmatpush1.bf16.msra.mxu0 0
        %5369 = vmatprep.subr.bf16.mxu0 0
        %5370 = vmatpush1.bf16.msra.mxu0 0
        %5371 = vmatprep.subr.bf16.mxu0 0
        %5372 = vmatpush1.bf16.msra.mxu0 0
        %5373 = vmatprep.subr.bf16.mxu0 0
        %5374 = vmatpush1.bf16.msra.mxu0 0
        %5375 = vmatprep.mubr.bf16.mxu0 0
        %5376 = vmatmul.mubr.bf16.gmra.mrb[0].mxu0 %v5341
        %v5377 = vpop.f32.mrb[0].mxu0
        %v5378 = vadd.f32 0.0, %v5377
        %v5379 = vpop.f32.mrb[0].mxu0
        %v5380 = vpop.f32.mrb[0].mxu0
        %v5381 = vadd.f32 0.0, %v5380
        %v5382 = vpop.f32.mrb[0].mxu0
        %5383 = vdwg.mxu0
        %v5385 = vsel %vm4031, %v4750, 0
        %5387 = vmatprep.subr.bf16.mxu0 0
        %5388 = vmatpush1.bf16.msra.mxu0 %v2444
        %5389 = vmatprep.subr.bf16.mxu0 0
        %5390 = vmatpush1.bf16.msra.mxu0 0
        %5391 = vmatprep.subr.bf16.mxu0 0
        %5392 = vmatpush1.bf16.msra.mxu0 0
        %5393 = vmatprep.subr.bf16.mxu0 0
        %5394 = vmatpush1.bf16.msra.mxu0 0
        %5395 = vmatprep.subr.bf16.mxu0 0
        %5396 = vmatpush1.bf16.msra.mxu0 0
        %5397 = vmatprep.subr.bf16.mxu0 0
        %5398 = vmatpush1.bf16.msra.mxu0 0
        %5399 = vmatprep.subr.bf16.mxu0 0
        %5400 = vmatpush1.bf16.msra.mxu0 0
        %5401 = vmatprep.subr.bf16.mxu0 0
        %5402 = vmatpush1.bf16.msra.mxu0 0
        %5403 = vmatprep.subr.bf16.mxu0 0
        %5404 = vmatpush1.bf16.msra.mxu0 0
        %5405 = vmatprep.subr.bf16.mxu0 0
        %5406 = vmatpush1.bf16.msra.mxu0 0
        %5407 = vmatprep.subr.bf16.mxu0 0
        %5408 = vmatpush1.bf16.msra.mxu0 0
        %5409 = vmatprep.subr.bf16.mxu0 0
        %5410 = vmatpush1.bf16.msra.mxu0 0
        %5411 = vmatprep.subr.bf16.mxu0 0
        %5412 = vmatpush1.bf16.msra.mxu0 0
        %5413 = vmatprep.subr.bf16.mxu0 0
        %5414 = vmatpush1.bf16.msra.mxu0 0
        %5415 = vmatprep.subr.bf16.mxu0 0
        %5416 = vmatpush1.bf16.msra.mxu0 0
        %5417 = vmatprep.subr.bf16.mxu0 0
        %5418 = vmatpush1.bf16.msra.mxu0 0
        %5419 = vmatprep.mubr.bf16.mxu0 0
        %5420 = vmatmul.mubr.bf16.gmra.mrb[0].mxu0 %v5385
        %v5421 = vpop.f32.mrb[0].mxu0
        %v5422 = vadd.f32 0.0, %v5421
        %v5423 = vpop.f32.mrb[0].mxu0
        %v5424 = vpop.f32.mrb[0].mxu0
        %v5425 = vadd.f32 0.0, %v5424
        %v5426 = vpop.f32.mrb[0].mxu0
        %5427 = vdwg.mxu0
        %v5429 = vsel %vm4031, %v4751, 0
        %5431 = vmatprep.subr.bf16.mxu0 0
        %5432 = vmatpush1.bf16.msra.mxu0 %v2445
        %5433 = vmatprep.subr.bf16.mxu0 0
        %5434 = vmatpush1.bf16.msra.mxu0 0
        %5435 = vmatprep.subr.bf16.mxu0 0
        %5436 = vmatpush1.bf16.msra.mxu0 0
        %5437 = vmatprep.subr.bf16.mxu0 0
        %5438 = vmatpush1.bf16.msra.mxu0 0
        %5439 = vmatprep.subr.bf16.mxu0 0
        %5440 = vmatpush1.bf16.msra.mxu0 0
        %5441 = vmatprep.subr.bf16.mxu0 0
        %5442 = vmatpush1.bf16.msra.mxu0 0
        %5443 = vmatprep.subr.bf16.mxu0 0
        %5444 = vmatpush1.bf16.msra.mxu0 0
        %5445 = vmatprep.subr.bf16.mxu0 0
        %5446 = vmatpush1.bf16.msra.mxu0 0
        %5447 = vmatprep.subr.bf16.mxu0 0
        %5448 = vmatpush1.bf16.msra.mxu0 0
        %5449 = vmatprep.subr.bf16.mxu0 0
        %5450 = vmatpush1.bf16.msra.mxu0 0
        %5451 = vmatprep.subr.bf16.mxu0 0
        %5452 = vmatpush1.bf16.msra.mxu0 0
        %5453 = vmatprep.subr.bf16.mxu0 0
        %5454 = vmatpush1.bf16.msra.mxu0 0
        %5455 = vmatprep.subr.bf16.mxu0 0
        %5456 = vmatpush1.bf16.msra.mxu0 0
        %5457 = vmatprep.subr.bf16.mxu0 0
        %5458 = vmatpush1.bf16.msra.mxu0 0
        %5459 = vmatprep.subr.bf16.mxu0 0
        %5460 = vmatpush1.bf16.msra.mxu0 0
        %5461 = vmatprep.subr.bf16.mxu0 0
        %5462 = vmatpush1.bf16.msra.mxu0 0
        %5463 = vmatprep.mubr.bf16.mxu0 0
        %5464 = vmatmul.mubr.bf16.gmra.mrb[0].mxu0 %v5429
        %v5465 = vpop.f32.mrb[0].mxu0
        %v5466 = vadd.f32 0.0, %v5465
        %v5467 = vpop.f32.mrb[0].mxu0
        %v5468 = vpop.f32.mrb[0].mxu0
        %v5469 = vadd.f32 0.0, %v5468
        %v5470 = vpop.f32.mrb[0].mxu0
        %5471 = vdwg.mxu0
        %v5473 = vsel %vm4031, %v4752, 0
        %5475 = vmatprep.subr.bf16.mxu0 0
        %5476 = vmatpush1.bf16.msra.mxu0 %v2446
        %5477 = vmatprep.subr.bf16.mxu0 0
        %5478 = vmatpush1.bf16.msra.mxu0 0
        %5479 = vmatprep.subr.bf16.mxu0 0
        %5480 = vmatpush1.bf16.msra.mxu0 0
        %5481 = vmatprep.subr.bf16.mxu0 0
        %5482 = vmatpush1.bf16.msra.mxu0 0
        %5483 = vmatprep.subr.bf16.mxu0 0
        %5484 = vmatpush1.bf16.msra.mxu0 0
        %5485 = vmatprep.subr.bf16.mxu0 0
        %5486 = vmatpush1.bf16.msra.mxu0 0
        %5487 = vmatprep.subr.bf16.mxu0 0
        %5488 = vmatpush1.bf16.msra.mxu0 0
        %5489 = vmatprep.subr.bf16.mxu0 0
        %5490 = vmatpush1.bf16.msra.mxu0 0
        %5491 = vmatprep.subr.bf16.mxu0 0
        %5492 = vmatpush1.bf16.msra.mxu0 0
        %5493 = vmatprep.subr.bf16.mxu0 0
        %5494 = vmatpush1.bf16.msra.mxu0 0
        %5495 = vmatprep.subr.bf16.mxu0 0
        %5496 = vmatpush1.bf16.msra.mxu0 0
        %5497 = vmatprep.subr.bf16.mxu0 0
        %5498 = vmatpush1.bf16.msra.mxu0 0
        %5499 = vmatprep.subr.bf16.mxu0 0
        %5500 = vmatpush1.bf16.msra.mxu0 0
        %5501 = vmatprep.subr.bf16.mxu0 0
        %5502 = vmatpush1.bf16.msra.mxu0 0
        %5503 = vmatprep.subr.bf16.mxu0 0
        %5504 = vmatpush1.bf16.msra.mxu0 0
        %5505 = vmatprep.subr.bf16.mxu0 0
        %5506 = vmatpush1.bf16.msra.mxu0 0
        %5507 = vmatprep.mubr.bf16.mxu0 0
        %5508 = vmatmul.mubr.bf16.gmra.mrb[0].mxu0 %v5473
        %v5509 = vpop.f32.mrb[0].mxu0
        %v5510 = vadd.f32 0.0, %v5509
        %v5511 = vpop.f32.mrb[0].mxu0
        %v5512 = vpop.f32.mrb[0].mxu0
        %v5513 = vadd.f32 0.0, %v5512
        %v5514 = vpop.f32.mrb[0].mxu0
        %5515 = vdwg.mxu0
        %v5517 = vsel %vm4031, %v4753, 0
        %5519 = vmatprep.subr.bf16.mxu0 0
        %5520 = vmatpush1.bf16.msra.mxu0 %v2447
        %5521 = vmatprep.subr.bf16.mxu0 0
        %5522 = vmatpush1.bf16.msra.mxu0 0
        %5523 = vmatprep.subr.bf16.mxu0 0
        %5524 = vmatpush1.bf16.msra.mxu0 0
        %5525 = vmatprep.subr.bf16.mxu0 0
        %5526 = vmatpush1.bf16.msra.mxu0 0
        %5527 = vmatprep.subr.bf16.mxu0 0
        %5528 = vmatpush1.bf16.msra.mxu0 0
        %5529 = vmatprep.subr.bf16.mxu0 0
        %5530 = vmatpush1.bf16.msra.mxu0 0
        %5531 = vmatprep.subr.bf16.mxu0 0
        %5532 = vmatpush1.bf16.msra.mxu0 0
        %5533 = vmatprep.subr.bf16.mxu0 0
        %5534 = vmatpush1.bf16.msra.mxu0 0
        %5535 = vmatprep.subr.bf16.mxu0 0
        %5536 = vmatpush1.bf16.msra.mxu0 0
        %5537 = vmatprep.subr.bf16.mxu0 0
        %5538 = vmatpush1.bf16.msra.mxu0 0
        %5539 = vmatprep.subr.bf16.mxu0 0
        %5540 = vmatpush1.bf16.msra.mxu0 0
        %5541 = vmatprep.subr.bf16.mxu0 0
        %5542 = vmatpush1.bf16.msra.mxu0 0
        %5543 = vmatprep.subr.bf16.mxu0 0
        %5544 = vmatpush1.bf16.msra.mxu0 0
        %5545 = vmatprep.subr.bf16.mxu0 0
        %5546 = vmatpush1.bf16.msra.mxu0 0
        %5547 = vmatprep.subr.bf16.mxu0 0
        %5548 = vmatpush1.bf16.msra.mxu0 0
        %5549 = vmatprep.subr.bf16.mxu0 0
        %5550 = vmatpush1.bf16.msra.mxu0 0
        %5551 = vmatprep.mubr.bf16.mxu0 0
        %5552 = vmatmul.mubr.bf16.gmra.mrb[0].mxu0 %v5517
        %v5553 = vpop.f32.mrb[0].mxu0
        %v5554 = vadd.f32 0.0, %v5553
        %v5555 = vpop.f32.mrb[0].mxu0
        %v5556 = vpop.f32.mrb[0].mxu0
        %v5557 = vadd.f32 0.0, %v5556
        %v5558 = vpop.f32.mrb[0].mxu0
        %5559 = vdwg.mxu0
        %v5561 = vsel %vm4031, %v4754, 0
        %5563 = vmatprep.subr.bf16.mxu0 0
        %5564 = vmatpush1.bf16.msra.mxu0 %v2448
        %5565 = vmatprep.subr.bf16.mxu0 0
        %5566 = vmatpush1.bf16.msra.mxu0 0
        %5567 = vmatprep.subr.bf16.mxu0 0
        %5568 = vmatpush1.bf16.msra.mxu0 0
        %5569 = vmatprep.subr.bf16.mxu0 0
        %5570 = vmatpush1.bf16.msra.mxu0 0
        %5571 = vmatprep.subr.bf16.mxu0 0
        %5572 = vmatpush1.bf16.msra.mxu0 0
        %5573 = vmatprep.subr.bf16.mxu0 0
        %5574 = vmatpush1.bf16.msra.mxu0 0
        %5575 = vmatprep.subr.bf16.mxu0 0
        %5576 = vmatpush1.bf16.msra.mxu0 0
        %5577 = vmatprep.subr.bf16.mxu0 0
        %5578 = vmatpush1.bf16.msra.mxu0 0
        %5579 = vmatprep.subr.bf16.mxu0 0
        %5580 = vmatpush1.bf16.msra.mxu0 0
        %5581 = vmatprep.subr.bf16.mxu0 0
        %5582 = vmatpush1.bf16.msra.mxu0 0
        %5583 = vmatprep.subr.bf16.mxu0 0
        %5584 = vmatpush1.bf16.msra.mxu0 0
        %5585 = vmatprep.subr.bf16.mxu0 0
        %5586 = vmatpush1.bf16.msra.mxu0 0
        %5587 = vmatprep.subr.bf16.mxu0 0
        %5588 = vmatpush1.bf16.msra.mxu0 0
        %5589 = vmatprep.subr.bf16.mxu0 0
        %5590 = vmatpush1.bf16.msra.mxu0 0
        %5591 = vmatprep.subr.bf16.mxu0 0
        %5592 = vmatpush1.bf16.msra.mxu0 0
        %5593 = vmatprep.subr.bf16.mxu0 0
        %5594 = vmatpush1.bf16.msra.mxu0 0
        %5595 = vmatprep.mubr.bf16.mxu0 0
        %5596 = vmatmul.mubr.bf16.gmra.mrb[0].mxu0 %v5561
        %v5597 = vpop.f32.mrb[0].mxu0
        %v5598 = vadd.f32 0.0, %v5597
        %v5599 = vpop.f32.mrb[0].mxu0
        %v5600 = vpop.f32.mrb[0].mxu0
        %v5601 = vadd.f32 0.0, %v5600
        %v5602 = vpop.f32.mrb[0].mxu0
        %5603 = vdwg.mxu0
        %v5605 = vsel %vm4031, %v4755, 0
        %5607 = vmatprep.subr.bf16.mxu0 0
        %5608 = vmatpush1.bf16.msra.mxu0 %v2449
        %5609 = vmatprep.subr.bf16.mxu0 0
        %5610 = vmatpush1.bf16.msra.mxu0 0
        %5611 = vmatprep.subr.bf16.mxu0 0
        %5612 = vmatpush1.bf16.msra.mxu0 0
        %5613 = vmatprep.subr.bf16.mxu0 0
        %5614 = vmatpush1.bf16.msra.mxu0 0
        %5615 = vmatprep.subr.bf16.mxu0 0
        %5616 = vmatpush1.bf16.msra.mxu0 0
        %5617 = vmatprep.subr.bf16.mxu0 0
        %5618 = vmatpush1.bf16.msra.mxu0 0
        %5619 = vmatprep.subr.bf16.mxu0 0
        %5620 = vmatpush1.bf16.msra.mxu0 0
        %5621 = vmatprep.subr.bf16.mxu0 0
        %5622 = vmatpush1.bf16.msra.mxu0 0
        %5623 = vmatprep.subr.bf16.mxu0 0
        %5624 = vmatpush1.bf16.msra.mxu0 0
        %5625 = vmatprep.subr.bf16.mxu0 0
        %5626 = vmatpush1.bf16.msra.mxu0 0
        %5627 = vmatprep.subr.bf16.mxu0 0
        %5628 = vmatpush1.bf16.msra.mxu0 0
        %5629 = vmatprep.subr.bf16.mxu0 0
        %5630 = vmatpush1.bf16.msra.mxu0 0
        %5631 = vmatprep.subr.bf16.mxu0 0
        %5632 = vmatpush1.bf16.msra.mxu0 0
        %5633 = vmatprep.subr.bf16.mxu0 0
        %5634 = vmatpush1.bf16.msra.mxu0 0
        %5635 = vmatprep.subr.bf16.mxu0 0
        %5636 = vmatpush1.bf16.msra.mxu0 0
        %5637 = vmatprep.subr.bf16.mxu0 0
        %5638 = vmatpush1.bf16.msra.mxu0 0
        %5639 = vmatprep.mubr.bf16.mxu0 0
        %5640 = vmatmul.mubr.bf16.gmra.mrb[0].mxu0 %v5605
        %v5641 = vpop.f32.mrb[0].mxu0
        %v5642 = vadd.f32 0.0, %v5641
        %v5643 = vpop.f32.mrb[0].mxu0
        %v5644 = vpop.f32.mrb[0].mxu0
        %v5645 = vadd.f32 0.0, %v5644
        %v5646 = vpop.f32.mrb[0].mxu0
        %5647 = vdwg.mxu0
        %v5649 = vsel %vm4031, %v4756, 0
        %5651 = vmatprep.subr.bf16.mxu0 0
        %5652 = vmatpush1.bf16.msra.mxu0 %v2450
        %5653 = vmatprep.subr.bf16.mxu0 0
        %5654 = vmatpush1.bf16.msra.mxu0 0
        %5655 = vmatprep.subr.bf16.mxu0 0
        %5656 = vmatpush1.bf16.msra.mxu0 0
        %5657 = vmatprep.subr.bf16.mxu0 0
        %5658 = vmatpush1.bf16.msra.mxu0 0
        %5659 = vmatprep.subr.bf16.mxu0 0
        %5660 = vmatpush1.bf16.msra.mxu0 0
        %5661 = vmatprep.subr.bf16.mxu0 0
        %5662 = vmatpush1.bf16.msra.mxu0 0
        %5663 = vmatprep.subr.bf16.mxu0 0
        %5664 = vmatpush1.bf16.msra.mxu0 0
        %5665 = vmatprep.subr.bf16.mxu0 0
        %5666 = vmatpush1.bf16.msra.mxu0 0
        %5667 = vmatprep.subr.bf16.mxu0 0
        %5668 = vmatpush1.bf16.msra.mxu0 0
        %5669 = vmatprep.subr.bf16.mxu0 0
        %5670 = vmatpush1.bf16.msra.mxu0 0
        %5671 = vmatprep.subr.bf16.mxu0 0
        %5672 = vmatpush1.bf16.msra.mxu0 0
        %5673 = vmatprep.subr.bf16.mxu0 0
        %5674 = vmatpush1.bf16.msra.mxu0 0
        %5675 = vmatprep.subr.bf16.mxu0 0
        %5676 = vmatpush1.bf16.msra.mxu0 0
        %5677 = vmatprep.subr.bf16.mxu0 0
        %5678 = vmatpush1.bf16.msra.mxu0 0
        %5679 = vmatprep.subr.bf16.mxu0 0
        %5680 = vmatpush1.bf16.msra.mxu0 0
        %5681 = vmatprep.subr.bf16.mxu0 0
        %5682 = vmatpush1.bf16.msra.mxu0 0
        %5683 = vmatprep.mubr.bf16.mxu0 0
        %5684 = vmatmul.mubr.bf16.gmra.mrb[0].mxu0 %v5649
        %v5685 = vpop.f32.mrb[0].mxu0
        %v5686 = vadd.f32 0.0, %v5685
        %v5687 = vpop.f32.mrb[0].mxu0
        %v5688 = vpop.f32.mrb[0].mxu0
        %v5689 = vadd.f32 0.0, %v5688
        %v5690 = vpop.f32.mrb[0].mxu0
        %5691 = vdwg.mxu0
        %v5693 = vsel %vm4031, %v4757, 0
        %5695 = vmatprep.subr.bf16.mxu0 0
        %5696 = vmatpush1.bf16.msra.mxu0 %v2451
        %5697 = vmatprep.subr.bf16.mxu0 0
        %5698 = vmatpush1.bf16.msra.mxu0 0
        %5699 = vmatprep.subr.bf16.mxu0 0
        %5700 = vmatpush1.bf16.msra.mxu0 0
        %5701 = vmatprep.subr.bf16.mxu0 0
        %5702 = vmatpush1.bf16.msra.mxu0 0
        %5703 = vmatprep.subr.bf16.mxu0 0
        %5704 = vmatpush1.bf16.msra.mxu0 0
        %5705 = vmatprep.subr.bf16.mxu0 0
        %5706 = vmatpush1.bf16.msra.mxu0 0
        %5707 = vmatprep.subr.bf16.mxu0 0
        %5708 = vmatpush1.bf16.msra.mxu0 0
        %5709 = vmatprep.subr.bf16.mxu0 0
        %5710 = vmatpush1.bf16.msra.mxu0 0
        %5711 = vmatprep.subr.bf16.mxu0 0
        %5712 = vmatpush1.bf16.msra.mxu0 0
        %5713 = vmatprep.subr.bf16.mxu0 0
        %5714 = vmatpush1.bf16.msra.mxu0 0
        %5715 = vmatprep.subr.bf16.mxu0 0
        %5716 = vmatpush1.bf16.msra.mxu0 0
        %5717 = vmatprep.subr.bf16.mxu0 0
        %5718 = vmatpush1.bf16.msra.mxu0 0
        %5719 = vmatprep.subr.bf16.mxu0 0
        %5720 = vmatpush1.bf16.msra.mxu0 0
        %5721 = vmatprep.subr.bf16.mxu0 0
        %5722 = vmatpush1.bf16.msra.mxu0 0
        %5723 = vmatprep.subr.bf16.mxu0 0
        %5724 = vmatpush1.bf16.msra.mxu0 0
        %5725 = vmatprep.subr.bf16.mxu0 0
        %5726 = vmatpush1.bf16.msra.mxu0 0
        %5727 = vmatprep.mubr.bf16.mxu0 0
        %5728 = vmatmul.mubr.bf16.gmra.mrb[0].mxu0 %v5693
        %v5729 = vpop.f32.mrb[0].mxu0
        %v5730 = vadd.f32 0.0, %v5729
        %v5731 = vpop.f32.mrb[0].mxu0
        %v5732 = vpop.f32.mrb[0].mxu0
        %v5733 = vadd.f32 0.0, %v5732
        %v5734 = vpop.f32.mrb[0].mxu0
        %5735 = vdwg.mxu0
        %v5737 = vsel %vm4031, %v4758, 0
        %5739 = vmatprep.subr.bf16.mxu0 0
        %5740 = vmatpush1.bf16.msra.mxu0 %v2452
        %5741 = vmatprep.subr.bf16.mxu0 0
        %5742 = vmatpush1.bf16.msra.mxu0 0
        %5743 = vmatprep.subr.bf16.mxu0 0
        %5744 = vmatpush1.bf16.msra.mxu0 0
        %5745 = vmatprep.subr.bf16.mxu0 0
        %5746 = vmatpush1.bf16.msra.mxu0 0
        %5747 = vmatprep.subr.bf16.mxu0 0
        %5748 = vmatpush1.bf16.msra.mxu0 0
        %5749 = vmatprep.subr.bf16.mxu0 0
        %5750 = vmatpush1.bf16.msra.mxu0 0
        %5751 = vmatprep.subr.bf16.mxu0 0
        %5752 = vmatpush1.bf16.msra.mxu0 0
        %5753 = vmatprep.subr.bf16.mxu0 0
        %5754 = vmatpush1.bf16.msra.mxu0 0
        %5755 = vmatprep.subr.bf16.mxu0 0
        %5756 = vmatpush1.bf16.msra.mxu0 0
        %5757 = vmatprep.subr.bf16.mxu0 0
        %5758 = vmatpush1.bf16.msra.mxu0 0
        %5759 = vmatprep.subr.bf16.mxu0 0
        %5760 = vmatpush1.bf16.msra.mxu0 0
        %5761 = vmatprep.subr.bf16.mxu0 0
        %5762 = vmatpush1.bf16.msra.mxu0 0
        %5763 = vmatprep.subr.bf16.mxu0 0
        %5764 = vmatpush1.bf16.msra.mxu0 0
        %5765 = vmatprep.subr.bf16.mxu0 0
        %5766 = vmatpush1.bf16.msra.mxu0 0
        %5767 = vmatprep.subr.bf16.mxu0 0
        %5768 = vmatpush1.bf16.msra.mxu0 0
        %5769 = vmatprep.subr.bf16.mxu0 0
        %5770 = vmatpush1.bf16.msra.mxu0 0
        %5771 = vmatprep.mubr.bf16.mxu0 0
        %5772 = vmatmul.mubr.bf16.gmra.mrb[0].mxu0 %v5737
        %v5773 = vpop.f32.mrb[0].mxu0
        %v5774 = vadd.f32 0.0, %v5773
        %v5775 = vpop.f32.mrb[0].mxu0
        %v5776 = vpop.f32.mrb[0].mxu0
        %v5777 = vadd.f32 0.0, %v5776
        %v5778 = vpop.f32.mrb[0].mxu0
        %5779 = vdwg.mxu0
        %v5781 = vsel %vm4031, %v4759, 0
        %5783 = vmatprep.subr.bf16.mxu0 0
        %5784 = vmatpush1.bf16.msra.mxu0 %v2453
        %5785 = vmatprep.subr.bf16.mxu0 0
        %5786 = vmatpush1.bf16.msra.mxu0 0
        %5787 = vmatprep.subr.bf16.mxu0 0
        %5788 = vmatpush1.bf16.msra.mxu0 0
        %5789 = vmatprep.subr.bf16.mxu0 0
        %5790 = vmatpush1.bf16.msra.mxu0 0
        %5791 = vmatprep.subr.bf16.mxu0 0
        %5792 = vmatpush1.bf16.msra.mxu0 0
        %5793 = vmatprep.subr.bf16.mxu0 0
        %5794 = vmatpush1.bf16.msra.mxu0 0
        %5795 = vmatprep.subr.bf16.mxu0 0
        %5796 = vmatpush1.bf16.msra.mxu0 0
        %5797 = vmatprep.subr.bf16.mxu0 0
        %5798 = vmatpush1.bf16.msra.mxu0 0
        %5799 = vmatprep.subr.bf16.mxu0 0
        %5800 = vmatpush1.bf16.msra.mxu0 0
        %5801 = vmatprep.subr.bf16.mxu0 0
        %5802 = vmatpush1.bf16.msra.mxu0 0
        %5803 = vmatprep.subr.bf16.mxu0 0
        %5804 = vmatpush1.bf16.msra.mxu0 0
        %5805 = vmatprep.subr.bf16.mxu0 0
        %5806 = vmatpush1.bf16.msra.mxu0 0
        %5807 = vmatprep.subr.bf16.mxu0 0
        %5808 = vmatpush1.bf16.msra.mxu0 0
        %5809 = vmatprep.subr.bf16.mxu0 0
        %5810 = vmatpush1.bf16.msra.mxu0 0
        %5811 = vmatprep.subr.bf16.mxu0 0
        %5812 = vmatpush1.bf16.msra.mxu0 0
        %5813 = vmatprep.subr.bf16.mxu0 0
        %5814 = vmatpush1.bf16.msra.mxu0 0
        %5815 = vmatprep.mubr.bf16.mxu0 0
        %5816 = vmatmul.mubr.bf16.gmra.mrb[0].mxu0 %v5781
        %v5817 = vpop.f32.mrb[0].mxu0
        %v5818 = vadd.f32 0.0, %v5817
        %v5819 = vpop.f32.mrb[0].mxu0
        %v5820 = vpop.f32.mrb[0].mxu0
        %v5821 = vadd.f32 0.0, %v5820
        %v5822 = vpop.f32.mrb[0].mxu0
        %5823 = vdwg.mxu0
        %v5825 = vsel %vm4031, %v4760, 0
        %5827 = vmatprep.subr.bf16.mxu0 0
        %5828 = vmatpush1.bf16.msra.mxu0 %v2454
        %5829 = vmatprep.subr.bf16.mxu0 0
        %5830 = vmatpush1.bf16.msra.mxu0 0
        %5831 = vmatprep.subr.bf16.mxu0 0
        %5832 = vmatpush1.bf16.msra.mxu0 0
        %5833 = vmatprep.subr.bf16.mxu0 0
        %5834 = vmatpush1.bf16.msra.mxu0 0
        %5835 = vmatprep.subr.bf16.mxu0 0
        %5836 = vmatpush1.bf16.msra.mxu0 0
        %5837 = vmatprep.subr.bf16.mxu0 0
        %5838 = vmatpush1.bf16.msra.mxu0 0
        %5839 = vmatprep.subr.bf16.mxu0 0
        %5840 = vmatpush1.bf16.msra.mxu0 0
        %5841 = vmatprep.subr.bf16.mxu0 0
        %5842 = vmatpush1.bf16.msra.mxu0 0
        %5843 = vmatprep.subr.bf16.mxu0 0
        %5844 = vmatpush1.bf16.msra.mxu0 0
        %5845 = vmatprep.subr.bf16.mxu0 0
        %5846 = vmatpush1.bf16.msra.mxu0 0
        %5847 = vmatprep.subr.bf16.mxu0 0
        %5848 = vmatpush1.bf16.msra.mxu0 0
        %5849 = vmatprep.subr.bf16.mxu0 0
        %5850 = vmatpush1.bf16.msra.mxu0 0
        %5851 = vmatprep.subr.bf16.mxu0 0
        %5852 = vmatpush1.bf16.msra.mxu0 0
        %5853 = vmatprep.subr.bf16.mxu0 0
        %5854 = vmatpush1.bf16.msra.mxu0 0
        %5855 = vmatprep.subr.bf16.mxu0 0
        %5856 = vmatpush1.bf16.msra.mxu0 0
        %5857 = vmatprep.subr.bf16.mxu0 0
        %5858 = vmatpush1.bf16.msra.mxu0 0
        %5859 = vmatprep.mubr.bf16.mxu0 0
        %5860 = vmatmul.mubr.bf16.gmra.mrb[0].mxu0 %v5825
        %v5861 = vpop.f32.mrb[0].mxu0
        %v5862 = vadd.f32 0.0, %v5861
        %v5863 = vpop.f32.mrb[0].mxu0
        %v5864 = vpop.f32.mrb[0].mxu0
        %v5865 = vadd.f32 0.0, %v5864
        %v5866 = vpop.f32.mrb[0].mxu0
        %5867 = vdwg.mxu0
        %v5869 = vsel %vm4031, %v4761, 0
        %5871 = vmatprep.subr.bf16.mxu0 0
        %5872 = vmatpush1.bf16.msra.mxu0 %v2455
        %5873 = vmatprep.subr.bf16.mxu0 0
        %5874 = vmatpush1.bf16.msra.mxu0 0
        %5875 = vmatprep.subr.bf16.mxu0 0
        %5876 = vmatpush1.bf16.msra.mxu0 0
        %5877 = vmatprep.subr.bf16.mxu0 0
        %5878 = vmatpush1.bf16.msra.mxu0 0
        %5879 = vmatprep.subr.bf16.mxu0 0
        %5880 = vmatpush1.bf16.msra.mxu0 0
        %5881 = vmatprep.subr.bf16.mxu0 0
        %5882 = vmatpush1.bf16.msra.mxu0 0
        %5883 = vmatprep.subr.bf16.mxu0 0
        %5884 = vmatpush1.bf16.msra.mxu0 0
        %5885 = vmatprep.subr.bf16.mxu0 0
        %5886 = vmatpush1.bf16.msra.mxu0 0
        %5887 = vmatprep.subr.bf16.mxu0 0
        %5888 = vmatpush1.bf16.msra.mxu0 0
        %5889 = vmatprep.subr.bf16.mxu0 0
        %5890 = vmatpush1.bf16.msra.mxu0 0
        %5891 = vmatprep.subr.bf16.mxu0 0
        %5892 = vmatpush1.bf16.msra.mxu0 0
        %5893 = vmatprep.subr.bf16.mxu0 0
        %5894 = vmatpush1.bf16.msra.mxu0 0
        %5895 = vmatprep.subr.bf16.mxu0 0
        %5896 = vmatpush1.bf16.msra.mxu0 0
        %5897 = vmatprep.subr.bf16.mxu0 0
        %5898 = vmatpush1.bf16.msra.mxu0 0
        %5899 = vmatprep.subr.bf16.mxu0 0
        %5900 = vmatpush1.bf16.msra.mxu0 0
        %5901 = vmatprep.subr.bf16.mxu0 0
        %5902 = vmatpush1.bf16.msra.mxu0 0
        %5903 = vmatprep.mubr.bf16.mxu0 0
        %5904 = vmatmul.mubr.bf16.gmra.mrb[0].mxu0 %v5869
        %v5905 = vpop.f32.mrb[0].mxu0
        %v5906 = vadd.f32 0.0, %v5905
        %v5907 = vpop.f32.mrb[0].mxu0
        %v5908 = vpop.f32.mrb[0].mxu0
        %v5909 = vadd.f32 0.0, %v5908
        %v5910 = vpop.f32.mrb[0].mxu0
        %5911 = vdwg.mxu0
        %v5913 = vsel %vm4031, %v4762, 0
        %5915 = vmatprep.subr.bf16.mxu0 0
        %5916 = vmatpush1.bf16.msra.mxu0 %v2456
        %5917 = vmatprep.subr.bf16.mxu0 0
        %5918 = vmatpush1.bf16.msra.mxu0 0
        %5919 = vmatprep.subr.bf16.mxu0 0
        %5920 = vmatpush1.bf16.msra.mxu0 0
        %5921 = vmatprep.subr.bf16.mxu0 0
        %5922 = vmatpush1.bf16.msra.mxu0 0
        %5923 = vmatprep.subr.bf16.mxu0 0
        %5924 = vmatpush1.bf16.msra.mxu0 0
        %5925 = vmatprep.subr.bf16.mxu0 0
        %5926 = vmatpush1.bf16.msra.mxu0 0
        %5927 = vmatprep.subr.bf16.mxu0 0
        %5928 = vmatpush1.bf16.msra.mxu0 0
        %5929 = vmatprep.subr.bf16.mxu0 0
        %5930 = vmatpush1.bf16.msra.mxu0 0
        %5931 = vmatprep.subr.bf16.mxu0 0
        %5932 = vmatpush1.bf16.msra.mxu0 0
        %5933 = vmatprep.subr.bf16.mxu0 0
        %5934 = vmatpush1.bf16.msra.mxu0 0
        %5935 = vmatprep.subr.bf16.mxu0 0
        %5936 = vmatpush1.bf16.msra.mxu0 0
        %5937 = vmatprep.subr.bf16.mxu0 0
        %5938 = vmatpush1.bf16.msra.mxu0 0
        %5939 = vmatprep.subr.bf16.mxu0 0
        %5940 = vmatpush1.bf16.msra.mxu0 0
        %5941 = vmatprep.subr.bf16.mxu0 0
        %5942 = vmatpush1.bf16.msra.mxu0 0
        %5943 = vmatprep.subr.bf16.mxu0 0
        %5944 = vmatpush1.bf16.msra.mxu0 0
        %5945 = vmatprep.subr.bf16.mxu0 0
        %5946 = vmatpush1.bf16.msra.mxu0 0
        %5947 = vmatprep.mubr.bf16.mxu0 0
        %5948 = vmatmul.mubr.bf16.gmra.mrb[0].mxu0 %v5913
        %v5949 = vpop.f32.mrb[0].mxu0
        %v5950 = vadd.f32 0.0, %v5949
        %v5951 = vpop.f32.mrb[0].mxu0
        %v5952 = vpop.f32.mrb[0].mxu0
        %v5953 = vadd.f32 0.0, %v5952
        %v5954 = vpop.f32.mrb[0].mxu0
        %5955 = vdwg.mxu0
        %v5957 = vsel %vm4031, %v4763, 0
        %5959 = vmatprep.subr.bf16.mxu0 0
        %5960 = vmatpush1.bf16.msra.mxu0 %v2457
        %5961 = vmatprep.subr.bf16.mxu0 0
        %5962 = vmatpush1.bf16.msra.mxu0 0
        %5963 = vmatprep.subr.bf16.mxu0 0
        %5964 = vmatpush1.bf16.msra.mxu0 0
        %5965 = vmatprep.subr.bf16.mxu0 0
        %5966 = vmatpush1.bf16.msra.mxu0 0
        %5967 = vmatprep.subr.bf16.mxu0 0
        %5968 = vmatpush1.bf16.msra.mxu0 0
        %5969 = vmatprep.subr.bf16.mxu0 0
        %5970 = vmatpush1.bf16.msra.mxu0 0
        %5971 = vmatprep.subr.bf16.mxu0 0
        %5972 = vmatpush1.bf16.msra.mxu0 0
        %5973 = vmatprep.subr.bf16.mxu0 0
        %5974 = vmatpush1.bf16.msra.mxu0 0
        %5975 = vmatprep.subr.bf16.mxu0 0
        %5976 = vmatpush1.bf16.msra.mxu0 0
        %5977 = vmatprep.subr.bf16.mxu0 0
        %5978 = vmatpush1.bf16.msra.mxu0 0
        %5979 = vmatprep.subr.bf16.mxu0 0
        %5980 = vmatpush1.bf16.msra.mxu0 0
        %5981 = vmatprep.subr.bf16.mxu0 0
        %5982 = vmatpush1.bf16.msra.mxu0 0
        %5983 = vmatprep.subr.bf16.mxu0 0
        %5984 = vmatpush1.bf16.msra.mxu0 0
        %5985 = vmatprep.subr.bf16.mxu0 0
        %5986 = vmatpush1.bf16.msra.mxu0 0
        %5987 = vmatprep.subr.bf16.mxu0 0
        %5988 = vmatpush1.bf16.msra.mxu0 0
        %5989 = vmatprep.subr.bf16.mxu0 0
        %5990 = vmatpush1.bf16.msra.mxu0 0
        %5991 = vmatprep.mubr.bf16.mxu0 0
        %5992 = vmatmul.mubr.bf16.gmra.mrb[0].mxu0 %v5957
        %v5993 = vpop.f32.mrb[0].mxu0
        %v5994 = vadd.f32 0.0, %v5993
        %v5995 = vpop.f32.mrb[0].mxu0
        %v5996 = vpop.f32.mrb[0].mxu0
        %v5997 = vadd.f32 0.0, %v5996
        %v5998 = vpop.f32.mrb[0].mxu0
        %5999 = vdwg.mxu0
        %v6001 = vsel %vm4031, %v4764, 0
        %6003 = vmatprep.subr.bf16.mxu0 0
        %6004 = vmatpush1.bf16.msra.mxu0 %v2458
        %6005 = vmatprep.subr.bf16.mxu0 0
        %6006 = vmatpush1.bf16.msra.mxu0 0
        %6007 = vmatprep.subr.bf16.mxu0 0
        %6008 = vmatpush1.bf16.msra.mxu0 0
        %6009 = vmatprep.subr.bf16.mxu0 0
        %6010 = vmatpush1.bf16.msra.mxu0 0
        %6011 = vmatprep.subr.bf16.mxu0 0
        %6012 = vmatpush1.bf16.msra.mxu0 0
        %6013 = vmatprep.subr.bf16.mxu0 0
        %6014 = vmatpush1.bf16.msra.mxu0 0
        %6015 = vmatprep.subr.bf16.mxu0 0
        %6016 = vmatpush1.bf16.msra.mxu0 0
        %6017 = vmatprep.subr.bf16.mxu0 0
        %6018 = vmatpush1.bf16.msra.mxu0 0
        %6019 = vmatprep.subr.bf16.mxu0 0
        %6020 = vmatpush1.bf16.msra.mxu0 0
        %6021 = vmatprep.subr.bf16.mxu0 0
        %6022 = vmatpush1.bf16.msra.mxu0 0
        %6023 = vmatprep.subr.bf16.mxu0 0
        %6024 = vmatpush1.bf16.msra.mxu0 0
        %6025 = vmatprep.subr.bf16.mxu0 0
        %6026 = vmatpush1.bf16.msra.mxu0 0
        %6027 = vmatprep.subr.bf16.mxu0 0
        %6028 = vmatpush1.bf16.msra.mxu0 0
        %6029 = vmatprep.subr.bf16.mxu0 0
        %6030 = vmatpush1.bf16.msra.mxu0 0
        %6031 = vmatprep.subr.bf16.mxu0 0
        %6032 = vmatpush1.bf16.msra.mxu0 0
        %6033 = vmatprep.subr.bf16.mxu0 0
        %6034 = vmatpush1.bf16.msra.mxu0 0
        %6035 = vmatprep.mubr.bf16.mxu0 0
        %6036 = vmatmul.mubr.bf16.gmra.mrb[0].mxu0 %v6001
        %v6037 = vpop.f32.mrb[0].mxu0
        %v6038 = vadd.f32 0.0, %v6037
        %v6039 = vpop.f32.mrb[0].mxu0
        %v6040 = vpop.f32.mrb[0].mxu0
        %v6041 = vadd.f32 0.0, %v6040
        %v6042 = vpop.f32.mrb[0].mxu0
        %6043 = vdwg.mxu0
        %v6045 = vsel %vm4031, %v4765, 0
        %6047 = vmatprep.subr.bf16.mxu0 0
        %6048 = vmatpush1.bf16.msra.mxu0 %v2459
        %6049 = vmatprep.subr.bf16.mxu0 0
        %6050 = vmatpush1.bf16.msra.mxu0 0
        %6051 = vmatprep.subr.bf16.mxu0 0
        %6052 = vmatpush1.bf16.msra.mxu0 0
        %6053 = vmatprep.subr.bf16.mxu0 0
        %6054 = vmatpush1.bf16.msra.mxu0 0
        %6055 = vmatprep.subr.bf16.mxu0 0
        %6056 = vmatpush1.bf16.msra.mxu0 0
        %6057 = vmatprep.subr.bf16.mxu0 0
        %6058 = vmatpush1.bf16.msra.mxu0 0
        %6059 = vmatprep.subr.bf16.mxu0 0
        %6060 = vmatpush1.bf16.msra.mxu0 0
        %6061 = vmatprep.subr.bf16.mxu0 0
        %6062 = vmatpush1.bf16.msra.mxu0 0
        %6063 = vmatprep.subr.bf16.mxu0 0
        %6064 = vmatpush1.bf16.msra.mxu0 0
        %6065 = vmatprep.subr.bf16.mxu0 0
        %6066 = vmatpush1.bf16.msra.mxu0 0
        %6067 = vmatprep.subr.bf16.mxu0 0
        %6068 = vmatpush1.bf16.msra.mxu0 0
        %6069 = vmatprep.subr.bf16.mxu0 0
        %6070 = vmatpush1.bf16.msra.mxu0 0
        %6071 = vmatprep.subr.bf16.mxu0 0
        %6072 = vmatpush1.bf16.msra.mxu0 0
        %6073 = vmatprep.subr.bf16.mxu0 0
        %6074 = vmatpush1.bf16.msra.mxu0 0
        %6075 = vmatprep.subr.bf16.mxu0 0
        %6076 = vmatpush1.bf16.msra.mxu0 0
        %6077 = vmatprep.subr.bf16.mxu0 0
        %6078 = vmatpush1.bf16.msra.mxu0 0
        %6079 = vmatprep.mubr.bf16.mxu0 0
        %6080 = vmatmul.mubr.bf16.gmra.mrb[0].mxu0 %v6045
        %v6081 = vpop.f32.mrb[0].mxu0
        %v6082 = vadd.f32 0.0, %v6081
        %v6083 = vpop.f32.mrb[0].mxu0
        %v6084 = vpop.f32.mrb[0].mxu0
        %v6085 = vadd.f32 0.0, %v6084
        %v6086 = vpop.f32.mrb[0].mxu0
        %6087 = vdwg.mxu0
        %v6089 = vsel %vm4031, %v4766, 0
        %6091 = vmatprep.subr.bf16.mxu0 0
        %6092 = vmatpush1.bf16.msra.mxu0 %v2460
        %6093 = vmatprep.subr.bf16.mxu0 0
        %6094 = vmatpush1.bf16.msra.mxu0 0
        %6095 = vmatprep.subr.bf16.mxu0 0
        %6096 = vmatpush1.bf16.msra.mxu0 0
        %6097 = vmatprep.subr.bf16.mxu0 0
        %6098 = vmatpush1.bf16.msra.mxu0 0
        %6099 = vmatprep.subr.bf16.mxu0 0
        %6100 = vmatpush1.bf16.msra.mxu0 0
        %6101 = vmatprep.subr.bf16.mxu0 0
        %6102 = vmatpush1.bf16.msra.mxu0 0
        %6103 = vmatprep.subr.bf16.mxu0 0
        %6104 = vmatpush1.bf16.msra.mxu0 0
        %6105 = vmatprep.subr.bf16.mxu0 0
        %6106 = vmatpush1.bf16.msra.mxu0 0
        %6107 = vmatprep.subr.bf16.mxu0 0
        %6108 = vmatpush1.bf16.msra.mxu0 0
        %6109 = vmatprep.subr.bf16.mxu0 0
        %6110 = vmatpush1.bf16.msra.mxu0 0
        %6111 = vmatprep.subr.bf16.mxu0 0
        %6112 = vmatpush1.bf16.msra.mxu0 0
        %6113 = vmatprep.subr.bf16.mxu0 0
        %6114 = vmatpush1.bf16.msra.mxu0 0
        %6115 = vmatprep.subr.bf16.mxu0 0
        %6116 = vmatpush1.bf16.msra.mxu0 0
        %6117 = vmatprep.subr.bf16.mxu0 0
        %6118 = vmatpush1.bf16.msra.mxu0 0
        %6119 = vmatprep.subr.bf16.mxu0 0
        %6120 = vmatpush1.bf16.msra.mxu0 0
        %6121 = vmatprep.subr.bf16.mxu0 0
        %6122 = vmatpush1.bf16.msra.mxu0 0
        %6123 = vmatprep.mubr.bf16.mxu0 0
        %6124 = vmatmul.mubr.bf16.gmra.mrb[0].mxu0 %v6089
        %v6125 = vpop.f32.mrb[0].mxu0
        %v6126 = vadd.f32 0.0, %v6125
        %v6127 = vpop.f32.mrb[0].mxu0
        %v6128 = vpop.f32.mrb[0].mxu0
        %v6129 = vadd.f32 0.0, %v6128
        %v6130 = vpop.f32.mrb[0].mxu0
        %6131 = vdwg.mxu0
        %v6133 = vsel %vm4031, %v4767, 0
        %6135 = vmatprep.subr.bf16.mxu0 0
        %6136 = vmatpush1.bf16.msra.mxu0 %v2461
        %6137 = vmatprep.subr.bf16.mxu0 0
        %6138 = vmatpush1.bf16.msra.mxu0 0
        %6139 = vmatprep.subr.bf16.mxu0 0
        %6140 = vmatpush1.bf16.msra.mxu0 0
        %6141 = vmatprep.subr.bf16.mxu0 0
        %6142 = vmatpush1.bf16.msra.mxu0 0
        %6143 = vmatprep.subr.bf16.mxu0 0
        %6144 = vmatpush1.bf16.msra.mxu0 0
        %6145 = vmatprep.subr.bf16.mxu0 0
        %6146 = vmatpush1.bf16.msra.mxu0 0
        %6147 = vmatprep.subr.bf16.mxu0 0
        %6148 = vmatpush1.bf16.msra.mxu0 0
        %6149 = vmatprep.subr.bf16.mxu0 0
        %6150 = vmatpush1.bf16.msra.mxu0 0
        %6151 = vmatprep.subr.bf16.mxu0 0
        %6152 = vmatpush1.bf16.msra.mxu0 0
        %6153 = vmatprep.subr.bf16.mxu0 0
        %6154 = vmatpush1.bf16.msra.mxu0 0
        %6155 = vmatprep.subr.bf16.mxu0 0
        %6156 = vmatpush1.bf16.msra.mxu0 0
        %6157 = vmatprep.subr.bf16.mxu0 0
        %6158 = vmatpush1.bf16.msra.mxu0 0
        %6159 = vmatprep.subr.bf16.mxu0 0
        %6160 = vmatpush1.bf16.msra.mxu0 0
        %6161 = vmatprep.subr.bf16.mxu0 0
        %6162 = vmatpush1.bf16.msra.mxu0 0
        %6163 = vmatprep.subr.bf16.mxu0 0
        %6164 = vmatpush1.bf16.msra.mxu0 0
        %6165 = vmatprep.subr.bf16.mxu0 0
        %6166 = vmatpush1.bf16.msra.mxu0 0
        %6167 = vmatprep.mubr.bf16.mxu0 0
        %6168 = vmatmul.mubr.bf16.gmra.mrb[0].mxu0 %v6133
        %v6169 = vpop.f32.mrb[0].mxu0
        %v6170 = vadd.f32 0.0, %v6169
        %v6171 = vpop.f32.mrb[0].mxu0
        %v6172 = vpop.f32.mrb[0].mxu0
        %v6173 = vadd.f32 0.0, %v6172
        %v6174 = vpop.f32.mrb[0].mxu0
        %6175 = vdwg.mxu0
        %6192 = vrot.lane.b32.xlu0 %v5158, 64
        %v6193 = vpop.permute.xlu0 %6192
        %6194 = vrot.lane.b32.xlu0 %v5161, 64
        %v6195 = vpop.permute.xlu0 %6194
        %6196 = vrot.lane.b32.xlu0 %v5202, 64
        %v6197 = vpop.permute.xlu0 %6196
        %6198 = vrot.lane.b32.xlu0 %v5205, 64
        %v6199 = vpop.permute.xlu0 %6198
        %6200 = vrot.lane.b32.xlu0 %v5246, 64
        %v6201 = vpop.permute.xlu0 %6200
        %6202 = vrot.lane.b32.xlu0 %v5249, 64
        %v6203 = vpop.permute.xlu0 %6202
        %6204 = vrot.lane.b32.xlu0 %v5290, 64
        %v6205 = vpop.permute.xlu0 %6204
        %6206 = vrot.lane.b32.xlu0 %v5293, 64
        %v6207 = vpop.permute.xlu0 %6206
        %6208 = vrot.lane.b32.xlu0 %v5334, 64
        %v6209 = vpop.permute.xlu0 %6208
        %6210 = vrot.lane.b32.xlu0 %v5337, 64
        %v6211 = vpop.permute.xlu0 %6210
        %6212 = vrot.lane.b32.xlu0 %v5378, 64
        %v6213 = vpop.permute.xlu0 %6212
        %6214 = vrot.lane.b32.xlu0 %v5381, 64
        %v6215 = vpop.permute.xlu0 %6214
        %6216 = vrot.lane.b32.xlu0 %v5422, 64
        %v6217 = vpop.permute.xlu0 %6216
        %6218 = vrot.lane.b32.xlu0 %v5425, 64
        %v6219 = vpop.permute.xlu0 %6218
        %6220 = vrot.lane.b32.xlu0 %v5466, 64
        %v6221 = vpop.permute.xlu0 %6220
        %6222 = vrot.lane.b32.xlu0 %v5469, 64
        %v6223 = vpop.permute.xlu0 %6222
        %6256 = vrot.lane.b32.xlu0 %v5862, 64
        %v6257 = vpop.permute.xlu0 %6256
        %6258 = vrot.lane.b32.xlu0 %v5865, 64
        %v6259 = vpop.permute.xlu0 %6258
        %6260 = vrot.lane.b32.xlu0 %v5906, 64
        %v6261 = vpop.permute.xlu0 %6260
        %6262 = vrot.lane.b32.xlu0 %v5909, 64
        %v6263 = vpop.permute.xlu0 %6262
        %6264 = vrot.lane.b32.xlu0 %v5950, 64
        %v6265 = vpop.permute.xlu0 %6264
        %6266 = vrot.lane.b32.xlu0 %v5953, 64
        %v6267 = vpop.permute.xlu0 %6266
        %6268 = vrot.lane.b32.xlu0 %v5994, 64
        %v6269 = vpop.permute.xlu0 %6268
        %6270 = vrot.lane.b32.xlu0 %v5997, 64
        %v6271 = vpop.permute.xlu0 %6270
        %6272 = vrot.lane.b32.xlu0 %v6038, 64
        %v6273 = vpop.permute.xlu0 %6272
        %6274 = vrot.lane.b32.xlu0 %v6041, 64
        %v6275 = vpop.permute.xlu0 %6274
        %6276 = vrot.lane.b32.xlu0 %v6082, 64
        %v6277 = vpop.permute.xlu0 %6276
        %6278 = vrot.lane.b32.xlu0 %v6085, 64
        %v6279 = vpop.permute.xlu0 %6278
        %6280 = vrot.lane.b32.xlu0 %v6126, 64
        %v6281 = vpop.permute.xlu0 %6280
        %6282 = vrot.lane.b32.xlu0 %v6129, 64
        %v6283 = vpop.permute.xlu0 %6282
        %6284 = vrot.lane.b32.xlu0 %v6170, 64
        %v6285 = vpop.permute.xlu0 %6284
        %6286 = vrot.lane.b32.xlu0 %v6173, 64
        %v6287 = vpop.permute.xlu0 %6286
        %v6304 = vsel %vm2462, %v4806, %v6193
        %v6305 = vsel %vm2462, %v4809, %v6195
        %v6306 = vsel %vm2462, %v4850, %v6197
        %v6307 = vsel %vm2462, %v4853, %v6199
        %v6308 = vsel %vm2462, %v4894, %v6201
        %v6309 = vsel %vm2462, %v4897, %v6203
        %v6310 = vsel %vm2462, %v4938, %v6205
        %v6311 = vsel %vm2462, %v4941, %v6207
        %v6312 = vsel %vm2462, %v4982, %v6209
        %v6313 = vsel %vm2462, %v4985, %v6211
        %v6314 = vsel %vm2462, %v5026, %v6213
        %v6315 = vsel %vm2462, %v5029, %v6215
        %v6316 = vsel %vm2462, %v5070, %v6217
        %v6317 = vsel %vm2462, %v5073, %v6219
        %v6318 = vsel %vm2462, %v5114, %v6221
        %v6319 = vsel %vm2462, %v5117, %v6223
        %v6320 = vsel %vm2462, %v5510, %v6257
        %v6321 = vsel %vm2462, %v5513, %v6259
        %v6322 = vsel %vm2462, %v5554, %v6261
        %v6323 = vsel %vm2462, %v5557, %v6263
        %v6324 = vsel %vm2462, %v5598, %v6265
        %v6325 = vsel %vm2462, %v5601, %v6267
        %v6326 = vsel %vm2462, %v5642, %v6269
        %v6327 = vsel %vm2462, %v5645, %v6271
        %v6328 = vsel %vm2462, %v5686, %v6273
        %v6329 = vsel %vm2462, %v5689, %v6275
        %v6330 = vsel %vm2462, %v5730, %v6277
        %v6331 = vsel %vm2462, %v5733, %v6279
        %v6332 = vsel %vm2462, %v5774, %v6281
        %v6333 = vsel %vm2462, %v5777, %v6283
        %v6334 = vsel %vm2462, %v5818, %v6285
        %v6335 = vsel %vm2462, %v5821, %v6287
        %v6336 = vadd.f32 %v6304, %v983
        %v6337 = vadd.f32 %v6320, %v984
        %v6338 = vadd.f32 %v6305, %v985
        %v6339 = vadd.f32 %v6321, %v986
        %v6340 = vadd.f32 %v6306, %v987
        %v6341 = vadd.f32 %v6322, %v988
        %v6342 = vadd.f32 %v6307, %v989
        %v6343 = vadd.f32 %v6323, %v990
        %v6344 = vadd.f32 %v6308, %v991
        %v6345 = vadd.f32 %v6324, %v992
        %v6346 = vadd.f32 %v6309, %v993
        %v6347 = vadd.f32 %v6325, %v994
        %v6348 = vadd.f32 %v6310, %v995
        %v6349 = vadd.f32 %v6326, %v996
        %v6350 = vadd.f32 %v6311, %v997
        %v6351 = vadd.f32 %v6327, %v998
        %v6352 = vadd.f32 %v6312, %v999
        %v6353 = vadd.f32 %v6328, %v1000
        %v6354 = vadd.f32 %v6313, %v1001
        %v6355 = vadd.f32 %v6329, %v1002
        %v6356 = vadd.f32 %v6314, %v1003
        %v6357 = vadd.f32 %v6330, %v1004
        %v6358 = vadd.f32 %v6315, %v1005
        %v6359 = vadd.f32 %v6331, %v1006
        %v6360 = vadd.f32 %v6316, %v1007
        %v6361 = vadd.f32 %v6332, %v1008
        %v6362 = vadd.f32 %v6317, %v1009
        %v6363 = vadd.f32 %v6333, %v1010
        %v6364 = vadd.f32 %v6318, %v1011
        %v6365 = vadd.f32 %v6334, %v1012
        %v6366 = vadd.f32 %v6319, %v1013
        %v6367 = vadd.f32 %v6335, %v1014
        %v6368 = vld [vmem:[%s747] sm:$0x3]
        %v6369 = vld [vmem:[%s756] sm:$0x3]
        %v6370 = vadd.f32 %v6336, %v6337
        %6371 = vadd.xlane.f32.xlu0 %v6370
        %v6372 = vpop.xlane.xlu0 %6371
        %v6373 = vadd.f32 %v6338, %v6339
        %6374 = vadd.xlane.f32.xlu0 %v6373
        %v6375 = vpop.xlane.xlu0 %6374
        %v6376 = vadd.f32 %v6340, %v6341
        %6377 = vadd.xlane.f32.xlu0 %v6376
        %v6378 = vpop.xlane.xlu0 %6377
        %v6379 = vadd.f32 %v6342, %v6343
        %6380 = vadd.xlane.f32.xlu0 %v6379
        %v6381 = vpop.xlane.xlu0 %6380
        %v6382 = vadd.f32 %v6344, %v6345
        %6383 = vadd.xlane.f32.xlu0 %v6382
        %v6384 = vpop.xlane.xlu0 %6383
        %v6385 = vadd.f32 %v6346, %v6347
        %6386 = vadd.xlane.f32.xlu0 %v6385
        %v6387 = vpop.xlane.xlu0 %6386
        %v6388 = vadd.f32 %v6348, %v6349
        %6389 = vadd.xlane.f32.xlu0 %v6388
        %v6390 = vpop.xlane.xlu0 %6389
        %v6391 = vadd.f32 %v6350, %v6351
        %6392 = vadd.xlane.f32.xlu0 %v6391
        %v6393 = vpop.xlane.xlu0 %6392
        %v6394 = vadd.f32 %v6352, %v6353
        %6395 = vadd.xlane.f32.xlu0 %v6394
        %v6396 = vpop.xlane.xlu0 %6395
        %v6397 = vadd.f32 %v6354, %v6355
        %6398 = vadd.xlane.f32.xlu0 %v6397
        %v6399 = vpop.xlane.xlu0 %6398
        %v6400 = vadd.f32 %v6356, %v6357
        %6401 = vadd.xlane.f32.xlu0 %v6400
        %v6402 = vpop.xlane.xlu0 %6401
        %v6403 = vadd.f32 %v6358, %v6359
        %6404 = vadd.xlane.f32.xlu0 %v6403
        %v6405 = vpop.xlane.xlu0 %6404
        %v6406 = vadd.f32 %v6360, %v6361
        %6407 = vadd.xlane.f32.xlu0 %v6406
        %v6408 = vpop.xlane.xlu0 %6407
        %v6409 = vadd.f32 %v6362, %v6363
        %6410 = vadd.xlane.f32.xlu0 %v6409
        %v6411 = vpop.xlane.xlu0 %6410
        %v6412 = vadd.f32 %v6364, %v6365
        %6413 = vadd.xlane.f32.xlu0 %v6412
        %v6414 = vpop.xlane.xlu0 %6413
        %v6415 = vadd.f32 %v6366, %v6367
        %6416 = vadd.xlane.f32.xlu0 %v6415
        %v6417 = vpop.xlane.xlu0 %6416
        %v6418 = vrcp.pop 256.0
        %v6419 = vmul.f32 %v6372, %v6418
        %v6420 = vmul.f32 %v6375, %v6418
        %v6421 = vmul.f32 %v6378, %v6418
        %v6422 = vmul.f32 %v6381, %v6418
        %v6423 = vmul.f32 %v6384, %v6418
        %v6424 = vmul.f32 %v6387, %v6418
        %v6425 = vmul.f32 %v6390, %v6418
        %v6426 = vmul.f32 %v6393, %v6418
        %v6427 = vmul.f32 %v6396, %v6418
        %v6428 = vmul.f32 %v6399, %v6418
        %v6429 = vmul.f32 %v6402, %v6418
        %v6430 = vmul.f32 %v6405, %v6418
        %v6431 = vmul.f32 %v6408, %v6418
        %v6432 = vmul.f32 %v6411, %v6418
        %v6433 = vmul.f32 %v6414, %v6418
        %v6434 = vmul.f32 %v6417, %v6418
        %v6435 = vsub.f32 %v6336, %v6419
        %v6436 = vsub.f32 %v6337, %v6419
        %v6437 = vsub.f32 %v6338, %v6420
        %v6438 = vsub.f32 %v6339, %v6420
        %v6439 = vsub.f32 %v6340, %v6421
        %v6440 = vsub.f32 %v6341, %v6421
        %v6441 = vsub.f32 %v6342, %v6422
        %v6442 = vsub.f32 %v6343, %v6422
        %v6443 = vsub.f32 %v6344, %v6423
        %v6444 = vsub.f32 %v6345, %v6423
        %v6445 = vsub.f32 %v6346, %v6424
        %v6446 = vsub.f32 %v6347, %v6424
        %v6447 = vsub.f32 %v6348, %v6425
        %v6448 = vsub.f32 %v6349, %v6425
        %v6449 = vsub.f32 %v6350, %v6426
        %v6450 = vsub.f32 %v6351, %v6426
        %v6451 = vsub.f32 %v6352, %v6427
        %v6452 = vsub.f32 %v6353, %v6427
        %v6453 = vsub.f32 %v6354, %v6428
        %v6454 = vsub.f32 %v6355, %v6428
        %v6455 = vsub.f32 %v6356, %v6429
        %v6456 = vsub.f32 %v6357, %v6429
        %v6457 = vsub.f32 %v6358, %v6430
        %v6458 = vsub.f32 %v6359, %v6430
        %v6459 = vsub.f32 %v6360, %v6431
        %v6460 = vsub.f32 %v6361, %v6431
        %v6461 = vsub.f32 %v6362, %v6432
        %v6462 = vsub.f32 %v6363, %v6432
        %v6463 = vsub.f32 %v6364, %v6433
        %v6464 = vsub.f32 %v6365, %v6433
        %v6465 = vsub.f32 %v6366, %v6434
        %v6466 = vsub.f32 %v6367, %v6434
        %v6467 = vmul.f32 %v6435, %v6435
        %v6468 = vmul.f32 %v6436, %v6436
        %v6469 = vmul.f32 %v6437, %v6437
        %v6470 = vmul.f32 %v6438, %v6438
        %v6471 = vmul.f32 %v6439, %v6439
        %v6472 = vmul.f32 %v6440, %v6440
        %v6473 = vmul.f32 %v6441, %v6441
        %v6474 = vmul.f32 %v6442, %v6442
        %v6475 = vmul.f32 %v6443, %v6443
        %v6476 = vmul.f32 %v6444, %v6444
        %v6477 = vmul.f32 %v6445, %v6445
        %v6478 = vmul.f32 %v6446, %v6446
        %v6479 = vmul.f32 %v6447, %v6447
        %v6480 = vmul.f32 %v6448, %v6448
        %v6481 = vmul.f32 %v6449, %v6449
        %v6482 = vmul.f32 %v6450, %v6450
        %v6483 = vmul.f32 %v6451, %v6451
        %v6484 = vmul.f32 %v6452, %v6452
        %v6485 = vmul.f32 %v6453, %v6453
        %v6486 = vmul.f32 %v6454, %v6454
        %v6487 = vmul.f32 %v6455, %v6455
        %v6488 = vmul.f32 %v6456, %v6456
        %v6489 = vmul.f32 %v6457, %v6457
        %v6490 = vmul.f32 %v6458, %v6458
        %v6491 = vmul.f32 %v6459, %v6459
        %v6492 = vmul.f32 %v6460, %v6460
        %v6493 = vmul.f32 %v6461, %v6461
        %v6494 = vmul.f32 %v6462, %v6462
        %v6495 = vmul.f32 %v6463, %v6463
        %v6496 = vmul.f32 %v6464, %v6464
        %v6497 = vmul.f32 %v6465, %v6465
        %v6498 = vmul.f32 %v6466, %v6466
        %v6499 = vadd.f32 %v6467, %v6468
        %6500 = vadd.xlane.f32.xlu0 %v6499
        %v6501 = vpop.xlane.xlu0 %6500
        %v6502 = vadd.f32 %v6469, %v6470
        %6503 = vadd.xlane.f32.xlu0 %v6502
        %v6504 = vpop.xlane.xlu0 %6503
        %v6505 = vadd.f32 %v6471, %v6472
        %6506 = vadd.xlane.f32.xlu0 %v6505
        %v6507 = vpop.xlane.xlu0 %6506
        %v6508 = vadd.f32 %v6473, %v6474
        %6509 = vadd.xlane.f32.xlu0 %v6508
        %v6510 = vpop.xlane.xlu0 %6509
        %v6511 = vadd.f32 %v6475, %v6476
        %6512 = vadd.xlane.f32.xlu0 %v6511
        %v6513 = vpop.xlane.xlu0 %6512
        %v6514 = vadd.f32 %v6477, %v6478
        %6515 = vadd.xlane.f32.xlu0 %v6514
        %v6516 = vpop.xlane.xlu0 %6515
        %v6517 = vadd.f32 %v6479, %v6480
        %6518 = vadd.xlane.f32.xlu0 %v6517
        %v6519 = vpop.xlane.xlu0 %6518
        %v6520 = vadd.f32 %v6481, %v6482
        %6521 = vadd.xlane.f32.xlu0 %v6520
        %v6522 = vpop.xlane.xlu0 %6521
        %v6523 = vadd.f32 %v6483, %v6484
        %6524 = vadd.xlane.f32.xlu0 %v6523
        %v6525 = vpop.xlane.xlu0 %6524
        %v6526 = vadd.f32 %v6485, %v6486
        %6527 = vadd.xlane.f32.xlu0 %v6526
        %v6528 = vpop.xlane.xlu0 %6527
        %v6529 = vadd.f32 %v6487, %v6488
        %6530 = vadd.xlane.f32.xlu0 %v6529
        %v6531 = vpop.xlane.xlu0 %6530
        %v6532 = vadd.f32 %v6489, %v6490
        %6533 = vadd.xlane.f32.xlu0 %v6532
        %v6534 = vpop.xlane.xlu0 %6533
        %v6535 = vadd.f32 %v6491, %v6492
        %6536 = vadd.xlane.f32.xlu0 %v6535
        %v6537 = vpop.xlane.xlu0 %6536
        %v6538 = vadd.f32 %v6493, %v6494
        %6539 = vadd.xlane.f32.xlu0 %v6538
        %v6540 = vpop.xlane.xlu0 %6539
        %v6541 = vadd.f32 %v6495, %v6496
        %6542 = vadd.xlane.f32.xlu0 %v6541
        %v6543 = vpop.xlane.xlu0 %6542
        %v6544 = vadd.f32 %v6497, %v6498
        %6545 = vadd.xlane.f32.xlu0 %v6544
        %v6546 = vpop.xlane.xlu0 %6545
        %v6547 = vmul.f32 %v6501, %v6418
        %v6548 = vmul.f32 %v6504, %v6418
        %v6549 = vmul.f32 %v6507, %v6418
        %v6550 = vmul.f32 %v6510, %v6418
        %v6551 = vmul.f32 %v6513, %v6418
        %v6552 = vmul.f32 %v6516, %v6418
        %v6553 = vmul.f32 %v6519, %v6418
        %v6554 = vmul.f32 %v6522, %v6418
        %v6555 = vmul.f32 %v6525, %v6418
        %v6556 = vmul.f32 %v6528, %v6418
        %v6557 = vmul.f32 %v6531, %v6418
        %v6558 = vmul.f32 %v6534, %v6418
        %v6559 = vmul.f32 %v6537, %v6418
        %v6560 = vmul.f32 %v6540, %v6418
        %v6561 = vmul.f32 %v6543, %v6418
        %v6562 = vmul.f32 %v6546, %v6418
        %v6563 = vadd.f32 %v6547, 1e-12
        %v6564 = vadd.f32 %v6548, 1e-12
        %v6565 = vadd.f32 %v6549, 1e-12
        %v6566 = vadd.f32 %v6550, 1e-12
        %v6567 = vadd.f32 %v6551, 1e-12
        %v6568 = vadd.f32 %v6552, 1e-12
        %v6569 = vadd.f32 %v6553, 1e-12
        %v6570 = vadd.f32 %v6554, 1e-12
        %v6571 = vadd.f32 %v6555, 1e-12
        %v6572 = vadd.f32 %v6556, 1e-12
        %v6573 = vadd.f32 %v6557, 1e-12
        %v6574 = vadd.f32 %v6558, 1e-12
        %v6575 = vadd.f32 %v6559, 1e-12
        %v6576 = vadd.f32 %v6560, 1e-12
        %v6577 = vadd.f32 %v6561, 1e-12
        %v6578 = vadd.f32 %v6562, 1e-12
        %v6579 = vrsqrt.pop %v6563
        %v6580 = vrsqrt.pop %v6564
        %v6581 = vrsqrt.pop %v6565
        %v6582 = vrsqrt.pop %v6566
        %v6583 = vrsqrt.pop %v6567
        %v6584 = vrsqrt.pop %v6568
        %v6585 = vrsqrt.pop %v6569
        %v6586 = vrsqrt.pop %v6570
        %v6587 = vrsqrt.pop %v6571
        %v6588 = vrsqrt.pop %v6572
        %v6589 = vrsqrt.pop %v6573
        %v6590 = vrsqrt.pop %v6574
        %v6591 = vrsqrt.pop %v6575
        %v6592 = vrsqrt.pop %v6576
        %v6593 = vrsqrt.pop %v6577
        %v6594 = vrsqrt.pop %v6578
        %v6595 = vmul.f32 %v6435, %v6579
        %v6596 = vmul.f32 %v6436, %v6579
        %v6597 = vmul.f32 %v6437, %v6580
        %v6598 = vmul.f32 %v6438, %v6580
        %v6599 = vmul.f32 %v6439, %v6581
        %v6600 = vmul.f32 %v6440, %v6581
        %v6601 = vmul.f32 %v6441, %v6582
        %v6602 = vmul.f32 %v6442, %v6582
        %v6603 = vmul.f32 %v6443, %v6583
        %v6604 = vmul.f32 %v6444, %v6583
        %v6605 = vmul.f32 %v6445, %v6584
        %v6606 = vmul.f32 %v6446, %v6584
        %v6607 = vmul.f32 %v6447, %v6585
        %v6608 = vmul.f32 %v6448, %v6585
        %v6609 = vmul.f32 %v6449, %v6586
        %v6610 = vmul.f32 %v6450, %v6586
        %v6611 = vmul.f32 %v6451, %v6587
        %v6612 = vmul.f32 %v6452, %v6587
        %v6613 = vmul.f32 %v6453, %v6588
        %v6614 = vmul.f32 %v6454, %v6588
        %v6615 = vmul.f32 %v6455, %v6589
        %v6616 = vmul.f32 %v6456, %v6589
        %v6617 = vmul.f32 %v6457, %v6590
        %v6618 = vmul.f32 %v6458, %v6590
        %v6619 = vmul.f32 %v6459, %v6591
        %v6620 = vmul.f32 %v6460, %v6591
        %v6621 = vmul.f32 %v6461, %v6592
        %v6622 = vmul.f32 %v6462, %v6592
        %v6623 = vmul.f32 %v6463, %v6593
        %v6624 = vmul.f32 %v6464, %v6593
        %v6625 = vmul.f32 %v6465, %v6594
        %v6626 = vmul.f32 %v6466, %v6594
        %v6628 = vlaneseq
        %v6629 = vshrl.u32 %v6628, 7
        %v6630 = vsub.s32 0, %v6629
        %v6631 = vrot.slane %v6368, %v6630
        %v6632 = vlaneseq
        %v6633 = vshrl.u32 %v6632, 7
        %v6634 = vsub.s32 1, %v6633
        %v6635 = vrot.slane %v6368, %v6634
        %v6638 = vmul.f32 %v6631, %v6595
        %v6639 = vmul.f32 %v6635, %v6596
        %v6640 = vmul.f32 %v6631, %v6597
        %v6641 = vmul.f32 %v6635, %v6598
        %v6642 = vmul.f32 %v6631, %v6599
        %v6643 = vmul.f32 %v6635, %v6600
        %v6644 = vmul.f32 %v6631, %v6601
        %v6645 = vmul.f32 %v6635, %v6602
        %v6646 = vmul.f32 %v6631, %v6603
        %v6647 = vmul.f32 %v6635, %v6604
        %v6648 = vmul.f32 %v6631, %v6605
        %v6649 = vmul.f32 %v6635, %v6606
        %v6650 = vmul.f32 %v6631, %v6607
        %v6651 = vmul.f32 %v6635, %v6608
        %v6652 = vmul.f32 %v6631, %v6609
        %v6653 = vmul.f32 %v6635, %v6610
        %v6654 = vmul.f32 %v6631, %v6611
        %v6655 = vmul.f32 %v6635, %v6612
        %v6656 = vmul.f32 %v6631, %v6613
        %v6657 = vmul.f32 %v6635, %v6614
        %v6658 = vmul.f32 %v6631, %v6615
        %v6659 = vmul.f32 %v6635, %v6616
        %v6660 = vmul.f32 %v6631, %v6617
        %v6661 = vmul.f32 %v6635, %v6618
        %v6662 = vmul.f32 %v6631, %v6619
        %v6663 = vmul.f32 %v6635, %v6620
        %v6664 = vmul.f32 %v6631, %v6621
        %v6665 = vmul.f32 %v6635, %v6622
        %v6666 = vmul.f32 %v6631, %v6623
        %v6667 = vmul.f32 %v6635, %v6624
        %v6668 = vmul.f32 %v6631, %v6625
        %v6669 = vmul.f32 %v6635, %v6626
        %v6671 = vlaneseq
        %v6672 = vshrl.u32 %v6671, 7
        %v6673 = vsub.s32 0, %v6672
        %v6674 = vrot.slane %v6369, %v6673
        %v6675 = vlaneseq
        %v6676 = vshrl.u32 %v6675, 7
        %v6677 = vsub.s32 1, %v6676
        %v6678 = vrot.slane %v6369, %v6677
        %v6681 = vadd.f32 %v6638, %v6674
        %v6682 = vadd.f32 %v6639, %v6678
        %v6683 = vadd.f32 %v6640, %v6674
        %v6684 = vadd.f32 %v6641, %v6678
        %v6685 = vadd.f32 %v6642, %v6674
        %v6686 = vadd.f32 %v6643, %v6678
        %v6687 = vadd.f32 %v6644, %v6674
        %v6688 = vadd.f32 %v6645, %v6678
        %v6689 = vadd.f32 %v6646, %v6674
        %v6690 = vadd.f32 %v6647, %v6678
        %v6691 = vadd.f32 %v6648, %v6674
        %v6692 = vadd.f32 %v6649, %v6678
        %v6693 = vadd.f32 %v6650, %v6674
        %v6694 = vadd.f32 %v6651, %v6678
        %v6695 = vadd.f32 %v6652, %v6674
        %v6696 = vadd.f32 %v6653, %v6678
        %v6697 = vadd.f32 %v6654, %v6674
        %v6698 = vadd.f32 %v6655, %v6678
        %v6699 = vadd.f32 %v6656, %v6674
        %v6700 = vadd.f32 %v6657, %v6678
        %v6701 = vadd.f32 %v6658, %v6674
        %v6702 = vadd.f32 %v6659, %v6678
        %v6703 = vadd.f32 %v6660, %v6674
        %v6704 = vadd.f32 %v6661, %v6678
        %v6705 = vadd.f32 %v6662, %v6674
        %v6706 = vadd.f32 %v6663, %v6678
        %v6707 = vadd.f32 %v6664, %v6674
        %v6708 = vadd.f32 %v6665, %v6678
        %v6709 = vadd.f32 %v6666, %v6674
        %v6710 = vadd.f32 %v6667, %v6678
        %v6711 = vadd.f32 %v6668, %v6674
        %v6712 = vadd.f32 %v6669, %v6678
        %v6713 = vpack.c.bf16 %v6683, %v6681
        %v6714 = vpack.c.bf16 %v6684, %v6682
        %v6715 = vpack.c.bf16 %v6687, %v6685
        %v6716 = vpack.c.bf16 %v6688, %v6686
        %v6717 = vpack.c.bf16 %v6691, %v6689
        %v6718 = vpack.c.bf16 %v6692, %v6690
        %v6719 = vpack.c.bf16 %v6695, %v6693
        %v6720 = vpack.c.bf16 %v6696, %v6694
        %v6721 = vpack.c.bf16 %v6699, %v6697
        %v6722 = vpack.c.bf16 %v6700, %v6698
        %v6723 = vpack.c.bf16 %v6703, %v6701
        %v6724 = vpack.c.bf16 %v6704, %v6702
        %v6725 = vpack.c.bf16 %v6707, %v6705
        %v6726 = vpack.c.bf16 %v6708, %v6706
        %v6727 = vpack.c.bf16 %v6711, %v6709
        %v6728 = vpack.c.bf16 %v6712, %v6710
        %v6729 = vld [vmem:[%s765] sm:$0xff]
        %v6730 = vld [vmem:[%s765 + $0x8] sm:$0xff]
        %v6731 = vld [vmem:[%s765 + $0x10] sm:$0xff]
        %v6732 = vld [vmem:[%s765 + $0x18] sm:$0xff]
        %v6733 = vld [vmem:[%s765 + $0x20] sm:$0xff]
        %v6734 = vld [vmem:[%s765 + $0x28] sm:$0xff]
        %v6735 = vld [vmem:[%s765 + $0x30] sm:$0xff]
        %v6736 = vld [vmem:[%s765 + $0x38] sm:$0xff]
        %v6737 = vld [vmem:[%s765 + $0x40] sm:$0xff]
        %v6738 = vld [vmem:[%s765 + $0x48] sm:$0xff]
        %v6739 = vld [vmem:[%s765 + $0x50] sm:$0xff]
        %v6740 = vld [vmem:[%s765 + $0x58] sm:$0xff]
        %v6741 = vld [vmem:[%s765 + $0x60] sm:$0xff]
        %v6742 = vld [vmem:[%s765 + $0x68] sm:$0xff]
        %v6743 = vld [vmem:[%s765 + $0x70] sm:$0xff]
        %v6744 = vld [vmem:[%s765 + $0x78] sm:$0xff]
        %v6745 = vld [vmem:[%s765 + $0x80] sm:$0xff]
        %v6746 = vld [vmem:[%s765 + $0x88] sm:$0xff]
        %v6747 = vld [vmem:[%s765 + $0x90] sm:$0xff]
        %v6748 = vld [vmem:[%s765 + $0x98] sm:$0xff]
        %v6749 = vld [vmem:[%s765 + $0xa0] sm:$0xff]
        %v6750 = vld [vmem:[%s765 + $0xa8] sm:$0xff]
        %v6751 = vld [vmem:[%s765 + $0xb0] sm:$0xff]
        %v6752 = vld [vmem:[%s765 + $0xb8] sm:$0xff]
        %v6753 = vld [vmem:[%s765 + $0xc0] sm:$0xff]
        %v6754 = vld [vmem:[%s765 + $0xc8] sm:$0xff]
        %v6755 = vld [vmem:[%s765 + $0xd0] sm:$0xff]
        %v6756 = vld [vmem:[%s765 + $0xd8] sm:$0xff]
        %v6757 = vld [vmem:[%s765 + $0xe0] sm:$0xff]
        %v6758 = vld [vmem:[%s765 + $0xe8] sm:$0xff]
        %v6759 = vld [vmem:[%s765 + $0xf0] sm:$0xff]
        %v6760 = vld [vmem:[%s765 + $0xf8] sm:$0xff]
        %v6761 = vld [vmem:[%s765 + $0x100] sm:$0xff]
        %v6762 = vld [vmem:[%s765 + $0x108] sm:$0xff]
        %v6763 = vld [vmem:[%s765 + $0x110] sm:$0xff]
        %v6764 = vld [vmem:[%s765 + $0x118] sm:$0xff]
        %v6765 = vld [vmem:[%s765 + $0x120] sm:$0xff]
        %v6766 = vld [vmem:[%s765 + $0x128] sm:$0xff]
        %v6767 = vld [vmem:[%s765 + $0x130] sm:$0xff]
        %v6768 = vld [vmem:[%s765 + $0x138] sm:$0xff]
        %v6769 = vld [vmem:[%s765 + $0x140] sm:$0xff]
        %v6770 = vld [vmem:[%s765 + $0x148] sm:$0xff]
        %v6771 = vld [vmem:[%s765 + $0x150] sm:$0xff]
        %v6772 = vld [vmem:[%s765 + $0x158] sm:$0xff]
        %v6773 = vld [vmem:[%s765 + $0x160] sm:$0xff]
        %v6774 = vld [vmem:[%s765 + $0x168] sm:$0xff]
        %v6775 = vld [vmem:[%s765 + $0x170] sm:$0xff]
        %v6776 = vld [vmem:[%s765 + $0x178] sm:$0xff]
        %v6777 = vld [vmem:[%s765 + $0x180] sm:$0xff]
        %v6778 = vld [vmem:[%s765 + $0x188] sm:$0xff]
        %v6779 = vld [vmem:[%s765 + $0x190] sm:$0xff]
        %v6780 = vld [vmem:[%s765 + $0x198] sm:$0xff]
        %v6781 = vld [vmem:[%s765 + $0x1a0] sm:$0xff]
        %v6782 = vld [vmem:[%s765 + $0x1a8] sm:$0xff]
        %v6783 = vld [vmem:[%s765 + $0x1b0] sm:$0xff]
        %v6784 = vld [vmem:[%s765 + $0x1b8] sm:$0xff]
        %v6785 = vld [vmem:[%s765 + $0x1c0] sm:$0xff]
        %v6786 = vld [vmem:[%s765 + $0x1c8] sm:$0xff]
        %v6787 = vld [vmem:[%s765 + $0x1d0] sm:$0xff]
        %v6788 = vld [vmem:[%s765 + $0x1d8] sm:$0xff]
        %v6789 = vld [vmem:[%s765 + $0x1e0] sm:$0xff]
        %v6790 = vld [vmem:[%s765 + $0x1e8] sm:$0xff]
        %v6791 = vld [vmem:[%s765 + $0x1f0] sm:$0xff]
        %v6792 = vld [vmem:[%s765 + $0x1f8] sm:$0xff]
        %v6793 = vld [vmem:[%s765 + $0x200] sm:$0xff]
        %v6794 = vld [vmem:[%s765 + $0x208] sm:$0xff]
        %v6795 = vld [vmem:[%s765 + $0x210] sm:$0xff]
        %v6796 = vld [vmem:[%s765 + $0x218] sm:$0xff]
        %v6797 = vld [vmem:[%s765 + $0x220] sm:$0xff]
        %v6798 = vld [vmem:[%s765 + $0x228] sm:$0xff]
        %v6799 = vld [vmem:[%s765 + $0x230] sm:$0xff]
        %v6800 = vld [vmem:[%s765 + $0x238] sm:$0xff]
        %v6801 = vld [vmem:[%s765 + $0x240] sm:$0xff]
        %v6802 = vld [vmem:[%s765 + $0x248] sm:$0xff]
        %v6803 = vld [vmem:[%s765 + $0x250] sm:$0xff]
        %v6804 = vld [vmem:[%s765 + $0x258] sm:$0xff]
        %v6805 = vld [vmem:[%s765 + $0x260] sm:$0xff]
        %v6806 = vld [vmem:[%s765 + $0x268] sm:$0xff]
        %v6807 = vld [vmem:[%s765 + $0x270] sm:$0xff]
        %v6808 = vld [vmem:[%s765 + $0x278] sm:$0xff]
        %v6809 = vld [vmem:[%s765 + $0x280] sm:$0xff]
        %v6810 = vld [vmem:[%s765 + $0x288] sm:$0xff]
        %v6811 = vld [vmem:[%s765 + $0x290] sm:$0xff]
        %v6812 = vld [vmem:[%s765 + $0x298] sm:$0xff]
        %v6813 = vld [vmem:[%s765 + $0x2a0] sm:$0xff]
        %v6814 = vld [vmem:[%s765 + $0x2a8] sm:$0xff]
        %v6815 = vld [vmem:[%s765 + $0x2b0] sm:$0xff]
        %v6816 = vld [vmem:[%s765 + $0x2b8] sm:$0xff]
        %v6817 = vld [vmem:[%s765 + $0x2c0] sm:$0xff]
        %v6818 = vld [vmem:[%s765 + $0x2c8] sm:$0xff]
        %v6819 = vld [vmem:[%s765 + $0x2d0] sm:$0xff]
        %v6820 = vld [vmem:[%s765 + $0x2d8] sm:$0xff]
        %v6821 = vld [vmem:[%s765 + $0x2e0] sm:$0xff]
        %v6822 = vld [vmem:[%s765 + $0x2e8] sm:$0xff]
        %v6823 = vld [vmem:[%s765 + $0x2f0] sm:$0xff]
        %v6824 = vld [vmem:[%s765 + $0x2f8] sm:$0xff]
        %v6825 = vld [vmem:[%s765 + $0x300] sm:$0xff]
        %v6826 = vld [vmem:[%s765 + $0x308] sm:$0xff]
        %v6827 = vld [vmem:[%s765 + $0x310] sm:$0xff]
        %v6828 = vld [vmem:[%s765 + $0x318] sm:$0xff]
        %v6829 = vld [vmem:[%s765 + $0x320] sm:$0xff]
        %v6830 = vld [vmem:[%s765 + $0x328] sm:$0xff]
        %v6831 = vld [vmem:[%s765 + $0x330] sm:$0xff]
        %v6832 = vld [vmem:[%s765 + $0x338] sm:$0xff]
        %v6833 = vld [vmem:[%s765 + $0x340] sm:$0xff]
        %v6834 = vld [vmem:[%s765 + $0x348] sm:$0xff]
        %v6835 = vld [vmem:[%s765 + $0x350] sm:$0xff]
        %v6836 = vld [vmem:[%s765 + $0x358] sm:$0xff]
        %v6837 = vld [vmem:[%s765 + $0x360] sm:$0xff]
        %v6838 = vld [vmem:[%s765 + $0x368] sm:$0xff]
        %v6839 = vld [vmem:[%s765 + $0x370] sm:$0xff]
        %v6840 = vld [vmem:[%s765 + $0x378] sm:$0xff]
        %v6841 = vld [vmem:[%s765 + $0x380] sm:$0xff]
        %v6842 = vld [vmem:[%s765 + $0x388] sm:$0xff]
        %v6843 = vld [vmem:[%s765 + $0x390] sm:$0xff]
        %v6844 = vld [vmem:[%s765 + $0x398] sm:$0xff]
        %v6845 = vld [vmem:[%s765 + $0x3a0] sm:$0xff]
        %v6846 = vld [vmem:[%s765 + $0x3a8] sm:$0xff]
        %v6847 = vld [vmem:[%s765 + $0x3b0] sm:$0xff]
        %v6848 = vld [vmem:[%s765 + $0x3b8] sm:$0xff]
        %v6849 = vld [vmem:[%s765 + $0x3c0] sm:$0xff]
        %v6850 = vld [vmem:[%s765 + $0x3c8] sm:$0xff]
        %v6851 = vld [vmem:[%s765 + $0x3d0] sm:$0xff]
        %v6852 = vld [vmem:[%s765 + $0x3d8] sm:$0xff]
        %v6853 = vld [vmem:[%s765 + $0x3e0] sm:$0xff]
        %v6854 = vld [vmem:[%s765 + $0x3e8] sm:$0xff]
        %v6855 = vld [vmem:[%s765 + $0x3f0] sm:$0xff]
        %v6856 = vld [vmem:[%s765 + $0x3f8] sm:$0xff]
        %v6857 = vld [vmem:[%s900] sm:$0xff]
        %v6859 = vlaneseq
        %v6860 = vshrl.u32 %v6859, 7
        %v6861 = vsub.s32 0, %v6860
        %v6862 = vrot.slane %v6857, %v6861
        %v6863 = vlaneseq
        %v6864 = vshrl.u32 %v6863, 7
        %v6865 = vsub.s32 1, %v6864
        %v6866 = vrot.slane %v6857, %v6865
        %v6867 = vlaneseq
        %v6868 = vshrl.u32 %v6867, 7
        %v6869 = vsub.s32 2, %v6868
        %v6870 = vrot.slane %v6857, %v6869
        %v6871 = vlaneseq
        %v6872 = vshrl.u32 %v6871, 7
        %v6873 = vsub.s32 3, %v6872
        %v6874 = vrot.slane %v6857, %v6873
        %v6875 = vlaneseq
        %v6876 = vshrl.u32 %v6875, 7
        %v6877 = vsub.s32 4, %v6876
        %v6878 = vrot.slane %v6857, %v6877
        %v6879 = vlaneseq
        %v6880 = vshrl.u32 %v6879, 7
        %v6881 = vsub.s32 5, %v6880
        %v6882 = vrot.slane %v6857, %v6881
        %v6883 = vlaneseq
        %v6884 = vshrl.u32 %v6883, 7
        %v6885 = vsub.s32 6, %v6884
        %v6886 = vrot.slane %v6857, %v6885
        %v6887 = vlaneseq
        %v6888 = vshrl.u32 %v6887, 7
        %v6889 = vsub.s32 7, %v6888
        %v6890 = vrot.slane %v6857, %v6889
        %v7027 = vunpack.c.l.b16 %v6729
        %v7028 = vunpack.c.h.b16 %v6729
        %v7029 = vunpack.c.l.b16 %v6730
        %v7030 = vunpack.c.h.b16 %v6730
        %v7031 = vunpack.c.l.b16 %v6731
        %v7032 = vunpack.c.h.b16 %v6731
        %v7033 = vunpack.c.l.b16 %v6732
        %v7034 = vunpack.c.h.b16 %v6732
        %v7035 = vunpack.c.l.b16 %v6733
        %v7036 = vunpack.c.h.b16 %v6733
        %v7037 = vunpack.c.l.b16 %v6734
        %v7038 = vunpack.c.h.b16 %v6734
        %v7039 = vunpack.c.l.b16 %v6735
        %v7040 = vunpack.c.h.b16 %v6735
        %v7041 = vunpack.c.l.b16 %v6736
        %v7042 = vunpack.c.h.b16 %v6736
        %v7043 = vunpack.c.l.b16 %v6737
        %v7044 = vunpack.c.h.b16 %v6737
        %v7045 = vunpack.c.l.b16 %v6738
        %v7046 = vunpack.c.h.b16 %v6738
        %v7047 = vunpack.c.l.b16 %v6739
        %v7048 = vunpack.c.h.b16 %v6739
        %v7049 = vunpack.c.l.b16 %v6740
        %v7050 = vunpack.c.h.b16 %v6740
        %v7051 = vunpack.c.l.b16 %v6741
        %v7052 = vunpack.c.h.b16 %v6741
        %v7053 = vunpack.c.l.b16 %v6742
        %v7054 = vunpack.c.h.b16 %v6742
        %v7055 = vunpack.c.l.b16 %v6743
        %v7056 = vunpack.c.h.b16 %v6743
        %v7057 = vunpack.c.l.b16 %v6744
        %v7058 = vunpack.c.h.b16 %v6744
        %v7059 = vunpack.c.l.b16 %v6745
        %v7060 = vunpack.c.h.b16 %v6745
        %v7061 = vunpack.c.l.b16 %v6746
        %v7062 = vunpack.c.h.b16 %v6746
        %v7063 = vunpack.c.l.b16 %v6747
        %v7064 = vunpack.c.h.b16 %v6747
        %v7065 = vunpack.c.l.b16 %v6748
        %v7066 = vunpack.c.h.b16 %v6748
        %v7067 = vunpack.c.l.b16 %v6749
        %v7068 = vunpack.c.h.b16 %v6749
        %v7069 = vunpack.c.l.b16 %v6750
        %v7070 = vunpack.c.h.b16 %v6750
        %v7071 = vunpack.c.l.b16 %v6751
        %v7072 = vunpack.c.h.b16 %v6751
        %v7073 = vunpack.c.l.b16 %v6752
        %v7074 = vunpack.c.h.b16 %v6752
        %v7075 = vunpack.c.l.b16 %v6753
        %v7076 = vunpack.c.h.b16 %v6753
        %v7077 = vunpack.c.l.b16 %v6754
        %v7078 = vunpack.c.h.b16 %v6754
        %v7079 = vunpack.c.l.b16 %v6755
        %v7080 = vunpack.c.h.b16 %v6755
        %v7081 = vunpack.c.l.b16 %v6756
        %v7082 = vunpack.c.h.b16 %v6756
        %v7083 = vunpack.c.l.b16 %v6757
        %v7084 = vunpack.c.h.b16 %v6757
        %v7085 = vunpack.c.l.b16 %v6758
        %v7086 = vunpack.c.h.b16 %v6758
        %v7087 = vunpack.c.l.b16 %v6759
        %v7088 = vunpack.c.h.b16 %v6759
        %v7089 = vunpack.c.l.b16 %v6760
        %v7090 = vunpack.c.h.b16 %v6760
        %v7091 = vunpack.c.l.b16 %v6761
        %v7092 = vunpack.c.h.b16 %v6761
        %v7093 = vunpack.c.l.b16 %v6762
        %v7094 = vunpack.c.h.b16 %v6762
        %v7095 = vunpack.c.l.b16 %v6763
        %v7096 = vunpack.c.h.b16 %v6763
        %v7097 = vunpack.c.l.b16 %v6764
        %v7098 = vunpack.c.h.b16 %v6764
        %v7099 = vunpack.c.l.b16 %v6765
        %v7100 = vunpack.c.h.b16 %v6765
        %v7101 = vunpack.c.l.b16 %v6766
        %v7102 = vunpack.c.h.b16 %v6766
        %v7103 = vunpack.c.l.b16 %v6767
        %v7104 = vunpack.c.h.b16 %v6767
        %v7105 = vunpack.c.l.b16 %v6768
        %v7106 = vunpack.c.h.b16 %v6768
        %v7107 = vunpack.c.l.b16 %v6769
        %v7108 = vunpack.c.h.b16 %v6769
        %v7109 = vunpack.c.l.b16 %v6770
        %v7110 = vunpack.c.h.b16 %v6770
        %v7111 = vunpack.c.l.b16 %v6771
        %v7112 = vunpack.c.h.b16 %v6771
        %v7113 = vunpack.c.l.b16 %v6772
        %v7114 = vunpack.c.h.b16 %v6772
        %v7115 = vunpack.c.l.b16 %v6773
        %v7116 = vunpack.c.h.b16 %v6773
        %v7117 = vunpack.c.l.b16 %v6774
        %v7118 = vunpack.c.h.b16 %v6774
        %v7119 = vunpack.c.l.b16 %v6775
        %v7120 = vunpack.c.h.b16 %v6775
        %v7121 = vunpack.c.l.b16 %v6776
        %v7122 = vunpack.c.h.b16 %v6776
        %v7123 = vunpack.c.l.b16 %v6777
        %v7124 = vunpack.c.h.b16 %v6777
        %v7125 = vunpack.c.l.b16 %v6778
        %v7126 = vunpack.c.h.b16 %v6778
        %v7127 = vunpack.c.l.b16 %v6779
        %v7128 = vunpack.c.h.b16 %v6779
        %v7129 = vunpack.c.l.b16 %v6780
        %v7130 = vunpack.c.h.b16 %v6780
        %v7131 = vunpack.c.l.b16 %v6781
        %v7132 = vunpack.c.h.b16 %v6781
        %v7133 = vunpack.c.l.b16 %v6782
        %v7134 = vunpack.c.h.b16 %v6782
        %v7135 = vunpack.c.l.b16 %v6783
        %v7136 = vunpack.c.h.b16 %v6783
        %v7137 = vunpack.c.l.b16 %v6784
        %v7138 = vunpack.c.h.b16 %v6784
        %v7139 = vunpack.c.l.b16 %v6785
        %v7140 = vunpack.c.h.b16 %v6785
        %v7141 = vunpack.c.l.b16 %v6786
        %v7142 = vunpack.c.h.b16 %v6786
        %v7143 = vunpack.c.l.b16 %v6787
        %v7144 = vunpack.c.h.b16 %v6787
        %v7145 = vunpack.c.l.b16 %v6788
        %v7146 = vunpack.c.h.b16 %v6788
        %v7147 = vunpack.c.l.b16 %v6789
        %v7148 = vunpack.c.h.b16 %v6789
        %v7149 = vunpack.c.l.b16 %v6790
        %v7150 = vunpack.c.h.b16 %v6790
        %v7151 = vunpack.c.l.b16 %v6791
        %v7152 = vunpack.c.h.b16 %v6791
        %v7153 = vunpack.c.l.b16 %v6792
        %v7154 = vunpack.c.h.b16 %v6792
        %v7155 = vunpack.c.l.b16 %v6793
        %v7156 = vunpack.c.h.b16 %v6793
        %v7157 = vunpack.c.l.b16 %v6794
        %v7158 = vunpack.c.h.b16 %v6794
        %v7159 = vunpack.c.l.b16 %v6795
        %v7160 = vunpack.c.h.b16 %v6795
        %v7161 = vunpack.c.l.b16 %v6796
        %v7162 = vunpack.c.h.b16 %v6796
        %v7163 = vunpack.c.l.b16 %v6797
        %v7164 = vunpack.c.h.b16 %v6797
        %v7165 = vunpack.c.l.b16 %v6798
        %v7166 = vunpack.c.h.b16 %v6798
        %v7167 = vunpack.c.l.b16 %v6799
        %v7168 = vunpack.c.h.b16 %v6799
        %v7169 = vunpack.c.l.b16 %v6800
        %v7170 = vunpack.c.h.b16 %v6800
        %v7171 = vunpack.c.l.b16 %v6801
        %v7172 = vunpack.c.h.b16 %v6801
        %v7173 = vunpack.c.l.b16 %v6802
        %v7174 = vunpack.c.h.b16 %v6802
        %v7175 = vunpack.c.l.b16 %v6803
        %v7176 = vunpack.c.h.b16 %v6803
        %v7177 = vunpack.c.l.b16 %v6804
        %v7178 = vunpack.c.h.b16 %v6804
        %v7179 = vunpack.c.l.b16 %v6805
        %v7180 = vunpack.c.h.b16 %v6805
        %v7181 = vunpack.c.l.b16 %v6806
        %v7182 = vunpack.c.h.b16 %v6806
        %v7183 = vunpack.c.l.b16 %v6807
        %v7184 = vunpack.c.h.b16 %v6807
        %v7185 = vunpack.c.l.b16 %v6808
        %v7186 = vunpack.c.h.b16 %v6808
        %v7187 = vunpack.c.l.b16 %v6809
        %v7188 = vunpack.c.h.b16 %v6809
        %v7189 = vunpack.c.l.b16 %v6810
        %v7190 = vunpack.c.h.b16 %v6810
        %v7191 = vunpack.c.l.b16 %v6811
        %v7192 = vunpack.c.h.b16 %v6811
        %v7193 = vunpack.c.l.b16 %v6812
        %v7194 = vunpack.c.h.b16 %v6812
        %v7195 = vunpack.c.l.b16 %v6813
        %v7196 = vunpack.c.h.b16 %v6813
        %v7197 = vunpack.c.l.b16 %v6814
        %v7198 = vunpack.c.h.b16 %v6814
        %v7199 = vunpack.c.l.b16 %v6815
        %v7200 = vunpack.c.h.b16 %v6815
        %v7201 = vunpack.c.l.b16 %v6816
        %v7202 = vunpack.c.h.b16 %v6816
        %v7203 = vunpack.c.l.b16 %v6817
        %v7204 = vunpack.c.h.b16 %v6817
        %v7205 = vunpack.c.l.b16 %v6818
        %v7206 = vunpack.c.h.b16 %v6818
        %v7207 = vunpack.c.l.b16 %v6819
        %v7208 = vunpack.c.h.b16 %v6819
        %v7209 = vunpack.c.l.b16 %v6820
        %v7210 = vunpack.c.h.b16 %v6820
        %v7211 = vunpack.c.l.b16 %v6821
        %v7212 = vunpack.c.h.b16 %v6821
        %v7213 = vunpack.c.l.b16 %v6822
        %v7214 = vunpack.c.h.b16 %v6822
        %v7215 = vunpack.c.l.b16 %v6823
        %v7216 = vunpack.c.h.b16 %v6823
        %v7217 = vunpack.c.l.b16 %v6824
        %v7218 = vunpack.c.h.b16 %v6824
        %v7219 = vunpack.c.l.b16 %v6825
        %v7220 = vunpack.c.h.b16 %v6825
        %v7221 = vunpack.c.l.b16 %v6826
        %v7222 = vunpack.c.h.b16 %v6826
        %v7223 = vunpack.c.l.b16 %v6827
        %v7224 = vunpack.c.h.b16 %v6827
        %v7225 = vunpack.c.l.b16 %v6828
        %v7226 = vunpack.c.h.b16 %v6828
        %v7227 = vunpack.c.l.b16 %v6829
        %v7228 = vunpack.c.h.b16 %v6829
        %v7229 = vunpack.c.l.b16 %v6830
        %v7230 = vunpack.c.h.b16 %v6830
        %v7231 = vunpack.c.l.b16 %v6831
        %v7232 = vunpack.c.h.b16 %v6831
        %v7233 = vunpack.c.l.b16 %v6832
        %v7234 = vunpack.c.h.b16 %v6832
        %v7235 = vunpack.c.l.b16 %v6833
        %v7236 = vunpack.c.h.b16 %v6833
        %v7237 = vunpack.c.l.b16 %v6834
        %v7238 = vunpack.c.h.b16 %v6834
        %v7239 = vunpack.c.l.b16 %v6835
        %v7240 = vunpack.c.h.b16 %v6835
        %v7241 = vunpack.c.l.b16 %v6836
        %v7242 = vunpack.c.h.b16 %v6836
        %v7243 = vunpack.c.l.b16 %v6837
        %v7244 = vunpack.c.h.b16 %v6837
        %v7245 = vunpack.c.l.b16 %v6838
        %v7246 = vunpack.c.h.b16 %v6838
        %v7247 = vunpack.c.l.b16 %v6839
        %v7248 = vunpack.c.h.b16 %v6839
        %v7249 = vunpack.c.l.b16 %v6840
        %v7250 = vunpack.c.h.b16 %v6840
        %v7251 = vunpack.c.l.b16 %v6841
        %v7252 = vunpack.c.h.b16 %v6841
        %v7253 = vunpack.c.l.b16 %v6842
        %v7254 = vunpack.c.h.b16 %v6842
        %v7255 = vunpack.c.l.b16 %v6843
        %v7256 = vunpack.c.h.b16 %v6843
        %v7257 = vunpack.c.l.b16 %v6844
        %v7258 = vunpack.c.h.b16 %v6844
        %v7259 = vunpack.c.l.b16 %v6845
        %v7260 = vunpack.c.h.b16 %v6845
        %v7261 = vunpack.c.l.b16 %v6846
        %v7262 = vunpack.c.h.b16 %v6846
        %v7263 = vunpack.c.l.b16 %v6847
        %v7264 = vunpack.c.h.b16 %v6847
        %v7265 = vunpack.c.l.b16 %v6848
        %v7266 = vunpack.c.h.b16 %v6848
        %v7267 = vunpack.c.l.b16 %v6849
        %v7268 = vunpack.c.h.b16 %v6849
        %v7269 = vunpack.c.l.b16 %v6850
        %v7270 = vunpack.c.h.b16 %v6850
        %v7271 = vunpack.c.l.b16 %v6851
        %v7272 = vunpack.c.h.b16 %v6851
        %v7273 = vunpack.c.l.b16 %v6852
        %v7274 = vunpack.c.h.b16 %v6852
        %v7275 = vunpack.c.l.b16 %v6853
        %v7276 = vunpack.c.h.b16 %v6853
        %v7277 = vunpack.c.l.b16 %v6854
        %v7278 = vunpack.c.h.b16 %v6854
        %v7279 = vunpack.c.l.b16 %v6855
        %v7280 = vunpack.c.h.b16 %v6855
        %v7281 = vunpack.c.l.b16 %v6856
        %v7282 = vunpack.c.h.b16 %v6856
        %v7283 = vpack.c.b16 %v7035, %v7027
        %v7284 = vpack.c.b16 %v7036, %v7028
        %v7285 = vpack.c.b16 %v7037, %v7029
        %v7286 = vpack.c.b16 %v7038, %v7030
        %v7287 = vpack.c.b16 %v7039, %v7031
        %v7288 = vpack.c.b16 %v7040, %v7032
        %v7289 = vpack.c.b16 %v7041, %v7033
        %v7290 = vpack.c.b16 %v7042, %v7034
        %v7291 = vpack.c.b16 %v7051, %v7043
        %v7292 = vpack.c.b16 %v7052, %v7044
        %v7293 = vpack.c.b16 %v7053, %v7045
        %v7294 = vpack.c.b16 %v7054, %v7046
        %v7295 = vpack.c.b16 %v7055, %v7047
        %v7296 = vpack.c.b16 %v7056, %v7048
        %v7297 = vpack.c.b16 %v7057, %v7049
        %v7298 = vpack.c.b16 %v7058, %v7050
        %v7299 = vpack.c.b16 %v7067, %v7059
        %v7300 = vpack.c.b16 %v7068, %v7060
        %v7301 = vpack.c.b16 %v7069, %v7061
        %v7302 = vpack.c.b16 %v7070, %v7062
        %v7303 = vpack.c.b16 %v7071, %v7063
        %v7304 = vpack.c.b16 %v7072, %v7064
        %v7305 = vpack.c.b16 %v7073, %v7065
        %v7306 = vpack.c.b16 %v7074, %v7066
        %v7307 = vpack.c.b16 %v7083, %v7075
        %v7308 = vpack.c.b16 %v7084, %v7076
        %v7309 = vpack.c.b16 %v7085, %v7077
        %v7310 = vpack.c.b16 %v7086, %v7078
        %v7311 = vpack.c.b16 %v7087, %v7079
        %v7312 = vpack.c.b16 %v7088, %v7080
        %v7313 = vpack.c.b16 %v7089, %v7081
        %v7314 = vpack.c.b16 %v7090, %v7082
        %v7315 = vpack.c.b16 %v7099, %v7091
        %v7316 = vpack.c.b16 %v7100, %v7092
        %v7317 = vpack.c.b16 %v7101, %v7093
        %v7318 = vpack.c.b16 %v7102, %v7094
        %v7319 = vpack.c.b16 %v7103, %v7095
        %v7320 = vpack.c.b16 %v7104, %v7096
        %v7321 = vpack.c.b16 %v7105, %v7097
        %v7322 = vpack.c.b16 %v7106, %v7098
        %v7323 = vpack.c.b16 %v7115, %v7107
        %v7324 = vpack.c.b16 %v7116, %v7108
        %v7325 = vpack.c.b16 %v7117, %v7109
        %v7326 = vpack.c.b16 %v7118, %v7110
        %v7327 = vpack.c.b16 %v7119, %v7111
        %v7328 = vpack.c.b16 %v7120, %v7112
        %v7329 = vpack.c.b16 %v7121, %v7113
        %v7330 = vpack.c.b16 %v7122, %v7114
        %v7331 = vpack.c.b16 %v7131, %v7123
        %v7332 = vpack.c.b16 %v7132, %v7124
        %v7333 = vpack.c.b16 %v7133, %v7125
        %v7334 = vpack.c.b16 %v7134, %v7126
        %v7335 = vpack.c.b16 %v7135, %v7127
        %v7336 = vpack.c.b16 %v7136, %v7128
        %v7337 = vpack.c.b16 %v7137, %v7129
        %v7338 = vpack.c.b16 %v7138, %v7130
        %v7339 = vpack.c.b16 %v7147, %v7139
        %v7340 = vpack.c.b16 %v7148, %v7140
        %v7341 = vpack.c.b16 %v7149, %v7141
        %v7342 = vpack.c.b16 %v7150, %v7142
        %v7343 = vpack.c.b16 %v7151, %v7143
        %v7344 = vpack.c.b16 %v7152, %v7144
        %v7345 = vpack.c.b16 %v7153, %v7145
        %v7346 = vpack.c.b16 %v7154, %v7146
        %v7347 = vpack.c.b16 %v7163, %v7155
        %v7348 = vpack.c.b16 %v7164, %v7156
        %v7349 = vpack.c.b16 %v7165, %v7157
        %v7350 = vpack.c.b16 %v7166, %v7158
        %v7351 = vpack.c.b16 %v7167, %v7159
        %v7352 = vpack.c.b16 %v7168, %v7160
        %v7353 = vpack.c.b16 %v7169, %v7161
        %v7354 = vpack.c.b16 %v7170, %v7162
        %v7355 = vpack.c.b16 %v7179, %v7171
        %v7356 = vpack.c.b16 %v7180, %v7172
        %v7357 = vpack.c.b16 %v7181, %v7173
        %v7358 = vpack.c.b16 %v7182, %v7174
        %v7359 = vpack.c.b16 %v7183, %v7175
        %v7360 = vpack.c.b16 %v7184, %v7176
        %v7361 = vpack.c.b16 %v7185, %v7177
        %v7362 = vpack.c.b16 %v7186, %v7178
        %v7363 = vpack.c.b16 %v7195, %v7187
        %v7364 = vpack.c.b16 %v7196, %v7188
        %v7365 = vpack.c.b16 %v7197, %v7189
        %v7366 = vpack.c.b16 %v7198, %v7190
        %v7367 = vpack.c.b16 %v7199, %v7191
        %v7368 = vpack.c.b16 %v7200, %v7192
        %v7369 = vpack.c.b16 %v7201, %v7193
        %v7370 = vpack.c.b16 %v7202, %v7194
        %v7371 = vpack.c.b16 %v7211, %v7203
        %v7372 = vpack.c.b16 %v7212, %v7204
        %v7373 = vpack.c.b16 %v7213, %v7205
        %v7374 = vpack.c.b16 %v7214, %v7206
        %v7375 = vpack.c.b16 %v7215, %v7207
        %v7376 = vpack.c.b16 %v7216, %v7208
        %v7377 = vpack.c.b16 %v7217, %v7209
        %v7378 = vpack.c.b16 %v7218, %v7210
        %v7379 = vpack.c.b16 %v7227, %v7219
        %v7380 = vpack.c.b16 %v7228, %v7220
        %v7381 = vpack.c.b16 %v7229, %v7221
        %v7382 = vpack.c.b16 %v7230, %v7222
        %v7383 = vpack.c.b16 %v7231, %v7223
        %v7384 = vpack.c.b16 %v7232, %v7224
        %v7385 = vpack.c.b16 %v7233, %v7225
        %v7386 = vpack.c.b16 %v7234, %v7226
        %v7387 = vpack.c.b16 %v7243, %v7235
        %v7388 = vpack.c.b16 %v7244, %v7236
        %v7389 = vpack.c.b16 %v7245, %v7237
        %v7390 = vpack.c.b16 %v7246, %v7238
        %v7391 = vpack.c.b16 %v7247, %v7239
        %v7392 = vpack.c.b16 %v7248, %v7240
        %v7393 = vpack.c.b16 %v7249, %v7241
        %v7394 = vpack.c.b16 %v7250, %v7242
        %v7395 = vpack.c.b16 %v7259, %v7251
        %v7396 = vpack.c.b16 %v7260, %v7252
        %v7397 = vpack.c.b16 %v7261, %v7253
        %v7398 = vpack.c.b16 %v7262, %v7254
        %v7399 = vpack.c.b16 %v7263, %v7255
        %v7400 = vpack.c.b16 %v7264, %v7256
        %v7401 = vpack.c.b16 %v7265, %v7257
        %v7402 = vpack.c.b16 %v7266, %v7258
        %v7403 = vpack.c.b16 %v7275, %v7267
        %v7404 = vpack.c.b16 %v7276, %v7268
        %v7405 = vpack.c.b16 %v7277, %v7269
        %v7406 = vpack.c.b16 %v7278, %v7270
        %v7407 = vpack.c.b16 %v7279, %v7271
        %v7408 = vpack.c.b16 %v7280, %v7272
        %v7409 = vpack.c.b16 %v7281, %v7273
        %v7410 = vpack.c.b16 %v7282, %v7274
        %7539 = vmatprep.subr.bf16.mxu0 %v7284
        %7540 = vmatpush1.bf16.msra.mxu0 %v7283
        %7541 = vmatprep.subr.bf16.mxu0 %v7292
        %7542 = vmatpush1.bf16.msra.mxu0 %v7291
        %7543 = vmatprep.subr.bf16.mxu0 %v7300
        %7544 = vmatpush1.bf16.msra.mxu0 %v7299
        %7545 = vmatprep.subr.bf16.mxu0 %v7308
        %7546 = vmatpush1.bf16.msra.mxu0 %v7307
        %7547 = vmatprep.subr.bf16.mxu0 %v7316
        %7548 = vmatpush1.bf16.msra.mxu0 %v7315
        %7549 = vmatprep.subr.bf16.mxu0 %v7324
        %7550 = vmatpush1.bf16.msra.mxu0 %v7323
        %7551 = vmatprep.subr.bf16.mxu0 %v7332
        %7552 = vmatpush1.bf16.msra.mxu0 %v7331
        %7553 = vmatprep.subr.bf16.mxu0 %v7340
        %7554 = vmatpush1.bf16.msra.mxu0 %v7339
        %7555 = vmatprep.subr.bf16.mxu0 %v7348
        %7556 = vmatpush1.bf16.msra.mxu0 %v7347
        %7557 = vmatprep.subr.bf16.mxu0 %v7356
        %7558 = vmatpush1.bf16.msra.mxu0 %v7355
        %7559 = vmatprep.subr.bf16.mxu0 %v7364
        %7560 = vmatpush1.bf16.msra.mxu0 %v7363
        %7561 = vmatprep.subr.bf16.mxu0 %v7372
        %7562 = vmatpush1.bf16.msra.mxu0 %v7371
        %7563 = vmatprep.subr.bf16.mxu0 %v7380
        %7564 = vmatpush1.bf16.msra.mxu0 %v7379
        %7565 = vmatprep.subr.bf16.mxu0 %v7388
        %7566 = vmatpush1.bf16.msra.mxu0 %v7387
        %7567 = vmatprep.subr.bf16.mxu0 %v7396
        %7568 = vmatpush1.bf16.msra.mxu0 %v7395
        %7569 = vmatprep.subr.bf16.mxu0 %v7404
        %7570 = vmatpush1.bf16.msra.mxu0 %v7403
        %7571 = vmatprep.mubr.bf16.mxu0 %v6714
        %7572 = vmatmul.mubr.bf16.gmra.mrb[0].mxu0 %v6713
        %v7573 = vpop.f32.mrb[0].mxu0
        %v7574 = vadd.f32 %v6862, %v7573
        %v7575 = vpop.f32.mrb[0].mxu0
        %v7576 = vadd.f32 %v6866, %v7575
        %v7577 = vpop.f32.mrb[0].mxu0
        %v7578 = vadd.f32 %v6862, %v7577
        %v7579 = vpop.f32.mrb[0].mxu0
        %v7580 = vadd.f32 %v6866, %v7579
        %7581 = vmatprep.mubr.bf16.mxu0 %v6716
        %7582 = vmatmul.mubr.bf16.gmra.mrb[0].mxu0 %v6715
        %v7583 = vpop.f32.mrb[0].mxu0
        %v7584 = vadd.f32 %v6862, %v7583
        %v7585 = vpop.f32.mrb[0].mxu0
        %v7586 = vadd.f32 %v6866, %v7585
        %v7587 = vpop.f32.mrb[0].mxu0
        %v7588 = vadd.f32 %v6862, %v7587
        %v7589 = vpop.f32.mrb[0].mxu0
        %v7590 = vadd.f32 %v6866, %v7589
        %7591 = vmatprep.mubr.bf16.mxu0 %v6718
        %7592 = vmatmul.mubr.bf16.gmra.mrb[0].mxu0 %v6717
        %v7593 = vpop.f32.mrb[0].mxu0
        %v7594 = vadd.f32 %v6862, %v7593
        %v7595 = vpop.f32.mrb[0].mxu0
        %v7596 = vadd.f32 %v6866, %v7595
        %v7597 = vpop.f32.mrb[0].mxu0
        %v7598 = vadd.f32 %v6862, %v7597
        %v7599 = vpop.f32.mrb[0].mxu0
        %v7600 = vadd.f32 %v6866, %v7599
        %7601 = vmatprep.mubr.bf16.mxu0 %v6720
        %7602 = vmatmul.mubr.bf16.gmra.mrb[0].mxu0 %v6719
        %v7603 = vpop.f32.mrb[0].mxu0
        %v7604 = vadd.f32 %v6862, %v7603
        %v7605 = vpop.f32.mrb[0].mxu0
        %v7606 = vadd.f32 %v6866, %v7605
        %v7607 = vpop.f32.mrb[0].mxu0
        %v7608 = vadd.f32 %v6862, %v7607
        %v7609 = vpop.f32.mrb[0].mxu0
        %v7610 = vadd.f32 %v6866, %v7609
        %7611 = vmatprep.mubr.bf16.mxu0 %v6722
        %7612 = vmatmul.mubr.bf16.gmra.mrb[0].mxu0 %v6721
        %v7613 = vpop.f32.mrb[0].mxu0
        %v7614 = vadd.f32 %v6862, %v7613
        %v7615 = vpop.f32.mrb[0].mxu0
        %v7616 = vadd.f32 %v6866, %v7615
        %v7617 = vpop.f32.mrb[0].mxu0
        %v7618 = vadd.f32 %v6862, %v7617
        %v7619 = vpop.f32.mrb[0].mxu0
        %v7620 = vadd.f32 %v6866, %v7619
        %7621 = vmatprep.mubr.bf16.mxu0 %v6724
        %7622 = vmatmul.mubr.bf16.gmra.mrb[0].mxu0 %v6723
        %v7623 = vpop.f32.mrb[0].mxu0
        %v7624 = vadd.f32 %v6862, %v7623
        %v7625 = vpop.f32.mrb[0].mxu0
        %v7626 = vadd.f32 %v6866, %v7625
        %v7627 = vpop.f32.mrb[0].mxu0
        %v7628 = vadd.f32 %v6862, %v7627
        %v7629 = vpop.f32.mrb[0].mxu0
        %v7630 = vadd.f32 %v6866, %v7629
        %7631 = vmatprep.mubr.bf16.mxu0 %v6726
        %7632 = vmatmul.mubr.bf16.gmra.mrb[0].mxu0 %v6725
        %v7633 = vpop.f32.mrb[0].mxu0
        %v7634 = vadd.f32 %v6862, %v7633
        %v7635 = vpop.f32.mrb[0].mxu0
        %v7636 = vadd.f32 %v6866, %v7635
        %v7637 = vpop.f32.mrb[0].mxu0
        %v7638 = vadd.f32 %v6862, %v7637
        %v7639 = vpop.f32.mrb[0].mxu0
        %v7640 = vadd.f32 %v6866, %v7639
        %7641 = vmatprep.mubr.bf16.mxu0 %v6728
        %7642 = vmatmul.mubr.bf16.gmra.mrb[0].mxu0 %v6727
        %v7643 = vpop.f32.mrb[0].mxu0
        %v7644 = vadd.f32 %v6862, %v7643
        %v7645 = vpop.f32.mrb[0].mxu0
        %v7646 = vadd.f32 %v6866, %v7645
        %v7647 = vpop.f32.mrb[0].mxu0
        %v7648 = vadd.f32 %v6862, %v7647
        %v7649 = vpop.f32.mrb[0].mxu0
        %v7650 = vadd.f32 %v6866, %v7649
        %7651 = vdwg.mxu0
        %7652 = vmatprep.subr.bf16.mxu0 %v7286
        %7653 = vmatpush1.bf16.msra.mxu0 %v7285
        %7654 = vmatprep.subr.bf16.mxu0 %v7294
        %7655 = vmatpush1.bf16.msra.mxu0 %v7293
        %7656 = vmatprep.subr.bf16.mxu0 %v7302
        %7657 = vmatpush1.bf16.msra.mxu0 %v7301
        %7658 = vmatprep.subr.bf16.mxu0 %v7310
        %7659 = vmatpush1.bf16.msra.mxu0 %v7309
        %7660 = vmatprep.subr.bf16.mxu0 %v7318
        %7661 = vmatpush1.bf16.msra.mxu0 %v7317
        %7662 = vmatprep.subr.bf16.mxu0 %v7326
        %7663 = vmatpush1.bf16.msra.mxu0 %v7325
        %7664 = vmatprep.subr.bf16.mxu0 %v7334
        %7665 = vmatpush1.bf16.msra.mxu0 %v7333
        %7666 = vmatprep.subr.bf16.mxu0 %v7342
        %7667 = vmatpush1.bf16.msra.mxu0 %v7341
        %7668 = vmatprep.subr.bf16.mxu0 %v7350
        %7669 = vmatpush1.bf16.msra.mxu0 %v7349
        %7670 = vmatprep.subr.bf16.mxu0 %v7358
        %7671 = vmatpush1.bf16.msra.mxu0 %v7357
        %7672 = vmatprep.subr.bf16.mxu0 %v7366
        %7673 = vmatpush1.bf16.msra.mxu0 %v7365
        %7674 = vmatprep.subr.bf16.mxu0 %v7374
        %7675 = vmatpush1.bf16.msra.mxu0 %v7373
        %7676 = vmatprep.subr.bf16.mxu0 %v7382
        %7677 = vmatpush1.bf16.msra.mxu0 %v7381
        %7678 = vmatprep.subr.bf16.mxu0 %v7390
        %7679 = vmatpush1.bf16.msra.mxu0 %v7389
        %7680 = vmatprep.subr.bf16.mxu0 %v7398
        %7681 = vmatpush1.bf16.msra.mxu0 %v7397
        %7682 = vmatprep.subr.bf16.mxu0 %v7406
        %7683 = vmatpush1.bf16.msra.mxu0 %v7405
        %7684 = vmatprep.mubr.bf16.mxu0 %v6714
        %7685 = vmatmul.mubr.bf16.gmra.mrb[0].mxu0 %v6713
        %v7686 = vpop.f32.mrb[0].mxu0
        %v7687 = vadd.f32 %v6870, %v7686
        %v7688 = vpop.f32.mrb[0].mxu0
        %v7689 = vadd.f32 %v6874, %v7688
        %v7690 = vpop.f32.mrb[0].mxu0
        %v7691 = vadd.f32 %v6870, %v7690
        %v7692 = vpop.f32.mrb[0].mxu0
        %v7693 = vadd.f32 %v6874, %v7692
        %7694 = vmatprep.mubr.bf16.mxu0 %v6716
        %7695 = vmatmul.mubr.bf16.gmra.mrb[0].mxu0 %v6715
        %v7696 = vpop.f32.mrb[0].mxu0
        %v7697 = vadd.f32 %v6870, %v7696
        %v7698 = vpop.f32.mrb[0].mxu0
        %v7699 = vadd.f32 %v6874, %v7698
        %v7700 = vpop.f32.mrb[0].mxu0
        %v7701 = vadd.f32 %v6870, %v7700
        %v7702 = vpop.f32.mrb[0].mxu0
        %v7703 = vadd.f32 %v6874, %v7702
        %7704 = vmatprep.mubr.bf16.mxu0 %v6718
        %7705 = vmatmul.mubr.bf16.gmra.mrb[0].mxu0 %v6717
        %v7706 = vpop.f32.mrb[0].mxu0
        %v7707 = vadd.f32 %v6870, %v7706
        %v7708 = vpop.f32.mrb[0].mxu0
        %v7709 = vadd.f32 %v6874, %v7708
        %v7710 = vpop.f32.mrb[0].mxu0
        %v7711 = vadd.f32 %v6870, %v7710
        %v7712 = vpop.f32.mrb[0].mxu0
        %v7713 = vadd.f32 %v6874, %v7712
        %7714 = vmatprep.mubr.bf16.mxu0 %v6720
        %7715 = vmatmul.mubr.bf16.gmra.mrb[0].mxu0 %v6719
        %v7716 = vpop.f32.mrb[0].mxu0
        %v7717 = vadd.f32 %v6870, %v7716
        %v7718 = vpop.f32.mrb[0].mxu0
        %v7719 = vadd.f32 %v6874, %v7718
        %v7720 = vpop.f32.mrb[0].mxu0
        %v7721 = vadd.f32 %v6870, %v7720
        %v7722 = vpop.f32.mrb[0].mxu0
        %v7723 = vadd.f32 %v6874, %v7722
        %7724 = vmatprep.mubr.bf16.mxu0 %v6722
        %7725 = vmatmul.mubr.bf16.gmra.mrb[0].mxu0 %v6721
        %v7726 = vpop.f32.mrb[0].mxu0
        %v7727 = vadd.f32 %v6870, %v7726
        %v7728 = vpop.f32.mrb[0].mxu0
        %v7729 = vadd.f32 %v6874, %v7728
        %v7730 = vpop.f32.mrb[0].mxu0
        %v7731 = vadd.f32 %v6870, %v7730
        %v7732 = vpop.f32.mrb[0].mxu0
        %v7733 = vadd.f32 %v6874, %v7732
        %7734 = vmatprep.mubr.bf16.mxu0 %v6724
        %7735 = vmatmul.mubr.bf16.gmra.mrb[0].mxu0 %v6723
        %v7736 = vpop.f32.mrb[0].mxu0
        %v7737 = vadd.f32 %v6870, %v7736
        %v7738 = vpop.f32.mrb[0].mxu0
        %v7739 = vadd.f32 %v6874, %v7738
        %v7740 = vpop.f32.mrb[0].mxu0
        %v7741 = vadd.f32 %v6870, %v7740
        %v7742 = vpop.f32.mrb[0].mxu0
        %v7743 = vadd.f32 %v6874, %v7742
        %7744 = vmatprep.mubr.bf16.mxu0 %v6726
        %7745 = vmatmul.mubr.bf16.gmra.mrb[0].mxu0 %v6725
        %v7746 = vpop.f32.mrb[0].mxu0
        %v7747 = vadd.f32 %v6870, %v7746
        %v7748 = vpop.f32.mrb[0].mxu0
        %v7749 = vadd.f32 %v6874, %v7748
        %v7750 = vpop.f32.mrb[0].mxu0
        %v7751 = vadd.f32 %v6870, %v7750
        %v7752 = vpop.f32.mrb[0].mxu0
        %v7753 = vadd.f32 %v6874, %v7752
        %7754 = vmatprep.mubr.bf16.mxu0 %v6728
        %7755 = vmatmul.mubr.bf16.gmra.mrb[0].mxu0 %v6727
        %v7756 = vpop.f32.mrb[0].mxu0
        %v7757 = vadd.f32 %v6870, %v7756
        %v7758 = vpop.f32.mrb[0].mxu0
        %v7759 = vadd.f32 %v6874, %v7758
        %v7760 = vpop.f32.mrb[0].mxu0
        %v7761 = vadd.f32 %v6870, %v7760
        %v7762 = vpop.f32.mrb[0].mxu0
        %v7763 = vadd.f32 %v6874, %v7762
        %7764 = vdwg.mxu0
        %7765 = vmatprep.subr.bf16.mxu0 %v7288
        %7766 = vmatpush1.bf16.msra.mxu0 %v7287
        %7767 = vmatprep.subr.bf16.mxu0 %v7296
        %7768 = vmatpush1.bf16.msra.mxu0 %v7295
        %7769 = vmatprep.subr.bf16.mxu0 %v7304
        %7770 = vmatpush1.bf16.msra.mxu0 %v7303
        %7771 = vmatprep.subr.bf16.mxu0 %v7312
        %7772 = vmatpush1.bf16.msra.mxu0 %v7311
        %7773 = vmatprep.subr.bf16.mxu0 %v7320
        %7774 = vmatpush1.bf16.msra.mxu0 %v7319
        %7775 = vmatprep.subr.bf16.mxu0 %v7328
        %7776 = vmatpush1.bf16.msra.mxu0 %v7327
        %7777 = vmatprep.subr.bf16.mxu0 %v7336
        %7778 = vmatpush1.bf16.msra.mxu0 %v7335
        %7779 = vmatprep.subr.bf16.mxu0 %v7344
        %7780 = vmatpush1.bf16.msra.mxu0 %v7343
        %7781 = vmatprep.subr.bf16.mxu0 %v7352
        %7782 = vmatpush1.bf16.msra.mxu0 %v7351
        %7783 = vmatprep.subr.bf16.mxu0 %v7360
        %7784 = vmatpush1.bf16.msra.mxu0 %v7359
        %7785 = vmatprep.subr.bf16.mxu0 %v7368
        %7786 = vmatpush1.bf16.msra.mxu0 %v7367
        %7787 = vmatprep.subr.bf16.mxu0 %v7376
        %7788 = vmatpush1.bf16.msra.mxu0 %v7375
        %7789 = vmatprep.subr.bf16.mxu0 %v7384
        %7790 = vmatpush1.bf16.msra.mxu0 %v7383
        %7791 = vmatprep.subr.bf16.mxu0 %v7392
        %7792 = vmatpush1.bf16.msra.mxu0 %v7391
        %7793 = vmatprep.subr.bf16.mxu0 %v7400
        %7794 = vmatpush1.bf16.msra.mxu0 %v7399
        %7795 = vmatprep.subr.bf16.mxu0 %v7408
        %7796 = vmatpush1.bf16.msra.mxu0 %v7407
        %7797 = vmatprep.mubr.bf16.mxu0 %v6714
        %7798 = vmatmul.mubr.bf16.gmra.mrb[0].mxu0 %v6713
        %v7799 = vpop.f32.mrb[0].mxu0
        %v7800 = vadd.f32 %v6878, %v7799
        %v7801 = vpop.f32.mrb[0].mxu0
        %v7802 = vadd.f32 %v6882, %v7801
        %v7803 = vpop.f32.mrb[0].mxu0
        %v7804 = vadd.f32 %v6878, %v7803
        %v7805 = vpop.f32.mrb[0].mxu0
        %v7806 = vadd.f32 %v6882, %v7805
        %7807 = vmatprep.mubr.bf16.mxu0 %v6716
        %7808 = vmatmul.mubr.bf16.gmra.mrb[0].mxu0 %v6715
        %v7809 = vpop.f32.mrb[0].mxu0
        %v7810 = vadd.f32 %v6878, %v7809
        %v7811 = vpop.f32.mrb[0].mxu0
        %v7812 = vadd.f32 %v6882, %v7811
        %v7813 = vpop.f32.mrb[0].mxu0
        %v7814 = vadd.f32 %v6878, %v7813
        %v7815 = vpop.f32.mrb[0].mxu0
        %v7816 = vadd.f32 %v6882, %v7815
        %7817 = vmatprep.mubr.bf16.mxu0 %v6718
        %7818 = vmatmul.mubr.bf16.gmra.mrb[0].mxu0 %v6717
        %v7819 = vpop.f32.mrb[0].mxu0
        %v7820 = vadd.f32 %v6878, %v7819
        %v7821 = vpop.f32.mrb[0].mxu0
        %v7822 = vadd.f32 %v6882, %v7821
        %v7823 = vpop.f32.mrb[0].mxu0
        %v7824 = vadd.f32 %v6878, %v7823
        %v7825 = vpop.f32.mrb[0].mxu0
        %v7826 = vadd.f32 %v6882, %v7825
        %7827 = vmatprep.mubr.bf16.mxu0 %v6720
        %7828 = vmatmul.mubr.bf16.gmra.mrb[0].mxu0 %v6719
        %v7829 = vpop.f32.mrb[0].mxu0
        %v7830 = vadd.f32 %v6878, %v7829
        %v7831 = vpop.f32.mrb[0].mxu0
        %v7832 = vadd.f32 %v6882, %v7831
        %v7833 = vpop.f32.mrb[0].mxu0
        %v7834 = vadd.f32 %v6878, %v7833
        %v7835 = vpop.f32.mrb[0].mxu0
        %v7836 = vadd.f32 %v6882, %v7835
        %7837 = vmatprep.mubr.bf16.mxu0 %v6722
        %7838 = vmatmul.mubr.bf16.gmra.mrb[0].mxu0 %v6721
        %v7839 = vpop.f32.mrb[0].mxu0
        %v7840 = vadd.f32 %v6878, %v7839
        %v7841 = vpop.f32.mrb[0].mxu0
        %v7842 = vadd.f32 %v6882, %v7841
        %v7843 = vpop.f32.mrb[0].mxu0
        %v7844 = vadd.f32 %v6878, %v7843
        %v7845 = vpop.f32.mrb[0].mxu0
        %v7846 = vadd.f32 %v6882, %v7845
        %7847 = vmatprep.mubr.bf16.mxu0 %v6724
        %7848 = vmatmul.mubr.bf16.gmra.mrb[0].mxu0 %v6723
        %v7849 = vpop.f32.mrb[0].mxu0
        %v7850 = vadd.f32 %v6878, %v7849
        %v7851 = vpop.f32.mrb[0].mxu0
        %v7852 = vadd.f32 %v6882, %v7851
        %v7853 = vpop.f32.mrb[0].mxu0
        %v7854 = vadd.f32 %v6878, %v7853
        %v7855 = vpop.f32.mrb[0].mxu0
        %v7856 = vadd.f32 %v6882, %v7855
        %7857 = vmatprep.mubr.bf16.mxu0 %v6726
        %7858 = vmatmul.mubr.bf16.gmra.mrb[0].mxu0 %v6725
        %v7859 = vpop.f32.mrb[0].mxu0
        %v7860 = vadd.f32 %v6878, %v7859
        %v7861 = vpop.f32.mrb[0].mxu0
        %v7862 = vadd.f32 %v6882, %v7861
        %v7863 = vpop.f32.mrb[0].mxu0
        %v7864 = vadd.f32 %v6878, %v7863
        %v7865 = vpop.f32.mrb[0].mxu0
        %v7866 = vadd.f32 %v6882, %v7865
        %7867 = vmatprep.mubr.bf16.mxu0 %v6728
        %7868 = vmatmul.mubr.bf16.gmra.mrb[0].mxu0 %v6727
        %v7869 = vpop.f32.mrb[0].mxu0
        %v7870 = vadd.f32 %v6878, %v7869
        %v7871 = vpop.f32.mrb[0].mxu0
        %v7872 = vadd.f32 %v6882, %v7871
        %v7873 = vpop.f32.mrb[0].mxu0
        %v7874 = vadd.f32 %v6878, %v7873
        %v7875 = vpop.f32.mrb[0].mxu0
        %v7876 = vadd.f32 %v6882, %v7875
        %7877 = vdwg.mxu0
        %7878 = vmatprep.subr.bf16.mxu0 %v7290
        %7879 = vmatpush1.bf16.msra.mxu0 %v7289
        %7880 = vmatprep.subr.bf16.mxu0 %v7298
        %7881 = vmatpush1.bf16.msra.mxu0 %v7297
        %7882 = vmatprep.subr.bf16.mxu0 %v7306
        %7883 = vmatpush1.bf16.msra.mxu0 %v7305
        %7884 = vmatprep.subr.bf16.mxu0 %v7314
        %7885 = vmatpush1.bf16.msra.mxu0 %v7313
        %7886 = vmatprep.subr.bf16.mxu0 %v7322
        %7887 = vmatpush1.bf16.msra.mxu0 %v7321
        %7888 = vmatprep.subr.bf16.mxu0 %v7330
        %7889 = vmatpush1.bf16.msra.mxu0 %v7329
        %7890 = vmatprep.subr.bf16.mxu0 %v7338
        %7891 = vmatpush1.bf16.msra.mxu0 %v7337
        %7892 = vmatprep.subr.bf16.mxu0 %v7346
        %7893 = vmatpush1.bf16.msra.mxu0 %v7345
        %7894 = vmatprep.subr.bf16.mxu0 %v7354
        %7895 = vmatpush1.bf16.msra.mxu0 %v7353
        %7896 = vmatprep.subr.bf16.mxu0 %v7362
        %7897 = vmatpush1.bf16.msra.mxu0 %v7361
        %7898 = vmatprep.subr.bf16.mxu0 %v7370
        %7899 = vmatpush1.bf16.msra.mxu0 %v7369
        %7900 = vmatprep.subr.bf16.mxu0 %v7378
        %7901 = vmatpush1.bf16.msra.mxu0 %v7377
        %7902 = vmatprep.subr.bf16.mxu0 %v7386
        %7903 = vmatpush1.bf16.msra.mxu0 %v7385
        %7904 = vmatprep.subr.bf16.mxu0 %v7394
        %7905 = vmatpush1.bf16.msra.mxu0 %v7393
        %7906 = vmatprep.subr.bf16.mxu0 %v7402
        %7907 = vmatpush1.bf16.msra.mxu0 %v7401
        %7908 = vmatprep.subr.bf16.mxu0 %v7410
        %7909 = vmatpush1.bf16.msra.mxu0 %v7409
        %7910 = vmatprep.mubr.bf16.mxu0 %v6714
        %7911 = vmatmul.mubr.bf16.gmra.mrb[0].mxu0 %v6713
        %v7912 = vpop.f32.mrb[0].mxu0
        %v7913 = vadd.f32 %v6886, %v7912
        %v7914 = vpop.f32.mrb[0].mxu0
        %v7915 = vadd.f32 %v6890, %v7914
        %v7916 = vpop.f32.mrb[0].mxu0
        %v7917 = vadd.f32 %v6886, %v7916
        %v7918 = vpop.f32.mrb[0].mxu0
        %v7919 = vadd.f32 %v6890, %v7918
        %7920 = vmatprep.mubr.bf16.mxu0 %v6716
        %7921 = vmatmul.mubr.bf16.gmra.mrb[0].mxu0 %v6715
        %v7922 = vpop.f32.mrb[0].mxu0
        %v7923 = vadd.f32 %v6886, %v7922
        %v7924 = vpop.f32.mrb[0].mxu0
        %v7925 = vadd.f32 %v6890, %v7924
        %v7926 = vpop.f32.mrb[0].mxu0
        %v7927 = vadd.f32 %v6886, %v7926
        %v7928 = vpop.f32.mrb[0].mxu0
        %v7929 = vadd.f32 %v6890, %v7928
        %7930 = vmatprep.mubr.bf16.mxu0 %v6718
        %7931 = vmatmul.mubr.bf16.gmra.mrb[0].mxu0 %v6717
        %v7932 = vpop.f32.mrb[0].mxu0
        %v7933 = vadd.f32 %v6886, %v7932
        %v7934 = vpop.f32.mrb[0].mxu0
        %v7935 = vadd.f32 %v6890, %v7934
        %v7936 = vpop.f32.mrb[0].mxu0
        %v7937 = vadd.f32 %v6886, %v7936
        %v7938 = vpop.f32.mrb[0].mxu0
        %v7939 = vadd.f32 %v6890, %v7938
        %7940 = vmatprep.mubr.bf16.mxu0 %v6720
        %7941 = vmatmul.mubr.bf16.gmra.mrb[0].mxu0 %v6719
        %v7942 = vpop.f32.mrb[0].mxu0
        %v7943 = vadd.f32 %v6886, %v7942
        %v7944 = vpop.f32.mrb[0].mxu0
        %v7945 = vadd.f32 %v6890, %v7944
        %v7946 = vpop.f32.mrb[0].mxu0
        %v7947 = vadd.f32 %v6886, %v7946
        %v7948 = vpop.f32.mrb[0].mxu0
        %v7949 = vadd.f32 %v6890, %v7948
        %7950 = vmatprep.mubr.bf16.mxu0 %v6722
        %7951 = vmatmul.mubr.bf16.gmra.mrb[0].mxu0 %v6721
        %v7952 = vpop.f32.mrb[0].mxu0
        %v7953 = vadd.f32 %v6886, %v7952
        %v7954 = vpop.f32.mrb[0].mxu0
        %v7955 = vadd.f32 %v6890, %v7954
        %v7956 = vpop.f32.mrb[0].mxu0
        %v7957 = vadd.f32 %v6886, %v7956
        %v7958 = vpop.f32.mrb[0].mxu0
        %v7959 = vadd.f32 %v6890, %v7958
        %7960 = vmatprep.mubr.bf16.mxu0 %v6724
        %7961 = vmatmul.mubr.bf16.gmra.mrb[0].mxu0 %v6723
        %v7962 = vpop.f32.mrb[0].mxu0
        %v7963 = vadd.f32 %v6886, %v7962
        %v7964 = vpop.f32.mrb[0].mxu0
        %v7965 = vadd.f32 %v6890, %v7964
        %v7966 = vpop.f32.mrb[0].mxu0
        %v7967 = vadd.f32 %v6886, %v7966
        %v7968 = vpop.f32.mrb[0].mxu0
        %v7969 = vadd.f32 %v6890, %v7968
        %7970 = vmatprep.mubr.bf16.mxu0 %v6726
        %7971 = vmatmul.mubr.bf16.gmra.mrb[0].mxu0 %v6725
        %v7972 = vpop.f32.mrb[0].mxu0
        %v7973 = vadd.f32 %v6886, %v7972
        %v7974 = vpop.f32.mrb[0].mxu0
        %v7975 = vadd.f32 %v6890, %v7974
        %v7976 = vpop.f32.mrb[0].mxu0
        %v7977 = vadd.f32 %v6886, %v7976
        %v7978 = vpop.f32.mrb[0].mxu0
        %v7979 = vadd.f32 %v6890, %v7978
        %7980 = vmatprep.mubr.bf16.mxu0 %v6728
        %7981 = vmatmul.mubr.bf16.gmra.mrb[0].mxu0 %v6727
        %v7982 = vpop.f32.mrb[0].mxu0
        %v7983 = vadd.f32 %v6886, %v7982
        %v7984 = vpop.f32.mrb[0].mxu0
        %v7985 = vadd.f32 %v6890, %v7984
        %v7986 = vpop.f32.mrb[0].mxu0
        %v7987 = vadd.f32 %v6886, %v7986
        %v7988 = vpop.f32.mrb[0].mxu0
        %v7989 = vadd.f32 %v6890, %v7988
        %7990 = vdwg.mxu0
        %v7991 = vmul.f32 %v7574, 0.5
        %v7992 = vmul.f32 %v7576, 0.5
        %v7993 = vmul.f32 %v7687, 0.5
        %v7994 = vmul.f32 %v7689, 0.5
        %v7995 = vmul.f32 %v7800, 0.5
        %v7996 = vmul.f32 %v7802, 0.5
        %v7997 = vmul.f32 %v7913, 0.5
        %v7998 = vmul.f32 %v7915, 0.5
        %v7999 = vmul.f32 %v7578, 0.5
        %v8000 = vmul.f32 %v7580, 0.5
        %v8001 = vmul.f32 %v7691, 0.5
        %v8002 = vmul.f32 %v7693, 0.5
        %v8003 = vmul.f32 %v7804, 0.5
        %v8004 = vmul.f32 %v7806, 0.5
        %v8005 = vmul.f32 %v7917, 0.5
        %v8006 = vmul.f32 %v7919, 0.5
        %v8007 = vmul.f32 %v7584, 0.5
        %v8008 = vmul.f32 %v7586, 0.5
        %v8009 = vmul.f32 %v7697, 0.5
        %v8010 = vmul.f32 %v7699, 0.5
        %v8011 = vmul.f32 %v7810, 0.5
        %v8012 = vmul.f32 %v7812, 0.5
        %v8013 = vmul.f32 %v7923, 0.5
        %v8014 = vmul.f32 %v7925, 0.5
        %v8015 = vmul.f32 %v7588, 0.5
        %v8016 = vmul.f32 %v7590, 0.5
        %v8017 = vmul.f32 %v7701, 0.5
        %v8018 = vmul.f32 %v7703, 0.5
        %v8019 = vmul.f32 %v7814, 0.5
        %v8020 = vmul.f32 %v7816, 0.5
        %v8021 = vmul.f32 %v7927, 0.5
        %v8022 = vmul.f32 %v7929, 0.5
        %v8023 = vmul.f32 %v7594, 0.5
        %v8024 = vmul.f32 %v7596, 0.5
        %v8025 = vmul.f32 %v7707, 0.5
        %v8026 = vmul.f32 %v7709, 0.5
        %v8027 = vmul.f32 %v7820, 0.5
        %v8028 = vmul.f32 %v7822, 0.5
        %v8029 = vmul.f32 %v7933, 0.5
        %v8030 = vmul.f32 %v7935, 0.5
        %v8031 = vmul.f32 %v7598, 0.5
        %v8032 = vmul.f32 %v7600, 0.5
        %v8033 = vmul.f32 %v7711, 0.5
        %v8034 = vmul.f32 %v7713, 0.5
        %v8035 = vmul.f32 %v7824, 0.5
        %v8036 = vmul.f32 %v7826, 0.5
        %v8037 = vmul.f32 %v7937, 0.5
        %v8038 = vmul.f32 %v7939, 0.5
        %v8039 = vmul.f32 %v7604, 0.5
        %v8040 = vmul.f32 %v7606, 0.5
        %v8041 = vmul.f32 %v7717, 0.5
        %v8042 = vmul.f32 %v7719, 0.5
        %v8043 = vmul.f32 %v7830, 0.5
        %v8044 = vmul.f32 %v7832, 0.5
        %v8045 = vmul.f32 %v7943, 0.5
        %v8046 = vmul.f32 %v7945, 0.5
        %v8047 = vmul.f32 %v7608, 0.5
        %v8048 = vmul.f32 %v7610, 0.5
        %v8049 = vmul.f32 %v7721, 0.5
        %v8050 = vmul.f32 %v7723, 0.5
        %v8051 = vmul.f32 %v7834, 0.5
        %v8052 = vmul.f32 %v7836, 0.5
        %v8053 = vmul.f32 %v7947, 0.5
        %v8054 = vmul.f32 %v7949, 0.5
        %v8055 = vmul.f32 %v7614, 0.5
        %v8056 = vmul.f32 %v7616, 0.5
        %v8057 = vmul.f32 %v7727, 0.5
        %v8058 = vmul.f32 %v7729, 0.5
        %v8059 = vmul.f32 %v7840, 0.5
        %v8060 = vmul.f32 %v7842, 0.5
        %v8061 = vmul.f32 %v7953, 0.5
        %v8062 = vmul.f32 %v7955, 0.5
        %v8063 = vmul.f32 %v7618, 0.5
        %v8064 = vmul.f32 %v7620, 0.5
        %v8065 = vmul.f32 %v7731, 0.5
        %v8066 = vmul.f32 %v7733, 0.5
        %v8067 = vmul.f32 %v7844, 0.5
        %v8068 = vmul.f32 %v7846, 0.5
        %v8069 = vmul.f32 %v7957, 0.5
        %v8070 = vmul.f32 %v7959, 0.5
        %v8071 = vmul.f32 %v7624, 0.5
        %v8072 = vmul.f32 %v7626, 0.5
        %v8073 = vmul.f32 %v7737, 0.5
        %v8074 = vmul.f32 %v7739, 0.5
        %v8075 = vmul.f32 %v7850, 0.5
        %v8076 = vmul.f32 %v7852, 0.5
        %v8077 = vmul.f32 %v7963, 0.5
        %v8078 = vmul.f32 %v7965, 0.5
        %v8079 = vmul.f32 %v7628, 0.5
        %v8080 = vmul.f32 %v7630, 0.5
        %v8081 = vmul.f32 %v7741, 0.5
        %v8082 = vmul.f32 %v7743, 0.5
        %v8083 = vmul.f32 %v7854, 0.5
        %v8084 = vmul.f32 %v7856, 0.5
        %v8085 = vmul.f32 %v7967, 0.5
        %v8086 = vmul.f32 %v7969, 0.5
        %v8087 = vmul.f32 %v7634, 0.5
        %v8088 = vmul.f32 %v7636, 0.5
        %v8089 = vmul.f32 %v7747, 0.5
        %v8090 = vmul.f32 %v7749, 0.5
        %v8091 = vmul.f32 %v7860, 0.5
        %v8092 = vmul.f32 %v7862, 0.5
        %v8093 = vmul.f32 %v7973, 0.5
        %v8094 = vmul.f32 %v7975, 0.5
        %v8095 = vmul.f32 %v7638, 0.5
        %v8096 = vmul.f32 %v7640, 0.5
        %v8097 = vmul.f32 %v7751, 0.5
        %v8098 = vmul.f32 %v7753, 0.5
        %v8099 = vmul.f32 %v7864, 0.5
        %v8100 = vmul.f32 %v7866, 0.5
        %v8101 = vmul.f32 %v7977, 0.5
        %v8102 = vmul.f32 %v7979, 0.5
        %v8103 = vmul.f32 %v7644, 0.5
        %v8104 = vmul.f32 %v7646, 0.5
        %v8105 = vmul.f32 %v7757, 0.5
        %v8106 = vmul.f32 %v7759, 0.5
        %v8107 = vmul.f32 %v7870, 0.5
        %v8108 = vmul.f32 %v7872, 0.5
        %v8109 = vmul.f32 %v7983, 0.5
        %v8110 = vmul.f32 %v7985, 0.5
        %v8111 = vmul.f32 %v7648, 0.5
        %v8112 = vmul.f32 %v7650, 0.5
        %v8113 = vmul.f32 %v7761, 0.5
        %v8114 = vmul.f32 %v7763, 0.5
        %v8115 = vmul.f32 %v7874, 0.5
        %v8116 = vmul.f32 %v7876, 0.5
        %v8117 = vmul.f32 %v7987, 0.5
        %v8118 = vmul.f32 %v7989, 0.5
        %v8119 = vmul.f32 %v7574, %v7574
        %v8120 = vmul.f32 %v7576, %v7576
        %v8121 = vmul.f32 %v7687, %v7687
        %v8122 = vmul.f32 %v7689, %v7689
        %v8123 = vmul.f32 %v7800, %v7800
        %v8124 = vmul.f32 %v7802, %v7802
        %v8125 = vmul.f32 %v7913, %v7913
        %v8126 = vmul.f32 %v7915, %v7915
        %v8127 = vmul.f32 %v7578, %v7578
        %v8128 = vmul.f32 %v7580, %v7580
        %v8129 = vmul.f32 %v7691, %v7691
        %v8130 = vmul.f32 %v7693, %v7693
        %v8131 = vmul.f32 %v7804, %v7804
        %v8132 = vmul.f32 %v7806, %v7806
        %v8133 = vmul.f32 %v7917, %v7917
        %v8134 = vmul.f32 %v7919, %v7919
        %v8135 = vmul.f32 %v7584, %v7584
        %v8136 = vmul.f32 %v7586, %v7586
        %v8137 = vmul.f32 %v7697, %v7697
        %v8138 = vmul.f32 %v7699, %v7699
        %v8139 = vmul.f32 %v7810, %v7810
        %v8140 = vmul.f32 %v7812, %v7812
        %v8141 = vmul.f32 %v7923, %v7923
        %v8142 = vmul.f32 %v7925, %v7925
        %v8143 = vmul.f32 %v7588, %v7588
        %v8144 = vmul.f32 %v7590, %v7590
        %v8145 = vmul.f32 %v7701, %v7701
        %v8146 = vmul.f32 %v7703, %v7703
        %v8147 = vmul.f32 %v7814, %v7814
        %v8148 = vmul.f32 %v7816, %v7816
        %v8149 = vmul.f32 %v7927, %v7927
        %v8150 = vmul.f32 %v7929, %v7929
        %v8151 = vmul.f32 %v7594, %v7594
        %v8152 = vmul.f32 %v7596, %v7596
        %v8153 = vmul.f32 %v7707, %v7707
        %v8154 = vmul.f32 %v7709, %v7709
        %v8155 = vmul.f32 %v7820, %v7820
        %v8156 = vmul.f32 %v7822, %v7822
        %v8157 = vmul.f32 %v7933, %v7933
        %v8158 = vmul.f32 %v7935, %v7935
        %v8159 = vmul.f32 %v7598, %v7598
        %v8160 = vmul.f32 %v7600, %v7600
        %v8161 = vmul.f32 %v7711, %v7711
        %v8162 = vmul.f32 %v7713, %v7713
        %v8163 = vmul.f32 %v7824, %v7824
        %v8164 = vmul.f32 %v7826, %v7826
        %v8165 = vmul.f32 %v7937, %v7937
        %v8166 = vmul.f32 %v7939, %v7939
        %v8167 = vmul.f32 %v7604, %v7604
        %v8168 = vmul.f32 %v7606, %v7606
        %v8169 = vmul.f32 %v7717, %v7717
        %v8170 = vmul.f32 %v7719, %v7719
        %v8171 = vmul.f32 %v7830, %v7830
        %v8172 = vmul.f32 %v7832, %v7832
        %v8173 = vmul.f32 %v7943, %v7943
        %v8174 = vmul.f32 %v7945, %v7945
        %v8175 = vmul.f32 %v7608, %v7608
        %v8176 = vmul.f32 %v7610, %v7610
        %v8177 = vmul.f32 %v7721, %v7721
        %v8178 = vmul.f32 %v7723, %v7723
        %v8179 = vmul.f32 %v7834, %v7834
        %v8180 = vmul.f32 %v7836, %v7836
        %v8181 = vmul.f32 %v7947, %v7947
        %v8182 = vmul.f32 %v7949, %v7949
        %v8183 = vmul.f32 %v7614, %v7614
        %v8184 = vmul.f32 %v7616, %v7616
        %v8185 = vmul.f32 %v7727, %v7727
        %v8186 = vmul.f32 %v7729, %v7729
        %v8187 = vmul.f32 %v7840, %v7840
        %v8188 = vmul.f32 %v7842, %v7842
        %v8189 = vmul.f32 %v7953, %v7953
        %v8190 = vmul.f32 %v7955, %v7955
        %v8191 = vmul.f32 %v7618, %v7618
        %v8192 = vmul.f32 %v7620, %v7620
        %v8193 = vmul.f32 %v7731, %v7731
        %v8194 = vmul.f32 %v7733, %v7733
        %v8195 = vmul.f32 %v7844, %v7844
        %v8196 = vmul.f32 %v7846, %v7846
        %v8197 = vmul.f32 %v7957, %v7957
        %v8198 = vmul.f32 %v7959, %v7959
        %v8199 = vmul.f32 %v7624, %v7624
        %v8200 = vmul.f32 %v7626, %v7626
        %v8201 = vmul.f32 %v7737, %v7737
        %v8202 = vmul.f32 %v7739, %v7739
        %v8203 = vmul.f32 %v7850, %v7850
        %v8204 = vmul.f32 %v7852, %v7852
        %v8205 = vmul.f32 %v7963, %v7963
        %v8206 = vmul.f32 %v7965, %v7965
        %v8207 = vmul.f32 %v7628, %v7628
        %v8208 = vmul.f32 %v7630, %v7630
        %v8209 = vmul.f32 %v7741, %v7741
        %v8210 = vmul.f32 %v7743, %v7743
        %v8211 = vmul.f32 %v7854, %v7854
        %v8212 = vmul.f32 %v7856, %v7856
        %v8213 = vmul.f32 %v7967, %v7967
        %v8214 = vmul.f32 %v7969, %v7969
        %v8215 = vmul.f32 %v7634, %v7634
        %v8216 = vmul.f32 %v7636, %v7636
        %v8217 = vmul.f32 %v7747, %v7747
        %v8218 = vmul.f32 %v7749, %v7749
        %v8219 = vmul.f32 %v7860, %v7860
        %v8220 = vmul.f32 %v7862, %v7862
        %v8221 = vmul.f32 %v7973, %v7973
        %v8222 = vmul.f32 %v7975, %v7975
        %v8223 = vmul.f32 %v7638, %v7638
        %v8224 = vmul.f32 %v7640, %v7640
        %v8225 = vmul.f32 %v7751, %v7751
        %v8226 = vmul.f32 %v7753, %v7753
        %v8227 = vmul.f32 %v7864, %v7864
        %v8228 = vmul.f32 %v7866, %v7866
        %v8229 = vmul.f32 %v7977, %v7977
        %v8230 = vmul.f32 %v7979, %v7979
        %v8231 = vmul.f32 %v7644, %v7644
        %v8232 = vmul.f32 %v7646, %v7646
        %v8233 = vmul.f32 %v7757, %v7757
        %v8234 = vmul.f32 %v7759, %v7759
        %v8235 = vmul.f32 %v7870, %v7870
        %v8236 = vmul.f32 %v7872, %v7872
        %v8237 = vmul.f32 %v7983, %v7983
        %v8238 = vmul.f32 %v7985, %v7985
        %v8239 = vmul.f32 %v7648, %v7648
        %v8240 = vmul.f32 %v7650, %v7650
        %v8241 = vmul.f32 %v7761, %v7761
        %v8242 = vmul.f32 %v7763, %v7763
        %v8243 = vmul.f32 %v7874, %v7874
        %v8244 = vmul.f32 %v7876, %v7876
        %v8245 = vmul.f32 %v7987, %v7987
        %v8246 = vmul.f32 %v7989, %v7989
        %v8247 = vmul.f32 %v8119, %v7574
        %v8248 = vmul.f32 %v8120, %v7576
        %v8249 = vmul.f32 %v8121, %v7687
        %v8250 = vmul.f32 %v8122, %v7689
        %v8251 = vmul.f32 %v8123, %v7800
        %v8252 = vmul.f32 %v8124, %v7802
        %v8253 = vmul.f32 %v8125, %v7913
        %v8254 = vmul.f32 %v8126, %v7915
        %v8255 = vmul.f32 %v8127, %v7578
        %v8256 = vmul.f32 %v8128, %v7580
        %v8257 = vmul.f32 %v8129, %v7691
        %v8258 = vmul.f32 %v8130, %v7693
        %v8259 = vmul.f32 %v8131, %v7804
        %v8260 = vmul.f32 %v8132, %v7806
        %v8261 = vmul.f32 %v8133, %v7917
        %v8262 = vmul.f32 %v8134, %v7919
        %v8263 = vmul.f32 %v8135, %v7584
        %v8264 = vmul.f32 %v8136, %v7586
        %v8265 = vmul.f32 %v8137, %v7697
        %v8266 = vmul.f32 %v8138, %v7699
        %v8267 = vmul.f32 %v8139, %v7810
        %v8268 = vmul.f32 %v8140, %v7812
        %v8269 = vmul.f32 %v8141, %v7923
        %v8270 = vmul.f32 %v8142, %v7925
        %v8271 = vmul.f32 %v8143, %v7588
        %v8272 = vmul.f32 %v8144, %v7590
        %v8273 = vmul.f32 %v8145, %v7701
        %v8274 = vmul.f32 %v8146, %v7703
        %v8275 = vmul.f32 %v8147, %v7814
        %v8276 = vmul.f32 %v8148, %v7816
        %v8277 = vmul.f32 %v8149, %v7927
        %v8278 = vmul.f32 %v8150, %v7929
        %v8279 = vmul.f32 %v8151, %v7594
        %v8280 = vmul.f32 %v8152, %v7596
        %v8281 = vmul.f32 %v8153, %v7707
        %v8282 = vmul.f32 %v8154, %v7709
        %v8283 = vmul.f32 %v8155, %v7820
        %v8284 = vmul.f32 %v8156, %v7822
        %v8285 = vmul.f32 %v8157, %v7933
        %v8286 = vmul.f32 %v8158, %v7935
        %v8287 = vmul.f32 %v8159, %v7598
        %v8288 = vmul.f32 %v8160, %v7600
        %v8289 = vmul.f32 %v8161, %v7711
        %v8290 = vmul.f32 %v8162, %v7713
        %v8291 = vmul.f32 %v8163, %v7824
        %v8292 = vmul.f32 %v8164, %v7826
        %v8293 = vmul.f32 %v8165, %v7937
        %v8294 = vmul.f32 %v8166, %v7939
        %v8295 = vmul.f32 %v8167, %v7604
        %v8296 = vmul.f32 %v8168, %v7606
        %v8297 = vmul.f32 %v8169, %v7717
        %v8298 = vmul.f32 %v8170, %v7719
        %v8299 = vmul.f32 %v8171, %v7830
        %v8300 = vmul.f32 %v8172, %v7832
        %v8301 = vmul.f32 %v8173, %v7943
        %v8302 = vmul.f32 %v8174, %v7945
        %v8303 = vmul.f32 %v8175, %v7608
        %v8304 = vmul.f32 %v8176, %v7610
        %v8305 = vmul.f32 %v8177, %v7721
        %v8306 = vmul.f32 %v8178, %v7723
        %v8307 = vmul.f32 %v8179, %v7834
        %v8308 = vmul.f32 %v8180, %v7836
        %v8309 = vmul.f32 %v8181, %v7947
        %v8310 = vmul.f32 %v8182, %v7949
        %v8311 = vmul.f32 %v8183, %v7614
        %v8312 = vmul.f32 %v8184, %v7616
        %v8313 = vmul.f32 %v8185, %v7727
        %v8314 = vmul.f32 %v8186, %v7729
        %v8315 = vmul.f32 %v8187, %v7840
        %v8316 = vmul.f32 %v8188, %v7842
        %v8317 = vmul.f32 %v8189, %v7953
        %v8318 = vmul.f32 %v8190, %v7955
        %v8319 = vmul.f32 %v8191, %v7618
        %v8320 = vmul.f32 %v8192, %v7620
        %v8321 = vmul.f32 %v8193, %v7731
        %v8322 = vmul.f32 %v8194, %v7733
        %v8323 = vmul.f32 %v8195, %v7844
        %v8324 = vmul.f32 %v8196, %v7846
        %v8325 = vmul.f32 %v8197, %v7957
        %v8326 = vmul.f32 %v8198, %v7959
        %v8327 = vmul.f32 %v8199, %v7624
        %v8328 = vmul.f32 %v8200, %v7626
        %v8329 = vmul.f32 %v8201, %v7737
        %v8330 = vmul.f32 %v8202, %v7739
        %v8331 = vmul.f32 %v8203, %v7850
        %v8332 = vmul.f32 %v8204, %v7852
        %v8333 = vmul.f32 %v8205, %v7963
        %v8334 = vmul.f32 %v8206, %v7965
        %v8335 = vmul.f32 %v8207, %v7628
        %v8336 = vmul.f32 %v8208, %v7630
        %v8337 = vmul.f32 %v8209, %v7741
        %v8338 = vmul.f32 %v8210, %v7743
        %v8339 = vmul.f32 %v8211, %v7854
        %v8340 = vmul.f32 %v8212, %v7856
        %v8341 = vmul.f32 %v8213, %v7967
        %v8342 = vmul.f32 %v8214, %v7969
        %v8343 = vmul.f32 %v8215, %v7634
        %v8344 = vmul.f32 %v8216, %v7636
        %v8345 = vmul.f32 %v8217, %v7747
        %v8346 = vmul.f32 %v8218, %v7749
        %v8347 = vmul.f32 %v8219, %v7860
        %v8348 = vmul.f32 %v8220, %v7862
        %v8349 = vmul.f32 %v8221, %v7973
        %v8350 = vmul.f32 %v8222, %v7975
        %v8351 = vmul.f32 %v8223, %v7638
        %v8352 = vmul.f32 %v8224, %v7640
        %v8353 = vmul.f32 %v8225, %v7751
        %v8354 = vmul.f32 %v8226, %v7753
        %v8355 = vmul.f32 %v8227, %v7864
        %v8356 = vmul.f32 %v8228, %v7866
        %v8357 = vmul.f32 %v8229, %v7977
        %v8358 = vmul.f32 %v8230, %v7979
        %v8359 = vmul.f32 %v8231, %v7644
        %v8360 = vmul.f32 %v8232, %v7646
        %v8361 = vmul.f32 %v8233, %v7757
        %v8362 = vmul.f32 %v8234, %v7759
        %v8363 = vmul.f32 %v8235, %v7870
        %v8364 = vmul.f32 %v8236, %v7872
        %v8365 = vmul.f32 %v8237, %v7983
        %v8366 = vmul.f32 %v8238, %v7985
        %v8367 = vmul.f32 %v8239, %v7648
        %v8368 = vmul.f32 %v8240, %v7650
        %v8369 = vmul.f32 %v8241, %v7761
        %v8370 = vmul.f32 %v8242, %v7763
        %v8371 = vmul.f32 %v8243, %v7874
        %v8372 = vmul.f32 %v8244, %v7876
        %v8373 = vmul.f32 %v8245, %v7987
        %v8374 = vmul.f32 %v8246, %v7989
        %v8375 = vmul.f32 %v8247, 0.044715
        %v8376 = vmul.f32 %v8248, 0.044715
        %v8377 = vmul.f32 %v8249, 0.044715
        %v8378 = vmul.f32 %v8250, 0.044715
        %v8379 = vmul.f32 %v8251, 0.044715
        %v8380 = vmul.f32 %v8252, 0.044715
        %v8381 = vmul.f32 %v8253, 0.044715
        %v8382 = vmul.f32 %v8254, 0.044715
        %v8383 = vmul.f32 %v8255, 0.044715
        %v8384 = vmul.f32 %v8256, 0.044715
        %v8385 = vmul.f32 %v8257, 0.044715
        %v8386 = vmul.f32 %v8258, 0.044715
        %v8387 = vmul.f32 %v8259, 0.044715
        %v8388 = vmul.f32 %v8260, 0.044715
        %v8389 = vmul.f32 %v8261, 0.044715
        %v8390 = vmul.f32 %v8262, 0.044715
        %v8391 = vmul.f32 %v8263, 0.044715
        %v8392 = vmul.f32 %v8264, 0.044715
        %v8393 = vmul.f32 %v8265, 0.044715
        %v8394 = vmul.f32 %v8266, 0.044715
        %v8395 = vmul.f32 %v8267, 0.044715
        %v8396 = vmul.f32 %v8268, 0.044715
        %v8397 = vmul.f32 %v8269, 0.044715
        %v8398 = vmul.f32 %v8270, 0.044715
        %v8399 = vmul.f32 %v8271, 0.044715
        %v8400 = vmul.f32 %v8272, 0.044715
        %v8401 = vmul.f32 %v8273, 0.044715
        %v8402 = vmul.f32 %v8274, 0.044715
        %v8403 = vmul.f32 %v8275, 0.044715
        %v8404 = vmul.f32 %v8276, 0.044715
        %v8405 = vmul.f32 %v8277, 0.044715
        %v8406 = vmul.f32 %v8278, 0.044715
        %v8407 = vmul.f32 %v8279, 0.044715
        %v8408 = vmul.f32 %v8280, 0.044715
        %v8409 = vmul.f32 %v8281, 0.044715
        %v8410 = vmul.f32 %v8282, 0.044715
        %v8411 = vmul.f32 %v8283, 0.044715
        %v8412 = vmul.f32 %v8284, 0.044715
        %v8413 = vmul.f32 %v8285, 0.044715
        %v8414 = vmul.f32 %v8286, 0.044715
        %v8415 = vmul.f32 %v8287, 0.044715
        %v8416 = vmul.f32 %v8288, 0.044715
        %v8417 = vmul.f32 %v8289, 0.044715
        %v8418 = vmul.f32 %v8290, 0.044715
        %v8419 = vmul.f32 %v8291, 0.044715
        %v8420 = vmul.f32 %v8292, 0.044715
        %v8421 = vmul.f32 %v8293, 0.044715
        %v8422 = vmul.f32 %v8294, 0.044715
        %v8423 = vmul.f32 %v8295, 0.044715
        %v8424 = vmul.f32 %v8296, 0.044715
        %v8425 = vmul.f32 %v8297, 0.044715
        %v8426 = vmul.f32 %v8298, 0.044715
        %v8427 = vmul.f32 %v8299, 0.044715
        %v8428 = vmul.f32 %v8300, 0.044715
        %v8429 = vmul.f32 %v8301, 0.044715
        %v8430 = vmul.f32 %v8302, 0.044715
        %v8431 = vmul.f32 %v8303, 0.044715
        %v8432 = vmul.f32 %v8304, 0.044715
        %v8433 = vmul.f32 %v8305, 0.044715
        %v8434 = vmul.f32 %v8306, 0.044715
        %v8435 = vmul.f32 %v8307, 0.044715
        %v8436 = vmul.f32 %v8308, 0.044715
        %v8437 = vmul.f32 %v8309, 0.044715
        %v8438 = vmul.f32 %v8310, 0.044715
        %v8439 = vmul.f32 %v8311, 0.044715
        %v8440 = vmul.f32 %v8312, 0.044715
        %v8441 = vmul.f32 %v8313, 0.044715
        %v8442 = vmul.f32 %v8314, 0.044715
        %v8443 = vmul.f32 %v8315, 0.044715
        %v8444 = vmul.f32 %v8316, 0.044715
        %v8445 = vmul.f32 %v8317, 0.044715
        %v8446 = vmul.f32 %v8318, 0.044715
        %v8447 = vmul.f32 %v8319, 0.044715
        %v8448 = vmul.f32 %v8320, 0.044715
        %v8449 = vmul.f32 %v8321, 0.044715
        %v8450 = vmul.f32 %v8322, 0.044715
        %v8451 = vmul.f32 %v8323, 0.044715
        %v8452 = vmul.f32 %v8324, 0.044715
        %v8453 = vmul.f32 %v8325, 0.044715
        %v8454 = vmul.f32 %v8326, 0.044715
        %v8455 = vmul.f32 %v8327, 0.044715
        %v8456 = vmul.f32 %v8328, 0.044715
        %v8457 = vmul.f32 %v8329, 0.044715
        %v8458 = vmul.f32 %v8330, 0.044715
        %v8459 = vmul.f32 %v8331, 0.044715
        %v8460 = vmul.f32 %v8332, 0.044715
        %v8461 = vmul.f32 %v8333, 0.044715
        %v8462 = vmul.f32 %v8334, 0.044715
        %v8463 = vmul.f32 %v8335, 0.044715
        %v8464 = vmul.f32 %v8336, 0.044715
        %v8465 = vmul.f32 %v8337, 0.044715
        %v8466 = vmul.f32 %v8338, 0.044715
        %v8467 = vmul.f32 %v8339, 0.044715
        %v8468 = vmul.f32 %v8340, 0.044715
        %v8469 = vmul.f32 %v8341, 0.044715
        %v8470 = vmul.f32 %v8342, 0.044715
        %v8471 = vmul.f32 %v8343, 0.044715
        %v8472 = vmul.f32 %v8344, 0.044715
        %v8473 = vmul.f32 %v8345, 0.044715
        %v8474 = vmul.f32 %v8346, 0.044715
        %v8475 = vmul.f32 %v8347, 0.044715
        %v8476 = vmul.f32 %v8348, 0.044715
        %v8477 = vmul.f32 %v8349, 0.044715
        %v8478 = vmul.f32 %v8350, 0.044715
        %v8479 = vmul.f32 %v8351, 0.044715
        %v8480 = vmul.f32 %v8352, 0.044715
        %v8481 = vmul.f32 %v8353, 0.044715
        %v8482 = vmul.f32 %v8354, 0.044715
        %v8483 = vmul.f32 %v8355, 0.044715
        %v8484 = vmul.f32 %v8356, 0.044715
        %v8485 = vmul.f32 %v8357, 0.044715
        %v8486 = vmul.f32 %v8358, 0.044715
        %v8487 = vmul.f32 %v8359, 0.044715
        %v8488 = vmul.f32 %v8360, 0.044715
        %v8489 = vmul.f32 %v8361, 0.044715
        %v8490 = vmul.f32 %v8362, 0.044715
        %v8491 = vmul.f32 %v8363, 0.044715
        %v8492 = vmul.f32 %v8364, 0.044715
        %v8493 = vmul.f32 %v8365, 0.044715
        %v8494 = vmul.f32 %v8366, 0.044715
        %v8495 = vmul.f32 %v8367, 0.044715
        %v8496 = vmul.f32 %v8368, 0.044715
        %v8497 = vmul.f32 %v8369, 0.044715
        %v8498 = vmul.f32 %v8370, 0.044715
        %v8499 = vmul.f32 %v8371, 0.044715
        %v8500 = vmul.f32 %v8372, 0.044715
        %v8501 = vmul.f32 %v8373, 0.044715
        %v8502 = vmul.f32 %v8374, 0.044715
        %v8503 = vadd.f32 %v7574, %v8375
        %v8504 = vadd.f32 %v7576, %v8376
        %v8505 = vadd.f32 %v7687, %v8377
        %v8506 = vadd.f32 %v7689, %v8378
        %v8507 = vadd.f32 %v7800, %v8379
        %v8508 = vadd.f32 %v7802, %v8380
        %v8509 = vadd.f32 %v7913, %v8381
        %v8510 = vadd.f32 %v7915, %v8382
        %v8511 = vadd.f32 %v7578, %v8383
        %v8512 = vadd.f32 %v7580, %v8384
        %v8513 = vadd.f32 %v7691, %v8385
        %v8514 = vadd.f32 %v7693, %v8386
        %v8515 = vadd.f32 %v7804, %v8387
        %v8516 = vadd.f32 %v7806, %v8388
        %v8517 = vadd.f32 %v7917, %v8389
        %v8518 = vadd.f32 %v7919, %v8390
        %v8519 = vadd.f32 %v7584, %v8391
        %v8520 = vadd.f32 %v7586, %v8392
        %v8521 = vadd.f32 %v7697, %v8393
        %v8522 = vadd.f32 %v7699, %v8394
        %v8523 = vadd.f32 %v7810, %v8395
        %v8524 = vadd.f32 %v7812, %v8396
        %v8525 = vadd.f32 %v7923, %v8397
        %v8526 = vadd.f32 %v7925, %v8398
        %v8527 = vadd.f32 %v7588, %v8399
        %v8528 = vadd.f32 %v7590, %v8400
        %v8529 = vadd.f32 %v7701, %v8401
        %v8530 = vadd.f32 %v7703, %v8402
        %v8531 = vadd.f32 %v7814, %v8403
        %v8532 = vadd.f32 %v7816, %v8404
        %v8533 = vadd.f32 %v7927, %v8405
        %v8534 = vadd.f32 %v7929, %v8406
        %v8535 = vadd.f32 %v7594, %v8407
        %v8536 = vadd.f32 %v7596, %v8408
        %v8537 = vadd.f32 %v7707, %v8409
        %v8538 = vadd.f32 %v7709, %v8410
        %v8539 = vadd.f32 %v7820, %v8411
        %v8540 = vadd.f32 %v7822, %v8412
        %v8541 = vadd.f32 %v7933, %v8413
        %v8542 = vadd.f32 %v7935, %v8414
        %v8543 = vadd.f32 %v7598, %v8415
        %v8544 = vadd.f32 %v7600, %v8416
        %v8545 = vadd.f32 %v7711, %v8417
        %v8546 = vadd.f32 %v7713, %v8418
        %v8547 = vadd.f32 %v7824, %v8419
        %v8548 = vadd.f32 %v7826, %v8420
        %v8549 = vadd.f32 %v7937, %v8421
        %v8550 = vadd.f32 %v7939, %v8422
        %v8551 = vadd.f32 %v7604, %v8423
        %v8552 = vadd.f32 %v7606, %v8424
        %v8553 = vadd.f32 %v7717, %v8425
        %v8554 = vadd.f32 %v7719, %v8426
        %v8555 = vadd.f32 %v7830, %v8427
        %v8556 = vadd.f32 %v7832, %v8428
        %v8557 = vadd.f32 %v7943, %v8429
        %v8558 = vadd.f32 %v7945, %v8430
        %v8559 = vadd.f32 %v7608, %v8431
        %v8560 = vadd.f32 %v7610, %v8432
        %v8561 = vadd.f32 %v7721, %v8433
        %v8562 = vadd.f32 %v7723, %v8434
        %v8563 = vadd.f32 %v7834, %v8435
        %v8564 = vadd.f32 %v7836, %v8436
        %v8565 = vadd.f32 %v7947, %v8437
        %v8566 = vadd.f32 %v7949, %v8438
        %v8567 = vadd.f32 %v7614, %v8439
        %v8568 = vadd.f32 %v7616, %v8440
        %v8569 = vadd.f32 %v7727, %v8441
        %v8570 = vadd.f32 %v7729, %v8442
        %v8571 = vadd.f32 %v7840, %v8443
        %v8572 = vadd.f32 %v7842, %v8444
        %v8573 = vadd.f32 %v7953, %v8445
        %v8574 = vadd.f32 %v7955, %v8446
        %v8575 = vadd.f32 %v7618, %v8447
        %v8576 = vadd.f32 %v7620, %v8448
        %v8577 = vadd.f32 %v7731, %v8449
        %v8578 = vadd.f32 %v7733, %v8450
        %v8579 = vadd.f32 %v7844, %v8451
        %v8580 = vadd.f32 %v7846, %v8452
        %v8581 = vadd.f32 %v7957, %v8453
        %v8582 = vadd.f32 %v7959, %v8454
        %v8583 = vadd.f32 %v7624, %v8455
        %v8584 = vadd.f32 %v7626, %v8456
        %v8585 = vadd.f32 %v7737, %v8457
        %v8586 = vadd.f32 %v7739, %v8458
        %v8587 = vadd.f32 %v7850, %v8459
        %v8588 = vadd.f32 %v7852, %v8460
        %v8589 = vadd.f32 %v7963, %v8461
        %v8590 = vadd.f32 %v7965, %v8462
        %v8591 = vadd.f32 %v7628, %v8463
        %v8592 = vadd.f32 %v7630, %v8464
        %v8593 = vadd.f32 %v7741, %v8465
        %v8594 = vadd.f32 %v7743, %v8466
        %v8595 = vadd.f32 %v7854, %v8467
        %v8596 = vadd.f32 %v7856, %v8468
        %v8597 = vadd.f32 %v7967, %v8469
        %v8598 = vadd.f32 %v7969, %v8470
        %v8599 = vadd.f32 %v7634, %v8471
        %v8600 = vadd.f32 %v7636, %v8472
        %v8601 = vadd.f32 %v7747, %v8473
        %v8602 = vadd.f32 %v7749, %v8474
        %v8603 = vadd.f32 %v7860, %v8475
        %v8604 = vadd.f32 %v7862, %v8476
        %v8605 = vadd.f32 %v7973, %v8477
        %v8606 = vadd.f32 %v7975, %v8478
        %v8607 = vadd.f32 %v7638, %v8479
        %v8608 = vadd.f32 %v7640, %v8480
        %v8609 = vadd.f32 %v7751, %v8481
        %v8610 = vadd.f32 %v7753, %v8482
        %v8611 = vadd.f32 %v7864, %v8483
        %v8612 = vadd.f32 %v7866, %v8484
        %v8613 = vadd.f32 %v7977, %v8485
        %v8614 = vadd.f32 %v7979, %v8486
        %v8615 = vadd.f32 %v7644, %v8487
        %v8616 = vadd.f32 %v7646, %v8488
        %v8617 = vadd.f32 %v7757, %v8489
        %v8618 = vadd.f32 %v7759, %v8490
        %v8619 = vadd.f32 %v7870, %v8491
        %v8620 = vadd.f32 %v7872, %v8492
        %v8621 = vadd.f32 %v7983, %v8493
        %v8622 = vadd.f32 %v7985, %v8494
        %v8623 = vadd.f32 %v7648, %v8495
        %v8624 = vadd.f32 %v7650, %v8496
        %v8625 = vadd.f32 %v7761, %v8497
        %v8626 = vadd.f32 %v7763, %v8498
        %v8627 = vadd.f32 %v7874, %v8499
        %v8628 = vadd.f32 %v7876, %v8500
        %v8629 = vadd.f32 %v7987, %v8501
        %v8630 = vadd.f32 %v7989, %v8502
        %v8631 = vmul.f32 %v8503, 0.7978846
        %v8632 = vmul.f32 %v8504, 0.7978846
        %v8633 = vmul.f32 %v8505, 0.7978846
        %v8634 = vmul.f32 %v8506, 0.7978846
        %v8635 = vmul.f32 %v8507, 0.7978846
        %v8636 = vmul.f32 %v8508, 0.7978846
        %v8637 = vmul.f32 %v8509, 0.7978846
        %v8638 = vmul.f32 %v8510, 0.7978846
        %v8639 = vmul.f32 %v8511, 0.7978846
        %v8640 = vmul.f32 %v8512, 0.7978846
        %v8641 = vmul.f32 %v8513, 0.7978846
        %v8642 = vmul.f32 %v8514, 0.7978846
        %v8643 = vmul.f32 %v8515, 0.7978846
        %v8644 = vmul.f32 %v8516, 0.7978846
        %v8645 = vmul.f32 %v8517, 0.7978846
        %v8646 = vmul.f32 %v8518, 0.7978846
        %v8647 = vmul.f32 %v8519, 0.7978846
        %v8648 = vmul.f32 %v8520, 0.7978846
        %v8649 = vmul.f32 %v8521, 0.7978846
        %v8650 = vmul.f32 %v8522, 0.7978846
        %v8651 = vmul.f32 %v8523, 0.7978846
        %v8652 = vmul.f32 %v8524, 0.7978846
        %v8653 = vmul.f32 %v8525, 0.7978846
        %v8654 = vmul.f32 %v8526, 0.7978846
        %v8655 = vmul.f32 %v8527, 0.7978846
        %v8656 = vmul.f32 %v8528, 0.7978846
        %v8657 = vmul.f32 %v8529, 0.7978846
        %v8658 = vmul.f32 %v8530, 0.7978846
        %v8659 = vmul.f32 %v8531, 0.7978846
        %v8660 = vmul.f32 %v8532, 0.7978846
        %v8661 = vmul.f32 %v8533, 0.7978846
        %v8662 = vmul.f32 %v8534, 0.7978846
        %v8663 = vmul.f32 %v8535, 0.7978846
        %v8664 = vmul.f32 %v8536, 0.7978846
        %v8665 = vmul.f32 %v8537, 0.7978846
        %v8666 = vmul.f32 %v8538, 0.7978846
        %v8667 = vmul.f32 %v8539, 0.7978846
        %v8668 = vmul.f32 %v8540, 0.7978846
        %v8669 = vmul.f32 %v8541, 0.7978846
        %v8670 = vmul.f32 %v8542, 0.7978846
        %v8671 = vmul.f32 %v8543, 0.7978846
        %v8672 = vmul.f32 %v8544, 0.7978846
        %v8673 = vmul.f32 %v8545, 0.7978846
        %v8674 = vmul.f32 %v8546, 0.7978846
        %v8675 = vmul.f32 %v8547, 0.7978846
        %v8676 = vmul.f32 %v8548, 0.7978846
        %v8677 = vmul.f32 %v8549, 0.7978846
        %v8678 = vmul.f32 %v8550, 0.7978846
        %v8679 = vmul.f32 %v8551, 0.7978846
        %v8680 = vmul.f32 %v8552, 0.7978846
        %v8681 = vmul.f32 %v8553, 0.7978846
        %v8682 = vmul.f32 %v8554, 0.7978846
        %v8683 = vmul.f32 %v8555, 0.7978846
        %v8684 = vmul.f32 %v8556, 0.7978846
        %v8685 = vmul.f32 %v8557, 0.7978846
        %v8686 = vmul.f32 %v8558, 0.7978846
        %v8687 = vmul.f32 %v8559, 0.7978846
        %v8688 = vmul.f32 %v8560, 0.7978846
        %v8689 = vmul.f32 %v8561, 0.7978846
        %v8690 = vmul.f32 %v8562, 0.7978846
        %v8691 = vmul.f32 %v8563, 0.7978846
        %v8692 = vmul.f32 %v8564, 0.7978846
        %v8693 = vmul.f32 %v8565, 0.7978846
        %v8694 = vmul.f32 %v8566, 0.7978846
        %v8695 = vmul.f32 %v8567, 0.7978846
        %v8696 = vmul.f32 %v8568, 0.7978846
        %v8697 = vmul.f32 %v8569, 0.7978846
        %v8698 = vmul.f32 %v8570, 0.7978846
        %v8699 = vmul.f32 %v8571, 0.7978846
        %v8700 = vmul.f32 %v8572, 0.7978846
        %v8701 = vmul.f32 %v8573, 0.7978846
        %v8702 = vmul.f32 %v8574, 0.7978846
        %v8703 = vmul.f32 %v8575, 0.7978846
        %v8704 = vmul.f32 %v8576, 0.7978846
        %v8705 = vmul.f32 %v8577, 0.7978846
        %v8706 = vmul.f32 %v8578, 0.7978846
        %v8707 = vmul.f32 %v8579, 0.7978846
        %v8708 = vmul.f32 %v8580, 0.7978846
        %v8709 = vmul.f32 %v8581, 0.7978846
        %v8710 = vmul.f32 %v8582, 0.7978846
        %v8711 = vmul.f32 %v8583, 0.7978846
        %v8712 = vmul.f32 %v8584, 0.7978846
        %v8713 = vmul.f32 %v8585, 0.7978846
        %v8714 = vmul.f32 %v8586, 0.7978846
        %v8715 = vmul.f32 %v8587, 0.7978846
        %v8716 = vmul.f32 %v8588, 0.7978846
        %v8717 = vmul.f32 %v8589, 0.7978846
        %v8718 = vmul.f32 %v8590, 0.7978846
        %v8719 = vmul.f32 %v8591, 0.7978846
        %v8720 = vmul.f32 %v8592, 0.7978846
        %v8721 = vmul.f32 %v8593, 0.7978846
        %v8722 = vmul.f32 %v8594, 0.7978846
        %v8723 = vmul.f32 %v8595, 0.7978846
        %v8724 = vmul.f32 %v8596, 0.7978846
        %v8725 = vmul.f32 %v8597, 0.7978846
        %v8726 = vmul.f32 %v8598, 0.7978846
        %v8727 = vmul.f32 %v8599, 0.7978846
        %v8728 = vmul.f32 %v8600, 0.7978846
        %v8729 = vmul.f32 %v8601, 0.7978846
        %v8730 = vmul.f32 %v8602, 0.7978846
        %v8731 = vmul.f32 %v8603, 0.7978846
        %v8732 = vmul.f32 %v8604, 0.7978846
        %v8733 = vmul.f32 %v8605, 0.7978846
        %v8734 = vmul.f32 %v8606, 0.7978846
        %v8735 = vmul.f32 %v8607, 0.7978846
        %v8736 = vmul.f32 %v8608, 0.7978846
        %v8737 = vmul.f32 %v8609, 0.7978846
        %v8738 = vmul.f32 %v8610, 0.7978846
        %v8739 = vmul.f32 %v8611, 0.7978846
        %v8740 = vmul.f32 %v8612, 0.7978846
        %v8741 = vmul.f32 %v8613, 0.7978846
        %v8742 = vmul.f32 %v8614, 0.7978846
        %v8743 = vmul.f32 %v8615, 0.7978846
        %v8744 = vmul.f32 %v8616, 0.7978846
        %v8745 = vmul.f32 %v8617, 0.7978846
        %v8746 = vmul.f32 %v8618, 0.7978846
        %v8747 = vmul.f32 %v8619, 0.7978846
        %v8748 = vmul.f32 %v8620, 0.7978846
        %v8749 = vmul.f32 %v8621, 0.7978846
        %v8750 = vmul.f32 %v8622, 0.7978846
        %v8751 = vmul.f32 %v8623, 0.7978846
        %v8752 = vmul.f32 %v8624, 0.7978846
        %v8753 = vmul.f32 %v8625, 0.7978846
        %v8754 = vmul.f32 %v8626, 0.7978846
        %v8755 = vmul.f32 %v8627, 0.7978846
        %v8756 = vmul.f32 %v8628, 0.7978846
        %v8757 = vmul.f32 %v8629, 0.7978846
        %v8758 = vmul.f32 %v8630, 0.7978846
        %v8759 = vtanh.pop %v8631
        %v8760 = vtanh.pop %v8632
        %v8761 = vtanh.pop %v8633
        %v8762 = vtanh.pop %v8634
        %v8763 = vtanh.pop %v8635
        %v8764 = vtanh.pop %v8636
        %v8765 = vtanh.pop %v8637
        %v8766 = vtanh.pop %v8638
        %v8767 = vtanh.pop %v8639
        %v8768 = vtanh.pop %v8640
        %v8769 = vtanh.pop %v8641
        %v8770 = vtanh.pop %v8642
        %v8771 = vtanh.pop %v8643
        %v8772 = vtanh.pop %v8644
        %v8773 = vtanh.pop %v8645
        %v8774 = vtanh.pop %v8646
        %v8775 = vtanh.pop %v8647
        %v8776 = vtanh.pop %v8648
        %v8777 = vtanh.pop %v8649
        %v8778 = vtanh.pop %v8650
        %v8779 = vtanh.pop %v8651
        %v8780 = vtanh.pop %v8652
        %v8781 = vtanh.pop %v8653
        %v8782 = vtanh.pop %v8654
        %v8783 = vtanh.pop %v8655
        %v8784 = vtanh.pop %v8656
        %v8785 = vtanh.pop %v8657
        %v8786 = vtanh.pop %v8658
        %v8787 = vtanh.pop %v8659
        %v8788 = vtanh.pop %v8660
        %v8789 = vtanh.pop %v8661
        %v8790 = vtanh.pop %v8662
        %v8791 = vtanh.pop %v8663
        %v8792 = vtanh.pop %v8664
        %v8793 = vtanh.pop %v8665
        %v8794 = vtanh.pop %v8666
        %v8795 = vtanh.pop %v8667
        %v8796 = vtanh.pop %v8668
        %v8797 = vtanh.pop %v8669
        %v8798 = vtanh.pop %v8670
        %v8799 = vtanh.pop %v8671
        %v8800 = vtanh.pop %v8672
        %v8801 = vtanh.pop %v8673
        %v8802 = vtanh.pop %v8674
        %v8803 = vtanh.pop %v8675
        %v8804 = vtanh.pop %v8676
        %v8805 = vtanh.pop %v8677
        %v8806 = vtanh.pop %v8678
        %v8807 = vtanh.pop %v8679
        %v8808 = vtanh.pop %v8680
        %v8809 = vtanh.pop %v8681
        %v8810 = vtanh.pop %v8682
        %v8811 = vtanh.pop %v8683
        %v8812 = vtanh.pop %v8684
        %v8813 = vtanh.pop %v8685
        %v8814 = vtanh.pop %v8686
        %v8815 = vtanh.pop %v8687
        %v8816 = vtanh.pop %v8688
        %v8817 = vtanh.pop %v8689
        %v8818 = vtanh.pop %v8690
        %v8819 = vtanh.pop %v8691
        %v8820 = vtanh.pop %v8692
        %v8821 = vtanh.pop %v8693
        %v8822 = vtanh.pop %v8694
        %v8823 = vtanh.pop %v8695
        %v8824 = vtanh.pop %v8696
        %v8825 = vtanh.pop %v8697
        %v8826 = vtanh.pop %v8698
        %v8827 = vtanh.pop %v8699
        %v8828 = vtanh.pop %v8700
        %v8829 = vtanh.pop %v8701
        %v8830 = vtanh.pop %v8702
        %v8831 = vtanh.pop %v8703
        %v8832 = vtanh.pop %v8704
        %v8833 = vtanh.pop %v8705
        %v8834 = vtanh.pop %v8706
        %v8835 = vtanh.pop %v8707
        %v8836 = vtanh.pop %v8708
        %v8837 = vtanh.pop %v8709
        %v8838 = vtanh.pop %v8710
        %v8839 = vtanh.pop %v8711
        %v8840 = vtanh.pop %v8712
        %v8841 = vtanh.pop %v8713
        %v8842 = vtanh.pop %v8714
        %v8843 = vtanh.pop %v8715
        %v8844 = vtanh.pop %v8716
        %v8845 = vtanh.pop %v8717
        %v8846 = vtanh.pop %v8718
        %v8847 = vtanh.pop %v8719
        %v8848 = vtanh.pop %v8720
        %v8849 = vtanh.pop %v8721
        %v8850 = vtanh.pop %v8722
        %v8851 = vtanh.pop %v8723
        %v8852 = vtanh.pop %v8724
        %v8853 = vtanh.pop %v8725
        %v8854 = vtanh.pop %v8726
        %v8855 = vtanh.pop %v8727
        %v8856 = vtanh.pop %v8728
        %v8857 = vtanh.pop %v8729
        %v8858 = vtanh.pop %v8730
        %v8859 = vtanh.pop %v8731
        %v8860 = vtanh.pop %v8732
        %v8861 = vtanh.pop %v8733
        %v8862 = vtanh.pop %v8734
        %v8863 = vtanh.pop %v8735
        %v8864 = vtanh.pop %v8736
        %v8865 = vtanh.pop %v8737
        %v8866 = vtanh.pop %v8738
        %v8867 = vtanh.pop %v8739
        %v8868 = vtanh.pop %v8740
        %v8869 = vtanh.pop %v8741
        %v8870 = vtanh.pop %v8742
        %v8871 = vtanh.pop %v8743
        %v8872 = vtanh.pop %v8744
        %v8873 = vtanh.pop %v8745
        %v8874 = vtanh.pop %v8746
        %v8875 = vtanh.pop %v8747
        %v8876 = vtanh.pop %v8748
        %v8877 = vtanh.pop %v8749
        %v8878 = vtanh.pop %v8750
        %v8879 = vtanh.pop %v8751
        %v8880 = vtanh.pop %v8752
        %v8881 = vtanh.pop %v8753
        %v8882 = vtanh.pop %v8754
        %v8883 = vtanh.pop %v8755
        %v8884 = vtanh.pop %v8756
        %v8885 = vtanh.pop %v8757
        %v8886 = vtanh.pop %v8758
        %v8887 = vadd.f32 %v8759, 1.0
        %v8888 = vadd.f32 %v8760, 1.0
        %v8889 = vadd.f32 %v8761, 1.0
        %v8890 = vadd.f32 %v8762, 1.0
        %v8891 = vadd.f32 %v8763, 1.0
        %v8892 = vadd.f32 %v8764, 1.0
        %v8893 = vadd.f32 %v8765, 1.0
        %v8894 = vadd.f32 %v8766, 1.0
        %v8895 = vadd.f32 %v8767, 1.0
        %v8896 = vadd.f32 %v8768, 1.0
        %v8897 = vadd.f32 %v8769, 1.0
        %v8898 = vadd.f32 %v8770, 1.0
        %v8899 = vadd.f32 %v8771, 1.0
        %v8900 = vadd.f32 %v8772, 1.0
        %v8901 = vadd.f32 %v8773, 1.0
        %v8902 = vadd.f32 %v8774, 1.0
        %v8903 = vadd.f32 %v8775, 1.0
        %v8904 = vadd.f32 %v8776, 1.0
        %v8905 = vadd.f32 %v8777, 1.0
        %v8906 = vadd.f32 %v8778, 1.0
        %v8907 = vadd.f32 %v8779, 1.0
        %v8908 = vadd.f32 %v8780, 1.0
        %v8909 = vadd.f32 %v8781, 1.0
        %v8910 = vadd.f32 %v8782, 1.0
        %v8911 = vadd.f32 %v8783, 1.0
        %v8912 = vadd.f32 %v8784, 1.0
        %v8913 = vadd.f32 %v8785, 1.0
        %v8914 = vadd.f32 %v8786, 1.0
        %v8915 = vadd.f32 %v8787, 1.0
        %v8916 = vadd.f32 %v8788, 1.0
        %v8917 = vadd.f32 %v8789, 1.0
        %v8918 = vadd.f32 %v8790, 1.0
        %v8919 = vadd.f32 %v8791, 1.0
        %v8920 = vadd.f32 %v8792, 1.0
        %v8921 = vadd.f32 %v8793, 1.0
        %v8922 = vadd.f32 %v8794, 1.0
        %v8923 = vadd.f32 %v8795, 1.0
        %v8924 = vadd.f32 %v8796, 1.0
        %v8925 = vadd.f32 %v8797, 1.0
        %v8926 = vadd.f32 %v8798, 1.0
        %v8927 = vadd.f32 %v8799, 1.0
        %v8928 = vadd.f32 %v8800, 1.0
        %v8929 = vadd.f32 %v8801, 1.0
        %v8930 = vadd.f32 %v8802, 1.0
        %v8931 = vadd.f32 %v8803, 1.0
        %v8932 = vadd.f32 %v8804, 1.0
        %v8933 = vadd.f32 %v8805, 1.0
        %v8934 = vadd.f32 %v8806, 1.0
        %v8935 = vadd.f32 %v8807, 1.0
        %v8936 = vadd.f32 %v8808, 1.0
        %v8937 = vadd.f32 %v8809, 1.0
        %v8938 = vadd.f32 %v8810, 1.0
        %v8939 = vadd.f32 %v8811, 1.0
        %v8940 = vadd.f32 %v8812, 1.0
        %v8941 = vadd.f32 %v8813, 1.0
        %v8942 = vadd.f32 %v8814, 1.0
        %v8943 = vadd.f32 %v8815, 1.0
        %v8944 = vadd.f32 %v8816, 1.0
        %v8945 = vadd.f32 %v8817, 1.0
        %v8946 = vadd.f32 %v8818, 1.0
        %v8947 = vadd.f32 %v8819, 1.0
        %v8948 = vadd.f32 %v8820, 1.0
        %v8949 = vadd.f32 %v8821, 1.0
        %v8950 = vadd.f32 %v8822, 1.0
        %v8951 = vadd.f32 %v8823, 1.0
        %v8952 = vadd.f32 %v8824, 1.0
        %v8953 = vadd.f32 %v8825, 1.0
        %v8954 = vadd.f32 %v8826, 1.0
        %v8955 = vadd.f32 %v8827, 1.0
        %v8956 = vadd.f32 %v8828, 1.0
        %v8957 = vadd.f32 %v8829, 1.0
        %v8958 = vadd.f32 %v8830, 1.0
        %v8959 = vadd.f32 %v8831, 1.0
        %v8960 = vadd.f32 %v8832, 1.0
        %v8961 = vadd.f32 %v8833, 1.0
        %v8962 = vadd.f32 %v8834, 1.0
        %v8963 = vadd.f32 %v8835, 1.0
        %v8964 = vadd.f32 %v8836, 1.0
        %v8965 = vadd.f32 %v8837, 1.0
        %v8966 = vadd.f32 %v8838, 1.0
        %v8967 = vadd.f32 %v8839, 1.0
        %v8968 = vadd.f32 %v8840, 1.0
        %v8969 = vadd.f32 %v8841, 1.0
        %v8970 = vadd.f32 %v8842, 1.0
        %v8971 = vadd.f32 %v8843, 1.0
        %v8972 = vadd.f32 %v8844, 1.0
        %v8973 = vadd.f32 %v8845, 1.0
        %v8974 = vadd.f32 %v8846, 1.0
        %v8975 = vadd.f32 %v8847, 1.0
        %v8976 = vadd.f32 %v8848, 1.0
        %v8977 = vadd.f32 %v8849, 1.0
        %v8978 = vadd.f32 %v8850, 1.0
        %v8979 = vadd.f32 %v8851, 1.0
        %v8980 = vadd.f32 %v8852, 1.0
        %v8981 = vadd.f32 %v8853, 1.0
        %v8982 = vadd.f32 %v8854, 1.0
        %v8983 = vadd.f32 %v8855, 1.0
        %v8984 = vadd.f32 %v8856, 1.0
        %v8985 = vadd.f32 %v8857, 1.0
        %v8986 = vadd.f32 %v8858, 1.0
        %v8987 = vadd.f32 %v8859, 1.0
        %v8988 = vadd.f32 %v8860, 1.0
        %v8989 = vadd.f32 %v8861, 1.0
        %v8990 = vadd.f32 %v8862, 1.0
        %v8991 = vadd.f32 %v8863, 1.0
        %v8992 = vadd.f32 %v8864, 1.0
        %v8993 = vadd.f32 %v8865, 1.0
        %v8994 = vadd.f32 %v8866, 1.0
        %v8995 = vadd.f32 %v8867, 1.0
        %v8996 = vadd.f32 %v8868, 1.0
        %v8997 = vadd.f32 %v8869, 1.0
        %v8998 = vadd.f32 %v8870, 1.0
        %v8999 = vadd.f32 %v8871, 1.0
        %v9000 = vadd.f32 %v8872, 1.0
        %v9001 = vadd.f32 %v8873, 1.0
        %v9002 = vadd.f32 %v8874, 1.0
        %v9003 = vadd.f32 %v8875, 1.0
        %v9004 = vadd.f32 %v8876, 1.0
        %v9005 = vadd.f32 %v8877, 1.0
        %v9006 = vadd.f32 %v8878, 1.0
        %v9007 = vadd.f32 %v8879, 1.0
        %v9008 = vadd.f32 %v8880, 1.0
        %v9009 = vadd.f32 %v8881, 1.0
        %v9010 = vadd.f32 %v8882, 1.0
        %v9011 = vadd.f32 %v8883, 1.0
        %v9012 = vadd.f32 %v8884, 1.0
        %v9013 = vadd.f32 %v8885, 1.0
        %v9014 = vadd.f32 %v8886, 1.0
        %v9015 = vmul.f32 %v7991, %v8887
        %v9016 = vmul.f32 %v7992, %v8888
        %v9017 = vmul.f32 %v7993, %v8889
        %v9018 = vmul.f32 %v7994, %v8890
        %v9019 = vmul.f32 %v7995, %v8891
        %v9020 = vmul.f32 %v7996, %v8892
        %v9021 = vmul.f32 %v7997, %v8893
        %v9022 = vmul.f32 %v7998, %v8894
        %v9023 = vmul.f32 %v7999, %v8895
        %v9024 = vmul.f32 %v8000, %v8896
        %v9025 = vmul.f32 %v8001, %v8897
        %v9026 = vmul.f32 %v8002, %v8898
        %v9027 = vmul.f32 %v8003, %v8899
        %v9028 = vmul.f32 %v8004, %v8900
        %v9029 = vmul.f32 %v8005, %v8901
        %v9030 = vmul.f32 %v8006, %v8902
        %v9031 = vmul.f32 %v8007, %v8903
        %v9032 = vmul.f32 %v8008, %v8904
        %v9033 = vmul.f32 %v8009, %v8905
        %v9034 = vmul.f32 %v8010, %v8906
        %v9035 = vmul.f32 %v8011, %v8907
        %v9036 = vmul.f32 %v8012, %v8908
        %v9037 = vmul.f32 %v8013, %v8909
        %v9038 = vmul.f32 %v8014, %v8910
        %v9039 = vmul.f32 %v8015, %v8911
        %v9040 = vmul.f32 %v8016, %v8912
        %v9041 = vmul.f32 %v8017, %v8913
        %v9042 = vmul.f32 %v8018, %v8914
        %v9043 = vmul.f32 %v8019, %v8915
        %v9044 = vmul.f32 %v8020, %v8916
        %v9045 = vmul.f32 %v8021, %v8917
        %v9046 = vmul.f32 %v8022, %v8918
        %v9047 = vmul.f32 %v8023, %v8919
        %v9048 = vmul.f32 %v8024, %v8920
        %v9049 = vmul.f32 %v8025, %v8921
        %v9050 = vmul.f32 %v8026, %v8922
        %v9051 = vmul.f32 %v8027, %v8923
        %v9052 = vmul.f32 %v8028, %v8924
        %v9053 = vmul.f32 %v8029, %v8925
        %v9054 = vmul.f32 %v8030, %v8926
        %v9055 = vmul.f32 %v8031, %v8927
        %v9056 = vmul.f32 %v8032, %v8928
        %v9057 = vmul.f32 %v8033, %v8929
        %v9058 = vmul.f32 %v8034, %v8930
        %v9059 = vmul.f32 %v8035, %v8931
        %v9060 = vmul.f32 %v8036, %v8932
        %v9061 = vmul.f32 %v8037, %v8933
        %v9062 = vmul.f32 %v8038, %v8934
        %v9063 = vmul.f32 %v8039, %v8935
        %v9064 = vmul.f32 %v8040, %v8936
        %v9065 = vmul.f32 %v8041, %v8937
        %v9066 = vmul.f32 %v8042, %v8938
        %v9067 = vmul.f32 %v8043, %v8939
        %v9068 = vmul.f32 %v8044, %v8940
        %v9069 = vmul.f32 %v8045, %v8941
        %v9070 = vmul.f32 %v8046, %v8942
        %v9071 = vmul.f32 %v8047, %v8943
        %v9072 = vmul.f32 %v8048, %v8944
        %v9073 = vmul.f32 %v8049, %v8945
        %v9074 = vmul.f32 %v8050, %v8946
        %v9075 = vmul.f32 %v8051, %v8947
        %v9076 = vmul.f32 %v8052, %v8948
        %v9077 = vmul.f32 %v8053, %v8949
        %v9078 = vmul.f32 %v8054, %v8950
        %v9079 = vmul.f32 %v8055, %v8951
        %v9080 = vmul.f32 %v8056, %v8952
        %v9081 = vmul.f32 %v8057, %v8953
        %v9082 = vmul.f32 %v8058, %v8954
        %v9083 = vmul.f32 %v8059, %v8955
        %v9084 = vmul.f32 %v8060, %v8956
        %v9085 = vmul.f32 %v8061, %v8957
        %v9086 = vmul.f32 %v8062, %v8958
        %v9087 = vmul.f32 %v8063, %v8959
        %v9088 = vmul.f32 %v8064, %v8960
        %v9089 = vmul.f32 %v8065, %v8961
        %v9090 = vmul.f32 %v8066, %v8962
        %v9091 = vmul.f32 %v8067, %v8963
        %v9092 = vmul.f32 %v8068, %v8964
        %v9093 = vmul.f32 %v8069, %v8965
        %v9094 = vmul.f32 %v8070, %v8966
        %v9095 = vmul.f32 %v8071, %v8967
        %v9096 = vmul.f32 %v8072, %v8968
        %v9097 = vmul.f32 %v8073, %v8969
        %v9098 = vmul.f32 %v8074, %v8970
        %v9099 = vmul.f32 %v8075, %v8971
        %v9100 = vmul.f32 %v8076, %v8972
        %v9101 = vmul.f32 %v8077, %v8973
        %v9102 = vmul.f32 %v8078, %v8974
        %v9103 = vmul.f32 %v8079, %v8975
        %v9104 = vmul.f32 %v8080, %v8976
        %v9105 = vmul.f32 %v8081, %v8977
        %v9106 = vmul.f32 %v8082, %v8978
        %v9107 = vmul.f32 %v8083, %v8979
        %v9108 = vmul.f32 %v8084, %v8980
        %v9109 = vmul.f32 %v8085, %v8981
        %v9110 = vmul.f32 %v8086, %v8982
        %v9111 = vmul.f32 %v8087, %v8983
        %v9112 = vmul.f32 %v8088, %v8984
        %v9113 = vmul.f32 %v8089, %v8985
        %v9114 = vmul.f32 %v8090, %v8986
        %v9115 = vmul.f32 %v8091, %v8987
        %v9116 = vmul.f32 %v8092, %v8988
        %v9117 = vmul.f32 %v8093, %v8989
        %v9118 = vmul.f32 %v8094, %v8990
        %v9119 = vmul.f32 %v8095, %v8991
        %v9120 = vmul.f32 %v8096, %v8992
        %v9121 = vmul.f32 %v8097, %v8993
        %v9122 = vmul.f32 %v8098, %v8994
        %v9123 = vmul.f32 %v8099, %v8995
        %v9124 = vmul.f32 %v8100, %v8996
        %v9125 = vmul.f32 %v8101, %v8997
        %v9126 = vmul.f32 %v8102, %v8998
        %v9127 = vmul.f32 %v8103, %v8999
        %v9128 = vmul.f32 %v8104, %v9000
        %v9129 = vmul.f32 %v8105, %v9001
        %v9130 = vmul.f32 %v8106, %v9002
        %v9131 = vmul.f32 %v8107, %v9003
        %v9132 = vmul.f32 %v8108, %v9004
        %v9133 = vmul.f32 %v8109, %v9005
        %v9134 = vmul.f32 %v8110, %v9006
        %v9135 = vmul.f32 %v8111, %v9007
        %v9136 = vmul.f32 %v8112, %v9008
        %v9137 = vmul.f32 %v8113, %v9009
        %v9138 = vmul.f32 %v8114, %v9010
        %v9139 = vmul.f32 %v8115, %v9011
        %v9140 = vmul.f32 %v8116, %v9012
        %v9141 = vmul.f32 %v8117, %v9013
        %v9142 = vmul.f32 %v8118, %v9014
        %v9143 = vpack.c.bf16 %v9023, %v9015
        %v9144 = vpack.c.bf16 %v9024, %v9016
        %v9145 = vpack.c.bf16 %v9025, %v9017
        %v9146 = vpack.c.bf16 %v9026, %v9018
        %v9147 = vpack.c.bf16 %v9027, %v9019
        %v9148 = vpack.c.bf16 %v9028, %v9020
        %v9149 = vpack.c.bf16 %v9029, %v9021
        %v9150 = vpack.c.bf16 %v9030, %v9022
        %v9151 = vpack.c.bf16 %v9039, %v9031
        %v9152 = vpack.c.bf16 %v9040, %v9032
        %v9153 = vpack.c.bf16 %v9041, %v9033
        %v9154 = vpack.c.bf16 %v9042, %v9034
        %v9155 = vpack.c.bf16 %v9043, %v9035
        %v9156 = vpack.c.bf16 %v9044, %v9036
        %v9157 = vpack.c.bf16 %v9045, %v9037
        %v9158 = vpack.c.bf16 %v9046, %v9038
        %v9159 = vpack.c.bf16 %v9055, %v9047
        %v9160 = vpack.c.bf16 %v9056, %v9048
        %v9161 = vpack.c.bf16 %v9057, %v9049
        %v9162 = vpack.c.bf16 %v9058, %v9050
        %v9163 = vpack.c.bf16 %v9059, %v9051
        %v9164 = vpack.c.bf16 %v9060, %v9052
        %v9165 = vpack.c.bf16 %v9061, %v9053
        %v9166 = vpack.c.bf16 %v9062, %v9054
        %v9167 = vpack.c.bf16 %v9071, %v9063
        %v9168 = vpack.c.bf16 %v9072, %v9064
        %v9169 = vpack.c.bf16 %v9073, %v9065
        %v9170 = vpack.c.bf16 %v9074, %v9066
        %v9171 = vpack.c.bf16 %v9075, %v9067
        %v9172 = vpack.c.bf16 %v9076, %v9068
        %v9173 = vpack.c.bf16 %v9077, %v9069
        %v9174 = vpack.c.bf16 %v9078, %v9070
        %v9175 = vpack.c.bf16 %v9087, %v9079
        %v9176 = vpack.c.bf16 %v9088, %v9080
        %v9177 = vpack.c.bf16 %v9089, %v9081
        %v9178 = vpack.c.bf16 %v9090, %v9082
        %v9179 = vpack.c.bf16 %v9091, %v9083
        %v9180 = vpack.c.bf16 %v9092, %v9084
        %v9181 = vpack.c.bf16 %v9093, %v9085
        %v9182 = vpack.c.bf16 %v9094, %v9086
        %v9183 = vpack.c.bf16 %v9103, %v9095
        %v9184 = vpack.c.bf16 %v9104, %v9096
        %v9185 = vpack.c.bf16 %v9105, %v9097
        %v9186 = vpack.c.bf16 %v9106, %v9098
        %v9187 = vpack.c.bf16 %v9107, %v9099
        %v9188 = vpack.c.bf16 %v9108, %v9100
        %v9189 = vpack.c.bf16 %v9109, %v9101
        %v9190 = vpack.c.bf16 %v9110, %v9102
        %v9191 = vpack.c.bf16 %v9119, %v9111
        %v9192 = vpack.c.bf16 %v9120, %v9112
        %v9193 = vpack.c.bf16 %v9121, %v9113
        %v9194 = vpack.c.bf16 %v9122, %v9114
        %v9195 = vpack.c.bf16 %v9123, %v9115
        %v9196 = vpack.c.bf16 %v9124, %v9116
        %v9197 = vpack.c.bf16 %v9125, %v9117
        %v9198 = vpack.c.bf16 %v9126, %v9118
        %v9199 = vpack.c.bf16 %v9135, %v9127
        %v9200 = vpack.c.bf16 %v9136, %v9128
        %v9201 = vpack.c.bf16 %v9137, %v9129
        %v9202 = vpack.c.bf16 %v9138, %v9130
        %v9203 = vpack.c.bf16 %v9139, %v9131
        %v9204 = vpack.c.bf16 %v9140, %v9132
        %v9205 = vpack.c.bf16 %v9141, %v9133
        %v9206 = vpack.c.bf16 %v9142, %v9134
        %v9207 = vld [vmem:[%s774] sm:$0xff]
        %v9208 = vld [vmem:[%s774 + $0x8] sm:$0xff]
        %v9209 = vld [vmem:[%s774 + $0x10] sm:$0xff]
        %v9210 = vld [vmem:[%s774 + $0x18] sm:$0xff]
        %v9211 = vld [vmem:[%s774 + $0x20] sm:$0xff]
        %v9212 = vld [vmem:[%s774 + $0x28] sm:$0xff]
        %v9213 = vld [vmem:[%s774 + $0x30] sm:$0xff]
        %v9214 = vld [vmem:[%s774 + $0x38] sm:$0xff]
        %v9215 = vld [vmem:[%s774 + $0x40] sm:$0xff]
        %v9216 = vld [vmem:[%s774 + $0x48] sm:$0xff]
        %v9217 = vld [vmem:[%s774 + $0x50] sm:$0xff]
        %v9218 = vld [vmem:[%s774 + $0x58] sm:$0xff]
        %v9219 = vld [vmem:[%s774 + $0x60] sm:$0xff]
        %v9220 = vld [vmem:[%s774 + $0x68] sm:$0xff]
        %v9221 = vld [vmem:[%s774 + $0x70] sm:$0xff]
        %v9222 = vld [vmem:[%s774 + $0x78] sm:$0xff]
        %v9223 = vld [vmem:[%s774 + $0x80] sm:$0xff]
        %v9224 = vld [vmem:[%s774 + $0x88] sm:$0xff]
        %v9225 = vld [vmem:[%s774 + $0x90] sm:$0xff]
        %v9226 = vld [vmem:[%s774 + $0x98] sm:$0xff]
        %v9227 = vld [vmem:[%s774 + $0xa0] sm:$0xff]
        %v9228 = vld [vmem:[%s774 + $0xa8] sm:$0xff]
        %v9229 = vld [vmem:[%s774 + $0xb0] sm:$0xff]
        %v9230 = vld [vmem:[%s774 + $0xb8] sm:$0xff]
        %v9231 = vld [vmem:[%s774 + $0xc0] sm:$0xff]
        %v9232 = vld [vmem:[%s774 + $0xc8] sm:$0xff]
        %v9233 = vld [vmem:[%s774 + $0xd0] sm:$0xff]
        %v9234 = vld [vmem:[%s774 + $0xd8] sm:$0xff]
        %v9235 = vld [vmem:[%s774 + $0xe0] sm:$0xff]
        %v9236 = vld [vmem:[%s774 + $0xe8] sm:$0xff]
        %v9237 = vld [vmem:[%s774 + $0xf0] sm:$0xff]
        %v9238 = vld [vmem:[%s774 + $0xf8] sm:$0xff]
        %v9239 = vld [vmem:[%s774 + $0x100] sm:$0xff]
        %v9240 = vld [vmem:[%s774 + $0x108] sm:$0xff]
        %v9241 = vld [vmem:[%s774 + $0x110] sm:$0xff]
        %v9242 = vld [vmem:[%s774 + $0x118] sm:$0xff]
        %v9243 = vld [vmem:[%s774 + $0x120] sm:$0xff]
        %v9244 = vld [vmem:[%s774 + $0x128] sm:$0xff]
        %v9245 = vld [vmem:[%s774 + $0x130] sm:$0xff]
        %v9246 = vld [vmem:[%s774 + $0x138] sm:$0xff]
        %v9247 = vld [vmem:[%s774 + $0x140] sm:$0xff]
        %v9248 = vld [vmem:[%s774 + $0x148] sm:$0xff]
        %v9249 = vld [vmem:[%s774 + $0x150] sm:$0xff]
        %v9250 = vld [vmem:[%s774 + $0x158] sm:$0xff]
        %v9251 = vld [vmem:[%s774 + $0x160] sm:$0xff]
        %v9252 = vld [vmem:[%s774 + $0x168] sm:$0xff]
        %v9253 = vld [vmem:[%s774 + $0x170] sm:$0xff]
        %v9254 = vld [vmem:[%s774 + $0x178] sm:$0xff]
        %v9255 = vld [vmem:[%s774 + $0x180] sm:$0xff]
        %v9256 = vld [vmem:[%s774 + $0x188] sm:$0xff]
        %v9257 = vld [vmem:[%s774 + $0x190] sm:$0xff]
        %v9258 = vld [vmem:[%s774 + $0x198] sm:$0xff]
        %v9259 = vld [vmem:[%s774 + $0x1a0] sm:$0xff]
        %v9260 = vld [vmem:[%s774 + $0x1a8] sm:$0xff]
        %v9261 = vld [vmem:[%s774 + $0x1b0] sm:$0xff]
        %v9262 = vld [vmem:[%s774 + $0x1b8] sm:$0xff]
        %v9263 = vld [vmem:[%s774 + $0x1c0] sm:$0xff]
        %v9264 = vld [vmem:[%s774 + $0x1c8] sm:$0xff]
        %v9265 = vld [vmem:[%s774 + $0x1d0] sm:$0xff]
        %v9266 = vld [vmem:[%s774 + $0x1d8] sm:$0xff]
        %v9267 = vld [vmem:[%s774 + $0x1e0] sm:$0xff]
        %v9268 = vld [vmem:[%s774 + $0x1e8] sm:$0xff]
        %v9269 = vld [vmem:[%s774 + $0x1f0] sm:$0xff]
        %v9270 = vld [vmem:[%s774 + $0x1f8] sm:$0xff]
        %v9271 = vld [vmem:[%s774 + $0x200] sm:$0xff]
        %v9272 = vld [vmem:[%s774 + $0x208] sm:$0xff]
        %v9273 = vld [vmem:[%s774 + $0x210] sm:$0xff]
        %v9274 = vld [vmem:[%s774 + $0x218] sm:$0xff]
        %v9275 = vld [vmem:[%s774 + $0x220] sm:$0xff]
        %v9276 = vld [vmem:[%s774 + $0x228] sm:$0xff]
        %v9277 = vld [vmem:[%s774 + $0x230] sm:$0xff]
        %v9278 = vld [vmem:[%s774 + $0x238] sm:$0xff]
        %v9279 = vld [vmem:[%s774 + $0x240] sm:$0xff]
        %v9280 = vld [vmem:[%s774 + $0x248] sm:$0xff]
        %v9281 = vld [vmem:[%s774 + $0x250] sm:$0xff]
        %v9282 = vld [vmem:[%s774 + $0x258] sm:$0xff]
        %v9283 = vld [vmem:[%s774 + $0x260] sm:$0xff]
        %v9284 = vld [vmem:[%s774 + $0x268] sm:$0xff]
        %v9285 = vld [vmem:[%s774 + $0x270] sm:$0xff]
        %v9286 = vld [vmem:[%s774 + $0x278] sm:$0xff]
        %v9287 = vld [vmem:[%s774 + $0x280] sm:$0xff]
        %v9288 = vld [vmem:[%s774 + $0x288] sm:$0xff]
        %v9289 = vld [vmem:[%s774 + $0x290] sm:$0xff]
        %v9290 = vld [vmem:[%s774 + $0x298] sm:$0xff]
        %v9291 = vld [vmem:[%s774 + $0x2a0] sm:$0xff]
        %v9292 = vld [vmem:[%s774 + $0x2a8] sm:$0xff]
        %v9293 = vld [vmem:[%s774 + $0x2b0] sm:$0xff]
        %v9294 = vld [vmem:[%s774 + $0x2b8] sm:$0xff]
        %v9295 = vld [vmem:[%s774 + $0x2c0] sm:$0xff]
        %v9296 = vld [vmem:[%s774 + $0x2c8] sm:$0xff]
        %v9297 = vld [vmem:[%s774 + $0x2d0] sm:$0xff]
        %v9298 = vld [vmem:[%s774 + $0x2d8] sm:$0xff]
        %v9299 = vld [vmem:[%s774 + $0x2e0] sm:$0xff]
        %v9300 = vld [vmem:[%s774 + $0x2e8] sm:$0xff]
        %v9301 = vld [vmem:[%s774 + $0x2f0] sm:$0xff]
        %v9302 = vld [vmem:[%s774 + $0x2f8] sm:$0xff]
        %v9303 = vld [vmem:[%s774 + $0x300] sm:$0xff]
        %v9304 = vld [vmem:[%s774 + $0x308] sm:$0xff]
        %v9305 = vld [vmem:[%s774 + $0x310] sm:$0xff]
        %v9306 = vld [vmem:[%s774 + $0x318] sm:$0xff]
        %v9307 = vld [vmem:[%s774 + $0x320] sm:$0xff]
        %v9308 = vld [vmem:[%s774 + $0x328] sm:$0xff]
        %v9309 = vld [vmem:[%s774 + $0x330] sm:$0xff]
        %v9310 = vld [vmem:[%s774 + $0x338] sm:$0xff]
        %v9311 = vld [vmem:[%s774 + $0x340] sm:$0xff]
        %v9312 = vld [vmem:[%s774 + $0x348] sm:$0xff]
        %v9313 = vld [vmem:[%s774 + $0x350] sm:$0xff]
        %v9314 = vld [vmem:[%s774 + $0x358] sm:$0xff]
        %v9315 = vld [vmem:[%s774 + $0x360] sm:$0xff]
        %v9316 = vld [vmem:[%s774 + $0x368] sm:$0xff]
        %v9317 = vld [vmem:[%s774 + $0x370] sm:$0xff]
        %v9318 = vld [vmem:[%s774 + $0x378] sm:$0xff]
        %v9319 = vld [vmem:[%s774 + $0x380] sm:$0xff]
        %v9320 = vld [vmem:[%s774 + $0x388] sm:$0xff]
        %v9321 = vld [vmem:[%s774 + $0x390] sm:$0xff]
        %v9322 = vld [vmem:[%s774 + $0x398] sm:$0xff]
        %v9323 = vld [vmem:[%s774 + $0x3a0] sm:$0xff]
        %v9324 = vld [vmem:[%s774 + $0x3a8] sm:$0xff]
        %v9325 = vld [vmem:[%s774 + $0x3b0] sm:$0xff]
        %v9326 = vld [vmem:[%s774 + $0x3b8] sm:$0xff]
        %v9327 = vld [vmem:[%s774 + $0x3c0] sm:$0xff]
        %v9328 = vld [vmem:[%s774 + $0x3c8] sm:$0xff]
        %v9329 = vld [vmem:[%s774 + $0x3d0] sm:$0xff]
        %v9330 = vld [vmem:[%s774 + $0x3d8] sm:$0xff]
        %v9331 = vld [vmem:[%s774 + $0x3e0] sm:$0xff]
        %v9332 = vld [vmem:[%s774 + $0x3e8] sm:$0xff]
        %v9333 = vld [vmem:[%s774 + $0x3f0] sm:$0xff]
        %v9334 = vld [vmem:[%s774 + $0x3f8] sm:$0xff]
        %v9335 = vld [vmem:[%s904] sm:$0x3]
        %v9337 = vlaneseq
        %v9338 = vshrl.u32 %v9337, 7
        %v9339 = vsub.s32 0, %v9338
        %v9340 = vrot.slane %v9335, %v9339
        %v9341 = vlaneseq
        %v9342 = vshrl.u32 %v9341, 7
        %v9343 = vsub.s32 1, %v9342
        %v9344 = vrot.slane %v9335, %v9343
        %v9475 = vunpack.c.l.b16 %v9207
        %v9476 = vunpack.c.h.b16 %v9207
        %v9477 = vunpack.c.l.b16 %v9208
        %v9478 = vunpack.c.h.b16 %v9208
        %v9479 = vunpack.c.l.b16 %v9209
        %v9480 = vunpack.c.h.b16 %v9209
        %v9481 = vunpack.c.l.b16 %v9210
        %v9482 = vunpack.c.h.b16 %v9210
        %v9483 = vunpack.c.l.b16 %v9211
        %v9484 = vunpack.c.h.b16 %v9211
        %v9485 = vunpack.c.l.b16 %v9212
        %v9486 = vunpack.c.h.b16 %v9212
        %v9487 = vunpack.c.l.b16 %v9213
        %v9488 = vunpack.c.h.b16 %v9213
        %v9489 = vunpack.c.l.b16 %v9214
        %v9490 = vunpack.c.h.b16 %v9214
        %v9491 = vunpack.c.l.b16 %v9215
        %v9492 = vunpack.c.h.b16 %v9215
        %v9493 = vunpack.c.l.b16 %v9216
        %v9494 = vunpack.c.h.b16 %v9216
        %v9495 = vunpack.c.l.b16 %v9217
        %v9496 = vunpack.c.h.b16 %v9217
        %v9497 = vunpack.c.l.b16 %v9218
        %v9498 = vunpack.c.h.b16 %v9218
        %v9499 = vunpack.c.l.b16 %v9219
        %v9500 = vunpack.c.h.b16 %v9219
        %v9501 = vunpack.c.l.b16 %v9220
        %v9502 = vunpack.c.h.b16 %v9220
        %v9503 = vunpack.c.l.b16 %v9221
        %v9504 = vunpack.c.h.b16 %v9221
        %v9505 = vunpack.c.l.b16 %v9222
        %v9506 = vunpack.c.h.b16 %v9222
        %v9507 = vunpack.c.l.b16 %v9223
        %v9508 = vunpack.c.h.b16 %v9223
        %v9509 = vunpack.c.l.b16 %v9224
        %v9510 = vunpack.c.h.b16 %v9224
        %v9511 = vunpack.c.l.b16 %v9225
        %v9512 = vunpack.c.h.b16 %v9225
        %v9513 = vunpack.c.l.b16 %v9226
        %v9514 = vunpack.c.h.b16 %v9226
        %v9515 = vunpack.c.l.b16 %v9227
        %v9516 = vunpack.c.h.b16 %v9227
        %v9517 = vunpack.c.l.b16 %v9228
        %v9518 = vunpack.c.h.b16 %v9228
        %v9519 = vunpack.c.l.b16 %v9229
        %v9520 = vunpack.c.h.b16 %v9229
        %v9521 = vunpack.c.l.b16 %v9230
        %v9522 = vunpack.c.h.b16 %v9230
        %v9523 = vunpack.c.l.b16 %v9231
        %v9524 = vunpack.c.h.b16 %v9231
        %v9525 = vunpack.c.l.b16 %v9232
        %v9526 = vunpack.c.h.b16 %v9232
        %v9527 = vunpack.c.l.b16 %v9233
        %v9528 = vunpack.c.h.b16 %v9233
        %v9529 = vunpack.c.l.b16 %v9234
        %v9530 = vunpack.c.h.b16 %v9234
        %v9531 = vunpack.c.l.b16 %v9235
        %v9532 = vunpack.c.h.b16 %v9235
        %v9533 = vunpack.c.l.b16 %v9236
        %v9534 = vunpack.c.h.b16 %v9236
        %v9535 = vunpack.c.l.b16 %v9237
        %v9536 = vunpack.c.h.b16 %v9237
        %v9537 = vunpack.c.l.b16 %v9238
        %v9538 = vunpack.c.h.b16 %v9238
        %v9539 = vunpack.c.l.b16 %v9239
        %v9540 = vunpack.c.h.b16 %v9239
        %v9541 = vunpack.c.l.b16 %v9240
        %v9542 = vunpack.c.h.b16 %v9240
        %v9543 = vunpack.c.l.b16 %v9241
        %v9544 = vunpack.c.h.b16 %v9241
        %v9545 = vunpack.c.l.b16 %v9242
        %v9546 = vunpack.c.h.b16 %v9242
        %v9547 = vunpack.c.l.b16 %v9243
        %v9548 = vunpack.c.h.b16 %v9243
        %v9549 = vunpack.c.l.b16 %v9244
        %v9550 = vunpack.c.h.b16 %v9244
        %v9551 = vunpack.c.l.b16 %v9245
        %v9552 = vunpack.c.h.b16 %v9245
        %v9553 = vunpack.c.l.b16 %v9246
        %v9554 = vunpack.c.h.b16 %v9246
        %v9555 = vunpack.c.l.b16 %v9247
        %v9556 = vunpack.c.h.b16 %v9247
        %v9557 = vunpack.c.l.b16 %v9248
        %v9558 = vunpack.c.h.b16 %v9248
        %v9559 = vunpack.c.l.b16 %v9249
        %v9560 = vunpack.c.h.b16 %v9249
        %v9561 = vunpack.c.l.b16 %v9250
        %v9562 = vunpack.c.h.b16 %v9250
        %v9563 = vunpack.c.l.b16 %v9251
        %v9564 = vunpack.c.h.b16 %v9251
        %v9565 = vunpack.c.l.b16 %v9252
        %v9566 = vunpack.c.h.b16 %v9252
        %v9567 = vunpack.c.l.b16 %v9253
        %v9568 = vunpack.c.h.b16 %v9253
        %v9569 = vunpack.c.l.b16 %v9254
        %v9570 = vunpack.c.h.b16 %v9254
        %v9571 = vunpack.c.l.b16 %v9255
        %v9572 = vunpack.c.h.b16 %v9255
        %v9573 = vunpack.c.l.b16 %v9256
        %v9574 = vunpack.c.h.b16 %v9256
        %v9575 = vunpack.c.l.b16 %v9257
        %v9576 = vunpack.c.h.b16 %v9257
        %v9577 = vunpack.c.l.b16 %v9258
        %v9578 = vunpack.c.h.b16 %v9258
        %v9579 = vunpack.c.l.b16 %v9259
        %v9580 = vunpack.c.h.b16 %v9259
        %v9581 = vunpack.c.l.b16 %v9260
        %v9582 = vunpack.c.h.b16 %v9260
        %v9583 = vunpack.c.l.b16 %v9261
        %v9584 = vunpack.c.h.b16 %v9261
        %v9585 = vunpack.c.l.b16 %v9262
        %v9586 = vunpack.c.h.b16 %v9262
        %v9587 = vunpack.c.l.b16 %v9263
        %v9588 = vunpack.c.h.b16 %v9263
        %v9589 = vunpack.c.l.b16 %v9264
        %v9590 = vunpack.c.h.b16 %v9264
        %v9591 = vunpack.c.l.b16 %v9265
        %v9592 = vunpack.c.h.b16 %v9265
        %v9593 = vunpack.c.l.b16 %v9266
        %v9594 = vunpack.c.h.b16 %v9266
        %v9595 = vunpack.c.l.b16 %v9267
        %v9596 = vunpack.c.h.b16 %v9267
        %v9597 = vunpack.c.l.b16 %v9268
        %v9598 = vunpack.c.h.b16 %v9268
        %v9599 = vunpack.c.l.b16 %v9269
        %v9600 = vunpack.c.h.b16 %v9269
        %v9601 = vunpack.c.l.b16 %v9270
        %v9602 = vunpack.c.h.b16 %v9270
        %v9603 = vunpack.c.l.b16 %v9271
        %v9604 = vunpack.c.h.b16 %v9271
        %v9605 = vunpack.c.l.b16 %v9272
        %v9606 = vunpack.c.h.b16 %v9272
        %v9607 = vunpack.c.l.b16 %v9273
        %v9608 = vunpack.c.h.b16 %v9273
        %v9609 = vunpack.c.l.b16 %v9274
        %v9610 = vunpack.c.h.b16 %v9274
        %v9611 = vunpack.c.l.b16 %v9275
        %v9612 = vunpack.c.h.b16 %v9275
        %v9613 = vunpack.c.l.b16 %v9276
        %v9614 = vunpack.c.h.b16 %v9276
        %v9615 = vunpack.c.l.b16 %v9277
        %v9616 = vunpack.c.h.b16 %v9277
        %v9617 = vunpack.c.l.b16 %v9278
        %v9618 = vunpack.c.h.b16 %v9278
        %v9619 = vunpack.c.l.b16 %v9279
        %v9620 = vunpack.c.h.b16 %v9279
        %v9621 = vunpack.c.l.b16 %v9280
        %v9622 = vunpack.c.h.b16 %v9280
        %v9623 = vunpack.c.l.b16 %v9281
        %v9624 = vunpack.c.h.b16 %v9281
        %v9625 = vunpack.c.l.b16 %v9282
        %v9626 = vunpack.c.h.b16 %v9282
        %v9627 = vunpack.c.l.b16 %v9283
        %v9628 = vunpack.c.h.b16 %v9283
        %v9629 = vunpack.c.l.b16 %v9284
        %v9630 = vunpack.c.h.b16 %v9284
        %v9631 = vunpack.c.l.b16 %v9285
        %v9632 = vunpack.c.h.b16 %v9285
        %v9633 = vunpack.c.l.b16 %v9286
        %v9634 = vunpack.c.h.b16 %v9286
        %v9635 = vunpack.c.l.b16 %v9287
        %v9636 = vunpack.c.h.b16 %v9287
        %v9637 = vunpack.c.l.b16 %v9288
        %v9638 = vunpack.c.h.b16 %v9288
        %v9639 = vunpack.c.l.b16 %v9289
        %v9640 = vunpack.c.h.b16 %v9289
        %v9641 = vunpack.c.l.b16 %v9290
        %v9642 = vunpack.c.h.b16 %v9290
        %v9643 = vunpack.c.l.b16 %v9291
        %v9644 = vunpack.c.h.b16 %v9291
        %v9645 = vunpack.c.l.b16 %v9292
        %v9646 = vunpack.c.h.b16 %v9292
        %v9647 = vunpack.c.l.b16 %v9293
        %v9648 = vunpack.c.h.b16 %v9293
        %v9649 = vunpack.c.l.b16 %v9294
        %v9650 = vunpack.c.h.b16 %v9294
        %v9651 = vunpack.c.l.b16 %v9295
        %v9652 = vunpack.c.h.b16 %v9295
        %v9653 = vunpack.c.l.b16 %v9296
        %v9654 = vunpack.c.h.b16 %v9296
        %v9655 = vunpack.c.l.b16 %v9297
        %v9656 = vunpack.c.h.b16 %v9297
        %v9657 = vunpack.c.l.b16 %v9298
        %v9658 = vunpack.c.h.b16 %v9298
        %v9659 = vunpack.c.l.b16 %v9299
        %v9660 = vunpack.c.h.b16 %v9299
        %v9661 = vunpack.c.l.b16 %v9300
        %v9662 = vunpack.c.h.b16 %v9300
        %v9663 = vunpack.c.l.b16 %v9301
        %v9664 = vunpack.c.h.b16 %v9301
        %v9665 = vunpack.c.l.b16 %v9302
        %v9666 = vunpack.c.h.b16 %v9302
        %v9667 = vunpack.c.l.b16 %v9303
        %v9668 = vunpack.c.h.b16 %v9303
        %v9669 = vunpack.c.l.b16 %v9304
        %v9670 = vunpack.c.h.b16 %v9304
        %v9671 = vunpack.c.l.b16 %v9305
        %v9672 = vunpack.c.h.b16 %v9305
        %v9673 = vunpack.c.l.b16 %v9306
        %v9674 = vunpack.c.h.b16 %v9306
        %v9675 = vunpack.c.l.b16 %v9307
        %v9676 = vunpack.c.h.b16 %v9307
        %v9677 = vunpack.c.l.b16 %v9308
        %v9678 = vunpack.c.h.b16 %v9308
        %v9679 = vunpack.c.l.b16 %v9309
        %v9680 = vunpack.c.h.b16 %v9309
        %v9681 = vunpack.c.l.b16 %v9310
        %v9682 = vunpack.c.h.b16 %v9310
        %v9683 = vunpack.c.l.b16 %v9311
        %v9684 = vunpack.c.h.b16 %v9311
        %v9685 = vunpack.c.l.b16 %v9312
        %v9686 = vunpack.c.h.b16 %v9312
        %v9687 = vunpack.c.l.b16 %v9313
        %v9688 = vunpack.c.h.b16 %v9313
        %v9689 = vunpack.c.l.b16 %v9314
        %v9690 = vunpack.c.h.b16 %v9314
        %v9691 = vunpack.c.l.b16 %v9315
        %v9692 = vunpack.c.h.b16 %v9315
        %v9693 = vunpack.c.l.b16 %v9316
        %v9694 = vunpack.c.h.b16 %v9316
        %v9695 = vunpack.c.l.b16 %v9317
        %v9696 = vunpack.c.h.b16 %v9317
        %v9697 = vunpack.c.l.b16 %v9318
        %v9698 = vunpack.c.h.b16 %v9318
        %v9699 = vunpack.c.l.b16 %v9319
        %v9700 = vunpack.c.h.b16 %v9319
        %v9701 = vunpack.c.l.b16 %v9320
        %v9702 = vunpack.c.h.b16 %v9320
        %v9703 = vunpack.c.l.b16 %v9321
        %v9704 = vunpack.c.h.b16 %v9321
        %v9705 = vunpack.c.l.b16 %v9322
        %v9706 = vunpack.c.h.b16 %v9322
        %v9707 = vunpack.c.l.b16 %v9323
        %v9708 = vunpack.c.h.b16 %v9323
        %v9709 = vunpack.c.l.b16 %v9324
        %v9710 = vunpack.c.h.b16 %v9324
        %v9711 = vunpack.c.l.b16 %v9325
        %v9712 = vunpack.c.h.b16 %v9325
        %v9713 = vunpack.c.l.b16 %v9326
        %v9714 = vunpack.c.h.b16 %v9326
        %v9715 = vunpack.c.l.b16 %v9327
        %v9716 = vunpack.c.h.b16 %v9327
        %v9717 = vunpack.c.l.b16 %v9328
        %v9718 = vunpack.c.h.b16 %v9328
        %v9719 = vunpack.c.l.b16 %v9329
        %v9720 = vunpack.c.h.b16 %v9329
        %v9721 = vunpack.c.l.b16 %v9330
        %v9722 = vunpack.c.h.b16 %v9330
        %v9723 = vunpack.c.l.b16 %v9331
        %v9724 = vunpack.c.h.b16 %v9331
        %v9725 = vunpack.c.l.b16 %v9332
        %v9726 = vunpack.c.h.b16 %v9332
        %v9727 = vunpack.c.l.b16 %v9333
        %v9728 = vunpack.c.h.b16 %v9333
        %v9729 = vunpack.c.l.b16 %v9334
        %v9730 = vunpack.c.h.b16 %v9334
        %v9731 = vpack.c.b16 %v9477, %v9475
        %v9732 = vpack.c.b16 %v9478, %v9476
        %v9733 = vpack.c.b16 %v9481, %v9479
        %v9734 = vpack.c.b16 %v9482, %v9480
        %v9735 = vpack.c.b16 %v9485, %v9483
        %v9736 = vpack.c.b16 %v9486, %v9484
        %v9737 = vpack.c.b16 %v9489, %v9487
        %v9738 = vpack.c.b16 %v9490, %v9488
        %v9739 = vpack.c.b16 %v9493, %v9491
        %v9740 = vpack.c.b16 %v9494, %v9492
        %v9741 = vpack.c.b16 %v9497, %v9495
        %v9742 = vpack.c.b16 %v9498, %v9496
        %v9743 = vpack.c.b16 %v9501, %v9499
        %v9744 = vpack.c.b16 %v9502, %v9500
        %v9745 = vpack.c.b16 %v9505, %v9503
        %v9746 = vpack.c.b16 %v9506, %v9504
        %v9747 = vpack.c.b16 %v9509, %v9507
        %v9748 = vpack.c.b16 %v9510, %v9508
        %v9749 = vpack.c.b16 %v9513, %v9511
        %v9750 = vpack.c.b16 %v9514, %v9512
        %v9751 = vpack.c.b16 %v9517, %v9515
        %v9752 = vpack.c.b16 %v9518, %v9516
        %v9753 = vpack.c.b16 %v9521, %v9519
        %v9754 = vpack.c.b16 %v9522, %v9520
        %v9755 = vpack.c.b16 %v9525, %v9523
        %v9756 = vpack.c.b16 %v9526, %v9524
        %v9757 = vpack.c.b16 %v9529, %v9527
        %v9758 = vpack.c.b16 %v9530, %v9528
        %v9759 = vpack.c.b16 %v9533, %v9531
        %v9760 = vpack.c.b16 %v9534, %v9532
        %v9761 = vpack.c.b16 %v9537, %v9535
        %v9762 = vpack.c.b16 %v9538, %v9536
        %v9763 = vpack.c.b16 %v9541, %v9539
        %v9764 = vpack.c.b16 %v9542, %v9540
        %v9765 = vpack.c.b16 %v9545, %v9543
        %v9766 = vpack.c.b16 %v9546, %v9544
        %v9767 = vpack.c.b16 %v9549, %v9547
        %v9768 = vpack.c.b16 %v9550, %v9548
        %v9769 = vpack.c.b16 %v9553, %v9551
        %v9770 = vpack.c.b16 %v9554, %v9552
        %v9771 = vpack.c.b16 %v9557, %v9555
        %v9772 = vpack.c.b16 %v9558, %v9556
        %v9773 = vpack.c.b16 %v9561, %v9559
        %v9774 = vpack.c.b16 %v9562, %v9560
        %v9775 = vpack.c.b16 %v9565, %v9563
        %v9776 = vpack.c.b16 %v9566, %v9564
        %v9777 = vpack.c.b16 %v9569, %v9567
        %v9778 = vpack.c.b16 %v9570, %v9568
        %v9779 = vpack.c.b16 %v9573, %v9571
        %v9780 = vpack.c.b16 %v9574, %v9572
        %v9781 = vpack.c.b16 %v9577, %v9575
        %v9782 = vpack.c.b16 %v9578, %v9576
        %v9783 = vpack.c.b16 %v9581, %v9579
        %v9784 = vpack.c.b16 %v9582, %v9580
        %v9785 = vpack.c.b16 %v9585, %v9583
        %v9786 = vpack.c.b16 %v9586, %v9584
        %v9787 = vpack.c.b16 %v9589, %v9587
        %v9788 = vpack.c.b16 %v9590, %v9588
        %v9789 = vpack.c.b16 %v9593, %v9591
        %v9790 = vpack.c.b16 %v9594, %v9592
        %v9791 = vpack.c.b16 %v9597, %v9595
        %v9792 = vpack.c.b16 %v9598, %v9596
        %v9793 = vpack.c.b16 %v9601, %v9599
        %v9794 = vpack.c.b16 %v9602, %v9600
        %v9795 = vpack.c.b16 %v9605, %v9603
        %v9796 = vpack.c.b16 %v9606, %v9604
        %v9797 = vpack.c.b16 %v9609, %v9607
        %v9798 = vpack.c.b16 %v9610, %v9608
        %v9799 = vpack.c.b16 %v9613, %v9611
        %v9800 = vpack.c.b16 %v9614, %v9612
        %v9801 = vpack.c.b16 %v9617, %v9615
        %v9802 = vpack.c.b16 %v9618, %v9616
        %v9803 = vpack.c.b16 %v9621, %v9619
        %v9804 = vpack.c.b16 %v9622, %v9620
        %v9805 = vpack.c.b16 %v9625, %v9623
        %v9806 = vpack.c.b16 %v9626, %v9624
        %v9807 = vpack.c.b16 %v9629, %v9627
        %v9808 = vpack.c.b16 %v9630, %v9628
        %v9809 = vpack.c.b16 %v9633, %v9631
        %v9810 = vpack.c.b16 %v9634, %v9632
        %v9811 = vpack.c.b16 %v9637, %v9635
        %v9812 = vpack.c.b16 %v9638, %v9636
        %v9813 = vpack.c.b16 %v9641, %v9639
        %v9814 = vpack.c.b16 %v9642, %v9640
        %v9815 = vpack.c.b16 %v9645, %v9643
        %v9816 = vpack.c.b16 %v9646, %v9644
        %v9817 = vpack.c.b16 %v9649, %v9647
        %v9818 = vpack.c.b16 %v9650, %v9648
        %v9819 = vpack.c.b16 %v9653, %v9651
        %v9820 = vpack.c.b16 %v9654, %v9652
        %v9821 = vpack.c.b16 %v9657, %v9655
        %v9822 = vpack.c.b16 %v9658, %v9656
        %v9823 = vpack.c.b16 %v9661, %v9659
        %v9824 = vpack.c.b16 %v9662, %v9660
        %v9825 = vpack.c.b16 %v9665, %v9663
        %v9826 = vpack.c.b16 %v9666, %v9664
        %v9827 = vpack.c.b16 %v9669, %v9667
        %v9828 = vpack.c.b16 %v9670, %v9668
        %v9829 = vpack.c.b16 %v9673, %v9671
        %v9830 = vpack.c.b16 %v9674, %v9672
        %v9831 = vpack.c.b16 %v9677, %v9675
        %v9832 = vpack.c.b16 %v9678, %v9676
        %v9833 = vpack.c.b16 %v9681, %v9679
        %v9834 = vpack.c.b16 %v9682, %v9680
        %v9835 = vpack.c.b16 %v9685, %v9683
        %v9836 = vpack.c.b16 %v9686, %v9684
        %v9837 = vpack.c.b16 %v9689, %v9687
        %v9838 = vpack.c.b16 %v9690, %v9688
        %v9839 = vpack.c.b16 %v9693, %v9691
        %v9840 = vpack.c.b16 %v9694, %v9692
        %v9841 = vpack.c.b16 %v9697, %v9695
        %v9842 = vpack.c.b16 %v9698, %v9696
        %v9843 = vpack.c.b16 %v9701, %v9699
        %v9844 = vpack.c.b16 %v9702, %v9700
        %v9845 = vpack.c.b16 %v9705, %v9703
        %v9846 = vpack.c.b16 %v9706, %v9704
        %v9847 = vpack.c.b16 %v9709, %v9707
        %v9848 = vpack.c.b16 %v9710, %v9708
        %v9849 = vpack.c.b16 %v9713, %v9711
        %v9850 = vpack.c.b16 %v9714, %v9712
        %v9851 = vpack.c.b16 %v9717, %v9715
        %v9852 = vpack.c.b16 %v9718, %v9716
        %v9853 = vpack.c.b16 %v9721, %v9719
        %v9854 = vpack.c.b16 %v9722, %v9720
        %v9855 = vpack.c.b16 %v9725, %v9723
        %v9856 = vpack.c.b16 %v9726, %v9724
        %v9857 = vpack.c.b16 %v9729, %v9727
        %v9858 = vpack.c.b16 %v9730, %v9728
        %9987 = vmatprep.subr.bf16.mxu0 %v9732
        %9988 = vmatpush1.bf16.msra.mxu0 %v9731
        %9989 = vmatprep.subr.bf16.mxu0 %v9734
        %9990 = vmatpush1.bf16.msra.mxu0 %v9733
        %9991 = vmatprep.subr.bf16.mxu0 %v9736
        %9992 = vmatpush1.bf16.msra.mxu0 %v9735
        %9993 = vmatprep.subr.bf16.mxu0 %v9738
        %9994 = vmatpush1.bf16.msra.mxu0 %v9737
        %9995 = vmatprep.subr.bf16.mxu0 %v9740
        %9996 = vmatpush1.bf16.msra.mxu0 %v9739
        %9997 = vmatprep.subr.bf16.mxu0 %v9742
        %9998 = vmatpush1.bf16.msra.mxu0 %v9741
        %9999 = vmatprep.subr.bf16.mxu0 %v9744
        %10000 = vmatpush1.bf16.msra.mxu0 %v9743
        %10001 = vmatprep.subr.bf16.mxu0 %v9746
        %10002 = vmatpush1.bf16.msra.mxu0 %v9745
        %10003 = vmatprep.subr.bf16.mxu0 %v9748
        %10004 = vmatpush1.bf16.msra.mxu0 %v9747
        %10005 = vmatprep.subr.bf16.mxu0 %v9750
        %10006 = vmatpush1.bf16.msra.mxu0 %v9749
        %10007 = vmatprep.subr.bf16.mxu0 %v9752
        %10008 = vmatpush1.bf16.msra.mxu0 %v9751
        %10009 = vmatprep.subr.bf16.mxu0 %v9754
        %10010 = vmatpush1.bf16.msra.mxu0 %v9753
        %10011 = vmatprep.subr.bf16.mxu0 %v9756
        %10012 = vmatpush1.bf16.msra.mxu0 %v9755
        %10013 = vmatprep.subr.bf16.mxu0 %v9758
        %10014 = vmatpush1.bf16.msra.mxu0 %v9757
        %10015 = vmatprep.subr.bf16.mxu0 %v9760
        %10016 = vmatpush1.bf16.msra.mxu0 %v9759
        %10017 = vmatprep.subr.bf16.mxu0 %v9762
        %10018 = vmatpush1.bf16.msra.mxu0 %v9761
        %10019 = vmatprep.mubr.bf16.mxu0 %v9144
        %10020 = vmatmul.mubr.bf16.gmra.mrb[0].mxu0 %v9143
        %v10021 = vpop.f32.mrb[0].mxu0
        %v10022 = vadd.f32 %v9340, %v10021
        %v10023 = vpop.f32.mrb[0].mxu0
        %v10024 = vadd.f32 %v9344, %v10023
        %v10025 = vpop.f32.mrb[0].mxu0
        %v10026 = vadd.f32 %v9340, %v10025
        %v10027 = vpop.f32.mrb[0].mxu0
        %v10028 = vadd.f32 %v9344, %v10027
        %10029 = vmatprep.mubr.bf16.mxu0 %v9152
        %10030 = vmatmul.mubr.bf16.gmra.mrb[0].mxu0 %v9151
        %v10031 = vpop.f32.mrb[0].mxu0
        %v10032 = vadd.f32 %v9340, %v10031
        %v10033 = vpop.f32.mrb[0].mxu0
        %v10034 = vadd.f32 %v9344, %v10033
        %v10035 = vpop.f32.mrb[0].mxu0
        %v10036 = vadd.f32 %v9340, %v10035
        %v10037 = vpop.f32.mrb[0].mxu0
        %v10038 = vadd.f32 %v9344, %v10037
        %10039 = vmatprep.mubr.bf16.mxu0 %v9160
        %10040 = vmatmul.mubr.bf16.gmra.mrb[0].mxu0 %v9159
        %v10041 = vpop.f32.mrb[0].mxu0
        %v10042 = vadd.f32 %v9340, %v10041
        %v10043 = vpop.f32.mrb[0].mxu0
        %v10044 = vadd.f32 %v9344, %v10043
        %v10045 = vpop.f32.mrb[0].mxu0
        %v10046 = vadd.f32 %v9340, %v10045
        %v10047 = vpop.f32.mrb[0].mxu0
        %v10048 = vadd.f32 %v9344, %v10047
        %10049 = vmatprep.mubr.bf16.mxu0 %v9168
        %10050 = vmatmul.mubr.bf16.gmra.mrb[0].mxu0 %v9167
        %v10051 = vpop.f32.mrb[0].mxu0
        %v10052 = vadd.f32 %v9340, %v10051
        %v10053 = vpop.f32.mrb[0].mxu0
        %v10054 = vadd.f32 %v9344, %v10053
        %v10055 = vpop.f32.mrb[0].mxu0
        %v10056 = vadd.f32 %v9340, %v10055
        %v10057 = vpop.f32.mrb[0].mxu0
        %v10058 = vadd.f32 %v9344, %v10057
        %10059 = vmatprep.mubr.bf16.mxu0 %v9176
        %10060 = vmatmul.mubr.bf16.gmra.mrb[0].mxu0 %v9175
        %v10061 = vpop.f32.mrb[0].mxu0
        %v10062 = vadd.f32 %v9340, %v10061
        %v10063 = vpop.f32.mrb[0].mxu0
        %v10064 = vadd.f32 %v9344, %v10063
        %v10065 = vpop.f32.mrb[0].mxu0
        %v10066 = vadd.f32 %v9340, %v10065
        %v10067 = vpop.f32.mrb[0].mxu0
        %v10068 = vadd.f32 %v9344, %v10067
        %10069 = vmatprep.mubr.bf16.mxu0 %v9184
        %10070 = vmatmul.mubr.bf16.gmra.mrb[0].mxu0 %v9183
        %v10071 = vpop.f32.mrb[0].mxu0
        %v10072 = vadd.f32 %v9340, %v10071
        %v10073 = vpop.f32.mrb[0].mxu0
        %v10074 = vadd.f32 %v9344, %v10073
        %v10075 = vpop.f32.mrb[0].mxu0
        %v10076 = vadd.f32 %v9340, %v10075
        %v10077 = vpop.f32.mrb[0].mxu0
        %v10078 = vadd.f32 %v9344, %v10077
        %10079 = vmatprep.mubr.bf16.mxu0 %v9192
        %10080 = vmatmul.mubr.bf16.gmra.mrb[0].mxu0 %v9191
        %v10081 = vpop.f32.mrb[0].mxu0
        %v10082 = vadd.f32 %v9340, %v10081
        %v10083 = vpop.f32.mrb[0].mxu0
        %v10084 = vadd.f32 %v9344, %v10083
        %v10085 = vpop.f32.mrb[0].mxu0
        %v10086 = vadd.f32 %v9340, %v10085
        %v10087 = vpop.f32.mrb[0].mxu0
        %v10088 = vadd.f32 %v9344, %v10087
        %10089 = vmatprep.mubr.bf16.mxu0 %v9200
        %10090 = vmatmul.mubr.bf16.gmra.mrb[0].mxu0 %v9199
        %v10091 = vpop.f32.mrb[0].mxu0
        %v10092 = vadd.f32 %v9340, %v10091
        %v10093 = vpop.f32.mrb[0].mxu0
        %v10094 = vadd.f32 %v9344, %v10093
        %v10095 = vpop.f32.mrb[0].mxu0
        %v10096 = vadd.f32 %v9340, %v10095
        %v10097 = vpop.f32.mrb[0].mxu0
        %v10098 = vadd.f32 %v9344, %v10097
        %10099 = vdwg.mxu0
        %10100 = vmatprep.subr.bf16.mxu0 %v9764
        %10101 = vmatpush1.bf16.msra.mxu0 %v9763
        %10102 = vmatprep.subr.bf16.mxu0 %v9766
        %10103 = vmatpush1.bf16.msra.mxu0 %v9765
        %10104 = vmatprep.subr.bf16.mxu0 %v9768
        %10105 = vmatpush1.bf16.msra.mxu0 %v9767
        %10106 = vmatprep.subr.bf16.mxu0 %v9770
        %10107 = vmatpush1.bf16.msra.mxu0 %v9769
        %10108 = vmatprep.subr.bf16.mxu0 %v9772
        %10109 = vmatpush1.bf16.msra.mxu0 %v9771
        %10110 = vmatprep.subr.bf16.mxu0 %v9774
        %10111 = vmatpush1.bf16.msra.mxu0 %v9773
        %10112 = vmatprep.subr.bf16.mxu0 %v9776
        %10113 = vmatpush1.bf16.msra.mxu0 %v9775
        %10114 = vmatprep.subr.bf16.mxu0 %v9778
        %10115 = vmatpush1.bf16.msra.mxu0 %v9777
        %10116 = vmatprep.subr.bf16.mxu0 %v9780
        %10117 = vmatpush1.bf16.msra.mxu0 %v9779
        %10118 = vmatprep.subr.bf16.mxu0 %v9782
        %10119 = vmatpush1.bf16.msra.mxu0 %v9781
        %10120 = vmatprep.subr.bf16.mxu0 %v9784
        %10121 = vmatpush1.bf16.msra.mxu0 %v9783
        %10122 = vmatprep.subr.bf16.mxu0 %v9786
        %10123 = vmatpush1.bf16.msra.mxu0 %v9785
        %10124 = vmatprep.subr.bf16.mxu0 %v9788
        %10125 = vmatpush1.bf16.msra.mxu0 %v9787
        %10126 = vmatprep.subr.bf16.mxu0 %v9790
        %10127 = vmatpush1.bf16.msra.mxu0 %v9789
        %10128 = vmatprep.subr.bf16.mxu0 %v9792
        %10129 = vmatpush1.bf16.msra.mxu0 %v9791
        %10130 = vmatprep.subr.bf16.mxu0 %v9794
        %10131 = vmatpush1.bf16.msra.mxu0 %v9793
        %10132 = vmatprep.mubr.bf16.mxu0 %v9146
        %10133 = vmatmul.mubr.bf16.gmra.mrb[0].mxu0 %v9145
        %v10134 = vpop.f32.mrb[0].mxu0
        %v10135 = vadd.f32 %v10022, %v10134
        %v10136 = vpop.f32.mrb[0].mxu0
        %v10137 = vadd.f32 %v10024, %v10136
        %v10138 = vpop.f32.mrb[0].mxu0
        %v10139 = vadd.f32 %v10026, %v10138
        %v10140 = vpop.f32.mrb[0].mxu0
        %v10141 = vadd.f32 %v10028, %v10140
        %10142 = vmatprep.mubr.bf16.mxu0 %v9154
        %10143 = vmatmul.mubr.bf16.gmra.mrb[0].mxu0 %v9153
        %v10144 = vpop.f32.mrb[0].mxu0
        %v10145 = vadd.f32 %v10032, %v10144
        %v10146 = vpop.f32.mrb[0].mxu0
        %v10147 = vadd.f32 %v10034, %v10146
        %v10148 = vpop.f32.mrb[0].mxu0
        %v10149 = vadd.f32 %v10036, %v10148
        %v10150 = vpop.f32.mrb[0].mxu0
        %v10151 = vadd.f32 %v10038, %v10150
        %10152 = vmatprep.mubr.bf16.mxu0 %v9162
        %10153 = vmatmul.mubr.bf16.gmra.mrb[0].mxu0 %v9161
        %v10154 = vpop.f32.mrb[0].mxu0
        %v10155 = vadd.f32 %v10042, %v10154
        %v10156 = vpop.f32.mrb[0].mxu0
        %v10157 = vadd.f32 %v10044, %v10156
        %v10158 = vpop.f32.mrb[0].mxu0
        %v10159 = vadd.f32 %v10046, %v10158
        %v10160 = vpop.f32.mrb[0].mxu0
        %v10161 = vadd.f32 %v10048, %v10160
        %10162 = vmatprep.mubr.bf16.mxu0 %v9170
        %10163 = vmatmul.mubr.bf16.gmra.mrb[0].mxu0 %v9169
        %v10164 = vpop.f32.mrb[0].mxu0
        %v10165 = vadd.f32 %v10052, %v10164
        %v10166 = vpop.f32.mrb[0].mxu0
        %v10167 = vadd.f32 %v10054, %v10166
        %v10168 = vpop.f32.mrb[0].mxu0
        %v10169 = vadd.f32 %v10056, %v10168
        %v10170 = vpop.f32.mrb[0].mxu0
        %v10171 = vadd.f32 %v10058, %v10170
        %10172 = vmatprep.mubr.bf16.mxu0 %v9178
        %10173 = vmatmul.mubr.bf16.gmra.mrb[0].mxu0 %v9177
        %v10174 = vpop.f32.mrb[0].mxu0
        %v10175 = vadd.f32 %v10062, %v10174
        %v10176 = vpop.f32.mrb[0].mxu0
        %v10177 = vadd.f32 %v10064, %v10176
        %v10178 = vpop.f32.mrb[0].mxu0
        %v10179 = vadd.f32 %v10066, %v10178
        %v10180 = vpop.f32.mrb[0].mxu0
        %v10181 = vadd.f32 %v10068, %v10180
        %10182 = vmatprep.mubr.bf16.mxu0 %v9186
        %10183 = vmatmul.mubr.bf16.gmra.mrb[0].mxu0 %v9185
        %v10184 = vpop.f32.mrb[0].mxu0
        %v10185 = vadd.f32 %v10072, %v10184
        %v10186 = vpop.f32.mrb[0].mxu0
        %v10187 = vadd.f32 %v10074, %v10186
        %v10188 = vpop.f32.mrb[0].mxu0
        %v10189 = vadd.f32 %v10076, %v10188
        %v10190 = vpop.f32.mrb[0].mxu0
        %v10191 = vadd.f32 %v10078, %v10190
        %10192 = vmatprep.mubr.bf16.mxu0 %v9194
        %10193 = vmatmul.mubr.bf16.gmra.mrb[0].mxu0 %v9193
        %v10194 = vpop.f32.mrb[0].mxu0
        %v10195 = vadd.f32 %v10082, %v10194
        %v10196 = vpop.f32.mrb[0].mxu0
        %v10197 = vadd.f32 %v10084, %v10196
        %v10198 = vpop.f32.mrb[0].mxu0
        %v10199 = vadd.f32 %v10086, %v10198
        %v10200 = vpop.f32.mrb[0].mxu0
        %v10201 = vadd.f32 %v10088, %v10200
        %10202 = vmatprep.mubr.bf16.mxu0 %v9202
        %10203 = vmatmul.mubr.bf16.gmra.mrb[0].mxu0 %v9201
        %v10204 = vpop.f32.mrb[0].mxu0
        %v10205 = vadd.f32 %v10092, %v10204
        %v10206 = vpop.f32.mrb[0].mxu0
        %v10207 = vadd.f32 %v10094, %v10206
        %v10208 = vpop.f32.mrb[0].mxu0
        %v10209 = vadd.f32 %v10096, %v10208
        %v10210 = vpop.f32.mrb[0].mxu0
        %v10211 = vadd.f32 %v10098, %v10210
        %10212 = vdwg.mxu0
        %10213 = vmatprep.subr.bf16.mxu0 %v9796
        %10214 = vmatpush1.bf16.msra.mxu0 %v9795
        %10215 = vmatprep.subr.bf16.mxu0 %v9798
        %10216 = vmatpush1.bf16.msra.mxu0 %v9797
        %10217 = vmatprep.subr.bf16.mxu0 %v9800
        %10218 = vmatpush1.bf16.msra.mxu0 %v9799
        %10219 = vmatprep.subr.bf16.mxu0 %v9802
        %10220 = vmatpush1.bf16.msra.mxu0 %v9801
        %10221 = vmatprep.subr.bf16.mxu0 %v9804
        %10222 = vmatpush1.bf16.msra.mxu0 %v9803
        %10223 = vmatprep.subr.bf16.mxu0 %v9806
        %10224 = vmatpush1.bf16.msra.mxu0 %v9805
        %10225 = vmatprep.subr.bf16.mxu0 %v9808
        %10226 = vmatpush1.bf16.msra.mxu0 %v9807
        %10227 = vmatprep.subr.bf16.mxu0 %v9810
        %10228 = vmatpush1.bf16.msra.mxu0 %v9809
        %10229 = vmatprep.subr.bf16.mxu0 %v9812
        %10230 = vmatpush1.bf16.msra.mxu0 %v9811
        %10231 = vmatprep.subr.bf16.mxu0 %v9814
        %10232 = vmatpush1.bf16.msra.mxu0 %v9813
        %10233 = vmatprep.subr.bf16.mxu0 %v9816
        %10234 = vmatpush1.bf16.msra.mxu0 %v9815
        %10235 = vmatprep.subr.bf16.mxu0 %v9818
        %10236 = vmatpush1.bf16.msra.mxu0 %v9817
        %10237 = vmatprep.subr.bf16.mxu0 %v9820
        %10238 = vmatpush1.bf16.msra.mxu0 %v9819
        %10239 = vmatprep.subr.bf16.mxu0 %v9822
        %10240 = vmatpush1.bf16.msra.mxu0 %v9821
        %10241 = vmatprep.subr.bf16.mxu0 %v9824
        %10242 = vmatpush1.bf16.msra.mxu0 %v9823
        %10243 = vmatprep.subr.bf16.mxu0 %v9826
        %10244 = vmatpush1.bf16.msra.mxu0 %v9825
        %10245 = vmatprep.mubr.bf16.mxu0 %v9148
        %10246 = vmatmul.mubr.bf16.gmra.mrb[0].mxu0 %v9147
        %v10247 = vpop.f32.mrb[0].mxu0
        %v10248 = vadd.f32 %v10135, %v10247
        %v10249 = vpop.f32.mrb[0].mxu0
        %v10250 = vadd.f32 %v10137, %v10249
        %v10251 = vpop.f32.mrb[0].mxu0
        %v10252 = vadd.f32 %v10139, %v10251
        %v10253 = vpop.f32.mrb[0].mxu0
        %v10254 = vadd.f32 %v10141, %v10253
        %10255 = vmatprep.mubr.bf16.mxu0 %v9156
        %10256 = vmatmul.mubr.bf16.gmra.mrb[0].mxu0 %v9155
        %v10257 = vpop.f32.mrb[0].mxu0
        %v10258 = vadd.f32 %v10145, %v10257
        %v10259 = vpop.f32.mrb[0].mxu0
        %v10260 = vadd.f32 %v10147, %v10259
        %v10261 = vpop.f32.mrb[0].mxu0
        %v10262 = vadd.f32 %v10149, %v10261
        %v10263 = vpop.f32.mrb[0].mxu0
        %v10264 = vadd.f32 %v10151, %v10263
        %10265 = vmatprep.mubr.bf16.mxu0 %v9164
        %10266 = vmatmul.mubr.bf16.gmra.mrb[0].mxu0 %v9163
        %v10267 = vpop.f32.mrb[0].mxu0
        %v10268 = vadd.f32 %v10155, %v10267
        %v10269 = vpop.f32.mrb[0].mxu0
        %v10270 = vadd.f32 %v10157, %v10269
        %v10271 = vpop.f32.mrb[0].mxu0
        %v10272 = vadd.f32 %v10159, %v10271
        %v10273 = vpop.f32.mrb[0].mxu0
        %v10274 = vadd.f32 %v10161, %v10273
        %10275 = vmatprep.mubr.bf16.mxu0 %v9172
        %10276 = vmatmul.mubr.bf16.gmra.mrb[0].mxu0 %v9171
        %v10277 = vpop.f32.mrb[0].mxu0
        %v10278 = vadd.f32 %v10165, %v10277
        %v10279 = vpop.f32.mrb[0].mxu0
        %v10280 = vadd.f32 %v10167, %v10279
        %v10281 = vpop.f32.mrb[0].mxu0
        %v10282 = vadd.f32 %v10169, %v10281
        %v10283 = vpop.f32.mrb[0].mxu0
        %v10284 = vadd.f32 %v10171, %v10283
        %10285 = vmatprep.mubr.bf16.mxu0 %v9180
        %10286 = vmatmul.mubr.bf16.gmra.mrb[0].mxu0 %v9179
        %v10287 = vpop.f32.mrb[0].mxu0
        %v10288 = vadd.f32 %v10175, %v10287
        %v10289 = vpop.f32.mrb[0].mxu0
        %v10290 = vadd.f32 %v10177, %v10289
        %v10291 = vpop.f32.mrb[0].mxu0
        %v10292 = vadd.f32 %v10179, %v10291
        %v10293 = vpop.f32.mrb[0].mxu0
        %v10294 = vadd.f32 %v10181, %v10293
        %10295 = vmatprep.mubr.bf16.mxu0 %v9188
        %10296 = vmatmul.mubr.bf16.gmra.mrb[0].mxu0 %v9187
        %v10297 = vpop.f32.mrb[0].mxu0
        %v10298 = vadd.f32 %v10185, %v10297
        %v10299 = vpop.f32.mrb[0].mxu0
        %v10300 = vadd.f32 %v10187, %v10299
        %v10301 = vpop.f32.mrb[0].mxu0
        %v10302 = vadd.f32 %v10189, %v10301
        %v10303 = vpop.f32.mrb[0].mxu0
        %v10304 = vadd.f32 %v10191, %v10303
        %10305 = vmatprep.mubr.bf16.mxu0 %v9196
        %10306 = vmatmul.mubr.bf16.gmra.mrb[0].mxu0 %v9195
        %v10307 = vpop.f32.mrb[0].mxu0
        %v10308 = vadd.f32 %v10195, %v10307
        %v10309 = vpop.f32.mrb[0].mxu0
        %v10310 = vadd.f32 %v10197, %v10309
        %v10311 = vpop.f32.mrb[0].mxu0
        %v10312 = vadd.f32 %v10199, %v10311
        %v10313 = vpop.f32.mrb[0].mxu0
        %v10314 = vadd.f32 %v10201, %v10313
        %10315 = vmatprep.mubr.bf16.mxu0 %v9204
        %10316 = vmatmul.mubr.bf16.gmra.mrb[0].mxu0 %v9203
        %v10317 = vpop.f32.mrb[0].mxu0
        %v10318 = vadd.f32 %v10205, %v10317
        %v10319 = vpop.f32.mrb[0].mxu0
        %v10320 = vadd.f32 %v10207, %v10319
        %v10321 = vpop.f32.mrb[0].mxu0
        %v10322 = vadd.f32 %v10209, %v10321
        %v10323 = vpop.f32.mrb[0].mxu0
        %v10324 = vadd.f32 %v10211, %v10323
        %10325 = vdwg.mxu0
        %10326 = vmatprep.subr.bf16.mxu0 %v9828
        %10327 = vmatpush1.bf16.msra.mxu0 %v9827
        %10328 = vmatprep.subr.bf16.mxu0 %v9830
        %10329 = vmatpush1.bf16.msra.mxu0 %v9829
        %10330 = vmatprep.subr.bf16.mxu0 %v9832
        %10331 = vmatpush1.bf16.msra.mxu0 %v9831
        %10332 = vmatprep.subr.bf16.mxu0 %v9834
        %10333 = vmatpush1.bf16.msra.mxu0 %v9833
        %10334 = vmatprep.subr.bf16.mxu0 %v9836
        %10335 = vmatpush1.bf16.msra.mxu0 %v9835
        %10336 = vmatprep.subr.bf16.mxu0 %v9838
        %10337 = vmatpush1.bf16.msra.mxu0 %v9837
        %10338 = vmatprep.subr.bf16.mxu0 %v9840
        %10339 = vmatpush1.bf16.msra.mxu0 %v9839
        %10340 = vmatprep.subr.bf16.mxu0 %v9842
        %10341 = vmatpush1.bf16.msra.mxu0 %v9841
        %10342 = vmatprep.subr.bf16.mxu0 %v9844
        %10343 = vmatpush1.bf16.msra.mxu0 %v9843
        %10344 = vmatprep.subr.bf16.mxu0 %v9846
        %10345 = vmatpush1.bf16.msra.mxu0 %v9845
        %10346 = vmatprep.subr.bf16.mxu0 %v9848
        %10347 = vmatpush1.bf16.msra.mxu0 %v9847
        %10348 = vmatprep.subr.bf16.mxu0 %v9850
        %10349 = vmatpush1.bf16.msra.mxu0 %v9849
        %10350 = vmatprep.subr.bf16.mxu0 %v9852
        %10351 = vmatpush1.bf16.msra.mxu0 %v9851
        %10352 = vmatprep.subr.bf16.mxu0 %v9854
        %10353 = vmatpush1.bf16.msra.mxu0 %v9853
        %10354 = vmatprep.subr.bf16.mxu0 %v9856
        %10355 = vmatpush1.bf16.msra.mxu0 %v9855
        %10356 = vmatprep.subr.bf16.mxu0 %v9858
        %10357 = vmatpush1.bf16.msra.mxu0 %v9857
        %10358 = vmatprep.mubr.bf16.mxu0 %v9150
        %10359 = vmatmul.mubr.bf16.gmra.mrb[0].mxu0 %v9149
        %v10360 = vpop.f32.mrb[0].mxu0
        %v10361 = vadd.f32 %v10248, %v10360
        %v10362 = vpop.f32.mrb[0].mxu0
        %v10363 = vadd.f32 %v10250, %v10362
        %v10364 = vpop.f32.mrb[0].mxu0
        %v10365 = vadd.f32 %v10252, %v10364
        %v10366 = vpop.f32.mrb[0].mxu0
        %v10367 = vadd.f32 %v10254, %v10366
        %10368 = vmatprep.mubr.bf16.mxu0 %v9158
        %10369 = vmatmul.mubr.bf16.gmra.mrb[0].mxu0 %v9157
        %v10370 = vpop.f32.mrb[0].mxu0
        %v10371 = vadd.f32 %v10258, %v10370
        %v10372 = vpop.f32.mrb[0].mxu0
        %v10373 = vadd.f32 %v10260, %v10372
        %v10374 = vpop.f32.mrb[0].mxu0
        %v10375 = vadd.f32 %v10262, %v10374
        %v10376 = vpop.f32.mrb[0].mxu0
        %v10377 = vadd.f32 %v10264, %v10376
        %10378 = vmatprep.mubr.bf16.mxu0 %v9166
        %10379 = vmatmul.mubr.bf16.gmra.mrb[0].mxu0 %v9165
        %v10380 = vpop.f32.mrb[0].mxu0
        %v10381 = vadd.f32 %v10268, %v10380
        %v10382 = vpop.f32.mrb[0].mxu0
        %v10383 = vadd.f32 %v10270, %v10382
        %v10384 = vpop.f32.mrb[0].mxu0
        %v10385 = vadd.f32 %v10272, %v10384
        %v10386 = vpop.f32.mrb[0].mxu0
        %v10387 = vadd.f32 %v10274, %v10386
        %10388 = vmatprep.mubr.bf16.mxu0 %v9174
        %10389 = vmatmul.mubr.bf16.gmra.mrb[0].mxu0 %v9173
        %v10390 = vpop.f32.mrb[0].mxu0
        %v10391 = vadd.f32 %v10278, %v10390
        %v10392 = vpop.f32.mrb[0].mxu0
        %v10393 = vadd.f32 %v10280, %v10392
        %v10394 = vpop.f32.mrb[0].mxu0
        %v10395 = vadd.f32 %v10282, %v10394
        %v10396 = vpop.f32.mrb[0].mxu0
        %v10397 = vadd.f32 %v10284, %v10396
        %10398 = vmatprep.mubr.bf16.mxu0 %v9182
        %10399 = vmatmul.mubr.bf16.gmra.mrb[0].mxu0 %v9181
        %v10400 = vpop.f32.mrb[0].mxu0
        %v10401 = vadd.f32 %v10288, %v10400
        %v10402 = vpop.f32.mrb[0].mxu0
        %v10403 = vadd.f32 %v10290, %v10402
        %v10404 = vpop.f32.mrb[0].mxu0
        %v10405 = vadd.f32 %v10292, %v10404
        %v10406 = vpop.f32.mrb[0].mxu0
        %v10407 = vadd.f32 %v10294, %v10406
        %10408 = vmatprep.mubr.bf16.mxu0 %v9190
        %10409 = vmatmul.mubr.bf16.gmra.mrb[0].mxu0 %v9189
        %v10410 = vpop.f32.mrb[0].mxu0
        %v10411 = vadd.f32 %v10298, %v10410
        %v10412 = vpop.f32.mrb[0].mxu0
        %v10413 = vadd.f32 %v10300, %v10412
        %v10414 = vpop.f32.mrb[0].mxu0
        %v10415 = vadd.f32 %v10302, %v10414
        %v10416 = vpop.f32.mrb[0].mxu0
        %v10417 = vadd.f32 %v10304, %v10416
        %10418 = vmatprep.mubr.bf16.mxu0 %v9198
        %10419 = vmatmul.mubr.bf16.gmra.mrb[0].mxu0 %v9197
        %v10420 = vpop.f32.mrb[0].mxu0
        %v10421 = vadd.f32 %v10308, %v10420
        %v10422 = vpop.f32.mrb[0].mxu0
        %v10423 = vadd.f32 %v10310, %v10422
        %v10424 = vpop.f32.mrb[0].mxu0
        %v10425 = vadd.f32 %v10312, %v10424
        %v10426 = vpop.f32.mrb[0].mxu0
        %v10427 = vadd.f32 %v10314, %v10426
        %10428 = vmatprep.mubr.bf16.mxu0 %v9206
        %10429 = vmatmul.mubr.bf16.gmra.mrb[0].mxu0 %v9205
        %v10430 = vpop.f32.mrb[0].mxu0
        %v10431 = vadd.f32 %v10318, %v10430
        %v10432 = vpop.f32.mrb[0].mxu0
        %v10433 = vadd.f32 %v10320, %v10432
        %v10434 = vpop.f32.mrb[0].mxu0
        %v10435 = vadd.f32 %v10322, %v10434
        %v10436 = vpop.f32.mrb[0].mxu0
        %v10437 = vadd.f32 %v10324, %v10436
        %10438 = vdwg.mxu0
        %v10439 = vadd.f32 %v10361, %v6681
        %v10440 = vadd.f32 %v10363, %v6682
        %v10441 = vadd.f32 %v10365, %v6683
        %v10442 = vadd.f32 %v10367, %v6684
        %v10443 = vadd.f32 %v10371, %v6685
        %v10444 = vadd.f32 %v10373, %v6686
        %v10445 = vadd.f32 %v10375, %v6687
        %v10446 = vadd.f32 %v10377, %v6688
        %v10447 = vadd.f32 %v10381, %v6689
        %v10448 = vadd.f32 %v10383, %v6690
        %v10449 = vadd.f32 %v10385, %v6691
        %v10450 = vadd.f32 %v10387, %v6692
        %v10451 = vadd.f32 %v10391, %v6693
        %v10452 = vadd.f32 %v10393, %v6694
        %v10453 = vadd.f32 %v10395, %v6695
        %v10454 = vadd.f32 %v10397, %v6696
        %v10455 = vadd.f32 %v10401, %v6697
        %v10456 = vadd.f32 %v10403, %v6698
        %v10457 = vadd.f32 %v10405, %v6699
        %v10458 = vadd.f32 %v10407, %v6700
        %v10459 = vadd.f32 %v10411, %v6701
        %v10460 = vadd.f32 %v10413, %v6702
        %v10461 = vadd.f32 %v10415, %v6703
        %v10462 = vadd.f32 %v10417, %v6704
        %v10463 = vadd.f32 %v10421, %v6705
        %v10464 = vadd.f32 %v10423, %v6706
        %v10465 = vadd.f32 %v10425, %v6707
        %v10466 = vadd.f32 %v10427, %v6708
        %v10467 = vadd.f32 %v10431, %v6709
        %v10468 = vadd.f32 %v10433, %v6710
        %v10469 = vadd.f32 %v10435, %v6711
        %v10470 = vadd.f32 %v10437, %v6712
        %v10471 = vld [vmem:[%s908] sm:$0x3]
        %v10472 = vld [vmem:[%s912] sm:$0x3]
        %v10473 = vadd.f32 %v10439, %v10440
        %10474 = vadd.xlane.f32.xlu0 %v10473
        %v10475 = vpop.xlane.xlu0 %10474
        %v10476 = vadd.f32 %v10441, %v10442
        %10477 = vadd.xlane.f32.xlu0 %v10476
        %v10478 = vpop.xlane.xlu0 %10477
        %v10479 = vadd.f32 %v10443, %v10444
        %10480 = vadd.xlane.f32.xlu0 %v10479
        %v10481 = vpop.xlane.xlu0 %10480
        %v10482 = vadd.f32 %v10445, %v10446
        %10483 = vadd.xlane.f32.xlu0 %v10482
        %v10484 = vpop.xlane.xlu0 %10483
        %v10485 = vadd.f32 %v10447, %v10448
        %10486 = vadd.xlane.f32.xlu0 %v10485
        %v10487 = vpop.xlane.xlu0 %10486
        %v10488 = vadd.f32 %v10449, %v10450
        %10489 = vadd.xlane.f32.xlu0 %v10488
        %v10490 = vpop.xlane.xlu0 %10489
        %v10491 = vadd.f32 %v10451, %v10452
        %10492 = vadd.xlane.f32.xlu0 %v10491
        %v10493 = vpop.xlane.xlu0 %10492
        %v10494 = vadd.f32 %v10453, %v10454
        %10495 = vadd.xlane.f32.xlu0 %v10494
        %v10496 = vpop.xlane.xlu0 %10495
        %v10497 = vadd.f32 %v10455, %v10456
        %10498 = vadd.xlane.f32.xlu0 %v10497
        %v10499 = vpop.xlane.xlu0 %10498
        %v10500 = vadd.f32 %v10457, %v10458
        %10501 = vadd.xlane.f32.xlu0 %v10500
        %v10502 = vpop.xlane.xlu0 %10501
        %v10503 = vadd.f32 %v10459, %v10460
        %10504 = vadd.xlane.f32.xlu0 %v10503
        %v10505 = vpop.xlane.xlu0 %10504
        %v10506 = vadd.f32 %v10461, %v10462
        %10507 = vadd.xlane.f32.xlu0 %v10506
        %v10508 = vpop.xlane.xlu0 %10507
        %v10509 = vadd.f32 %v10463, %v10464
        %10510 = vadd.xlane.f32.xlu0 %v10509
        %v10511 = vpop.xlane.xlu0 %10510
        %v10512 = vadd.f32 %v10465, %v10466
        %10513 = vadd.xlane.f32.xlu0 %v10512
        %v10514 = vpop.xlane.xlu0 %10513
        %v10515 = vadd.f32 %v10467, %v10468
        %10516 = vadd.xlane.f32.xlu0 %v10515
        %v10517 = vpop.xlane.xlu0 %10516
        %v10518 = vadd.f32 %v10469, %v10470
        %10519 = vadd.xlane.f32.xlu0 %v10518
        %v10520 = vpop.xlane.xlu0 %10519
        %v10521 = vmul.f32 %v10475, %v6418
        %v10522 = vmul.f32 %v10478, %v6418
        %v10523 = vmul.f32 %v10481, %v6418
        %v10524 = vmul.f32 %v10484, %v6418
        %v10525 = vmul.f32 %v10487, %v6418
        %v10526 = vmul.f32 %v10490, %v6418
        %v10527 = vmul.f32 %v10493, %v6418
        %v10528 = vmul.f32 %v10496, %v6418
        %v10529 = vmul.f32 %v10499, %v6418
        %v10530 = vmul.f32 %v10502, %v6418
        %v10531 = vmul.f32 %v10505, %v6418
        %v10532 = vmul.f32 %v10508, %v6418
        %v10533 = vmul.f32 %v10511, %v6418
        %v10534 = vmul.f32 %v10514, %v6418
        %v10535 = vmul.f32 %v10517, %v6418
        %v10536 = vmul.f32 %v10520, %v6418
        %v10537 = vsub.f32 %v10439, %v10521
        %v10538 = vsub.f32 %v10440, %v10521
        %v10539 = vsub.f32 %v10441, %v10522
        %v10540 = vsub.f32 %v10442, %v10522
        %v10541 = vsub.f32 %v10443, %v10523
        %v10542 = vsub.f32 %v10444, %v10523
        %v10543 = vsub.f32 %v10445, %v10524
        %v10544 = vsub.f32 %v10446, %v10524
        %v10545 = vsub.f32 %v10447, %v10525
        %v10546 = vsub.f32 %v10448, %v10525
        %v10547 = vsub.f32 %v10449, %v10526
        %v10548 = vsub.f32 %v10450, %v10526
        %v10549 = vsub.f32 %v10451, %v10527
        %v10550 = vsub.f32 %v10452, %v10527
        %v10551 = vsub.f32 %v10453, %v10528
        %v10552 = vsub.f32 %v10454, %v10528
        %v10553 = vsub.f32 %v10455, %v10529
        %v10554 = vsub.f32 %v10456, %v10529
        %v10555 = vsub.f32 %v10457, %v10530
        %v10556 = vsub.f32 %v10458, %v10530
        %v10557 = vsub.f32 %v10459, %v10531
        %v10558 = vsub.f32 %v10460, %v10531
        %v10559 = vsub.f32 %v10461, %v10532
        %v10560 = vsub.f32 %v10462, %v10532
        %v10561 = vsub.f32 %v10463, %v10533
        %v10562 = vsub.f32 %v10464, %v10533
        %v10563 = vsub.f32 %v10465, %v10534
        %v10564 = vsub.f32 %v10466, %v10534
        %v10565 = vsub.f32 %v10467, %v10535
        %v10566 = vsub.f32 %v10468, %v10535
        %v10567 = vsub.f32 %v10469, %v10536
        %v10568 = vsub.f32 %v10470, %v10536
        %v10569 = vmul.f32 %v10537, %v10537
        %v10570 = vmul.f32 %v10538, %v10538
        %v10571 = vmul.f32 %v10539, %v10539
        %v10572 = vmul.f32 %v10540, %v10540
        %v10573 = vmul.f32 %v10541, %v10541
        %v10574 = vmul.f32 %v10542, %v10542
        %v10575 = vmul.f32 %v10543, %v10543
        %v10576 = vmul.f32 %v10544, %v10544
        %v10577 = vmul.f32 %v10545, %v10545
        %v10578 = vmul.f32 %v10546, %v10546
        %v10579 = vmul.f32 %v10547, %v10547
        %v10580 = vmul.f32 %v10548, %v10548
        %v10581 = vmul.f32 %v10549, %v10549
        %v10582 = vmul.f32 %v10550, %v10550
        %v10583 = vmul.f32 %v10551, %v10551
        %v10584 = vmul.f32 %v10552, %v10552
        %v10585 = vmul.f32 %v10553, %v10553
        %v10586 = vmul.f32 %v10554, %v10554
        %v10587 = vmul.f32 %v10555, %v10555
        %v10588 = vmul.f32 %v10556, %v10556
        %v10589 = vmul.f32 %v10557, %v10557
        %v10590 = vmul.f32 %v10558, %v10558
        %v10591 = vmul.f32 %v10559, %v10559
        %v10592 = vmul.f32 %v10560, %v10560
        %v10593 = vmul.f32 %v10561, %v10561
        %v10594 = vmul.f32 %v10562, %v10562
        %v10595 = vmul.f32 %v10563, %v10563
        %v10596 = vmul.f32 %v10564, %v10564
        %v10597 = vmul.f32 %v10565, %v10565
        %v10598 = vmul.f32 %v10566, %v10566
        %v10599 = vmul.f32 %v10567, %v10567
        %v10600 = vmul.f32 %v10568, %v10568
        %v10601 = vadd.f32 %v10569, %v10570
        %10602 = vadd.xlane.f32.xlu0 %v10601
        %v10603 = vpop.xlane.xlu0 %10602
        %v10604 = vadd.f32 %v10571, %v10572
        %10605 = vadd.xlane.f32.xlu0 %v10604
        %v10606 = vpop.xlane.xlu0 %10605
        %v10607 = vadd.f32 %v10573, %v10574
        %10608 = vadd.xlane.f32.xlu0 %v10607
        %v10609 = vpop.xlane.xlu0 %10608
        %v10610 = vadd.f32 %v10575, %v10576
        %10611 = vadd.xlane.f32.xlu0 %v10610
        %v10612 = vpop.xlane.xlu0 %10611
        %v10613 = vadd.f32 %v10577, %v10578
        %10614 = vadd.xlane.f32.xlu0 %v10613
        %v10615 = vpop.xlane.xlu0 %10614
        %v10616 = vadd.f32 %v10579, %v10580
        %10617 = vadd.xlane.f32.xlu0 %v10616
        %v10618 = vpop.xlane.xlu0 %10617
        %v10619 = vadd.f32 %v10581, %v10582
        %10620 = vadd.xlane.f32.xlu0 %v10619
        %v10621 = vpop.xlane.xlu0 %10620
        %v10622 = vadd.f32 %v10583, %v10584
        %10623 = vadd.xlane.f32.xlu0 %v10622
        %v10624 = vpop.xlane.xlu0 %10623
        %v10625 = vadd.f32 %v10585, %v10586
        %10626 = vadd.xlane.f32.xlu0 %v10625
        %v10627 = vpop.xlane.xlu0 %10626
        %v10628 = vadd.f32 %v10587, %v10588
        %10629 = vadd.xlane.f32.xlu0 %v10628
        %v10630 = vpop.xlane.xlu0 %10629
        %v10631 = vadd.f32 %v10589, %v10590
        %10632 = vadd.xlane.f32.xlu0 %v10631
        %v10633 = vpop.xlane.xlu0 %10632
        %v10634 = vadd.f32 %v10591, %v10592
        %10635 = vadd.xlane.f32.xlu0 %v10634
        %v10636 = vpop.xlane.xlu0 %10635
        %v10637 = vadd.f32 %v10593, %v10594
        %10638 = vadd.xlane.f32.xlu0 %v10637
        %v10639 = vpop.xlane.xlu0 %10638
        %v10640 = vadd.f32 %v10595, %v10596
        %10641 = vadd.xlane.f32.xlu0 %v10640
        %v10642 = vpop.xlane.xlu0 %10641
        %v10643 = vadd.f32 %v10597, %v10598
        %10644 = vadd.xlane.f32.xlu0 %v10643
        %v10645 = vpop.xlane.xlu0 %10644
        %v10646 = vadd.f32 %v10599, %v10600
        %10647 = vadd.xlane.f32.xlu0 %v10646
        %v10648 = vpop.xlane.xlu0 %10647
        %v10649 = vmul.f32 %v10603, %v6418
        %v10650 = vmul.f32 %v10606, %v6418
        %v10651 = vmul.f32 %v10609, %v6418
        %v10652 = vmul.f32 %v10612, %v6418
        %v10653 = vmul.f32 %v10615, %v6418
        %v10654 = vmul.f32 %v10618, %v6418
        %v10655 = vmul.f32 %v10621, %v6418
        %v10656 = vmul.f32 %v10624, %v6418
        %v10657 = vmul.f32 %v10627, %v6418
        %v10658 = vmul.f32 %v10630, %v6418
        %v10659 = vmul.f32 %v10633, %v6418
        %v10660 = vmul.f32 %v10636, %v6418
        %v10661 = vmul.f32 %v10639, %v6418
        %v10662 = vmul.f32 %v10642, %v6418
        %v10663 = vmul.f32 %v10645, %v6418
        %v10664 = vmul.f32 %v10648, %v6418
        %v10665 = vadd.f32 %v10649, 1e-12
        %v10666 = vadd.f32 %v10650, 1e-12
        %v10667 = vadd.f32 %v10651, 1e-12
        %v10668 = vadd.f32 %v10652, 1e-12
        %v10669 = vadd.f32 %v10653, 1e-12
        %v10670 = vadd.f32 %v10654, 1e-12
        %v10671 = vadd.f32 %v10655, 1e-12
        %v10672 = vadd.f32 %v10656, 1e-12
        %v10673 = vadd.f32 %v10657, 1e-12
        %v10674 = vadd.f32 %v10658, 1e-12
        %v10675 = vadd.f32 %v10659, 1e-12
        %v10676 = vadd.f32 %v10660, 1e-12
        %v10677 = vadd.f32 %v10661, 1e-12
        %v10678 = vadd.f32 %v10662, 1e-12
        %v10679 = vadd.f32 %v10663, 1e-12
        %v10680 = vadd.f32 %v10664, 1e-12
        %v10681 = vrsqrt.pop %v10665
        %v10682 = vrsqrt.pop %v10666
        %v10683 = vrsqrt.pop %v10667
        %v10684 = vrsqrt.pop %v10668
        %v10685 = vrsqrt.pop %v10669
        %v10686 = vrsqrt.pop %v10670
        %v10687 = vrsqrt.pop %v10671
        %v10688 = vrsqrt.pop %v10672
        %v10689 = vrsqrt.pop %v10673
        %v10690 = vrsqrt.pop %v10674
        %v10691 = vrsqrt.pop %v10675
        %v10692 = vrsqrt.pop %v10676
        %v10693 = vrsqrt.pop %v10677
        %v10694 = vrsqrt.pop %v10678
        %v10695 = vrsqrt.pop %v10679
        %v10696 = vrsqrt.pop %v10680
        %v10697 = vmul.f32 %v10537, %v10681
        %v10698 = vmul.f32 %v10538, %v10681
        %v10699 = vmul.f32 %v10539, %v10682
        %v10700 = vmul.f32 %v10540, %v10682
        %v10701 = vmul.f32 %v10541, %v10683
        %v10702 = vmul.f32 %v10542, %v10683
        %v10703 = vmul.f32 %v10543, %v10684
        %v10704 = vmul.f32 %v10544, %v10684
        %v10705 = vmul.f32 %v10545, %v10685
        %v10706 = vmul.f32 %v10546, %v10685
        %v10707 = vmul.f32 %v10547, %v10686
        %v10708 = vmul.f32 %v10548, %v10686
        %v10709 = vmul.f32 %v10549, %v10687
        %v10710 = vmul.f32 %v10550, %v10687
        %v10711 = vmul.f32 %v10551, %v10688
        %v10712 = vmul.f32 %v10552, %v10688
        %v10713 = vmul.f32 %v10553, %v10689
        %v10714 = vmul.f32 %v10554, %v10689
        %v10715 = vmul.f32 %v10555, %v10690
        %v10716 = vmul.f32 %v10556, %v10690
        %v10717 = vmul.f32 %v10557, %v10691
        %v10718 = vmul.f32 %v10558, %v10691
        %v10719 = vmul.f32 %v10559, %v10692
        %v10720 = vmul.f32 %v10560, %v10692
        %v10721 = vmul.f32 %v10561, %v10693
        %v10722 = vmul.f32 %v10562, %v10693
        %v10723 = vmul.f32 %v10563, %v10694
        %v10724 = vmul.f32 %v10564, %v10694
        %v10725 = vmul.f32 %v10565, %v10695
        %v10726 = vmul.f32 %v10566, %v10695
        %v10727 = vmul.f32 %v10567, %v10696
        %v10728 = vmul.f32 %v10568, %v10696
        %v10730 = vlaneseq
        %v10731 = vshrl.u32 %v10730, 7
        %v10732 = vsub.s32 0, %v10731
        %v10733 = vrot.slane %v10471, %v10732
        %v10734 = vlaneseq
        %v10735 = vshrl.u32 %v10734, 7
        %v10736 = vsub.s32 1, %v10735
        %v10737 = vrot.slane %v10471, %v10736
        %v10740 = vmul.f32 %v10733, %v10697
        %v10741 = vmul.f32 %v10737, %v10698
        %v10742 = vmul.f32 %v10733, %v10699
        %v10743 = vmul.f32 %v10737, %v10700
        %v10744 = vmul.f32 %v10733, %v10701
        %v10745 = vmul.f32 %v10737, %v10702
        %v10746 = vmul.f32 %v10733, %v10703
        %v10747 = vmul.f32 %v10737, %v10704
        %v10748 = vmul.f32 %v10733, %v10705
        %v10749 = vmul.f32 %v10737, %v10706
        %v10750 = vmul.f32 %v10733, %v10707
        %v10751 = vmul.f32 %v10737, %v10708
        %v10752 = vmul.f32 %v10733, %v10709
        %v10753 = vmul.f32 %v10737, %v10710
        %v10754 = vmul.f32 %v10733, %v10711
        %v10755 = vmul.f32 %v10737, %v10712
        %v10756 = vmul.f32 %v10733, %v10713
        %v10757 = vmul.f32 %v10737, %v10714
        %v10758 = vmul.f32 %v10733, %v10715
        %v10759 = vmul.f32 %v10737, %v10716
        %v10760 = vmul.f32 %v10733, %v10717
        %v10761 = vmul.f32 %v10737, %v10718
        %v10762 = vmul.f32 %v10733, %v10719
        %v10763 = vmul.f32 %v10737, %v10720
        %v10764 = vmul.f32 %v10733, %v10721
        %v10765 = vmul.f32 %v10737, %v10722
        %v10766 = vmul.f32 %v10733, %v10723
        %v10767 = vmul.f32 %v10737, %v10724
        %v10768 = vmul.f32 %v10733, %v10725
        %v10769 = vmul.f32 %v10737, %v10726
        %v10770 = vmul.f32 %v10733, %v10727
        %v10771 = vmul.f32 %v10737, %v10728
        %v10773 = vlaneseq
        %v10774 = vshrl.u32 %v10773, 7
        %v10775 = vsub.s32 0, %v10774
        %v10776 = vrot.slane %v10472, %v10775
        %v10777 = vlaneseq
        %v10778 = vshrl.u32 %v10777, 7
        %v10779 = vsub.s32 1, %v10778
        %v10780 = vrot.slane %v10472, %v10779
        %v10783 = vadd.f32 %v10740, %v10776
        %v10784 = vadd.f32 %v10741, %v10780
        %v10785 = vadd.f32 %v10742, %v10776
        %v10786 = vadd.f32 %v10743, %v10780
        %v10787 = vadd.f32 %v10744, %v10776
        %v10788 = vadd.f32 %v10745, %v10780
        %v10789 = vadd.f32 %v10746, %v10776
        %v10790 = vadd.f32 %v10747, %v10780
        %v10791 = vadd.f32 %v10748, %v10776
        %v10792 = vadd.f32 %v10749, %v10780
        %v10793 = vadd.f32 %v10750, %v10776
        %v10794 = vadd.f32 %v10751, %v10780
        %v10795 = vadd.f32 %v10752, %v10776
        %v10796 = vadd.f32 %v10753, %v10780
        %v10797 = vadd.f32 %v10754, %v10776
        %v10798 = vadd.f32 %v10755, %v10780
        %v10799 = vadd.f32 %v10756, %v10776
        %v10800 = vadd.f32 %v10757, %v10780
        %v10801 = vadd.f32 %v10758, %v10776
        %v10802 = vadd.f32 %v10759, %v10780
        %v10803 = vadd.f32 %v10760, %v10776
        %v10804 = vadd.f32 %v10761, %v10780
        %v10805 = vadd.f32 %v10762, %v10776
        %v10806 = vadd.f32 %v10763, %v10780
        %v10807 = vadd.f32 %v10764, %v10776
        %v10808 = vadd.f32 %v10765, %v10780
        %v10809 = vadd.f32 %v10766, %v10776
        %v10810 = vadd.f32 %v10767, %v10780
        %v10811 = vadd.f32 %v10768, %v10776
        %v10812 = vadd.f32 %v10769, %v10780
        %v10813 = vadd.f32 %v10770, %v10776
        %v10814 = vadd.f32 %v10771, %v10780
        %10815 = vst [vmem:[#allocation2] sm:$0xff] %v10783
        %10816 = vst [vmem:[#allocation2 + $0x8] sm:$0xff] %v10784
        %10817 = vst [vmem:[#allocation2 + $0x10] sm:$0xff] %v10785
        %10818 = vst [vmem:[#allocation2 + $0x18] sm:$0xff] %v10786
        %10819 = vst [vmem:[#allocation2 + $0x20] sm:$0xff] %v10787
        %10820 = vst [vmem:[#allocation2 + $0x28] sm:$0xff] %v10788
        %10821 = vst [vmem:[#allocation2 + $0x30] sm:$0xff] %v10789
        %10822 = vst [vmem:[#allocation2 + $0x38] sm:$0xff] %v10790
        %10823 = vst [vmem:[#allocation2 + $0x40] sm:$0xff] %v10791
        %10824 = vst [vmem:[#allocation2 + $0x48] sm:$0xff] %v10792
        %10825 = vst [vmem:[#allocation2 + $0x50] sm:$0xff] %v10793
        %10826 = vst [vmem:[#allocation2 + $0x58] sm:$0xff] %v10794
        %10827 = vst [vmem:[#allocation2 + $0x60] sm:$0xff] %v10795
        %10828 = vst [vmem:[#allocation2 + $0x68] sm:$0xff] %v10796
        %10829 = vst [vmem:[#allocation2 + $0x70] sm:$0xff] %v10797
        %10830 = vst [vmem:[#allocation2 + $0x78] sm:$0xff] %v10798
        %10831 = vst [vmem:[#allocation2 + $0x80] sm:$0xff] %v10799
        %10832 = vst [vmem:[#allocation2 + $0x88] sm:$0xff] %v10800
        %10833 = vst [vmem:[#allocation2 + $0x90] sm:$0xff] %v10801
        %10834 = vst [vmem:[#allocation2 + $0x98] sm:$0xff] %v10802
        %10835 = vst [vmem:[#allocation2 + $0xa0] sm:$0xff] %v10803
        %10836 = vst [vmem:[#allocation2 + $0xa8] sm:$0xff] %v10804
        %10837 = vst [vmem:[#allocation2 + $0xb0] sm:$0xff] %v10805
        %10838 = vst [vmem:[#allocation2 + $0xb8] sm:$0xff] %v10806
        %10839 = vst [vmem:[#allocation2 + $0xc0] sm:$0xff] %v10807
        %10840 = vst [vmem:[#allocation2 + $0xc8] sm:$0xff] %v10808
        %10841 = vst [vmem:[#allocation2 + $0xd0] sm:$0xff] %v10809
        %10842 = vst [vmem:[#allocation2 + $0xd8] sm:$0xff] %v10810
        %10843 = vst [vmem:[#allocation2 + $0xe0] sm:$0xff] %v10811
        %10844 = vst [vmem:[#allocation2 + $0xe8] sm:$0xff] %v10812
        %10845 = vst [vmem:[#allocation2 + $0xf0] sm:$0xff] %v10813
        %10846 = vst [vmem:[#allocation2 + $0xf8] sm:$0xff] %v10814
        %p10847 = scmp.eq.s32.totalorder %s49, 1
        // Predicated region
        $region117: #{tpu_custom_call.1} parent=79 // pred_check
          %p10848 = pneg %p10847
        $region118: #{tpu_custom_call.1} parent=79 // pred_check_branch
          %10850 = sbr.rel (%p10848) target = $region120
        $region119: #{tpu_custom_call.1} parent=79 // pred_region
          %10851 = vst [vmem:[%s883] sm:$0xff] %v10783
          %10852 = vst [vmem:[%s883 + $0x8] sm:$0xff] %v10784
          %10853 = vst [vmem:[%s883 + $0x10] sm:$0xff] %v10785
          %10854 = vst [vmem:[%s883 + $0x18] sm:$0xff] %v10786
          %10855 = vst [vmem:[%s883 + $0x20] sm:$0xff] %v10787
          %10856 = vst [vmem:[%s883 + $0x28] sm:$0xff] %v10788
          %10857 = vst [vmem:[%s883 + $0x30] sm:$0xff] %v10789
          %10858 = vst [vmem:[%s883 + $0x38] sm:$0xff] %v10790
          %10859 = vst [vmem:[%s883 + $0x40] sm:$0xff] %v10791
          %10860 = vst [vmem:[%s883 + $0x48] sm:$0xff] %v10792
          %10861 = vst [vmem:[%s883 + $0x50] sm:$0xff] %v10793
          %10862 = vst [vmem:[%s883 + $0x58] sm:$0xff] %v10794
          %10863 = vst [vmem:[%s883 + $0x60] sm:$0xff] %v10795
          %10864 = vst [vmem:[%s883 + $0x68] sm:$0xff] %v10796
          %10865 = vst [vmem:[%s883 + $0x70] sm:$0xff] %v10797
          %10866 = vst [vmem:[%s883 + $0x78] sm:$0xff] %v10798
          %10867 = vst [vmem:[%s883 + $0x80] sm:$0xff] %v10799
          %10868 = vst [vmem:[%s883 + $0x88] sm:$0xff] %v10800
          %10869 = vst [vmem:[%s883 + $0x90] sm:$0xff] %v10801
          %10870 = vst [vmem:[%s883 + $0x98] sm:$0xff] %v10802
          %10871 = vst [vmem:[%s883 + $0xa0] sm:$0xff] %v10803
          %10872 = vst [vmem:[%s883 + $0xa8] sm:$0xff] %v10804
          %10873 = vst [vmem:[%s883 + $0xb0] sm:$0xff] %v10805
          %10874 = vst [vmem:[%s883 + $0xb8] sm:$0xff] %v10806
          %10875 = vst [vmem:[%s883 + $0xc0] sm:$0xff] %v10807
          %10876 = vst [vmem:[%s883 + $0xc8] sm:$0xff] %v10808
          %10877 = vst [vmem:[%s883 + $0xd0] sm:$0xff] %v10809
          %10878 = vst [vmem:[%s883 + $0xd8] sm:$0xff] %v10810
          %10879 = vst [vmem:[%s883 + $0xe0] sm:$0xff] %v10811
          %10880 = vst [vmem:[%s883 + $0xe8] sm:$0xff] %v10812
          %10881 = vst [vmem:[%s883 + $0xf0] sm:$0xff] %v10813
          %10882 = vst [vmem:[%s883 + $0xf8] sm:$0xff] %v10814
        $region120: #{tpu_custom_call.1} parent=79 // pred_fallthru
          _
        %s10883 = sand.u32 %s454, 1
        %s10884 = scalar_lea.sflag [#allocation5], %s10883
        %s10885 = sand.u32 %s454, 1
        %s10886 = smul.addr %s10885, 256
        %s10887 = scalar_lea.vmem [#allocation17], %s10886
        // Predicated region
        $region121: #{tpu_custom_call.1} parent=79 // pred_check
          %p10888 = pneg %p464
        $region122: #{tpu_custom_call.1} parent=79 // pred_check_branch
          %10890 = sbr.rel (%p10888) target = $region124
        $region123: #{tpu_custom_call.1} parent=79 // pred_region
          %s10891 = smul.u32 8, %s48
          %s10893 = ssub.s32 4096, 4096
          %10894 = vsyncadd %s10884, %s10893
          %s10895 = smul.addr %s10891, 4
          %s10896 = smul.addr %s10895, 128
          %s10897 = scalar_lea.hbm %s15, %s10896
          %s10898 = sshll.u32 %s10887, 4
          %s10899 = int_to_ptr.vmem [resolvable:$true] %s10898
          %10904 = dma.vmem_to_hbm [thread:$0]  %s10899, 4096, %s10897, %s10884, 256, 256, 16
        $region124: #{tpu_custom_call.1} parent=79 // pred_fallthru
          _
      $region80: #{tpu_custom_call.1} parent=5 // pred_fallthru
        _
      %p10905 = scmp.le.s32.totalorder 2, %s39
      // Predicated region
      $region125: #{tpu_custom_call.1} parent=5 // pred_check
        %p10906 = pneg %p10905
      $region126: #{tpu_custom_call.1} parent=5 // pred_check_branch
        %10908 = sbr.rel (%p10906) target = $region128
      $region127: #{tpu_custom_call.1} parent=5 // pred_region
        %s10909 = ssub.s32 %s39, 2
        // Predicated region
        $region129: #{tpu_custom_call.1} parent=127 // pred_check
          %p10910 = pneg %p470
        $region130: #{tpu_custom_call.1} parent=127 // pred_check_branch
          %10912 = sbr.rel (%p10910) target = $region132
        $region131: #{tpu_custom_call.1} parent=127 // pred_region
          %s10913 = sand.u32 %s455, 1
          %s10914 = scalar_lea.sflag [#allocation5], %s10913
          %s10915 = sand.u32 %s455, 1
          %s10916 = smul.addr %s10915, 256
          %s10917 = scalar_lea.vmem [#allocation17], %s10916
          %10918 = dma.done %s10914, 4096
        $region132: #{tpu_custom_call.1} parent=127 // pred_fallthru
          _
      $region128: #{tpu_custom_call.1} parent=5 // pred_fallthru
        _
    $region6: #{tpu_custom_call.1} parent=1 // loop_footer
      %s43 = sadd.s32 1, %s39
    $region7: #{tpu_custom_call.1} parent=1 // loop_footer_branch
      %38 = sbr.rel target = $region3
    $region8: #{tpu_custom_call.1} parent=1 // loop_exit
      _
    %10919 = vsyncpa [#allocation4], 1
    %s10920 = scalar_lea.sflag [#allocation4], 1
    %10921 = vsyncpa %s10920, 1
    %10922 = vsyncpa [#allocation7], 1
    %s10923 = scalar_lea.sflag [#allocation7], 1
    %10924 = vsyncpa %s10923, 1
    %10925 = vsyncpa [#allocation10], 1
    %s10926 = scalar_lea.sflag [#allocation10], 1
    %10927 = vsyncpa %s10926, 1
    %10928 = vsyncpa [#allocation13], 1
    %s10929 = scalar_lea.sflag [#allocation13], 1
    %10930 = vsyncpa %s10929, 1
    %10931 = vsyncpa [#allocation16], 1
    %s10932 = scalar_lea.sflag [#allocation16], 1
    %10933 = vsyncpa %s10932, 1
    %10934 = vsyncpa [#allocation5], 1
    %s10935 = scalar_lea.sflag [#allocation5], 1
    %10936 = vsyncpa %s10935, 1

</llo_original>
